<compile_context>
chip_gen: v6e
topology: v6e:2x2x1
jax: 0.10.0
libtpu: 0.0.40
codegen_flags: <defaults>
</compile_context>

<pallas_src>
import jax
import jax.numpy as jnp
import numpy as np
from jax.experimental import pallas as pl
from jax.experimental.pallas import tpu as pltpu

FEATURE_SIZE = 1280   # efficientnet_b0 feature dim with num_classes=0
CONV_CH = 32          # stand-in backbone stem width
IMG_CH = 3
NUM_CLASSES = 3
VIS_IN = 5
KH = KW = 3


# ------------------------------ fused kernel --------------------------------
def fused_kernel(img_ref, vis_ref,
                 wconv_ref, bconv_ref, wproj_ref, bproj_ref,
                 w1, b1, w2, b2, w3, b3,
                 wc1i, wc1v, bc1, wc2, bc2, wc3, bc3,
                 out_ref):
    B, HP, WP, C = img_ref.shape          # zero-padded NHWC image (B, H+2, W+2, C)
    H, W = HP - 2, WP - 2
    HW = H * W

    # ---- backbone stand-in stem: 3x3 'same' conv via 9 shifted-window matmuls
    conv = jnp.zeros((B * HW, CONV_CH), jnp.float32)
    t = 0
    for dh in range(KH):
        for dw in range(KW):
            tap = img_ref[:, dh:dh + H, dw:dw + W, :]            # (B,H,W,C) VMEM window
            conv = conv + jnp.dot(tap.reshape(B * HW, C), wconv_ref[t],
                                  preferred_element_type=jnp.float32)
            t += 1
    conv = jnp.maximum(conv + bconv_ref[...], 0.0)               # (B*HW, 32)

    # ---- global average pool in-kernel (XLU reduce; no HBM averaging matrix)
    gap = jnp.sum(conv.reshape(B, HW, CONV_CH), axis=1) * (1.0 / HW)   # (B, 32)

    # ---- projection to backbone feature size (bf16 weights, f32 accumulation)
    feat = jnp.dot(gap.astype(jnp.bfloat16), wproj_ref[...],
                   preferred_element_type=jnp.float32) + bproj_ref[...]   # (B, 1280)

    # ---- visual_net (Dropout == identity in eval mode) ----------------------
    v = vis_ref[...]                                             # (B, 5)
    h = jnp.maximum(jnp.dot(v, w1[...], preferred_element_type=jnp.float32) + b1[...], 0.0)
    h = jnp.maximum(jnp.dot(h, w2[...], preferred_element_type=jnp.float32) + b2[...], 0.0)
    vfeat = jnp.dot(h, w3[...], preferred_element_type=jnp.float32) + b3[...]   # (B, 32)

    # ---- classifier; torch.cat([feat, vfeat], 1) @ Wc1 as a split matmul ----
    c = (jnp.dot(feat.astype(jnp.bfloat16), wc1i[...], preferred_element_type=jnp.float32)
         + jnp.dot(vfeat.astype(jnp.bfloat16), wc1v[...], preferred_element_type=jnp.float32)
         + bc1[...])
    c = jnp.maximum(c, 0.0)                                      # (B, 256)
    c = jnp.maximum(jnp.dot(c.astype(jnp.bfloat16), wc2[...],
                            preferred_element_type=jnp.float32) + bc2[...], 0.0)  # (B, 128)
    out_ref[...] = (jnp.dot(c, wc3[...], preferred_element_type=jnp.float32)
                    + bc3[...])                                  # (B, NUM_CLASSES)


def fused_forward(img_padded, vis, params):
    B = img_padded.shape[0]
    inputs = (img_padded, vis) + tuple(params)
    return pl.pallas_call(
        fused_kernel,
        out_shape=jax.ShapeDtypeStruct((B, NUM_CLASSES), jnp.float32),
        in_specs=[pl.BlockSpec(memory_space=pltpu.MemorySpace.VMEM)] * len(inputs),
        out_specs=pl.BlockSpec(memory_space=pltpu.MemorySpace.VMEM),
    )(*inputs)


# --------------------------------- glue -------------------------------------
def linear_init(key, fan_in, fan_out):
    """PyTorch nn.Linear default init: U(-1/sqrt(fan_in), 1/sqrt(fan_in))."""
    kw, kb = jax.random.split(key)
    bound = 1.0 / jnp.sqrt(float(fan_in))
    w = jax.random.uniform(kw, (fan_in, fan_out), jnp.float32, -bound, bound)
    b = jax.random.uniform(kb, (1, fan_out), jnp.float32, -bound, bound)
    return w, b


def make_params(key):
    ks = jax.random.split(key, 8)
    # backbone stand-in
    wconv, bconv = linear_init(ks[0], KH * KW * IMG_CH, CONV_CH)
    wconv = wconv.reshape(KH * KW, IMG_CH, CONV_CH)              # per-tap chunks
    wproj, bproj = linear_init(ks[1], CONV_CH, FEATURE_SIZE)
    # visual_net
    w1, b1 = linear_init(ks[2], VIS_IN, 32)
    w2, b2 = linear_init(ks[3], 32, 64)
    w3, b3 = linear_init(ks[4], 64, 32)
    # classifier (first layer split into image / visual halves of the concat)
    wc1, bc1 = linear_init(ks[5], FEATURE_SIZE + 32, 256)
    wc2, bc2 = linear_init(ks[6], 256, 128)
    wc3, bc3 = linear_init(ks[7], 128, NUM_CLASSES)
    # big weights shipped as bf16 (f32 accumulation inside the kernel)
    wproj_bf = wproj.astype(jnp.bfloat16)
    wc1i = wc1[:FEATURE_SIZE].astype(jnp.bfloat16)
    wc1v = wc1[FEATURE_SIZE:].astype(jnp.bfloat16)
    wc2_bf = wc2.astype(jnp.bfloat16)
    return (wconv, bconv, wproj_bf, bproj,
            w1, b1, w2, b2, w3, b3,
            wc1i, wc1v, bc1, wc2_bf, bc2, wc3, bc3)


@jax.jit
def enhanced_crop_classifier(images_nchw, visual_features, params):
    # NCHW -> NHWC, zero-pad spatially for the 'same' 3x3 stem; kernel does the rest.
    x = jnp.transpose(images_nchw, (0, 2, 3, 1))
    xp = jnp.pad(x, ((0, 0), (1, 1), (1, 1), (0, 0)))
    return fused_forward(xp, visual_features, params)


def reference_forward(images_nchw, visual_features, params):
    """Pure-JAX f32 reference using the same (already bf16-quantized) weights."""
    (wconv, bconv, wproj, bproj, w1, b1, w2, b2, w3, b3,
     wc1i, wc1v, bc1, wc2, bc2, wc3, bc3) = jax.tree_util.tree_map(
        lambda a: a.astype(jnp.float32), params)
    B, C, H, W = images_nchw.shape
    x = jnp.transpose(images_nchw, (0, 2, 3, 1))
    xp = jnp.pad(x, ((0, 0), (1, 1), (1, 1), (0, 0)))
    conv = jnp.zeros((B, H, W, CONV_CH), jnp.float32)
    t = 0
    for dh in range(KH):
        for dw in range(KW):
            tap = xp[:, dh:dh + H, dw:dw + W, :]
            conv = conv + jnp.einsum('bhwc,co->bhwo', tap, wconv[t])
            t += 1
    conv = jnp.maximum(conv + bconv, 0.0)
    gap = conv.mean(axis=(1, 2))
    feat = gap @ wproj + bproj
    h = jnp.maximum(visual_features @ w1 + b1, 0.0)
    h = jnp.maximum(h @ w2 + b2, 0.0)
    vfeat = h @ w3 + b3
    c = jnp.maximum(feat @ wc1i + vfeat @ wc1v + bc1, 0.0)
    c = jnp.maximum(c @ wc2 + bc2, 0.0)
    return c @ wc3 + bc3


if __name__ == "__main__":
    key = jax.random.PRNGKey(0)
    k_img, k_vis, k_par = jax.random.split(key, 3)

    B, C, H, W = 2, IMG_CH, 16, 16
    images = jax.random.normal(k_img, (B, C, H, W), jnp.float32)         # NCHW like PyTorch
    visual_features = jax.random.normal(k_vis, (B, VIS_IN), jnp.float32)

    params = make_params(k_par)

    out = enhanced_crop_classifier(images, visual_features, params)
    out = jax.block_until_ready(out)
    assert out.shape == (B, NUM_CLASSES) and out.dtype == jnp.float32

    ref = reference_forward(images, visual_features, params)
    np.testing.assert_allclose(np.asarray(out), np.asarray(ref), atol=5e-2, rtol=5e-2)

    print("KERNEL_OK")
</pallas_src>

<mosaic_0001>
module attributes {stable_mosaic.version = 11 : i64} {
  func.func @fused_kernel(%arg0: memref<2x18x18x3xf32, #tpu.memory_space<vmem>>, %arg1: memref<2x5xf32, #tpu.memory_space<vmem>>, %arg2: memref<9x3x32xf32, #tpu.memory_space<vmem>>, %arg3: memref<1x32xf32, #tpu.memory_space<vmem>>, %arg4: memref<32x1280xbf16, #tpu.memory_space<vmem>>, %arg5: memref<1x1280xf32, #tpu.memory_space<vmem>>, %arg6: memref<5x32xf32, #tpu.memory_space<vmem>>, %arg7: memref<1x32xf32, #tpu.memory_space<vmem>>, %arg8: memref<32x64xf32, #tpu.memory_space<vmem>>, %arg9: memref<1x64xf32, #tpu.memory_space<vmem>>, %arg10: memref<64x32xf32, #tpu.memory_space<vmem>>, %arg11: memref<1x32xf32, #tpu.memory_space<vmem>>, %arg12: memref<1280x256xbf16, #tpu.memory_space<vmem>>, %arg13: memref<32x256xbf16, #tpu.memory_space<vmem>>, %arg14: memref<1x256xf32, #tpu.memory_space<vmem>>, %arg15: memref<256x128xbf16, #tpu.memory_space<vmem>>, %arg16: memref<1x128xf32, #tpu.memory_space<vmem>>, %arg17: memref<128x3xf32, #tpu.memory_space<vmem>>, %arg18: memref<1x3xf32, #tpu.memory_space<vmem>>, %arg19: memref<2x3xf32, #tpu.memory_space<vmem>>) attributes {dimension_semantics = [], scalar_prefetch = 0 : i64, scratch_operands = 0 : i64, tpu.core_type = #tpu.core_type<tc>} {
    %cst = arith.constant 0.000000e+00 : f32
    %0 = vector.broadcast %cst : f32 to vector<512x32xf32>
    %c0 = arith.constant 0 : index
    %c0_0 = arith.constant 0 : index
    %c0_1 = arith.constant 0 : index
    %c0_2 = arith.constant 0 : index
    %1 = vector.load %arg0[%c0, %c0_0, %c0_1, %c0_2] : memref<2x18x18x3xf32, #tpu.memory_space<vmem>>, vector<2x16x16x3xf32>
    %2 = vector.shape_cast %1 : vector<2x16x16x3xf32> to vector<512x3xf32>
    %c0_3 = arith.constant 0 : index
    %c0_4 = arith.constant 0 : index
    %c0_5 = arith.constant 0 : index
    %3 = vector.load %arg2[%c0_3, %c0_4, %c0_5] : memref<9x3x32xf32, #tpu.memory_space<vmem>>, vector<1x3x32xf32>
    %4 = vector.shape_cast %3 : vector<1x3x32xf32> to vector<3x32xf32>
    %cst_6 = arith.constant dense<0.000000e+00> : vector<512x32xf32>
    %5 = tpu.matmul %2, %4, %cst_6 {dimension_numbers = #tpu.dot_dimension_numbers<[1], [0], [0], [1], [0, 0, 1, 1], [], []>} : vector<512x3xf32>, vector<3x32xf32>, vector<512x32xf32> -> vector<512x32xf32>
    %6 = arith.addf %0, %5 : vector<512x32xf32>
    %c0_7 = arith.constant 0 : index
    %c0_8 = arith.constant 0 : index
    %c1 = arith.constant 1 : index
    %c0_9 = arith.constant 0 : index
    %7 = vector.load %arg0[%c0_7, %c0_8, %c1, %c0_9] : memref<2x18x18x3xf32, #tpu.memory_space<vmem>>, vector<2x16x16x3xf32>
    %8 = vector.shape_cast %7 : vector<2x16x16x3xf32> to vector<512x3xf32>
    %c1_10 = arith.constant 1 : index
    %c0_11 = arith.constant 0 : index
    %c0_12 = arith.constant 0 : index
    %9 = vector.load %arg2[%c1_10, %c0_11, %c0_12] : memref<9x3x32xf32, #tpu.memory_space<vmem>>, vector<1x3x32xf32>
    %10 = vector.shape_cast %9 : vector<1x3x32xf32> to vector<3x32xf32>
    %cst_13 = arith.constant dense<0.000000e+00> : vector<512x32xf32>
    %11 = tpu.matmul %8, %10, %cst_13 {dimension_numbers = #tpu.dot_dimension_numbers<[1], [0], [0], [1], [0, 0, 1, 1], [], []>} : vector<512x3xf32>, vector<3x32xf32>, vector<512x32xf32> -> vector<512x32xf32>
    %12 = arith.addf %6, %11 : vector<512x32xf32>
    %c0_14 = arith.constant 0 : index
    %c0_15 = arith.constant 0 : index
    %c2 = arith.constant 2 : index
    %c0_16 = arith.constant 0 : index
    %13 = vector.load %arg0[%c0_14, %c0_15, %c2, %c0_16] : memref<2x18x18x3xf32, #tpu.memory_space<vmem>>, vector<2x16x16x3xf32>
    %14 = vector.shape_cast %13 : vector<2x16x16x3xf32> to vector<512x3xf32>
    %c2_17 = arith.constant 2 : index
    %c0_18 = arith.constant 0 : index
    %c0_19 = arith.constant 0 : index
    %15 = vector.load %arg2[%c2_17, %c0_18, %c0_19] : memref<9x3x32xf32, #tpu.memory_space<vmem>>, vector<1x3x32xf32>
    %16 = vector.shape_cast %15 : vector<1x3x32xf32> to vector<3x32xf32>
    %cst_20 = arith.constant dense<0.000000e+00> : vector<512x32xf32>
    %17 = tpu.matmul %14, %16, %cst_20 {dimension_numbers = #tpu.dot_dimension_numbers<[1], [0], [0], [1], [0, 0, 1, 1], [], []>} : vector<512x3xf32>, vector<3x32xf32>, vector<512x32xf32> -> vector<512x32xf32>
    %18 = arith.addf %12, %17 : vector<512x32xf32>
    %c0_21 = arith.constant 0 : index
    %c1_22 = arith.constant 1 : index
    %c0_23 = arith.constant 0 : index
    %c0_24 = arith.constant 0 : index
    %19 = vector.load %arg0[%c0_21, %c1_22, %c0_23, %c0_24] : memref<2x18x18x3xf32, #tpu.memory_space<vmem>>, vector<2x16x16x3xf32>
    %20 = vector.shape_cast %19 : vector<2x16x16x3xf32> to vector<512x3xf32>
    %c3 = arith.constant 3 : index
    %c0_25 = arith.constant 0 : index
    %c0_26 = arith.constant 0 : index
    %21 = vector.load %arg2[%c3, %c0_25, %c0_26] : memref<9x3x32xf32, #tpu.memory_space<vmem>>, vector<1x3x32xf32>
    %22 = vector.shape_cast %21 : vector<1x3x32xf32> to vector<3x32xf32>
    %cst_27 = arith.constant dense<0.000000e+00> : vector<512x32xf32>
    %23 = tpu.matmul %20, %22, %cst_27 {dimension_numbers = #tpu.dot_dimension_numbers<[1], [0], [0], [1], [0, 0, 1, 1], [], []>} : vector<512x3xf32>, vector<3x32xf32>, vector<512x32xf32> -> vector<512x32xf32>
    %24 = arith.addf %18, %23 : vector<512x32xf32>
    %c0_28 = arith.constant 0 : index
    %c1_29 = arith.constant 1 : index
    %c1_30 = arith.constant 1 : index
    %c0_31 = arith.constant 0 : index
    %25 = vector.load %arg0[%c0_28, %c1_29, %c1_30, %c0_31] : memref<2x18x18x3xf32, #tpu.memory_space<vmem>>, vector<2x16x16x3xf32>
    %26 = vector.shape_cast %25 : vector<2x16x16x3xf32> to vector<512x3xf32>
    %c4 = arith.constant 4 : index
    %c0_32 = arith.constant 0 : index
    %c0_33 = arith.constant 0 : index
    %27 = vector.load %arg2[%c4, %c0_32, %c0_33] : memref<9x3x32xf32, #tpu.memory_space<vmem>>, vector<1x3x32xf32>
    %28 = vector.shape_cast %27 : vector<1x3x32xf32> to vector<3x32xf32>
    %cst_34 = arith.constant dense<0.000000e+00> : vector<512x32xf32>
    %29 = tpu.matmul %26, %28, %cst_34 {dimension_numbers = #tpu.dot_dimension_numbers<[1], [0], [0], [1], [0, 0, 1, 1], [], []>} : vector<512x3xf32>, vector<3x32xf32>, vector<512x32xf32> -> vector<512x32xf32>
    %30 = arith.addf %24, %29 : vector<512x32xf32>
    %c0_35 = arith.constant 0 : index
    %c1_36 = arith.constant 1 : index
    %c2_37 = arith.constant 2 : index
    %c0_38 = arith.constant 0 : index
    %31 = vector.load %arg0[%c0_35, %c1_36, %c2_37, %c0_38] : memref<2x18x18x3xf32, #tpu.memory_space<vmem>>, vector<2x16x16x3xf32>
    %32 = vector.shape_cast %31 : vector<2x16x16x3xf32> to vector<512x3xf32>
    %c5 = arith.constant 5 : index
    %c0_39 = arith.constant 0 : index
    %c0_40 = arith.constant 0 : index
    %33 = vector.load %arg2[%c5, %c0_39, %c0_40] : memref<9x3x32xf32, #tpu.memory_space<vmem>>, vector<1x3x32xf32>
    %34 = vector.shape_cast %33 : vector<1x3x32xf32> to vector<3x32xf32>
    %cst_41 = arith.constant dense<0.000000e+00> : vector<512x32xf32>
    %35 = tpu.matmul %32, %34, %cst_41 {dimension_numbers = #tpu.dot_dimension_numbers<[1], [0], [0], [1], [0, 0, 1, 1], [], []>} : vector<512x3xf32>, vector<3x32xf32>, vector<512x32xf32> -> vector<512x32xf32>
    %36 = arith.addf %30, %35 : vector<512x32xf32>
    %c0_42 = arith.constant 0 : index
    %c2_43 = arith.constant 2 : index
    %c0_44 = arith.constant 0 : index
    %c0_45 = arith.constant 0 : index
    %37 = vector.load %arg0[%c0_42, %c2_43, %c0_44, %c0_45] : memref<2x18x18x3xf32, #tpu.memory_space<vmem>>, vector<2x16x16x3xf32>
    %38 = vector.shape_cast %37 : vector<2x16x16x3xf32> to vector<512x3xf32>
    %c6 = arith.constant 6 : index
    %c0_46 = arith.constant 0 : index
    %c0_47 = arith.constant 0 : index
    %39 = vector.load %arg2[%c6, %c0_46, %c0_47] : memref<9x3x32xf32, #tpu.memory_space<vmem>>, vector<1x3x32xf32>
    %40 = vector.shape_cast %39 : vector<1x3x32xf32> to vector<3x32xf32>
    %cst_48 = arith.constant dense<0.000000e+00> : vector<512x32xf32>
    %41 = tpu.matmul %38, %40, %cst_48 {dimension_numbers = #tpu.dot_dimension_numbers<[1], [0], [0], [1], [0, 0, 1, 1], [], []>} : vector<512x3xf32>, vector<3x32xf32>, vector<512x32xf32> -> vector<512x32xf32>
    %42 = arith.addf %36, %41 : vector<512x32xf32>
    %c0_49 = arith.constant 0 : index
    %c2_50 = arith.constant 2 : index
    %c1_51 = arith.constant 1 : index
    %c0_52 = arith.constant 0 : index
    %43 = vector.load %arg0[%c0_49, %c2_50, %c1_51, %c0_52] : memref<2x18x18x3xf32, #tpu.memory_space<vmem>>, vector<2x16x16x3xf32>
    %44 = vector.shape_cast %43 : vector<2x16x16x3xf32> to vector<512x3xf32>
    %c7 = arith.constant 7 : index
    %c0_53 = arith.constant 0 : index
    %c0_54 = arith.constant 0 : index
    %45 = vector.load %arg2[%c7, %c0_53, %c0_54] : memref<9x3x32xf32, #tpu.memory_space<vmem>>, vector<1x3x32xf32>
    %46 = vector.shape_cast %45 : vector<1x3x32xf32> to vector<3x32xf32>
    %cst_55 = arith.constant dense<0.000000e+00> : vector<512x32xf32>
    %47 = tpu.matmul %44, %46, %cst_55 {dimension_numbers = #tpu.dot_dimension_numbers<[1], [0], [0], [1], [0, 0, 1, 1], [], []>} : vector<512x3xf32>, vector<3x32xf32>, vector<512x32xf32> -> vector<512x32xf32>
    %48 = arith.addf %42, %47 : vector<512x32xf32>
    %c0_56 = arith.constant 0 : index
    %c2_57 = arith.constant 2 : index
    %c2_58 = arith.constant 2 : index
    %c0_59 = arith.constant 0 : index
    %49 = vector.load %arg0[%c0_56, %c2_57, %c2_58, %c0_59] : memref<2x18x18x3xf32, #tpu.memory_space<vmem>>, vector<2x16x16x3xf32>
    %50 = vector.shape_cast %49 : vector<2x16x16x3xf32> to vector<512x3xf32>
    %c8 = arith.constant 8 : index
    %c0_60 = arith.constant 0 : index
    %c0_61 = arith.constant 0 : index
    %51 = vector.load %arg2[%c8, %c0_60, %c0_61] : memref<9x3x32xf32, #tpu.memory_space<vmem>>, vector<1x3x32xf32>
    %52 = vector.shape_cast %51 : vector<1x3x32xf32> to vector<3x32xf32>
    %cst_62 = arith.constant dense<0.000000e+00> : vector<512x32xf32>
    %53 = tpu.matmul %50, %52, %cst_62 {dimension_numbers = #tpu.dot_dimension_numbers<[1], [0], [0], [1], [0, 0, 1, 1], [], []>} : vector<512x3xf32>, vector<3x32xf32>, vector<512x32xf32> -> vector<512x32xf32>
    %54 = arith.addf %48, %53 : vector<512x32xf32>
    %c0_63 = arith.constant 0 : index
    %c0_64 = arith.constant 0 : index
    %55 = vector.load %arg3[%c0_63, %c0_64] : memref<1x32xf32, #tpu.memory_space<vmem>>, vector<1x32xf32>
    %56 = vector.broadcast %55 : vector<1x32xf32> to vector<512x32xf32>
    %57 = arith.addf %54, %56 : vector<512x32xf32>
    %cst_65 = arith.constant 0.000000e+00 : f32
    %58 = vector.broadcast %cst_65 : f32 to vector<512x32xf32>
    %59 = arith.maximumf %57, %58 : vector<512x32xf32>
    %60 = vector.shape_cast %59 : vector<512x32xf32> to vector<2x256x32xf32>
    %cst_66 = arith.constant dense<0.000000e+00> : vector<2x32xf32>
    %61 = vector.multi_reduction <add>, %60, %cst_66 [1] : vector<2x256x32xf32> to vector<2x32xf32>
    %cst_67 = arith.constant 3.906250e-03 : f32
    %62 = vector.broadcast %cst_67 : f32 to vector<2x32xf32>
    %63 = arith.mulf %61, %62 : vector<2x32xf32>
    %64 = arith.truncf %63 : vector<2x32xf32> to vector<2x32xbf16>
    %c0_68 = arith.constant 0 : index
    %c0_69 = arith.constant 0 : index
    %65 = vector.load %arg4[%c0_68, %c0_69] : memref<32x1280xbf16, #tpu.memory_space<vmem>>, vector<32x1280xbf16>
    %cst_70 = arith.constant dense<0.000000e+00> : vector<2x1280xf32>
    %66 = tpu.matmul %64, %65, %cst_70 {dimension_numbers = #tpu.dot_dimension_numbers<[1], [0], [0], [1], [0, 0, 1, 1], [], []>} : vector<2x32xbf16>, vector<32x1280xbf16>, vector<2x1280xf32> -> vector<2x1280xf32>
    %c0_71 = arith.constant 0 : index
    %c0_72 = arith.constant 0 : index
    %67 = vector.load %arg5[%c0_71, %c0_72] : memref<1x1280xf32, #tpu.memory_space<vmem>>, vector<1x1280xf32>
    %68 = vector.broadcast %67 : vector<1x1280xf32> to vector<2x1280xf32>
    %69 = arith.addf %66, %68 : vector<2x1280xf32>
    %c0_73 = arith.constant 0 : index
    %c0_74 = arith.constant 0 : index
    %70 = vector.load %arg1[%c0_73, %c0_74] : memref<2x5xf32, #tpu.memory_space<vmem>>, vector<2x5xf32>
    %c0_75 = arith.constant 0 : index
    %c0_76 = arith.constant 0 : index
    %71 = vector.load %arg6[%c0_75, %c0_76] : memref<5x32xf32, #tpu.memory_space<vmem>>, vector<5x32xf32>
    %cst_77 = arith.constant dense<0.000000e+00> : vector<2x32xf32>
    %72 = tpu.matmul %70, %71, %cst_77 {dimension_numbers = #tpu.dot_dimension_numbers<[1], [0], [0], [1], [0, 0, 1, 1], [], []>} : vector<2x5xf32>, vector<5x32xf32>, vector<2x32xf32> -> vector<2x32xf32>
    %c0_78 = arith.constant 0 : index
    %c0_79 = arith.constant 0 : index
    %73 = vector.load %arg7[%c0_78, %c0_79] : memref<1x32xf32, #tpu.memory_space<vmem>>, vector<1x32xf32>
    %74 = vector.broadcast %73 : vector<1x32xf32> to vector<2x32xf32>
    %75 = arith.addf %72, %74 : vector<2x32xf32>
    %cst_80 = arith.constant 0.000000e+00 : f32
    %76 = vector.broadcast %cst_80 : f32 to vector<2x32xf32>
    %77 = arith.maximumf %75, %76 : vector<2x32xf32>
    %c0_81 = arith.constant 0 : index
    %c0_82 = arith.constant 0 : index
    %78 = vector.load %arg8[%c0_81, %c0_82] : memref<32x64xf32, #tpu.memory_space<vmem>>, vector<32x64xf32>
    %cst_83 = arith.constant dense<0.000000e+00> : vector<2x64xf32>
    %79 = tpu.matmul %77, %78, %cst_83 {dimension_numbers = #tpu.dot_dimension_numbers<[1], [0], [0], [1], [0, 0, 1, 1], [], []>} : vector<2x32xf32>, vector<32x64xf32>, vector<2x64xf32> -> vector<2x64xf32>
    %c0_84 = arith.constant 0 : index
    %c0_85 = arith.constant 0 : index
    %80 = vector.load %arg9[%c0_84, %c0_85] : memref<1x64xf32, #tpu.memory_space<vmem>>, vector<1x64xf32>
    %81 = vector.broadcast %80 : vector<1x64xf32> to vector<2x64xf32>
    %82 = arith.addf %79, %81 : vector<2x64xf32>
    %cst_86 = arith.constant 0.000000e+00 : f32
    %83 = vector.broadcast %cst_86 : f32 to vector<2x64xf32>
    %84 = arith.maximumf %82, %83 : vector<2x64xf32>
    %c0_87 = arith.constant 0 : index
    %c0_88 = arith.constant 0 : index
    %85 = vector.load %arg10[%c0_87, %c0_88] : memref<64x32xf32, #tpu.memory_space<vmem>>, vector<64x32xf32>
    %cst_89 = arith.constant dense<0.000000e+00> : vector<2x32xf32>
    %86 = tpu.matmul %84, %85, %cst_89 {dimension_numbers = #tpu.dot_dimension_numbers<[1], [0], [0], [1], [0, 0, 1, 1], [], []>} : vector<2x64xf32>, vector<64x32xf32>, vector<2x32xf32> -> vector<2x32xf32>
    %c0_90 = arith.constant 0 : index
    %c0_91 = arith.constant 0 : index
    %87 = vector.load %arg11[%c0_90, %c0_91] : memref<1x32xf32, #tpu.memory_space<vmem>>, vector<1x32xf32>
    %88 = vector.broadcast %87 : vector<1x32xf32> to vector<2x32xf32>
    %89 = arith.addf %86, %88 : vector<2x32xf32>
    %90 = arith.truncf %69 : vector<2x1280xf32> to vector<2x1280xbf16>
    %c0_92 = arith.constant 0 : index
    %c0_93 = arith.constant 0 : index
    %91 = vector.load %arg12[%c0_92, %c0_93] : memref<1280x256xbf16, #tpu.memory_space<vmem>>, vector<1280x256xbf16>
    %cst_94 = arith.constant dense<0.000000e+00> : vector<2x256xf32>
    %92 = tpu.matmul %90, %91, %cst_94 {dimension_numbers = #tpu.dot_dimension_numbers<[1], [0], [0], [1], [0, 0, 1, 1], [], []>} : vector<2x1280xbf16>, vector<1280x256xbf16>, vector<2x256xf32> -> vector<2x256xf32>
    %93 = arith.truncf %89 : vector<2x32xf32> to vector<2x32xbf16>
    %c0_95 = arith.constant 0 : index
    %c0_96 = arith.constant 0 : index
    %94 = vector.load %arg13[%c0_95, %c0_96] : memref<32x256xbf16, #tpu.memory_space<vmem>>, vector<32x256xbf16>
    %cst_97 = arith.constant dense<0.000000e+00> : vector<2x256xf32>
    %95 = tpu.matmul %93, %94, %cst_97 {dimension_numbers = #tpu.dot_dimension_numbers<[1], [0], [0], [1], [0, 0, 1, 1], [], []>} : vector<2x32xbf16>, vector<32x256xbf16>, vector<2x256xf32> -> vector<2x256xf32>
    %96 = arith.addf %92, %95 : vector<2x256xf32>
    %c0_98 = arith.constant 0 : index
    %c0_99 = arith.constant 0 : index
    %97 = vector.load %arg14[%c0_98, %c0_99] : memref<1x256xf32, #tpu.memory_space<vmem>>, vector<1x256xf32>
    %98 = vector.broadcast %97 : vector<1x256xf32> to vector<2x256xf32>
    %99 = arith.addf %96, %98 : vector<2x256xf32>
    %cst_100 = arith.constant 0.000000e+00 : f32
    %100 = vector.broadcast %cst_100 : f32 to vector<2x256xf32>
    %101 = arith.maximumf %99, %100 : vector<2x256xf32>
    %102 = arith.truncf %101 : vector<2x256xf32> to vector<2x256xbf16>
    %c0_101 = arith.constant 0 : index
    %c0_102 = arith.constant 0 : index
    %103 = vector.load %arg15[%c0_101, %c0_102] : memref<256x128xbf16, #tpu.memory_space<vmem>>, vector<256x128xbf16>
    %cst_103 = arith.constant dense<0.000000e+00> : vector<2x128xf32>
    %104 = tpu.matmul %102, %103, %cst_103 {dimension_numbers = #tpu.dot_dimension_numbers<[1], [0], [0], [1], [0, 0, 1, 1], [], []>} : vector<2x256xbf16>, vector<256x128xbf16>, vector<2x128xf32> -> vector<2x128xf32>
    %c0_104 = arith.constant 0 : index
    %c0_105 = arith.constant 0 : index
    %105 = vector.load %arg16[%c0_104, %c0_105] : memref<1x128xf32, #tpu.memory_space<vmem>>, vector<1x128xf32>
    %106 = vector.broadcast %105 : vector<1x128xf32> to vector<2x128xf32>
    %107 = arith.addf %104, %106 : vector<2x128xf32>
    %cst_106 = arith.constant 0.000000e+00 : f32
    %108 = vector.broadcast %cst_106 : f32 to vector<2x128xf32>
    %109 = arith.maximumf %107, %108 : vector<2x128xf32>
    %c0_107 = arith.constant 0 : index
    %c0_108 = arith.constant 0 : index
    %110 = vector.load %arg17[%c0_107, %c0_108] : memref<128x3xf32, #tpu.memory_space<vmem>>, vector<128x3xf32>
    %cst_109 = arith.constant dense<0.000000e+00> : vector<2x3xf32>
    %111 = tpu.matmul %109, %110, %cst_109 {dimension_numbers = #tpu.dot_dimension_numbers<[1], [0], [0], [1], [0, 0, 1, 1], [], []>} : vector<2x128xf32>, vector<128x3xf32>, vector<2x3xf32> -> vector<2x3xf32>
    %c0_110 = arith.constant 0 : index
    %c0_111 = arith.constant 0 : index
    %112 = vector.load %arg18[%c0_110, %c0_111] : memref<1x3xf32, #tpu.memory_space<vmem>>, vector<1x3xf32>
    %113 = vector.broadcast %112 : vector<1x3xf32> to vector<2x3xf32>
    %114 = arith.addf %111, %113 : vector<2x3xf32>
    %c0_112 = arith.constant 0 : index
    %c0_113 = arith.constant 0 : index
    %115 = vector.load %arg19[%c0_112, %c0_113] : memref<2x3xf32, #tpu.memory_space<vmem>>, vector<2x3xf32>
    tpu.vector_store %arg19[%c0_112, %c0_113], %114 {strides = array<i32>} : memref<2x3xf32, #tpu.memory_space<vmem>>, vector<2x3xf32>,
    return
  }
}

</mosaic_0001>

<llo_original>
// kernel: enhanced_crop_classifier.1
$region0: #{enhanced_crop_classifier.1}
  #allocation0 [shape = 'u32[]', space=smem, size = 0x4, offset = 0x4, fixed_abs, tag = 'smem constant byte address 0x4 - core index']
  #allocation1 [shape = 'u32[144,128]{1,0:T(1,128)}', space=vmem, size = 0x12000, scoped, tag = 'internal scratch']
  %s0 = inlined_call_operand.vmem [shape: f32[2,18,18,3], index: 0, kind: input, shape index: {}]
  %s1 = inlined_call_operand.vmem [shape: f32[2,5], index: 1, kind: input, shape index: {}]
  %s2 = inlined_call_operand.vmem [shape: f32[9,3,32], index: 2, kind: input, shape index: {}]
  %s3 = inlined_call_operand.vmem [shape: f32[1,32], index: 3, kind: input, shape index: {}]
  %s4 = inlined_call_operand.vmem [shape: bf16[32,1280], index: 4, kind: input, shape index: {}]
  %s5 = inlined_call_operand.vmem [shape: f32[1,1280], index: 5, kind: input, shape index: {}]
  %s6 = inlined_call_operand.vmem [shape: f32[5,32], index: 6, kind: input, shape index: {}]
  %s7 = inlined_call_operand.vmem [shape: f32[1,32], index: 7, kind: input, shape index: {}]
  %s8 = inlined_call_operand.vmem [shape: f32[32,64], index: 8, kind: input, shape index: {}]
  %s9 = inlined_call_operand.vmem [shape: f32[1,64], index: 9, kind: input, shape index: {}]
  %s10 = inlined_call_operand.vmem [shape: f32[64,32], index: 10, kind: input, shape index: {}]
  %s11 = inlined_call_operand.vmem [shape: f32[1,32], index: 11, kind: input, shape index: {}]
  %s12 = inlined_call_operand.vmem [shape: bf16[1280,256], index: 12, kind: input, shape index: {}]
  %s13 = inlined_call_operand.vmem [shape: bf16[32,256], index: 13, kind: input, shape index: {}]
  %s14 = inlined_call_operand.vmem [shape: f32[1,256], index: 14, kind: input, shape index: {}]
  %s15 = inlined_call_operand.vmem [shape: bf16[256,128], index: 15, kind: input, shape index: {}]
  %s16 = inlined_call_operand.vmem [shape: f32[1,128], index: 16, kind: input, shape index: {}]
  %s17 = inlined_call_operand.vmem [shape: f32[128,3], index: 17, kind: input, shape index: {}]
  %s18 = inlined_call_operand.vmem [shape: f32[1,3], index: 18, kind: input, shape index: {}]
  %s19 = inlined_call_operand.hbm [shape: f32[2,3], index: 19, kind: output, shape index: {}]
  %s20 = sld [smem:[#allocation0]]
  $region86: #{enhanced_crop_classifier.1} parent=0
    _
  %s22 = ssub.s32 1, %s20
  %s23 = scalar_select 0, %s22, %s20
  $region1: #{enhanced_crop_classifier.1} parent=0
    #allocation2 [shape = 'u8[1024]{0}', space=vmem, size = 0x400, scoped, tag = 'output window, operand 0, single buffered']
    #allocation3 [shape = 's32[1]{0}', space=sflag, size = 0x4, scoped, tag = 'scoped memory for enhanced_crop_classifier.1']
    %24 = vsyncpa [#allocation3], 0
    // Predicated region
    $region2: #{enhanced_crop_classifier.1} parent=1 // pred_check
      _
    $region3: #{enhanced_crop_classifier.1} parent=1 // pred_check_branch
      %26 = sbr.rel (0) target = $region5
    $region4: #{enhanced_crop_classifier.1} parent=1 // pred_region
      _
    $region5: #{enhanced_crop_classifier.1} parent=1 // pred_fallthru
      _
    // Predicated region
    $region6: #{enhanced_crop_classifier.1} parent=1 // pred_check
      _
    $region7: #{enhanced_crop_classifier.1} parent=1 // pred_check_branch
      %28 = sbr.rel (0) target = $region9
    $region8: #{enhanced_crop_classifier.1} parent=1 // pred_region
      _
    $region9: #{enhanced_crop_classifier.1} parent=1 // pred_fallthru
      _
    // Predicated region
    $region10: #{enhanced_crop_classifier.1} parent=1 // pred_check
      _
    $region11: #{enhanced_crop_classifier.1} parent=1 // pred_check_branch
      %30 = sbr.rel (0) target = $region13
    $region12: #{enhanced_crop_classifier.1} parent=1 // pred_region
      _
    $region13: #{enhanced_crop_classifier.1} parent=1 // pred_fallthru
      _
    // Predicated region
    $region14: #{enhanced_crop_classifier.1} parent=1 // pred_check
      _
    $region15: #{enhanced_crop_classifier.1} parent=1 // pred_check_branch
      %32 = sbr.rel (0) target = $region17
    $region16: #{enhanced_crop_classifier.1} parent=1 // pred_region
      _
    $region17: #{enhanced_crop_classifier.1} parent=1 // pred_fallthru
      _
    // Predicated region
    $region18: #{enhanced_crop_classifier.1} parent=1 // pred_check
      _
    $region19: #{enhanced_crop_classifier.1} parent=1 // pred_check_branch
      %34 = sbr.rel (0) target = $region21
    $region20: #{enhanced_crop_classifier.1} parent=1 // pred_region
      _
    $region21: #{enhanced_crop_classifier.1} parent=1 // pred_fallthru
      _
    // Predicated region
    $region22: #{enhanced_crop_classifier.1} parent=1 // pred_check
      _
    $region23: #{enhanced_crop_classifier.1} parent=1 // pred_check_branch
      %36 = sbr.rel (0) target = $region25
    $region24: #{enhanced_crop_classifier.1} parent=1 // pred_region
      _
    $region25: #{enhanced_crop_classifier.1} parent=1 // pred_fallthru
      _
    // Predicated region
    $region26: #{enhanced_crop_classifier.1} parent=1 // pred_check
      _
    $region27: #{enhanced_crop_classifier.1} parent=1 // pred_check_branch
      %38 = sbr.rel (0) target = $region29
    $region28: #{enhanced_crop_classifier.1} parent=1 // pred_region
      _
    $region29: #{enhanced_crop_classifier.1} parent=1 // pred_fallthru
      _
    // Predicated region
    $region30: #{enhanced_crop_classifier.1} parent=1 // pred_check
      _
    $region31: #{enhanced_crop_classifier.1} parent=1 // pred_check_branch
      %40 = sbr.rel (0) target = $region33
    $region32: #{enhanced_crop_classifier.1} parent=1 // pred_region
      _
    $region33: #{enhanced_crop_classifier.1} parent=1 // pred_fallthru
      _
    // Predicated region
    $region34: #{enhanced_crop_classifier.1} parent=1 // pred_check
      _
    $region35: #{enhanced_crop_classifier.1} parent=1 // pred_check_branch
      %42 = sbr.rel (0) target = $region37
    $region36: #{enhanced_crop_classifier.1} parent=1 // pred_region
      _
    $region37: #{enhanced_crop_classifier.1} parent=1 // pred_fallthru
      _
    // Predicated region
    $region38: #{enhanced_crop_classifier.1} parent=1 // pred_check
      _
    $region39: #{enhanced_crop_classifier.1} parent=1 // pred_check_branch
      %44 = sbr.rel (0) target = $region41
    $region40: #{enhanced_crop_classifier.1} parent=1 // pred_region
      _
    $region41: #{enhanced_crop_classifier.1} parent=1 // pred_fallthru
      _
    // Predicated region
    $region42: #{enhanced_crop_classifier.1} parent=1 // pred_check
      _
    $region43: #{enhanced_crop_classifier.1} parent=1 // pred_check_branch
      %46 = sbr.rel (0) target = $region45
    $region44: #{enhanced_crop_classifier.1} parent=1 // pred_region
      _
    $region45: #{enhanced_crop_classifier.1} parent=1 // pred_fallthru
      _
    // Predicated region
    $region46: #{enhanced_crop_classifier.1} parent=1 // pred_check
      _
    $region47: #{enhanced_crop_classifier.1} parent=1 // pred_check_branch
      %48 = sbr.rel (0) target = $region49
    $region48: #{enhanced_crop_classifier.1} parent=1 // pred_region
      _
    $region49: #{enhanced_crop_classifier.1} parent=1 // pred_fallthru
      _
    // Predicated region
    $region50: #{enhanced_crop_classifier.1} parent=1 // pred_check
      _
    $region51: #{enhanced_crop_classifier.1} parent=1 // pred_check_branch
      %50 = sbr.rel (0) target = $region53
    $region52: #{enhanced_crop_classifier.1} parent=1 // pred_region
      _
    $region53: #{enhanced_crop_classifier.1} parent=1 // pred_fallthru
      _
    // Predicated region
    $region54: #{enhanced_crop_classifier.1} parent=1 // pred_check
      _
    $region55: #{enhanced_crop_classifier.1} parent=1 // pred_check_branch
      %52 = sbr.rel (0) target = $region57
    $region56: #{enhanced_crop_classifier.1} parent=1 // pred_region
      _
    $region57: #{enhanced_crop_classifier.1} parent=1 // pred_fallthru
      _
    // Predicated region
    $region58: #{enhanced_crop_classifier.1} parent=1 // pred_check
      _
    $region59: #{enhanced_crop_classifier.1} parent=1 // pred_check_branch
      %54 = sbr.rel (0) target = $region61
    $region60: #{enhanced_crop_classifier.1} parent=1 // pred_region
      _
    $region61: #{enhanced_crop_classifier.1} parent=1 // pred_fallthru
      _
    // Predicated region
    $region62: #{enhanced_crop_classifier.1} parent=1 // pred_check
      _
    $region63: #{enhanced_crop_classifier.1} parent=1 // pred_check_branch
      %56 = sbr.rel (0) target = $region65
    $region64: #{enhanced_crop_classifier.1} parent=1 // pred_region
      _
    $region65: #{enhanced_crop_classifier.1} parent=1 // pred_fallthru
      _
    // Predicated region
    $region66: #{enhanced_crop_classifier.1} parent=1 // pred_check
      _
    $region67: #{enhanced_crop_classifier.1} parent=1 // pred_check_branch
      %58 = sbr.rel (0) target = $region69
    $region68: #{enhanced_crop_classifier.1} parent=1 // pred_region
      _
    $region69: #{enhanced_crop_classifier.1} parent=1 // pred_fallthru
      _
    // Predicated region
    $region70: #{enhanced_crop_classifier.1} parent=1 // pred_check
      _
    $region71: #{enhanced_crop_classifier.1} parent=1 // pred_check_branch
      %60 = sbr.rel (0) target = $region73
    $region72: #{enhanced_crop_classifier.1} parent=1 // pred_region
      _
    $region73: #{enhanced_crop_classifier.1} parent=1 // pred_fallthru
      _
    // Predicated region
    $region74: #{enhanced_crop_classifier.1} parent=1 // pred_check
      _
    $region75: #{enhanced_crop_classifier.1} parent=1 // pred_check_branch
      %62 = sbr.rel (0) target = $region77
    $region76: #{enhanced_crop_classifier.1} parent=1 // pred_region
      _
    $region77: #{enhanced_crop_classifier.1} parent=1 // pred_fallthru
      _
    %v64 = vld [vmem:[%s0] sm:$0xff]
    %v65 = vld [vmem:[%s0 + $0x8] sm:$0xff]
    %v66 = vld [vmem:[%s0 + $0x18] sm:$0xff]
    %v67 = vld [vmem:[%s0 + $0x20] sm:$0xff]
    %v68 = vld [vmem:[%s0 + $0x30] sm:$0xff]
    %v69 = vld [vmem:[%s0 + $0x38] sm:$0xff]
    %v70 = vld [vmem:[%s0 + $0x48] sm:$0xff]
    %v71 = vld [vmem:[%s0 + $0x50] sm:$0xff]
    %v72 = vld [vmem:[%s0 + $0x60] sm:$0xff]
    %v73 = vld [vmem:[%s0 + $0x68] sm:$0xff]
    %v74 = vld [vmem:[%s0 + $0x78] sm:$0xff]
    %v75 = vld [vmem:[%s0 + $0x80] sm:$0xff]
    %v76 = vld [vmem:[%s0 + $0x90] sm:$0xff]
    %v77 = vld [vmem:[%s0 + $0x98] sm:$0xff]
    %v78 = vld [vmem:[%s0 + $0xa8] sm:$0xff]
    %v79 = vld [vmem:[%s0 + $0xb0] sm:$0xff]
    %v80 = vld [vmem:[%s0 + $0xc0] sm:$0xff]
    %v81 = vld [vmem:[%s0 + $0xc8] sm:$0xff]
    %v82 = vld [vmem:[%s0 + $0xd8] sm:$0xff]
    %v83 = vld [vmem:[%s0 + $0xe0] sm:$0xff]
    %v84 = vld [vmem:[%s0 + $0xf0] sm:$0xff]
    %v85 = vld [vmem:[%s0 + $0xf8] sm:$0xff]
    %v86 = vld [vmem:[%s0 + $0x108] sm:$0xff]
    %v87 = vld [vmem:[%s0 + $0x110] sm:$0xff]
    %v88 = vld [vmem:[%s0 + $0x120] sm:$0xff]
    %v89 = vld [vmem:[%s0 + $0x128] sm:$0xff]
    %v90 = vld [vmem:[%s0 + $0x138] sm:$0xff]
    %v91 = vld [vmem:[%s0 + $0x140] sm:$0xff]
    %v92 = vld [vmem:[%s0 + $0x150] sm:$0xff]
    %v93 = vld [vmem:[%s0 + $0x158] sm:$0xff]
    %v94 = vld [vmem:[%s0 + $0x168] sm:$0xff]
    %v95 = vld [vmem:[%s0 + $0x170] sm:$0xff]
    %v96 = vld [vmem:[%s0 + $0x1b0] sm:$0xff]
    %v97 = vld [vmem:[%s0 + $0x1b8] sm:$0xff]
    %v98 = vld [vmem:[%s0 + $0x1c8] sm:$0xff]
    %v99 = vld [vmem:[%s0 + $0x1d0] sm:$0xff]
    %v100 = vld [vmem:[%s0 + $0x1e0] sm:$0xff]
    %v101 = vld [vmem:[%s0 + $0x1e8] sm:$0xff]
    %v102 = vld [vmem:[%s0 + $0x1f8] sm:$0xff]
    %v103 = vld [vmem:[%s0 + $0x200] sm:$0xff]
    %v104 = vld [vmem:[%s0 + $0x210] sm:$0xff]
    %v105 = vld [vmem:[%s0 + $0x218] sm:$0xff]
    %v106 = vld [vmem:[%s0 + $0x228] sm:$0xff]
    %v107 = vld [vmem:[%s0 + $0x230] sm:$0xff]
    %v108 = vld [vmem:[%s0 + $0x240] sm:$0xff]
    %v109 = vld [vmem:[%s0 + $0x248] sm:$0xff]
    %v110 = vld [vmem:[%s0 + $0x258] sm:$0xff]
    %v111 = vld [vmem:[%s0 + $0x260] sm:$0xff]
    %v112 = vld [vmem:[%s0 + $0x270] sm:$0xff]
    %v113 = vld [vmem:[%s0 + $0x278] sm:$0xff]
    %v114 = vld [vmem:[%s0 + $0x288] sm:$0xff]
    %v115 = vld [vmem:[%s0 + $0x290] sm:$0xff]
    %v116 = vld [vmem:[%s0 + $0x2a0] sm:$0xff]
    %v117 = vld [vmem:[%s0 + $0x2a8] sm:$0xff]
    %v118 = vld [vmem:[%s0 + $0x2b8] sm:$0xff]
    %v119 = vld [vmem:[%s0 + $0x2c0] sm:$0xff]
    %v120 = vld [vmem:[%s0 + $0x2d0] sm:$0xff]
    %v121 = vld [vmem:[%s0 + $0x2d8] sm:$0xff]
    %v122 = vld [vmem:[%s0 + $0x2e8] sm:$0xff]
    %v123 = vld [vmem:[%s0 + $0x2f0] sm:$0xff]
    %v124 = vld [vmem:[%s0 + $0x300] sm:$0xff]
    %v125 = vld [vmem:[%s0 + $0x308] sm:$0xff]
    %v126 = vld [vmem:[%s0 + $0x318] sm:$0xff]
    %v127 = vld [vmem:[%s0 + $0x320] sm:$0xff]
    %v128 = vld [vmem:[%s2] sm:$0x7]
    %v129 = vld [vmem:[%s0 + $0x1] sm:$0xff]
    %v130 = vld [vmem:[%s0 + $0x9] sm:$0xff]
    %v131 = vld [vmem:[%s0 + $0x19] sm:$0xff]
    %v132 = vld [vmem:[%s0 + $0x21] sm:$0xff]
    %v133 = vld [vmem:[%s0 + $0x31] sm:$0xff]
    %v134 = vld [vmem:[%s0 + $0x39] sm:$0xff]
    %v135 = vld [vmem:[%s0 + $0x49] sm:$0xff]
    %v136 = vld [vmem:[%s0 + $0x51] sm:$0xff]
    %v137 = vld [vmem:[%s0 + $0x61] sm:$0xff]
    %v138 = vld [vmem:[%s0 + $0x69] sm:$0xff]
    %v139 = vld [vmem:[%s0 + $0x79] sm:$0xff]
    %v140 = vld [vmem:[%s0 + $0x81] sm:$0xff]
    %v141 = vld [vmem:[%s0 + $0x91] sm:$0xff]
    %v142 = vld [vmem:[%s0 + $0x99] sm:$0xff]
    %v143 = vld [vmem:[%s0 + $0xa9] sm:$0xff]
    %v144 = vld [vmem:[%s0 + $0xb1] sm:$0xff]
    %v145 = vld [vmem:[%s0 + $0xc1] sm:$0xff]
    %v146 = vld [vmem:[%s0 + $0xc9] sm:$0xff]
    %v147 = vld [vmem:[%s0 + $0xd9] sm:$0xff]
    %v148 = vld [vmem:[%s0 + $0xe1] sm:$0xff]
    %v149 = vld [vmem:[%s0 + $0xf1] sm:$0xff]
    %v150 = vld [vmem:[%s0 + $0xf9] sm:$0xff]
    %v151 = vld [vmem:[%s0 + $0x109] sm:$0xff]
    %v152 = vld [vmem:[%s0 + $0x111] sm:$0xff]
    %v153 = vld [vmem:[%s0 + $0x121] sm:$0xff]
    %v154 = vld [vmem:[%s0 + $0x129] sm:$0xff]
    %v155 = vld [vmem:[%s0 + $0x139] sm:$0xff]
    %v156 = vld [vmem:[%s0 + $0x141] sm:$0xff]
    %v157 = vld [vmem:[%s0 + $0x151] sm:$0xff]
    %v158 = vld [vmem:[%s0 + $0x159] sm:$0xff]
    %v159 = vld [vmem:[%s0 + $0x169] sm:$0xff]
    %v160 = vld [vmem:[%s0 + $0x171] sm:$0xff]
    %v161 = vld [vmem:[%s0 + $0x1b1] sm:$0xff]
    %v162 = vld [vmem:[%s0 + $0x1b9] sm:$0xff]
    %v163 = vld [vmem:[%s0 + $0x1c9] sm:$0xff]
    %v164 = vld [vmem:[%s0 + $0x1d1] sm:$0xff]
    %v165 = vld [vmem:[%s0 + $0x1e1] sm:$0xff]
    %v166 = vld [vmem:[%s0 + $0x1e9] sm:$0xff]
    %v167 = vld [vmem:[%s0 + $0x1f9] sm:$0xff]
    %v168 = vld [vmem:[%s0 + $0x201] sm:$0xff]
    %v169 = vld [vmem:[%s0 + $0x211] sm:$0xff]
    %v170 = vld [vmem:[%s0 + $0x219] sm:$0xff]
    %v171 = vld [vmem:[%s0 + $0x229] sm:$0xff]
    %v172 = vld [vmem:[%s0 + $0x231] sm:$0xff]
    %v173 = vld [vmem:[%s0 + $0x241] sm:$0xff]
    %v174 = vld [vmem:[%s0 + $0x249] sm:$0xff]
    %v175 = vld [vmem:[%s0 + $0x259] sm:$0xff]
    %v176 = vld [vmem:[%s0 + $0x261] sm:$0xff]
    %v177 = vld [vmem:[%s0 + $0x271] sm:$0xff]
    %v178 = vld [vmem:[%s0 + $0x279] sm:$0xff]
    %v179 = vld [vmem:[%s0 + $0x289] sm:$0xff]
    %v180 = vld [vmem:[%s0 + $0x291] sm:$0xff]
    %v181 = vld [vmem:[%s0 + $0x2a1] sm:$0xff]
    %v182 = vld [vmem:[%s0 + $0x2a9] sm:$0xff]
    %v183 = vld [vmem:[%s0 + $0x2b9] sm:$0xff]
    %v184 = vld [vmem:[%s0 + $0x2c1] sm:$0xff]
    %v185 = vld [vmem:[%s0 + $0x2d1] sm:$0xff]
    %v186 = vld [vmem:[%s0 + $0x2d9] sm:$0xff]
    %v187 = vld [vmem:[%s0 + $0x2e9] sm:$0xff]
    %v188 = vld [vmem:[%s0 + $0x2f1] sm:$0xff]
    %v189 = vld [vmem:[%s0 + $0x301] sm:$0xff]
    %v190 = vld [vmem:[%s0 + $0x309] sm:$0xff]
    %v191 = vld [vmem:[%s0 + $0x319] sm:$0xff]
    %v192 = vld [vmem:[%s0 + $0x321] sm:$0xff]
    %s193 = scalar_lea.vmem %s2, 4
    %v194 = vld [vmem:[%s193] sm:$0x7]
    %vm195 = vcmask 23552
    %v197 = vsel %vm195, %v129, 0
    %v200 = vsel %vm195, %v130, 0
    %v203 = vsel %vm195, %v131, 0
    %v206 = vsel %vm195, %v132, 0
    %v209 = vsel %vm195, %v133, 0
    %v212 = vsel %vm195, %v134, 0
    %v215 = vsel %vm195, %v135, 0
    %v218 = vsel %vm195, %v136, 0
    %v221 = vsel %vm195, %v137, 0
    %v224 = vsel %vm195, %v138, 0
    %v227 = vsel %vm195, %v139, 0
    %v230 = vsel %vm195, %v140, 0
    %v233 = vsel %vm195, %v141, 0
    %v236 = vsel %vm195, %v142, 0
    %v239 = vsel %vm195, %v143, 0
    %v242 = vsel %vm195, %v144, 0
    %v245 = vsel %vm195, %v145, 0
    %v248 = vsel %vm195, %v146, 0
    %v251 = vsel %vm195, %v147, 0
    %v254 = vsel %vm195, %v148, 0
    %v257 = vsel %vm195, %v149, 0
    %v260 = vsel %vm195, %v150, 0
    %v263 = vsel %vm195, %v151, 0
    %v266 = vsel %vm195, %v152, 0
    %v269 = vsel %vm195, %v153, 0
    %v272 = vsel %vm195, %v154, 0
    %v275 = vsel %vm195, %v155, 0
    %v278 = vsel %vm195, %v156, 0
    %v281 = vsel %vm195, %v157, 0
    %v284 = vsel %vm195, %v158, 0
    %v287 = vsel %vm195, %v159, 0
    %v290 = vsel %vm195, %v160, 0
    %v293 = vsel %vm195, %v161, 0
    %v296 = vsel %vm195, %v162, 0
    %v299 = vsel %vm195, %v163, 0
    %v302 = vsel %vm195, %v164, 0
    %v305 = vsel %vm195, %v165, 0
    %v308 = vsel %vm195, %v166, 0
    %v311 = vsel %vm195, %v167, 0
    %v314 = vsel %vm195, %v168, 0
    %v317 = vsel %vm195, %v169, 0
    %v320 = vsel %vm195, %v170, 0
    %v323 = vsel %vm195, %v171, 0
    %v326 = vsel %vm195, %v172, 0
    %v329 = vsel %vm195, %v173, 0
    %v332 = vsel %vm195, %v174, 0
    %v335 = vsel %vm195, %v175, 0
    %v338 = vsel %vm195, %v176, 0
    %v341 = vsel %vm195, %v177, 0
    %v344 = vsel %vm195, %v178, 0
    %v347 = vsel %vm195, %v179, 0
    %v350 = vsel %vm195, %v180, 0
    %v353 = vsel %vm195, %v181, 0
    %v356 = vsel %vm195, %v182, 0
    %v359 = vsel %vm195, %v183, 0
    %v362 = vsel %vm195, %v184, 0
    %v365 = vsel %vm195, %v185, 0
    %v368 = vsel %vm195, %v186, 0
    %v371 = vsel %vm195, %v187, 0
    %v374 = vsel %vm195, %v188, 0
    %v377 = vsel %vm195, %v189, 0
    %v380 = vsel %vm195, %v190, 0
    %v383 = vsel %vm195, %v191, 0
    %v386 = vsel %vm195, %v192, 0
    %vm388 = vcmask 1042432
    %v390 = vsel %vm388, %v194, 0
    %392 = vmatprep.subr.mxu0 0.0
    %393 = vmatpush1.msra.mxu0 0.0
    %394 = vmatprep.subr.mxu0 0.0
    %395 = vmatpush1.msra.mxu0 0.0
    %396 = vmatprep.subr.mxu0 0.0
    %397 = vmatpush1.msra.mxu0 0.0
    %398 = vmatprep.subr.mxu0 0.0
    %399 = vmatpush1.msra.mxu0 0.0
    %400 = vmatprep.subr.mxu0 0.0
    %401 = vmatpush1.msra.mxu0 0.0
    %402 = vmatprep.subr.mxu0 0.0
    %403 = vmatpush1.msra.mxu0 0.0
    %404 = vmatprep.subr.mxu0 0.0
    %405 = vmatpush1.msra.mxu0 0.0
    %406 = vmatprep.subr.mxu0 0.0
    %407 = vmatpush1.msra.mxu0 0.0
    %408 = vmatprep.subr.mxu0 0.0
    %409 = vmatpush1.msra.mxu0 0.0
    %410 = vmatprep.subr.mxu0 0.0
    %411 = vmatpush1.msra.mxu0 0.0
    %412 = vmatprep.subr.mxu0 0.0
    %413 = vmatpush1.msra.mxu0 0.0
    %414 = vmatprep.subr.mxu0 0.0
    %415 = vmatpush1.msra.mxu0 0.0
    %416 = vmatprep.subr.mxu0 0.0
    %417 = vmatpush1.msra.mxu0 0.0
    %418 = vmatprep.subr.mxu0 0.0
    %419 = vmatpush1.msra.mxu0 0.0
    %420 = vmatprep.subr.mxu0 0.0
    %421 = vmatpush1.msra.mxu0 0.0
    %422 = vmatprep.subr.mxu0 0.0
    %423 = vmatpush1.msra.mxu0 %v390
    %424 = vmatprep.subr.mxu0 0.0
    %425 = vmatpush2.msra.mxu0 0.0
    %426 = vmatprep.subr.mxu0 0.0
    %427 = vmatpush2.msra.mxu0 0.0
    %428 = vmatprep.subr.mxu0 0.0
    %429 = vmatpush2.msra.mxu0 0.0
    %430 = vmatprep.subr.mxu0 0.0
    %431 = vmatpush2.msra.mxu0 0.0
    %432 = vmatprep.subr.mxu0 0.0
    %433 = vmatpush2.msra.mxu0 0.0
    %434 = vmatprep.subr.mxu0 0.0
    %435 = vmatpush2.msra.mxu0 0.0
    %436 = vmatprep.subr.mxu0 0.0
    %437 = vmatpush2.msra.mxu0 0.0
    %438 = vmatprep.subr.mxu0 0.0
    %439 = vmatpush2.msra.mxu0 0.0
    %440 = vmatprep.subr.mxu0 0.0
    %441 = vmatpush2.msra.mxu0 0.0
    %442 = vmatprep.subr.mxu0 0.0
    %443 = vmatpush2.msra.mxu0 0.0
    %444 = vmatprep.subr.mxu0 0.0
    %445 = vmatpush2.msra.mxu0 0.0
    %446 = vmatprep.subr.mxu0 0.0
    %447 = vmatpush2.msra.mxu0 0.0
    %448 = vmatprep.subr.mxu0 0.0
    %449 = vmatpush2.msra.mxu0 0.0
    %450 = vmatprep.subr.mxu0 0.0
    %451 = vmatpush2.msra.mxu0 0.0
    %452 = vmatprep.subr.mxu0 0.0
    %453 = vmatpush2.msra.mxu0 0.0
    %454 = vmatprep.subr.mxu0 0.0
    %455 = vmatpush2.msra.mxu0 0.0
    %456 = vmatprep.mubr.f32.mxu0 0.0
    %457 = vmatmul.mubr.f32.gmra.mxu0 %v197
    %v458 = vpop.f32.mrf.mxu0
    %v459 = vadd.f32 0.0, %v458
    %v460 = vpop.f32.mrf.mxu0
    %461 = vmatprep.mubr.f32.mxu0 0.0
    %462 = vmatmul.mubr.f32.gmra.mxu0 %v200
    %v463 = vpop.f32.mrf.mxu0
    %v464 = vadd.f32 0.0, %v463
    %v465 = vpop.f32.mrf.mxu0
    %466 = vmatprep.mubr.f32.mxu0 0.0
    %467 = vmatmul.mubr.f32.gmra.mxu0 %v203
    %v468 = vpop.f32.mrf.mxu0
    %v469 = vadd.f32 0.0, %v468
    %v470 = vpop.f32.mrf.mxu0
    %471 = vmatprep.mubr.f32.mxu0 0.0
    %472 = vmatmul.mubr.f32.gmra.mxu0 %v206
    %v473 = vpop.f32.mrf.mxu0
    %v474 = vadd.f32 0.0, %v473
    %v475 = vpop.f32.mrf.mxu0
    %476 = vmatprep.mubr.f32.mxu0 0.0
    %477 = vmatmul.mubr.f32.gmra.mxu0 %v209
    %v478 = vpop.f32.mrf.mxu0
    %v479 = vadd.f32 0.0, %v478
    %v480 = vpop.f32.mrf.mxu0
    %481 = vmatprep.mubr.f32.mxu0 0.0
    %482 = vmatmul.mubr.f32.gmra.mxu0 %v212
    %v483 = vpop.f32.mrf.mxu0
    %v484 = vadd.f32 0.0, %v483
    %v485 = vpop.f32.mrf.mxu0
    %486 = vmatprep.mubr.f32.mxu0 0.0
    %487 = vmatmul.mubr.f32.gmra.mxu0 %v215
    %v488 = vpop.f32.mrf.mxu0
    %v489 = vadd.f32 0.0, %v488
    %v490 = vpop.f32.mrf.mxu0
    %491 = vmatprep.mubr.f32.mxu0 0.0
    %492 = vmatmul.mubr.f32.gmra.mxu0 %v218
    %v493 = vpop.f32.mrf.mxu0
    %v494 = vadd.f32 0.0, %v493
    %v495 = vpop.f32.mrf.mxu0
    %496 = vmatprep.mubr.f32.mxu0 0.0
    %497 = vmatmul.mubr.f32.gmra.mxu0 %v221
    %v498 = vpop.f32.mrf.mxu0
    %v499 = vadd.f32 0.0, %v498
    %v500 = vpop.f32.mrf.mxu0
    %501 = vmatprep.mubr.f32.mxu0 0.0
    %502 = vmatmul.mubr.f32.gmra.mxu0 %v224
    %v503 = vpop.f32.mrf.mxu0
    %v504 = vadd.f32 0.0, %v503
    %v505 = vpop.f32.mrf.mxu0
    %506 = vmatprep.mubr.f32.mxu0 0.0
    %507 = vmatmul.mubr.f32.gmra.mxu0 %v227
    %v508 = vpop.f32.mrf.mxu0
    %v509 = vadd.f32 0.0, %v508
    %v510 = vpop.f32.mrf.mxu0
    %511 = vmatprep.mubr.f32.mxu0 0.0
    %512 = vmatmul.mubr.f32.gmra.mxu0 %v230
    %v513 = vpop.f32.mrf.mxu0
    %v514 = vadd.f32 0.0, %v513
    %v515 = vpop.f32.mrf.mxu0
    %516 = vmatprep.mubr.f32.mxu0 0.0
    %517 = vmatmul.mubr.f32.gmra.mxu0 %v233
    %v518 = vpop.f32.mrf.mxu0
    %v519 = vadd.f32 0.0, %v518
    %v520 = vpop.f32.mrf.mxu0
    %521 = vmatprep.mubr.f32.mxu0 0.0
    %522 = vmatmul.mubr.f32.gmra.mxu0 %v236
    %v523 = vpop.f32.mrf.mxu0
    %v524 = vadd.f32 0.0, %v523
    %v525 = vpop.f32.mrf.mxu0
    %526 = vmatprep.mubr.f32.mxu0 0.0
    %527 = vmatmul.mubr.f32.gmra.mxu0 %v239
    %v528 = vpop.f32.mrf.mxu0
    %v529 = vadd.f32 0.0, %v528
    %v530 = vpop.f32.mrf.mxu0
    %531 = vmatprep.mubr.f32.mxu0 0.0
    %532 = vmatmul.mubr.f32.gmra.mxu0 %v242
    %v533 = vpop.f32.mrf.mxu0
    %v534 = vadd.f32 0.0, %v533
    %v535 = vpop.f32.mrf.mxu0
    %536 = vmatprep.mubr.f32.mxu0 0.0
    %537 = vmatmul.mubr.f32.gmra.mxu0 %v245
    %v538 = vpop.f32.mrf.mxu0
    %v539 = vadd.f32 0.0, %v538
    %v540 = vpop.f32.mrf.mxu0
    %541 = vmatprep.mubr.f32.mxu0 0.0
    %542 = vmatmul.mubr.f32.gmra.mxu0 %v248
    %v543 = vpop.f32.mrf.mxu0
    %v544 = vadd.f32 0.0, %v543
    %v545 = vpop.f32.mrf.mxu0
    %546 = vmatprep.mubr.f32.mxu0 0.0
    %547 = vmatmul.mubr.f32.gmra.mxu0 %v251
    %v548 = vpop.f32.mrf.mxu0
    %v549 = vadd.f32 0.0, %v548
    %v550 = vpop.f32.mrf.mxu0
    %551 = vmatprep.mubr.f32.mxu0 0.0
    %552 = vmatmul.mubr.f32.gmra.mxu0 %v254
    %v553 = vpop.f32.mrf.mxu0
    %v554 = vadd.f32 0.0, %v553
    %v555 = vpop.f32.mrf.mxu0
    %556 = vmatprep.mubr.f32.mxu0 0.0
    %557 = vmatmul.mubr.f32.gmra.mxu0 %v257
    %v558 = vpop.f32.mrf.mxu0
    %v559 = vadd.f32 0.0, %v558
    %v560 = vpop.f32.mrf.mxu0
    %561 = vmatprep.mubr.f32.mxu0 0.0
    %562 = vmatmul.mubr.f32.gmra.mxu0 %v260
    %v563 = vpop.f32.mrf.mxu0
    %v564 = vadd.f32 0.0, %v563
    %v565 = vpop.f32.mrf.mxu0
    %566 = vmatprep.mubr.f32.mxu0 0.0
    %567 = vmatmul.mubr.f32.gmra.mxu0 %v263
    %v568 = vpop.f32.mrf.mxu0
    %v569 = vadd.f32 0.0, %v568
    %v570 = vpop.f32.mrf.mxu0
    %571 = vmatprep.mubr.f32.mxu0 0.0
    %572 = vmatmul.mubr.f32.gmra.mxu0 %v266
    %v573 = vpop.f32.mrf.mxu0
    %v574 = vadd.f32 0.0, %v573
    %v575 = vpop.f32.mrf.mxu0
    %576 = vmatprep.mubr.f32.mxu0 0.0
    %577 = vmatmul.mubr.f32.gmra.mxu0 %v269
    %v578 = vpop.f32.mrf.mxu0
    %v579 = vadd.f32 0.0, %v578
    %v580 = vpop.f32.mrf.mxu0
    %581 = vmatprep.mubr.f32.mxu0 0.0
    %582 = vmatmul.mubr.f32.gmra.mxu0 %v272
    %v583 = vpop.f32.mrf.mxu0
    %v584 = vadd.f32 0.0, %v583
    %v585 = vpop.f32.mrf.mxu0
    %586 = vmatprep.mubr.f32.mxu0 0.0
    %587 = vmatmul.mubr.f32.gmra.mxu0 %v275
    %v588 = vpop.f32.mrf.mxu0
    %v589 = vadd.f32 0.0, %v588
    %v590 = vpop.f32.mrf.mxu0
    %591 = vmatprep.mubr.f32.mxu0 0.0
    %592 = vmatmul.mubr.f32.gmra.mxu0 %v278
    %v593 = vpop.f32.mrf.mxu0
    %v594 = vadd.f32 0.0, %v593
    %v595 = vpop.f32.mrf.mxu0
    %596 = vmatprep.mubr.f32.mxu0 0.0
    %597 = vmatmul.mubr.f32.gmra.mxu0 %v281
    %v598 = vpop.f32.mrf.mxu0
    %v599 = vadd.f32 0.0, %v598
    %v600 = vpop.f32.mrf.mxu0
    %601 = vmatprep.mubr.f32.mxu0 0.0
    %602 = vmatmul.mubr.f32.gmra.mxu0 %v284
    %v603 = vpop.f32.mrf.mxu0
    %v604 = vadd.f32 0.0, %v603
    %v605 = vpop.f32.mrf.mxu0
    %606 = vmatprep.mubr.f32.mxu0 0.0
    %607 = vmatmul.mubr.f32.gmra.mxu0 %v287
    %v608 = vpop.f32.mrf.mxu0
    %v609 = vadd.f32 0.0, %v608
    %v610 = vpop.f32.mrf.mxu0
    %611 = vmatprep.mubr.f32.mxu0 0.0
    %612 = vmatmul.mubr.f32.gmra.mxu0 %v290
    %v613 = vpop.f32.mrf.mxu0
    %v614 = vadd.f32 0.0, %v613
    %v615 = vpop.f32.mrf.mxu0
    %616 = vmatprep.mubr.f32.mxu0 0.0
    %617 = vmatmul.mubr.f32.gmra.mxu0 %v293
    %v618 = vpop.f32.mrf.mxu0
    %v619 = vadd.f32 0.0, %v618
    %v620 = vpop.f32.mrf.mxu0
    %621 = vmatprep.mubr.f32.mxu0 0.0
    %622 = vmatmul.mubr.f32.gmra.mxu0 %v296
    %v623 = vpop.f32.mrf.mxu0
    %v624 = vadd.f32 0.0, %v623
    %v625 = vpop.f32.mrf.mxu0
    %626 = vmatprep.mubr.f32.mxu0 0.0
    %627 = vmatmul.mubr.f32.gmra.mxu0 %v299
    %v628 = vpop.f32.mrf.mxu0
    %v629 = vadd.f32 0.0, %v628
    %v630 = vpop.f32.mrf.mxu0
    %631 = vmatprep.mubr.f32.mxu0 0.0
    %632 = vmatmul.mubr.f32.gmra.mxu0 %v302
    %v633 = vpop.f32.mrf.mxu0
    %v634 = vadd.f32 0.0, %v633
    %v635 = vpop.f32.mrf.mxu0
    %636 = vmatprep.mubr.f32.mxu0 0.0
    %637 = vmatmul.mubr.f32.gmra.mxu0 %v305
    %v638 = vpop.f32.mrf.mxu0
    %v639 = vadd.f32 0.0, %v638
    %v640 = vpop.f32.mrf.mxu0
    %641 = vmatprep.mubr.f32.mxu0 0.0
    %642 = vmatmul.mubr.f32.gmra.mxu0 %v308
    %v643 = vpop.f32.mrf.mxu0
    %v644 = vadd.f32 0.0, %v643
    %v645 = vpop.f32.mrf.mxu0
    %646 = vmatprep.mubr.f32.mxu0 0.0
    %647 = vmatmul.mubr.f32.gmra.mxu0 %v311
    %v648 = vpop.f32.mrf.mxu0
    %v649 = vadd.f32 0.0, %v648
    %v650 = vpop.f32.mrf.mxu0
    %651 = vmatprep.mubr.f32.mxu0 0.0
    %652 = vmatmul.mubr.f32.gmra.mxu0 %v314
    %v653 = vpop.f32.mrf.mxu0
    %v654 = vadd.f32 0.0, %v653
    %v655 = vpop.f32.mrf.mxu0
    %656 = vmatprep.mubr.f32.mxu0 0.0
    %657 = vmatmul.mubr.f32.gmra.mxu0 %v317
    %v658 = vpop.f32.mrf.mxu0
    %v659 = vadd.f32 0.0, %v658
    %v660 = vpop.f32.mrf.mxu0
    %661 = vmatprep.mubr.f32.mxu0 0.0
    %662 = vmatmul.mubr.f32.gmra.mxu0 %v320
    %v663 = vpop.f32.mrf.mxu0
    %v664 = vadd.f32 0.0, %v663
    %v665 = vpop.f32.mrf.mxu0
    %666 = vmatprep.mubr.f32.mxu0 0.0
    %667 = vmatmul.mubr.f32.gmra.mxu0 %v323
    %v668 = vpop.f32.mrf.mxu0
    %v669 = vadd.f32 0.0, %v668
    %v670 = vpop.f32.mrf.mxu0
    %671 = vmatprep.mubr.f32.mxu0 0.0
    %672 = vmatmul.mubr.f32.gmra.mxu0 %v326
    %v673 = vpop.f32.mrf.mxu0
    %v674 = vadd.f32 0.0, %v673
    %v675 = vpop.f32.mrf.mxu0
    %676 = vmatprep.mubr.f32.mxu0 0.0
    %677 = vmatmul.mubr.f32.gmra.mxu0 %v329
    %v678 = vpop.f32.mrf.mxu0
    %v679 = vadd.f32 0.0, %v678
    %v680 = vpop.f32.mrf.mxu0
    %681 = vmatprep.mubr.f32.mxu0 0.0
    %682 = vmatmul.mubr.f32.gmra.mxu0 %v332
    %v683 = vpop.f32.mrf.mxu0
    %v684 = vadd.f32 0.0, %v683
    %v685 = vpop.f32.mrf.mxu0
    %686 = vmatprep.mubr.f32.mxu0 0.0
    %687 = vmatmul.mubr.f32.gmra.mxu0 %v335
    %v688 = vpop.f32.mrf.mxu0
    %v689 = vadd.f32 0.0, %v688
    %v690 = vpop.f32.mrf.mxu0
    %691 = vmatprep.mubr.f32.mxu0 0.0
    %692 = vmatmul.mubr.f32.gmra.mxu0 %v338
    %v693 = vpop.f32.mrf.mxu0
    %v694 = vadd.f32 0.0, %v693
    %v695 = vpop.f32.mrf.mxu0
    %696 = vmatprep.mubr.f32.mxu0 0.0
    %697 = vmatmul.mubr.f32.gmra.mxu0 %v341
    %v698 = vpop.f32.mrf.mxu0
    %v699 = vadd.f32 0.0, %v698
    %v700 = vpop.f32.mrf.mxu0
    %701 = vmatprep.mubr.f32.mxu0 0.0
    %702 = vmatmul.mubr.f32.gmra.mxu0 %v344
    %v703 = vpop.f32.mrf.mxu0
    %v704 = vadd.f32 0.0, %v703
    %v705 = vpop.f32.mrf.mxu0
    %706 = vmatprep.mubr.f32.mxu0 0.0
    %707 = vmatmul.mubr.f32.gmra.mxu0 %v347
    %v708 = vpop.f32.mrf.mxu0
    %v709 = vadd.f32 0.0, %v708
    %v710 = vpop.f32.mrf.mxu0
    %711 = vmatprep.mubr.f32.mxu0 0.0
    %712 = vmatmul.mubr.f32.gmra.mxu0 %v350
    %v713 = vpop.f32.mrf.mxu0
    %v714 = vadd.f32 0.0, %v713
    %v715 = vpop.f32.mrf.mxu0
    %716 = vmatprep.mubr.f32.mxu0 0.0
    %717 = vmatmul.mubr.f32.gmra.mxu0 %v353
    %v718 = vpop.f32.mrf.mxu0
    %v719 = vadd.f32 0.0, %v718
    %v720 = vpop.f32.mrf.mxu0
    %721 = vmatprep.mubr.f32.mxu0 0.0
    %722 = vmatmul.mubr.f32.gmra.mxu0 %v356
    %v723 = vpop.f32.mrf.mxu0
    %v724 = vadd.f32 0.0, %v723
    %v725 = vpop.f32.mrf.mxu0
    %726 = vmatprep.mubr.f32.mxu0 0.0
    %727 = vmatmul.mubr.f32.gmra.mxu0 %v359
    %v728 = vpop.f32.mrf.mxu0
    %v729 = vadd.f32 0.0, %v728
    %v730 = vpop.f32.mrf.mxu0
    %731 = vmatprep.mubr.f32.mxu0 0.0
    %732 = vmatmul.mubr.f32.gmra.mxu0 %v362
    %v733 = vpop.f32.mrf.mxu0
    %v734 = vadd.f32 0.0, %v733
    %v735 = vpop.f32.mrf.mxu0
    %736 = vmatprep.mubr.f32.mxu0 0.0
    %737 = vmatmul.mubr.f32.gmra.mxu0 %v365
    %v738 = vpop.f32.mrf.mxu0
    %v739 = vadd.f32 0.0, %v738
    %v740 = vpop.f32.mrf.mxu0
    %741 = vmatprep.mubr.f32.mxu0 0.0
    %742 = vmatmul.mubr.f32.gmra.mxu0 %v368
    %v743 = vpop.f32.mrf.mxu0
    %v744 = vadd.f32 0.0, %v743
    %v745 = vpop.f32.mrf.mxu0
    %746 = vmatprep.mubr.f32.mxu0 0.0
    %747 = vmatmul.mubr.f32.gmra.mxu0 %v371
    %v748 = vpop.f32.mrf.mxu0
    %v749 = vadd.f32 0.0, %v748
    %v750 = vpop.f32.mrf.mxu0
    %751 = vmatprep.mubr.f32.mxu0 0.0
    %752 = vmatmul.mubr.f32.gmra.mxu0 %v374
    %v753 = vpop.f32.mrf.mxu0
    %v754 = vadd.f32 0.0, %v753
    %v755 = vpop.f32.mrf.mxu0
    %756 = vmatprep.mubr.f32.mxu0 0.0
    %757 = vmatmul.mubr.f32.gmra.mxu0 %v377
    %v758 = vpop.f32.mrf.mxu0
    %v759 = vadd.f32 0.0, %v758
    %v760 = vpop.f32.mrf.mxu0
    %761 = vmatprep.mubr.f32.mxu0 0.0
    %762 = vmatmul.mubr.f32.gmra.mxu0 %v380
    %v763 = vpop.f32.mrf.mxu0
    %v764 = vadd.f32 0.0, %v763
    %v765 = vpop.f32.mrf.mxu0
    %766 = vmatprep.mubr.f32.mxu0 0.0
    %767 = vmatmul.mubr.f32.gmra.mxu0 %v383
    %v768 = vpop.f32.mrf.mxu0
    %v769 = vadd.f32 0.0, %v768
    %v770 = vpop.f32.mrf.mxu0
    %771 = vmatprep.mubr.f32.mxu0 0.0
    %772 = vmatmul.mubr.f32.gmra.mxu0 %v386
    %v773 = vpop.f32.mrf.mxu0
    %v774 = vadd.f32 0.0, %v773
    %v775 = vpop.f32.mrf.mxu0
    %776 = vdwg.mxu0
    %v778 = vsel %vm195, %v64, 0
    %v781 = vsel %vm195, %v65, 0
    %v784 = vsel %vm195, %v66, 0
    %v787 = vsel %vm195, %v67, 0
    %v790 = vsel %vm195, %v68, 0
    %v793 = vsel %vm195, %v69, 0
    %v796 = vsel %vm195, %v70, 0
    %v799 = vsel %vm195, %v71, 0
    %v802 = vsel %vm195, %v72, 0
    %v805 = vsel %vm195, %v73, 0
    %v808 = vsel %vm195, %v74, 0
    %v811 = vsel %vm195, %v75, 0
    %v814 = vsel %vm195, %v76, 0
    %v817 = vsel %vm195, %v77, 0
    %v820 = vsel %vm195, %v78, 0
    %v823 = vsel %vm195, %v79, 0
    %v826 = vsel %vm195, %v80, 0
    %v829 = vsel %vm195, %v81, 0
    %v832 = vsel %vm195, %v82, 0
    %v835 = vsel %vm195, %v83, 0
    %v838 = vsel %vm195, %v84, 0
    %v841 = vsel %vm195, %v85, 0
    %v844 = vsel %vm195, %v86, 0
    %v847 = vsel %vm195, %v87, 0
    %v850 = vsel %vm195, %v88, 0
    %v853 = vsel %vm195, %v89, 0
    %v856 = vsel %vm195, %v90, 0
    %v859 = vsel %vm195, %v91, 0
    %v862 = vsel %vm195, %v92, 0
    %v865 = vsel %vm195, %v93, 0
    %v868 = vsel %vm195, %v94, 0
    %v871 = vsel %vm195, %v95, 0
    %v874 = vsel %vm195, %v96, 0
    %v877 = vsel %vm195, %v97, 0
    %v880 = vsel %vm195, %v98, 0
    %v883 = vsel %vm195, %v99, 0
    %v886 = vsel %vm195, %v100, 0
    %v889 = vsel %vm195, %v101, 0
    %v892 = vsel %vm195, %v102, 0
    %v895 = vsel %vm195, %v103, 0
    %v898 = vsel %vm195, %v104, 0
    %v901 = vsel %vm195, %v105, 0
    %v904 = vsel %vm195, %v106, 0
    %v907 = vsel %vm195, %v107, 0
    %v910 = vsel %vm195, %v108, 0
    %v913 = vsel %vm195, %v109, 0
    %v916 = vsel %vm195, %v110, 0
    %v919 = vsel %vm195, %v111, 0
    %v922 = vsel %vm195, %v112, 0
    %v925 = vsel %vm195, %v113, 0
    %v928 = vsel %vm195, %v114, 0
    %v931 = vsel %vm195, %v115, 0
    %v934 = vsel %vm195, %v116, 0
    %v937 = vsel %vm195, %v117, 0
    %v940 = vsel %vm195, %v118, 0
    %v943 = vsel %vm195, %v119, 0
    %v946 = vsel %vm195, %v120, 0
    %v949 = vsel %vm195, %v121, 0
    %v952 = vsel %vm195, %v122, 0
    %v955 = vsel %vm195, %v123, 0
    %v958 = vsel %vm195, %v124, 0
    %v961 = vsel %vm195, %v125, 0
    %v964 = vsel %vm195, %v126, 0
    %v967 = vsel %vm195, %v127, 0
    %v970 = vsel %vm388, %v128, 0
    %972 = vmatprep.subr.mxu0 0.0
    %973 = vmatpush1.msra.mxu0 0.0
    %974 = vmatprep.subr.mxu0 0.0
    %975 = vmatpush1.msra.mxu0 0.0
    %976 = vmatprep.subr.mxu0 0.0
    %977 = vmatpush1.msra.mxu0 0.0
    %978 = vmatprep.subr.mxu0 0.0
    %979 = vmatpush1.msra.mxu0 0.0
    %980 = vmatprep.subr.mxu0 0.0
    %981 = vmatpush1.msra.mxu0 0.0
    %982 = vmatprep.subr.mxu0 0.0
    %983 = vmatpush1.msra.mxu0 0.0
    %984 = vmatprep.subr.mxu0 0.0
    %985 = vmatpush1.msra.mxu0 0.0
    %986 = vmatprep.subr.mxu0 0.0
    %987 = vmatpush1.msra.mxu0 0.0
    %988 = vmatprep.subr.mxu0 0.0
    %989 = vmatpush1.msra.mxu0 0.0
    %990 = vmatprep.subr.mxu0 0.0
    %991 = vmatpush1.msra.mxu0 0.0
    %992 = vmatprep.subr.mxu0 0.0
    %993 = vmatpush1.msra.mxu0 0.0
    %994 = vmatprep.subr.mxu0 0.0
    %995 = vmatpush1.msra.mxu0 0.0
    %996 = vmatprep.subr.mxu0 0.0
    %997 = vmatpush1.msra.mxu0 0.0
    %998 = vmatprep.subr.mxu0 0.0
    %999 = vmatpush1.msra.mxu0 0.0
    %1000 = vmatprep.subr.mxu0 0.0
    %1001 = vmatpush1.msra.mxu0 0.0
    %1002 = vmatprep.subr.mxu0 0.0
    %1003 = vmatpush1.msra.mxu0 %v970
    %1004 = vmatprep.subr.mxu0 0.0
    %1005 = vmatpush2.msra.mxu0 0.0
    %1006 = vmatprep.subr.mxu0 0.0
    %1007 = vmatpush2.msra.mxu0 0.0
    %1008 = vmatprep.subr.mxu0 0.0
    %1009 = vmatpush2.msra.mxu0 0.0
    %1010 = vmatprep.subr.mxu0 0.0
    %1011 = vmatpush2.msra.mxu0 0.0
    %1012 = vmatprep.subr.mxu0 0.0
    %1013 = vmatpush2.msra.mxu0 0.0
    %1014 = vmatprep.subr.mxu0 0.0
    %1015 = vmatpush2.msra.mxu0 0.0
    %1016 = vmatprep.subr.mxu0 0.0
    %1017 = vmatpush2.msra.mxu0 0.0
    %1018 = vmatprep.subr.mxu0 0.0
    %1019 = vmatpush2.msra.mxu0 0.0
    %1020 = vmatprep.subr.mxu0 0.0
    %1021 = vmatpush2.msra.mxu0 0.0
    %1022 = vmatprep.subr.mxu0 0.0
    %1023 = vmatpush2.msra.mxu0 0.0
    %1024 = vmatprep.subr.mxu0 0.0
    %1025 = vmatpush2.msra.mxu0 0.0
    %1026 = vmatprep.subr.mxu0 0.0
    %1027 = vmatpush2.msra.mxu0 0.0
    %1028 = vmatprep.subr.mxu0 0.0
    %1029 = vmatpush2.msra.mxu0 0.0
    %1030 = vmatprep.subr.mxu0 0.0
    %1031 = vmatpush2.msra.mxu0 0.0
    %1032 = vmatprep.subr.mxu0 0.0
    %1033 = vmatpush2.msra.mxu0 0.0
    %1034 = vmatprep.subr.mxu0 0.0
    %1035 = vmatpush2.msra.mxu0 0.0
    %1036 = vmatprep.mubr.f32.mxu0 0.0
    %1037 = vmatmul.mubr.f32.gmra.mxu0 %v778
    %v1038 = vpop.f32.mrf.mxu0
    %v1039 = vadd.f32 %v459, %v1038
    %v1040 = vpop.f32.mrf.mxu0
    %1041 = vmatprep.mubr.f32.mxu0 0.0
    %1042 = vmatmul.mubr.f32.gmra.mxu0 %v781
    %v1043 = vpop.f32.mrf.mxu0
    %v1044 = vadd.f32 %v464, %v1043
    %v1045 = vpop.f32.mrf.mxu0
    %1046 = vmatprep.mubr.f32.mxu0 0.0
    %1047 = vmatmul.mubr.f32.gmra.mxu0 %v784
    %v1048 = vpop.f32.mrf.mxu0
    %v1049 = vadd.f32 %v469, %v1048
    %v1050 = vpop.f32.mrf.mxu0
    %1051 = vmatprep.mubr.f32.mxu0 0.0
    %1052 = vmatmul.mubr.f32.gmra.mxu0 %v787
    %v1053 = vpop.f32.mrf.mxu0
    %v1054 = vadd.f32 %v474, %v1053
    %v1055 = vpop.f32.mrf.mxu0
    %1056 = vmatprep.mubr.f32.mxu0 0.0
    %1057 = vmatmul.mubr.f32.gmra.mxu0 %v790
    %v1058 = vpop.f32.mrf.mxu0
    %v1059 = vadd.f32 %v479, %v1058
    %v1060 = vpop.f32.mrf.mxu0
    %1061 = vmatprep.mubr.f32.mxu0 0.0
    %1062 = vmatmul.mubr.f32.gmra.mxu0 %v793
    %v1063 = vpop.f32.mrf.mxu0
    %v1064 = vadd.f32 %v484, %v1063
    %v1065 = vpop.f32.mrf.mxu0
    %1066 = vmatprep.mubr.f32.mxu0 0.0
    %1067 = vmatmul.mubr.f32.gmra.mxu0 %v796
    %v1068 = vpop.f32.mrf.mxu0
    %v1069 = vadd.f32 %v489, %v1068
    %v1070 = vpop.f32.mrf.mxu0
    %1071 = vmatprep.mubr.f32.mxu0 0.0
    %1072 = vmatmul.mubr.f32.gmra.mxu0 %v799
    %v1073 = vpop.f32.mrf.mxu0
    %v1074 = vadd.f32 %v494, %v1073
    %v1075 = vpop.f32.mrf.mxu0
    %1076 = vmatprep.mubr.f32.mxu0 0.0
    %1077 = vmatmul.mubr.f32.gmra.mxu0 %v802
    %v1078 = vpop.f32.mrf.mxu0
    %v1079 = vadd.f32 %v499, %v1078
    %v1080 = vpop.f32.mrf.mxu0
    %1081 = vmatprep.mubr.f32.mxu0 0.0
    %1082 = vmatmul.mubr.f32.gmra.mxu0 %v805
    %v1083 = vpop.f32.mrf.mxu0
    %v1084 = vadd.f32 %v504, %v1083
    %v1085 = vpop.f32.mrf.mxu0
    %1086 = vmatprep.mubr.f32.mxu0 0.0
    %1087 = vmatmul.mubr.f32.gmra.mxu0 %v808
    %v1088 = vpop.f32.mrf.mxu0
    %v1089 = vadd.f32 %v509, %v1088
    %v1090 = vpop.f32.mrf.mxu0
    %1091 = vmatprep.mubr.f32.mxu0 0.0
    %1092 = vmatmul.mubr.f32.gmra.mxu0 %v811
    %v1093 = vpop.f32.mrf.mxu0
    %v1094 = vadd.f32 %v514, %v1093
    %v1095 = vpop.f32.mrf.mxu0
    %1096 = vmatprep.mubr.f32.mxu0 0.0
    %1097 = vmatmul.mubr.f32.gmra.mxu0 %v814
    %v1098 = vpop.f32.mrf.mxu0
    %v1099 = vadd.f32 %v519, %v1098
    %v1100 = vpop.f32.mrf.mxu0
    %1101 = vmatprep.mubr.f32.mxu0 0.0
    %1102 = vmatmul.mubr.f32.gmra.mxu0 %v817
    %v1103 = vpop.f32.mrf.mxu0
    %v1104 = vadd.f32 %v524, %v1103
    %v1105 = vpop.f32.mrf.mxu0
    %1106 = vmatprep.mubr.f32.mxu0 0.0
    %1107 = vmatmul.mubr.f32.gmra.mxu0 %v820
    %v1108 = vpop.f32.mrf.mxu0
    %v1109 = vadd.f32 %v529, %v1108
    %v1110 = vpop.f32.mrf.mxu0
    %1111 = vmatprep.mubr.f32.mxu0 0.0
    %1112 = vmatmul.mubr.f32.gmra.mxu0 %v823
    %v1113 = vpop.f32.mrf.mxu0
    %v1114 = vadd.f32 %v534, %v1113
    %v1115 = vpop.f32.mrf.mxu0
    %1116 = vmatprep.mubr.f32.mxu0 0.0
    %1117 = vmatmul.mubr.f32.gmra.mxu0 %v826
    %v1118 = vpop.f32.mrf.mxu0
    %v1119 = vadd.f32 %v539, %v1118
    %v1120 = vpop.f32.mrf.mxu0
    %1121 = vmatprep.mubr.f32.mxu0 0.0
    %1122 = vmatmul.mubr.f32.gmra.mxu0 %v829
    %v1123 = vpop.f32.mrf.mxu0
    %v1124 = vadd.f32 %v544, %v1123
    %v1125 = vpop.f32.mrf.mxu0
    %1126 = vmatprep.mubr.f32.mxu0 0.0
    %1127 = vmatmul.mubr.f32.gmra.mxu0 %v832
    %v1128 = vpop.f32.mrf.mxu0
    %v1129 = vadd.f32 %v549, %v1128
    %v1130 = vpop.f32.mrf.mxu0
    %1131 = vmatprep.mubr.f32.mxu0 0.0
    %1132 = vmatmul.mubr.f32.gmra.mxu0 %v835
    %v1133 = vpop.f32.mrf.mxu0
    %v1134 = vadd.f32 %v554, %v1133
    %v1135 = vpop.f32.mrf.mxu0
    %1136 = vmatprep.mubr.f32.mxu0 0.0
    %1137 = vmatmul.mubr.f32.gmra.mxu0 %v838
    %v1138 = vpop.f32.mrf.mxu0
    %v1139 = vadd.f32 %v559, %v1138
    %v1140 = vpop.f32.mrf.mxu0
    %1141 = vmatprep.mubr.f32.mxu0 0.0
    %1142 = vmatmul.mubr.f32.gmra.mxu0 %v841
    %v1143 = vpop.f32.mrf.mxu0
    %v1144 = vadd.f32 %v564, %v1143
    %v1145 = vpop.f32.mrf.mxu0
    %1146 = vmatprep.mubr.f32.mxu0 0.0
    %1147 = vmatmul.mubr.f32.gmra.mxu0 %v844
    %v1148 = vpop.f32.mrf.mxu0
    %v1149 = vadd.f32 %v569, %v1148
    %v1150 = vpop.f32.mrf.mxu0
    %1151 = vmatprep.mubr.f32.mxu0 0.0
    %1152 = vmatmul.mubr.f32.gmra.mxu0 %v847
    %v1153 = vpop.f32.mrf.mxu0
    %v1154 = vadd.f32 %v574, %v1153
    %v1155 = vpop.f32.mrf.mxu0
    %1156 = vmatprep.mubr.f32.mxu0 0.0
    %1157 = vmatmul.mubr.f32.gmra.mxu0 %v850
    %v1158 = vpop.f32.mrf.mxu0
    %v1159 = vadd.f32 %v579, %v1158
    %v1160 = vpop.f32.mrf.mxu0
    %1161 = vmatprep.mubr.f32.mxu0 0.0
    %1162 = vmatmul.mubr.f32.gmra.mxu0 %v853
    %v1163 = vpop.f32.mrf.mxu0
    %v1164 = vadd.f32 %v584, %v1163
    %v1165 = vpop.f32.mrf.mxu0
    %1166 = vmatprep.mubr.f32.mxu0 0.0
    %1167 = vmatmul.mubr.f32.gmra.mxu0 %v856
    %v1168 = vpop.f32.mrf.mxu0
    %v1169 = vadd.f32 %v589, %v1168
    %v1170 = vpop.f32.mrf.mxu0
    %1171 = vmatprep.mubr.f32.mxu0 0.0
    %1172 = vmatmul.mubr.f32.gmra.mxu0 %v859
    %v1173 = vpop.f32.mrf.mxu0
    %v1174 = vadd.f32 %v594, %v1173
    %v1175 = vpop.f32.mrf.mxu0
    %1176 = vmatprep.mubr.f32.mxu0 0.0
    %1177 = vmatmul.mubr.f32.gmra.mxu0 %v862
    %v1178 = vpop.f32.mrf.mxu0
    %v1179 = vadd.f32 %v599, %v1178
    %v1180 = vpop.f32.mrf.mxu0
    %1181 = vmatprep.mubr.f32.mxu0 0.0
    %1182 = vmatmul.mubr.f32.gmra.mxu0 %v865
    %v1183 = vpop.f32.mrf.mxu0
    %v1184 = vadd.f32 %v604, %v1183
    %v1185 = vpop.f32.mrf.mxu0
    %1186 = vmatprep.mubr.f32.mxu0 0.0
    %1187 = vmatmul.mubr.f32.gmra.mxu0 %v868
    %v1188 = vpop.f32.mrf.mxu0
    %v1189 = vadd.f32 %v609, %v1188
    %v1190 = vpop.f32.mrf.mxu0
    %1191 = vmatprep.mubr.f32.mxu0 0.0
    %1192 = vmatmul.mubr.f32.gmra.mxu0 %v871
    %v1193 = vpop.f32.mrf.mxu0
    %v1194 = vadd.f32 %v614, %v1193
    %v1195 = vpop.f32.mrf.mxu0
    %1196 = vmatprep.mubr.f32.mxu0 0.0
    %1197 = vmatmul.mubr.f32.gmra.mxu0 %v874
    %v1198 = vpop.f32.mrf.mxu0
    %v1199 = vadd.f32 %v619, %v1198
    %v1200 = vpop.f32.mrf.mxu0
    %1201 = vmatprep.mubr.f32.mxu0 0.0
    %1202 = vmatmul.mubr.f32.gmra.mxu0 %v877
    %v1203 = vpop.f32.mrf.mxu0
    %v1204 = vadd.f32 %v624, %v1203
    %v1205 = vpop.f32.mrf.mxu0
    %1206 = vmatprep.mubr.f32.mxu0 0.0
    %1207 = vmatmul.mubr.f32.gmra.mxu0 %v880
    %v1208 = vpop.f32.mrf.mxu0
    %v1209 = vadd.f32 %v629, %v1208
    %v1210 = vpop.f32.mrf.mxu0
    %1211 = vmatprep.mubr.f32.mxu0 0.0
    %1212 = vmatmul.mubr.f32.gmra.mxu0 %v883
    %v1213 = vpop.f32.mrf.mxu0
    %v1214 = vadd.f32 %v634, %v1213
    %v1215 = vpop.f32.mrf.mxu0
    %1216 = vmatprep.mubr.f32.mxu0 0.0
    %1217 = vmatmul.mubr.f32.gmra.mxu0 %v886
    %v1218 = vpop.f32.mrf.mxu0
    %v1219 = vadd.f32 %v639, %v1218
    %v1220 = vpop.f32.mrf.mxu0
    %1221 = vmatprep.mubr.f32.mxu0 0.0
    %1222 = vmatmul.mubr.f32.gmra.mxu0 %v889
    %v1223 = vpop.f32.mrf.mxu0
    %v1224 = vadd.f32 %v644, %v1223
    %v1225 = vpop.f32.mrf.mxu0
    %1226 = vmatprep.mubr.f32.mxu0 0.0
    %1227 = vmatmul.mubr.f32.gmra.mxu0 %v892
    %v1228 = vpop.f32.mrf.mxu0
    %v1229 = vadd.f32 %v649, %v1228
    %v1230 = vpop.f32.mrf.mxu0
    %1231 = vmatprep.mubr.f32.mxu0 0.0
    %1232 = vmatmul.mubr.f32.gmra.mxu0 %v895
    %v1233 = vpop.f32.mrf.mxu0
    %v1234 = vadd.f32 %v654, %v1233
    %v1235 = vpop.f32.mrf.mxu0
    %1236 = vmatprep.mubr.f32.mxu0 0.0
    %1237 = vmatmul.mubr.f32.gmra.mxu0 %v898
    %v1238 = vpop.f32.mrf.mxu0
    %v1239 = vadd.f32 %v659, %v1238
    %v1240 = vpop.f32.mrf.mxu0
    %1241 = vmatprep.mubr.f32.mxu0 0.0
    %1242 = vmatmul.mubr.f32.gmra.mxu0 %v901
    %v1243 = vpop.f32.mrf.mxu0
    %v1244 = vadd.f32 %v664, %v1243
    %v1245 = vpop.f32.mrf.mxu0
    %1246 = vmatprep.mubr.f32.mxu0 0.0
    %1247 = vmatmul.mubr.f32.gmra.mxu0 %v904
    %v1248 = vpop.f32.mrf.mxu0
    %v1249 = vadd.f32 %v669, %v1248
    %v1250 = vpop.f32.mrf.mxu0
    %1251 = vmatprep.mubr.f32.mxu0 0.0
    %1252 = vmatmul.mubr.f32.gmra.mxu0 %v907
    %v1253 = vpop.f32.mrf.mxu0
    %v1254 = vadd.f32 %v674, %v1253
    %v1255 = vpop.f32.mrf.mxu0
    %1256 = vmatprep.mubr.f32.mxu0 0.0
    %1257 = vmatmul.mubr.f32.gmra.mxu0 %v910
    %v1258 = vpop.f32.mrf.mxu0
    %v1259 = vadd.f32 %v679, %v1258
    %v1260 = vpop.f32.mrf.mxu0
    %1261 = vmatprep.mubr.f32.mxu0 0.0
    %1262 = vmatmul.mubr.f32.gmra.mxu0 %v913
    %v1263 = vpop.f32.mrf.mxu0
    %v1264 = vadd.f32 %v684, %v1263
    %v1265 = vpop.f32.mrf.mxu0
    %1266 = vmatprep.mubr.f32.mxu0 0.0
    %1267 = vmatmul.mubr.f32.gmra.mxu0 %v916
    %v1268 = vpop.f32.mrf.mxu0
    %v1269 = vadd.f32 %v689, %v1268
    %v1270 = vpop.f32.mrf.mxu0
    %1271 = vmatprep.mubr.f32.mxu0 0.0
    %1272 = vmatmul.mubr.f32.gmra.mxu0 %v919
    %v1273 = vpop.f32.mrf.mxu0
    %v1274 = vadd.f32 %v694, %v1273
    %v1275 = vpop.f32.mrf.mxu0
    %1276 = vmatprep.mubr.f32.mxu0 0.0
    %1277 = vmatmul.mubr.f32.gmra.mxu0 %v922
    %v1278 = vpop.f32.mrf.mxu0
    %v1279 = vadd.f32 %v699, %v1278
    %v1280 = vpop.f32.mrf.mxu0
    %1281 = vmatprep.mubr.f32.mxu0 0.0
    %1282 = vmatmul.mubr.f32.gmra.mxu0 %v925
    %v1283 = vpop.f32.mrf.mxu0
    %v1284 = vadd.f32 %v704, %v1283
    %v1285 = vpop.f32.mrf.mxu0
    %1286 = vmatprep.mubr.f32.mxu0 0.0
    %1287 = vmatmul.mubr.f32.gmra.mxu0 %v928
    %v1288 = vpop.f32.mrf.mxu0
    %v1289 = vadd.f32 %v709, %v1288
    %v1290 = vpop.f32.mrf.mxu0
    %1291 = vmatprep.mubr.f32.mxu0 0.0
    %1292 = vmatmul.mubr.f32.gmra.mxu0 %v931
    %v1293 = vpop.f32.mrf.mxu0
    %v1294 = vadd.f32 %v714, %v1293
    %v1295 = vpop.f32.mrf.mxu0
    %1296 = vmatprep.mubr.f32.mxu0 0.0
    %1297 = vmatmul.mubr.f32.gmra.mxu0 %v934
    %v1298 = vpop.f32.mrf.mxu0
    %v1299 = vadd.f32 %v719, %v1298
    %v1300 = vpop.f32.mrf.mxu0
    %1301 = vmatprep.mubr.f32.mxu0 0.0
    %1302 = vmatmul.mubr.f32.gmra.mxu0 %v937
    %v1303 = vpop.f32.mrf.mxu0
    %v1304 = vadd.f32 %v724, %v1303
    %v1305 = vpop.f32.mrf.mxu0
    %1306 = vmatprep.mubr.f32.mxu0 0.0
    %1307 = vmatmul.mubr.f32.gmra.mxu0 %v940
    %v1308 = vpop.f32.mrf.mxu0
    %v1309 = vadd.f32 %v729, %v1308
    %v1310 = vpop.f32.mrf.mxu0
    %1311 = vmatprep.mubr.f32.mxu0 0.0
    %1312 = vmatmul.mubr.f32.gmra.mxu0 %v943
    %v1313 = vpop.f32.mrf.mxu0
    %v1314 = vadd.f32 %v734, %v1313
    %v1315 = vpop.f32.mrf.mxu0
    %1316 = vmatprep.mubr.f32.mxu0 0.0
    %1317 = vmatmul.mubr.f32.gmra.mxu0 %v946
    %v1318 = vpop.f32.mrf.mxu0
    %v1319 = vadd.f32 %v739, %v1318
    %v1320 = vpop.f32.mrf.mxu0
    %1321 = vmatprep.mubr.f32.mxu0 0.0
    %1322 = vmatmul.mubr.f32.gmra.mxu0 %v949
    %v1323 = vpop.f32.mrf.mxu0
    %v1324 = vadd.f32 %v744, %v1323
    %v1325 = vpop.f32.mrf.mxu0
    %1326 = vmatprep.mubr.f32.mxu0 0.0
    %1327 = vmatmul.mubr.f32.gmra.mxu0 %v952
    %v1328 = vpop.f32.mrf.mxu0
    %v1329 = vadd.f32 %v749, %v1328
    %v1330 = vpop.f32.mrf.mxu0
    %1331 = vmatprep.mubr.f32.mxu0 0.0
    %1332 = vmatmul.mubr.f32.gmra.mxu0 %v955
    %v1333 = vpop.f32.mrf.mxu0
    %v1334 = vadd.f32 %v754, %v1333
    %v1335 = vpop.f32.mrf.mxu0
    %1336 = vmatprep.mubr.f32.mxu0 0.0
    %1337 = vmatmul.mubr.f32.gmra.mxu0 %v958
    %v1338 = vpop.f32.mrf.mxu0
    %v1339 = vadd.f32 %v759, %v1338
    %v1340 = vpop.f32.mrf.mxu0
    %1341 = vmatprep.mubr.f32.mxu0 0.0
    %1342 = vmatmul.mubr.f32.gmra.mxu0 %v961
    %v1343 = vpop.f32.mrf.mxu0
    %v1344 = vadd.f32 %v764, %v1343
    %v1345 = vpop.f32.mrf.mxu0
    %1346 = vmatprep.mubr.f32.mxu0 0.0
    %1347 = vmatmul.mubr.f32.gmra.mxu0 %v964
    %v1348 = vpop.f32.mrf.mxu0
    %v1349 = vadd.f32 %v769, %v1348
    %v1350 = vpop.f32.mrf.mxu0
    %1351 = vmatprep.mubr.f32.mxu0 0.0
    %1352 = vmatmul.mubr.f32.gmra.mxu0 %v967
    %v1353 = vpop.f32.mrf.mxu0
    %v1354 = vadd.f32 %v774, %v1353
    %v1355 = vpop.f32.mrf.mxu0
    %1356 = vdwg.mxu0
    %v1357 = vld [vmem:[%s0 + $0x2] sm:$0xff]
    %v1358 = vld [vmem:[%s0 + $0xa] sm:$0xff]
    %v1359 = vld [vmem:[%s0 + $0x1a] sm:$0xff]
    %v1360 = vld [vmem:[%s0 + $0x22] sm:$0xff]
    %v1361 = vld [vmem:[%s0 + $0x32] sm:$0xff]
    %v1362 = vld [vmem:[%s0 + $0x3a] sm:$0xff]
    %v1363 = vld [vmem:[%s0 + $0x4a] sm:$0xff]
    %v1364 = vld [vmem:[%s0 + $0x52] sm:$0xff]
    %v1365 = vld [vmem:[%s0 + $0x62] sm:$0xff]
    %v1366 = vld [vmem:[%s0 + $0x6a] sm:$0xff]
    %v1367 = vld [vmem:[%s0 + $0x7a] sm:$0xff]
    %v1368 = vld [vmem:[%s0 + $0x82] sm:$0xff]
    %v1369 = vld [vmem:[%s0 + $0x92] sm:$0xff]
    %v1370 = vld [vmem:[%s0 + $0x9a] sm:$0xff]
    %v1371 = vld [vmem:[%s0 + $0xaa] sm:$0xff]
    %v1372 = vld [vmem:[%s0 + $0xb2] sm:$0xff]
    %v1373 = vld [vmem:[%s0 + $0xc2] sm:$0xff]
    %v1374 = vld [vmem:[%s0 + $0xca] sm:$0xff]
    %v1375 = vld [vmem:[%s0 + $0xda] sm:$0xff]
    %v1376 = vld [vmem:[%s0 + $0xe2] sm:$0xff]
    %v1377 = vld [vmem:[%s0 + $0xf2] sm:$0xff]
    %v1378 = vld [vmem:[%s0 + $0xfa] sm:$0xff]
    %v1379 = vld [vmem:[%s0 + $0x10a] sm:$0xff]
    %v1380 = vld [vmem:[%s0 + $0x112] sm:$0xff]
    %v1381 = vld [vmem:[%s0 + $0x122] sm:$0xff]
    %v1382 = vld [vmem:[%s0 + $0x12a] sm:$0xff]
    %v1383 = vld [vmem:[%s0 + $0x13a] sm:$0xff]
    %v1384 = vld [vmem:[%s0 + $0x142] sm:$0xff]
    %v1385 = vld [vmem:[%s0 + $0x152] sm:$0xff]
    %v1386 = vld [vmem:[%s0 + $0x15a] sm:$0xff]
    %v1387 = vld [vmem:[%s0 + $0x16a] sm:$0xff]
    %v1388 = vld [vmem:[%s0 + $0x172] sm:$0xff]
    %v1389 = vld [vmem:[%s0 + $0x1b2] sm:$0xff]
    %v1390 = vld [vmem:[%s0 + $0x1ba] sm:$0xff]
    %v1391 = vld [vmem:[%s0 + $0x1ca] sm:$0xff]
    %v1392 = vld [vmem:[%s0 + $0x1d2] sm:$0xff]
    %v1393 = vld [vmem:[%s0 + $0x1e2] sm:$0xff]
    %v1394 = vld [vmem:[%s0 + $0x1ea] sm:$0xff]
    %v1395 = vld [vmem:[%s0 + $0x1fa] sm:$0xff]
    %v1396 = vld [vmem:[%s0 + $0x202] sm:$0xff]
    %v1397 = vld [vmem:[%s0 + $0x212] sm:$0xff]
    %v1398 = vld [vmem:[%s0 + $0x21a] sm:$0xff]
    %v1399 = vld [vmem:[%s0 + $0x22a] sm:$0xff]
    %v1400 = vld [vmem:[%s0 + $0x232] sm:$0xff]
    %v1401 = vld [vmem:[%s0 + $0x242] sm:$0xff]
    %v1402 = vld [vmem:[%s0 + $0x24a] sm:$0xff]
    %v1403 = vld [vmem:[%s0 + $0x25a] sm:$0xff]
    %v1404 = vld [vmem:[%s0 + $0x262] sm:$0xff]
    %v1405 = vld [vmem:[%s0 + $0x272] sm:$0xff]
    %v1406 = vld [vmem:[%s0 + $0x27a] sm:$0xff]
    %v1407 = vld [vmem:[%s0 + $0x28a] sm:$0xff]
    %v1408 = vld [vmem:[%s0 + $0x292] sm:$0xff]
    %v1409 = vld [vmem:[%s0 + $0x2a2] sm:$0xff]
    %v1410 = vld [vmem:[%s0 + $0x2aa] sm:$0xff]
    %v1411 = vld [vmem:[%s0 + $0x2ba] sm:$0xff]
    %v1412 = vld [vmem:[%s0 + $0x2c2] sm:$0xff]
    %v1413 = vld [vmem:[%s0 + $0x2d2] sm:$0xff]
    %v1414 = vld [vmem:[%s0 + $0x2da] sm:$0xff]
    %v1415 = vld [vmem:[%s0 + $0x2ea] sm:$0xff]
    %v1416 = vld [vmem:[%s0 + $0x2f2] sm:$0xff]
    %v1417 = vld [vmem:[%s0 + $0x302] sm:$0xff]
    %v1418 = vld [vmem:[%s0 + $0x30a] sm:$0xff]
    %v1419 = vld [vmem:[%s0 + $0x31a] sm:$0xff]
    %v1420 = vld [vmem:[%s0 + $0x322] sm:$0xff]
    %s1421 = scalar_lea.vmem %s2, 8
    %v1422 = vld [vmem:[%s1421] sm:$0x7]
    %v1424 = vsel %vm195, %v1357, 0
    %v1427 = vsel %vm195, %v1358, 0
    %v1430 = vsel %vm195, %v1359, 0
    %v1433 = vsel %vm195, %v1360, 0
    %v1436 = vsel %vm195, %v1361, 0
    %v1439 = vsel %vm195, %v1362, 0
    %v1442 = vsel %vm195, %v1363, 0
    %v1445 = vsel %vm195, %v1364, 0
    %v1448 = vsel %vm195, %v1365, 0
    %v1451 = vsel %vm195, %v1366, 0
    %v1454 = vsel %vm195, %v1367, 0
    %v1457 = vsel %vm195, %v1368, 0
    %v1460 = vsel %vm195, %v1369, 0
    %v1463 = vsel %vm195, %v1370, 0
    %v1466 = vsel %vm195, %v1371, 0
    %v1469 = vsel %vm195, %v1372, 0
    %v1472 = vsel %vm195, %v1373, 0
    %v1475 = vsel %vm195, %v1374, 0
    %v1478 = vsel %vm195, %v1375, 0
    %v1481 = vsel %vm195, %v1376, 0
    %v1484 = vsel %vm195, %v1377, 0
    %v1487 = vsel %vm195, %v1378, 0
    %v1490 = vsel %vm195, %v1379, 0
    %v1493 = vsel %vm195, %v1380, 0
    %v1496 = vsel %vm195, %v1381, 0
    %v1499 = vsel %vm195, %v1382, 0
    %v1502 = vsel %vm195, %v1383, 0
    %v1505 = vsel %vm195, %v1384, 0
    %v1508 = vsel %vm195, %v1385, 0
    %v1511 = vsel %vm195, %v1386, 0
    %v1514 = vsel %vm195, %v1387, 0
    %v1517 = vsel %vm195, %v1388, 0
    %v1520 = vsel %vm195, %v1389, 0
    %v1523 = vsel %vm195, %v1390, 0
    %v1526 = vsel %vm195, %v1391, 0
    %v1529 = vsel %vm195, %v1392, 0
    %v1532 = vsel %vm195, %v1393, 0
    %v1535 = vsel %vm195, %v1394, 0
    %v1538 = vsel %vm195, %v1395, 0
    %v1541 = vsel %vm195, %v1396, 0
    %v1544 = vsel %vm195, %v1397, 0
    %v1547 = vsel %vm195, %v1398, 0
    %v1550 = vsel %vm195, %v1399, 0
    %v1553 = vsel %vm195, %v1400, 0
    %v1556 = vsel %vm195, %v1401, 0
    %v1559 = vsel %vm195, %v1402, 0
    %v1562 = vsel %vm195, %v1403, 0
    %v1565 = vsel %vm195, %v1404, 0
    %v1568 = vsel %vm195, %v1405, 0
    %v1571 = vsel %vm195, %v1406, 0
    %v1574 = vsel %vm195, %v1407, 0
    %v1577 = vsel %vm195, %v1408, 0
    %v1580 = vsel %vm195, %v1409, 0
    %v1583 = vsel %vm195, %v1410, 0
    %v1586 = vsel %vm195, %v1411, 0
    %v1589 = vsel %vm195, %v1412, 0
    %v1592 = vsel %vm195, %v1413, 0
    %v1595 = vsel %vm195, %v1414, 0
    %v1598 = vsel %vm195, %v1415, 0
    %v1601 = vsel %vm195, %v1416, 0
    %v1604 = vsel %vm195, %v1417, 0
    %v1607 = vsel %vm195, %v1418, 0
    %v1610 = vsel %vm195, %v1419, 0
    %v1613 = vsel %vm195, %v1420, 0
    %v1616 = vsel %vm388, %v1422, 0
    %1618 = vmatprep.subr.mxu0 0.0
    %1619 = vmatpush1.msra.mxu0 0.0
    %1620 = vmatprep.subr.mxu0 0.0
    %1621 = vmatpush1.msra.mxu0 0.0
    %1622 = vmatprep.subr.mxu0 0.0
    %1623 = vmatpush1.msra.mxu0 0.0
    %1624 = vmatprep.subr.mxu0 0.0
    %1625 = vmatpush1.msra.mxu0 0.0
    %1626 = vmatprep.subr.mxu0 0.0
    %1627 = vmatpush1.msra.mxu0 0.0
    %1628 = vmatprep.subr.mxu0 0.0
    %1629 = vmatpush1.msra.mxu0 0.0
    %1630 = vmatprep.subr.mxu0 0.0
    %1631 = vmatpush1.msra.mxu0 0.0
    %1632 = vmatprep.subr.mxu0 0.0
    %1633 = vmatpush1.msra.mxu0 0.0
    %1634 = vmatprep.subr.mxu0 0.0
    %1635 = vmatpush1.msra.mxu0 0.0
    %1636 = vmatprep.subr.mxu0 0.0
    %1637 = vmatpush1.msra.mxu0 0.0
    %1638 = vmatprep.subr.mxu0 0.0
    %1639 = vmatpush1.msra.mxu0 0.0
    %1640 = vmatprep.subr.mxu0 0.0
    %1641 = vmatpush1.msra.mxu0 0.0
    %1642 = vmatprep.subr.mxu0 0.0
    %1643 = vmatpush1.msra.mxu0 0.0
    %1644 = vmatprep.subr.mxu0 0.0
    %1645 = vmatpush1.msra.mxu0 0.0
    %1646 = vmatprep.subr.mxu0 0.0
    %1647 = vmatpush1.msra.mxu0 0.0
    %1648 = vmatprep.subr.mxu0 0.0
    %1649 = vmatpush1.msra.mxu0 %v1616
    %1650 = vmatprep.subr.mxu0 0.0
    %1651 = vmatpush2.msra.mxu0 0.0
    %1652 = vmatprep.subr.mxu0 0.0
    %1653 = vmatpush2.msra.mxu0 0.0
    %1654 = vmatprep.subr.mxu0 0.0
    %1655 = vmatpush2.msra.mxu0 0.0
    %1656 = vmatprep.subr.mxu0 0.0
    %1657 = vmatpush2.msra.mxu0 0.0
    %1658 = vmatprep.subr.mxu0 0.0
    %1659 = vmatpush2.msra.mxu0 0.0
    %1660 = vmatprep.subr.mxu0 0.0
    %1661 = vmatpush2.msra.mxu0 0.0
    %1662 = vmatprep.subr.mxu0 0.0
    %1663 = vmatpush2.msra.mxu0 0.0
    %1664 = vmatprep.subr.mxu0 0.0
    %1665 = vmatpush2.msra.mxu0 0.0
    %1666 = vmatprep.subr.mxu0 0.0
    %1667 = vmatpush2.msra.mxu0 0.0
    %1668 = vmatprep.subr.mxu0 0.0
    %1669 = vmatpush2.msra.mxu0 0.0
    %1670 = vmatprep.subr.mxu0 0.0
    %1671 = vmatpush2.msra.mxu0 0.0
    %1672 = vmatprep.subr.mxu0 0.0
    %1673 = vmatpush2.msra.mxu0 0.0
    %1674 = vmatprep.subr.mxu0 0.0
    %1675 = vmatpush2.msra.mxu0 0.0
    %1676 = vmatprep.subr.mxu0 0.0
    %1677 = vmatpush2.msra.mxu0 0.0
    %1678 = vmatprep.subr.mxu0 0.0
    %1679 = vmatpush2.msra.mxu0 0.0
    %1680 = vmatprep.subr.mxu0 0.0
    %1681 = vmatpush2.msra.mxu0 0.0
    %1682 = vmatprep.mubr.f32.mxu0 0.0
    %1683 = vmatmul.mubr.f32.gmra.mxu0 %v1424
    %v1684 = vpop.f32.mrf.mxu0
    %v1685 = vadd.f32 0.0, %v1684
    %v1686 = vpop.f32.mrf.mxu0
    %1687 = vmatprep.mubr.f32.mxu0 0.0
    %1688 = vmatmul.mubr.f32.gmra.mxu0 %v1427
    %v1689 = vpop.f32.mrf.mxu0
    %v1690 = vadd.f32 0.0, %v1689
    %v1691 = vpop.f32.mrf.mxu0
    %1692 = vmatprep.mubr.f32.mxu0 0.0
    %1693 = vmatmul.mubr.f32.gmra.mxu0 %v1430
    %v1694 = vpop.f32.mrf.mxu0
    %v1695 = vadd.f32 0.0, %v1694
    %v1696 = vpop.f32.mrf.mxu0
    %1697 = vmatprep.mubr.f32.mxu0 0.0
    %1698 = vmatmul.mubr.f32.gmra.mxu0 %v1433
    %v1699 = vpop.f32.mrf.mxu0
    %v1700 = vadd.f32 0.0, %v1699
    %v1701 = vpop.f32.mrf.mxu0
    %1702 = vmatprep.mubr.f32.mxu0 0.0
    %1703 = vmatmul.mubr.f32.gmra.mxu0 %v1436
    %v1704 = vpop.f32.mrf.mxu0
    %v1705 = vadd.f32 0.0, %v1704
    %v1706 = vpop.f32.mrf.mxu0
    %1707 = vmatprep.mubr.f32.mxu0 0.0
    %1708 = vmatmul.mubr.f32.gmra.mxu0 %v1439
    %v1709 = vpop.f32.mrf.mxu0
    %v1710 = vadd.f32 0.0, %v1709
    %v1711 = vpop.f32.mrf.mxu0
    %1712 = vmatprep.mubr.f32.mxu0 0.0
    %1713 = vmatmul.mubr.f32.gmra.mxu0 %v1442
    %v1714 = vpop.f32.mrf.mxu0
    %v1715 = vadd.f32 0.0, %v1714
    %v1716 = vpop.f32.mrf.mxu0
    %1717 = vmatprep.mubr.f32.mxu0 0.0
    %1718 = vmatmul.mubr.f32.gmra.mxu0 %v1445
    %v1719 = vpop.f32.mrf.mxu0
    %v1720 = vadd.f32 0.0, %v1719
    %v1721 = vpop.f32.mrf.mxu0
    %1722 = vmatprep.mubr.f32.mxu0 0.0
    %1723 = vmatmul.mubr.f32.gmra.mxu0 %v1448
    %v1724 = vpop.f32.mrf.mxu0
    %v1725 = vadd.f32 0.0, %v1724
    %v1726 = vpop.f32.mrf.mxu0
    %1727 = vmatprep.mubr.f32.mxu0 0.0
    %1728 = vmatmul.mubr.f32.gmra.mxu0 %v1451
    %v1729 = vpop.f32.mrf.mxu0
    %v1730 = vadd.f32 0.0, %v1729
    %v1731 = vpop.f32.mrf.mxu0
    %1732 = vmatprep.mubr.f32.mxu0 0.0
    %1733 = vmatmul.mubr.f32.gmra.mxu0 %v1454
    %v1734 = vpop.f32.mrf.mxu0
    %v1735 = vadd.f32 0.0, %v1734
    %v1736 = vpop.f32.mrf.mxu0
    %1737 = vmatprep.mubr.f32.mxu0 0.0
    %1738 = vmatmul.mubr.f32.gmra.mxu0 %v1457
    %v1739 = vpop.f32.mrf.mxu0
    %v1740 = vadd.f32 0.0, %v1739
    %v1741 = vpop.f32.mrf.mxu0
    %1742 = vmatprep.mubr.f32.mxu0 0.0
    %1743 = vmatmul.mubr.f32.gmra.mxu0 %v1460
    %v1744 = vpop.f32.mrf.mxu0
    %v1745 = vadd.f32 0.0, %v1744
    %v1746 = vpop.f32.mrf.mxu0
    %1747 = vmatprep.mubr.f32.mxu0 0.0
    %1748 = vmatmul.mubr.f32.gmra.mxu0 %v1463
    %v1749 = vpop.f32.mrf.mxu0
    %v1750 = vadd.f32 0.0, %v1749
    %v1751 = vpop.f32.mrf.mxu0
    %1752 = vmatprep.mubr.f32.mxu0 0.0
    %1753 = vmatmul.mubr.f32.gmra.mxu0 %v1466
    %v1754 = vpop.f32.mrf.mxu0
    %v1755 = vadd.f32 0.0, %v1754
    %v1756 = vpop.f32.mrf.mxu0
    %1757 = vmatprep.mubr.f32.mxu0 0.0
    %1758 = vmatmul.mubr.f32.gmra.mxu0 %v1469
    %v1759 = vpop.f32.mrf.mxu0
    %v1760 = vadd.f32 0.0, %v1759
    %v1761 = vpop.f32.mrf.mxu0
    %1762 = vmatprep.mubr.f32.mxu0 0.0
    %1763 = vmatmul.mubr.f32.gmra.mxu0 %v1472
    %v1764 = vpop.f32.mrf.mxu0
    %v1765 = vadd.f32 0.0, %v1764
    %v1766 = vpop.f32.mrf.mxu0
    %1767 = vmatprep.mubr.f32.mxu0 0.0
    %1768 = vmatmul.mubr.f32.gmra.mxu0 %v1475
    %v1769 = vpop.f32.mrf.mxu0
    %v1770 = vadd.f32 0.0, %v1769
    %v1771 = vpop.f32.mrf.mxu0
    %1772 = vmatprep.mubr.f32.mxu0 0.0
    %1773 = vmatmul.mubr.f32.gmra.mxu0 %v1478
    %v1774 = vpop.f32.mrf.mxu0
    %v1775 = vadd.f32 0.0, %v1774
    %v1776 = vpop.f32.mrf.mxu0
    %1777 = vmatprep.mubr.f32.mxu0 0.0
    %1778 = vmatmul.mubr.f32.gmra.mxu0 %v1481
    %v1779 = vpop.f32.mrf.mxu0
    %v1780 = vadd.f32 0.0, %v1779
    %v1781 = vpop.f32.mrf.mxu0
    %1782 = vmatprep.mubr.f32.mxu0 0.0
    %1783 = vmatmul.mubr.f32.gmra.mxu0 %v1484
    %v1784 = vpop.f32.mrf.mxu0
    %v1785 = vadd.f32 0.0, %v1784
    %v1786 = vpop.f32.mrf.mxu0
    %1787 = vmatprep.mubr.f32.mxu0 0.0
    %1788 = vmatmul.mubr.f32.gmra.mxu0 %v1487
    %v1789 = vpop.f32.mrf.mxu0
    %v1790 = vadd.f32 0.0, %v1789
    %v1791 = vpop.f32.mrf.mxu0
    %1792 = vmatprep.mubr.f32.mxu0 0.0
    %1793 = vmatmul.mubr.f32.gmra.mxu0 %v1490
    %v1794 = vpop.f32.mrf.mxu0
    %v1795 = vadd.f32 0.0, %v1794
    %v1796 = vpop.f32.mrf.mxu0
    %1797 = vmatprep.mubr.f32.mxu0 0.0
    %1798 = vmatmul.mubr.f32.gmra.mxu0 %v1493
    %v1799 = vpop.f32.mrf.mxu0
    %v1800 = vadd.f32 0.0, %v1799
    %v1801 = vpop.f32.mrf.mxu0
    %1802 = vmatprep.mubr.f32.mxu0 0.0
    %1803 = vmatmul.mubr.f32.gmra.mxu0 %v1496
    %v1804 = vpop.f32.mrf.mxu0
    %v1805 = vadd.f32 0.0, %v1804
    %v1806 = vpop.f32.mrf.mxu0
    %1807 = vmatprep.mubr.f32.mxu0 0.0
    %1808 = vmatmul.mubr.f32.gmra.mxu0 %v1499
    %v1809 = vpop.f32.mrf.mxu0
    %v1810 = vadd.f32 0.0, %v1809
    %v1811 = vpop.f32.mrf.mxu0
    %1812 = vmatprep.mubr.f32.mxu0 0.0
    %1813 = vmatmul.mubr.f32.gmra.mxu0 %v1502
    %v1814 = vpop.f32.mrf.mxu0
    %v1815 = vadd.f32 0.0, %v1814
    %v1816 = vpop.f32.mrf.mxu0
    %1817 = vmatprep.mubr.f32.mxu0 0.0
    %1818 = vmatmul.mubr.f32.gmra.mxu0 %v1505
    %v1819 = vpop.f32.mrf.mxu0
    %v1820 = vadd.f32 0.0, %v1819
    %v1821 = vpop.f32.mrf.mxu0
    %1822 = vmatprep.mubr.f32.mxu0 0.0
    %1823 = vmatmul.mubr.f32.gmra.mxu0 %v1508
    %v1824 = vpop.f32.mrf.mxu0
    %v1825 = vadd.f32 0.0, %v1824
    %v1826 = vpop.f32.mrf.mxu0
    %1827 = vmatprep.mubr.f32.mxu0 0.0
    %1828 = vmatmul.mubr.f32.gmra.mxu0 %v1511
    %v1829 = vpop.f32.mrf.mxu0
    %v1830 = vadd.f32 0.0, %v1829
    %v1831 = vpop.f32.mrf.mxu0
    %1832 = vmatprep.mubr.f32.mxu0 0.0
    %1833 = vmatmul.mubr.f32.gmra.mxu0 %v1514
    %v1834 = vpop.f32.mrf.mxu0
    %v1835 = vadd.f32 0.0, %v1834
    %v1836 = vpop.f32.mrf.mxu0
    %1837 = vmatprep.mubr.f32.mxu0 0.0
    %1838 = vmatmul.mubr.f32.gmra.mxu0 %v1517
    %v1839 = vpop.f32.mrf.mxu0
    %v1840 = vadd.f32 0.0, %v1839
    %v1841 = vpop.f32.mrf.mxu0
    %1842 = vmatprep.mubr.f32.mxu0 0.0
    %1843 = vmatmul.mubr.f32.gmra.mxu0 %v1520
    %v1844 = vpop.f32.mrf.mxu0
    %v1845 = vadd.f32 0.0, %v1844
    %v1846 = vpop.f32.mrf.mxu0
    %1847 = vmatprep.mubr.f32.mxu0 0.0
    %1848 = vmatmul.mubr.f32.gmra.mxu0 %v1523
    %v1849 = vpop.f32.mrf.mxu0
    %v1850 = vadd.f32 0.0, %v1849
    %v1851 = vpop.f32.mrf.mxu0
    %1852 = vmatprep.mubr.f32.mxu0 0.0
    %1853 = vmatmul.mubr.f32.gmra.mxu0 %v1526
    %v1854 = vpop.f32.mrf.mxu0
    %v1855 = vadd.f32 0.0, %v1854
    %v1856 = vpop.f32.mrf.mxu0
    %1857 = vmatprep.mubr.f32.mxu0 0.0
    %1858 = vmatmul.mubr.f32.gmra.mxu0 %v1529
    %v1859 = vpop.f32.mrf.mxu0
    %v1860 = vadd.f32 0.0, %v1859
    %v1861 = vpop.f32.mrf.mxu0
    %1862 = vmatprep.mubr.f32.mxu0 0.0
    %1863 = vmatmul.mubr.f32.gmra.mxu0 %v1532
    %v1864 = vpop.f32.mrf.mxu0
    %v1865 = vadd.f32 0.0, %v1864
    %v1866 = vpop.f32.mrf.mxu0
    %1867 = vmatprep.mubr.f32.mxu0 0.0
    %1868 = vmatmul.mubr.f32.gmra.mxu0 %v1535
    %v1869 = vpop.f32.mrf.mxu0
    %v1870 = vadd.f32 0.0, %v1869
    %v1871 = vpop.f32.mrf.mxu0
    %1872 = vmatprep.mubr.f32.mxu0 0.0
    %1873 = vmatmul.mubr.f32.gmra.mxu0 %v1538
    %v1874 = vpop.f32.mrf.mxu0
    %v1875 = vadd.f32 0.0, %v1874
    %v1876 = vpop.f32.mrf.mxu0
    %1877 = vmatprep.mubr.f32.mxu0 0.0
    %1878 = vmatmul.mubr.f32.gmra.mxu0 %v1541
    %v1879 = vpop.f32.mrf.mxu0
    %v1880 = vadd.f32 0.0, %v1879
    %v1881 = vpop.f32.mrf.mxu0
    %1882 = vmatprep.mubr.f32.mxu0 0.0
    %1883 = vmatmul.mubr.f32.gmra.mxu0 %v1544
    %v1884 = vpop.f32.mrf.mxu0
    %v1885 = vadd.f32 0.0, %v1884
    %v1886 = vpop.f32.mrf.mxu0
    %1887 = vmatprep.mubr.f32.mxu0 0.0
    %1888 = vmatmul.mubr.f32.gmra.mxu0 %v1547
    %v1889 = vpop.f32.mrf.mxu0
    %v1890 = vadd.f32 0.0, %v1889
    %v1891 = vpop.f32.mrf.mxu0
    %1892 = vmatprep.mubr.f32.mxu0 0.0
    %1893 = vmatmul.mubr.f32.gmra.mxu0 %v1550
    %v1894 = vpop.f32.mrf.mxu0
    %v1895 = vadd.f32 0.0, %v1894
    %v1896 = vpop.f32.mrf.mxu0
    %1897 = vmatprep.mubr.f32.mxu0 0.0
    %1898 = vmatmul.mubr.f32.gmra.mxu0 %v1553
    %v1899 = vpop.f32.mrf.mxu0
    %v1900 = vadd.f32 0.0, %v1899
    %v1901 = vpop.f32.mrf.mxu0
    %1902 = vmatprep.mubr.f32.mxu0 0.0
    %1903 = vmatmul.mubr.f32.gmra.mxu0 %v1556
    %v1904 = vpop.f32.mrf.mxu0
    %v1905 = vadd.f32 0.0, %v1904
    %v1906 = vpop.f32.mrf.mxu0
    %1907 = vmatprep.mubr.f32.mxu0 0.0
    %1908 = vmatmul.mubr.f32.gmra.mxu0 %v1559
    %v1909 = vpop.f32.mrf.mxu0
    %v1910 = vadd.f32 0.0, %v1909
    %v1911 = vpop.f32.mrf.mxu0
    %1912 = vmatprep.mubr.f32.mxu0 0.0
    %1913 = vmatmul.mubr.f32.gmra.mxu0 %v1562
    %v1914 = vpop.f32.mrf.mxu0
    %v1915 = vadd.f32 0.0, %v1914
    %v1916 = vpop.f32.mrf.mxu0
    %1917 = vmatprep.mubr.f32.mxu0 0.0
    %1918 = vmatmul.mubr.f32.gmra.mxu0 %v1565
    %v1919 = vpop.f32.mrf.mxu0
    %v1920 = vadd.f32 0.0, %v1919
    %v1921 = vpop.f32.mrf.mxu0
    %1922 = vmatprep.mubr.f32.mxu0 0.0
    %1923 = vmatmul.mubr.f32.gmra.mxu0 %v1568
    %v1924 = vpop.f32.mrf.mxu0
    %v1925 = vadd.f32 0.0, %v1924
    %v1926 = vpop.f32.mrf.mxu0
    %1927 = vmatprep.mubr.f32.mxu0 0.0
    %1928 = vmatmul.mubr.f32.gmra.mxu0 %v1571
    %v1929 = vpop.f32.mrf.mxu0
    %v1930 = vadd.f32 0.0, %v1929
    %v1931 = vpop.f32.mrf.mxu0
    %1932 = vmatprep.mubr.f32.mxu0 0.0
    %1933 = vmatmul.mubr.f32.gmra.mxu0 %v1574
    %v1934 = vpop.f32.mrf.mxu0
    %v1935 = vadd.f32 0.0, %v1934
    %v1936 = vpop.f32.mrf.mxu0
    %1937 = vmatprep.mubr.f32.mxu0 0.0
    %1938 = vmatmul.mubr.f32.gmra.mxu0 %v1577
    %v1939 = vpop.f32.mrf.mxu0
    %v1940 = vadd.f32 0.0, %v1939
    %v1941 = vpop.f32.mrf.mxu0
    %1942 = vmatprep.mubr.f32.mxu0 0.0
    %1943 = vmatmul.mubr.f32.gmra.mxu0 %v1580
    %v1944 = vpop.f32.mrf.mxu0
    %v1945 = vadd.f32 0.0, %v1944
    %v1946 = vpop.f32.mrf.mxu0
    %1947 = vmatprep.mubr.f32.mxu0 0.0
    %1948 = vmatmul.mubr.f32.gmra.mxu0 %v1583
    %v1949 = vpop.f32.mrf.mxu0
    %v1950 = vadd.f32 0.0, %v1949
    %v1951 = vpop.f32.mrf.mxu0
    %1952 = vmatprep.mubr.f32.mxu0 0.0
    %1953 = vmatmul.mubr.f32.gmra.mxu0 %v1586
    %v1954 = vpop.f32.mrf.mxu0
    %v1955 = vadd.f32 0.0, %v1954
    %v1956 = vpop.f32.mrf.mxu0
    %1957 = vmatprep.mubr.f32.mxu0 0.0
    %1958 = vmatmul.mubr.f32.gmra.mxu0 %v1589
    %v1959 = vpop.f32.mrf.mxu0
    %v1960 = vadd.f32 0.0, %v1959
    %v1961 = vpop.f32.mrf.mxu0
    %1962 = vmatprep.mubr.f32.mxu0 0.0
    %1963 = vmatmul.mubr.f32.gmra.mxu0 %v1592
    %v1964 = vpop.f32.mrf.mxu0
    %v1965 = vadd.f32 0.0, %v1964
    %v1966 = vpop.f32.mrf.mxu0
    %1967 = vmatprep.mubr.f32.mxu0 0.0
    %1968 = vmatmul.mubr.f32.gmra.mxu0 %v1595
    %v1969 = vpop.f32.mrf.mxu0
    %v1970 = vadd.f32 0.0, %v1969
    %v1971 = vpop.f32.mrf.mxu0
    %1972 = vmatprep.mubr.f32.mxu0 0.0
    %1973 = vmatmul.mubr.f32.gmra.mxu0 %v1598
    %v1974 = vpop.f32.mrf.mxu0
    %v1975 = vadd.f32 0.0, %v1974
    %v1976 = vpop.f32.mrf.mxu0
    %1977 = vmatprep.mubr.f32.mxu0 0.0
    %1978 = vmatmul.mubr.f32.gmra.mxu0 %v1601
    %v1979 = vpop.f32.mrf.mxu0
    %v1980 = vadd.f32 0.0, %v1979
    %v1981 = vpop.f32.mrf.mxu0
    %1982 = vmatprep.mubr.f32.mxu0 0.0
    %1983 = vmatmul.mubr.f32.gmra.mxu0 %v1604
    %v1984 = vpop.f32.mrf.mxu0
    %v1985 = vadd.f32 0.0, %v1984
    %v1986 = vpop.f32.mrf.mxu0
    %1987 = vmatprep.mubr.f32.mxu0 0.0
    %1988 = vmatmul.mubr.f32.gmra.mxu0 %v1607
    %v1989 = vpop.f32.mrf.mxu0
    %v1990 = vadd.f32 0.0, %v1989
    %v1991 = vpop.f32.mrf.mxu0
    %1992 = vmatprep.mubr.f32.mxu0 0.0
    %1993 = vmatmul.mubr.f32.gmra.mxu0 %v1610
    %v1994 = vpop.f32.mrf.mxu0
    %v1995 = vadd.f32 0.0, %v1994
    %v1996 = vpop.f32.mrf.mxu0
    %1997 = vmatprep.mubr.f32.mxu0 0.0
    %1998 = vmatmul.mubr.f32.gmra.mxu0 %v1613
    %v1999 = vpop.f32.mrf.mxu0
    %v2000 = vadd.f32 0.0, %v1999
    %v2001 = vpop.f32.mrf.mxu0
    %2002 = vdwg.mxu0
    %v2003 = vadd.f32 %v1039, %v1685
    %v2004 = vadd.f32 %v1044, %v1690
    %v2005 = vadd.f32 %v1049, %v1695
    %v2006 = vadd.f32 %v1054, %v1700
    %v2007 = vadd.f32 %v1059, %v1705
    %v2008 = vadd.f32 %v1064, %v1710
    %v2009 = vadd.f32 %v1069, %v1715
    %v2010 = vadd.f32 %v1074, %v1720
    %v2011 = vadd.f32 %v1079, %v1725
    %v2012 = vadd.f32 %v1084, %v1730
    %v2013 = vadd.f32 %v1089, %v1735
    %v2014 = vadd.f32 %v1094, %v1740
    %v2015 = vadd.f32 %v1099, %v1745
    %v2016 = vadd.f32 %v1104, %v1750
    %v2017 = vadd.f32 %v1109, %v1755
    %v2018 = vadd.f32 %v1114, %v1760
    %v2019 = vadd.f32 %v1119, %v1765
    %v2020 = vadd.f32 %v1124, %v1770
    %v2021 = vadd.f32 %v1129, %v1775
    %v2022 = vadd.f32 %v1134, %v1780
    %v2023 = vadd.f32 %v1139, %v1785
    %v2024 = vadd.f32 %v1144, %v1790
    %v2025 = vadd.f32 %v1149, %v1795
    %v2026 = vadd.f32 %v1154, %v1800
    %v2027 = vadd.f32 %v1159, %v1805
    %v2028 = vadd.f32 %v1164, %v1810
    %v2029 = vadd.f32 %v1169, %v1815
    %v2030 = vadd.f32 %v1174, %v1820
    %v2031 = vadd.f32 %v1179, %v1825
    %v2032 = vadd.f32 %v1184, %v1830
    %v2033 = vadd.f32 %v1189, %v1835
    %v2034 = vadd.f32 %v1194, %v1840
    %v2035 = vadd.f32 %v1199, %v1845
    %v2036 = vadd.f32 %v1204, %v1850
    %v2037 = vadd.f32 %v1209, %v1855
    %v2038 = vadd.f32 %v1214, %v1860
    %v2039 = vadd.f32 %v1219, %v1865
    %v2040 = vadd.f32 %v1224, %v1870
    %v2041 = vadd.f32 %v1229, %v1875
    %v2042 = vadd.f32 %v1234, %v1880
    %v2043 = vadd.f32 %v1239, %v1885
    %v2044 = vadd.f32 %v1244, %v1890
    %v2045 = vadd.f32 %v1249, %v1895
    %v2046 = vadd.f32 %v1254, %v1900
    %v2047 = vadd.f32 %v1259, %v1905
    %v2048 = vadd.f32 %v1264, %v1910
    %v2049 = vadd.f32 %v1269, %v1915
    %v2050 = vadd.f32 %v1274, %v1920
    %v2051 = vadd.f32 %v1279, %v1925
    %v2052 = vadd.f32 %v1284, %v1930
    %v2053 = vadd.f32 %v1289, %v1935
    %v2054 = vadd.f32 %v1294, %v1940
    %v2055 = vadd.f32 %v1299, %v1945
    %v2056 = vadd.f32 %v1304, %v1950
    %v2057 = vadd.f32 %v1309, %v1955
    %v2058 = vadd.f32 %v1314, %v1960
    %v2059 = vadd.f32 %v1319, %v1965
    %v2060 = vadd.f32 %v1324, %v1970
    %v2061 = vadd.f32 %v1329, %v1975
    %v2062 = vadd.f32 %v1334, %v1980
    %v2063 = vadd.f32 %v1339, %v1985
    %v2064 = vadd.f32 %v1344, %v1990
    %v2065 = vadd.f32 %v1349, %v1995
    %v2066 = vadd.f32 %v1354, %v2000
    %s2067 = scalar_lea.vmem %s0, 24
    %v2068 = vld [vmem:[%s2067] sm:$0xff]
    %v2069 = vld [vmem:[%s2067 + $0x8] sm:$0xff]
    %v2070 = vld [vmem:[%s2067 + $0x18] sm:$0xff]
    %v2071 = vld [vmem:[%s2067 + $0x20] sm:$0xff]
    %v2072 = vld [vmem:[%s2067 + $0x30] sm:$0xff]
    %v2073 = vld [vmem:[%s2067 + $0x38] sm:$0xff]
    %v2074 = vld [vmem:[%s2067 + $0x48] sm:$0xff]
    %v2075 = vld [vmem:[%s2067 + $0x50] sm:$0xff]
    %v2076 = vld [vmem:[%s2067 + $0x60] sm:$0xff]
    %v2077 = vld [vmem:[%s2067 + $0x68] sm:$0xff]
    %v2078 = vld [vmem:[%s2067 + $0x78] sm:$0xff]
    %v2079 = vld [vmem:[%s2067 + $0x80] sm:$0xff]
    %v2080 = vld [vmem:[%s2067 + $0x90] sm:$0xff]
    %v2081 = vld [vmem:[%s2067 + $0x98] sm:$0xff]
    %v2082 = vld [vmem:[%s2067 + $0xa8] sm:$0xff]
    %v2083 = vld [vmem:[%s2067 + $0xb0] sm:$0xff]
    %v2084 = vld [vmem:[%s2067 + $0xc0] sm:$0xff]
    %v2085 = vld [vmem:[%s2067 + $0xc8] sm:$0xff]
    %v2086 = vld [vmem:[%s2067 + $0xd8] sm:$0xff]
    %v2087 = vld [vmem:[%s2067 + $0xe0] sm:$0xff]
    %v2088 = vld [vmem:[%s2067 + $0xf0] sm:$0xff]
    %v2089 = vld [vmem:[%s2067 + $0xf8] sm:$0xff]
    %v2090 = vld [vmem:[%s2067 + $0x108] sm:$0xff]
    %v2091 = vld [vmem:[%s2067 + $0x110] sm:$0xff]
    %v2092 = vld [vmem:[%s2067 + $0x120] sm:$0xff]
    %v2093 = vld [vmem:[%s2067 + $0x128] sm:$0xff]
    %v2094 = vld [vmem:[%s2067 + $0x138] sm:$0xff]
    %v2095 = vld [vmem:[%s2067 + $0x140] sm:$0xff]
    %v2096 = vld [vmem:[%s2067 + $0x150] sm:$0xff]
    %v2097 = vld [vmem:[%s2067 + $0x158] sm:$0xff]
    %v2098 = vld [vmem:[%s2067 + $0x168] sm:$0xff]
    %v2099 = vld [vmem:[%s2067 + $0x170] sm:$0xff]
    %v2100 = vld [vmem:[%s2067 + $0x1b0] sm:$0xff]
    %v2101 = vld [vmem:[%s2067 + $0x1b8] sm:$0xff]
    %v2102 = vld [vmem:[%s2067 + $0x1c8] sm:$0xff]
    %v2103 = vld [vmem:[%s2067 + $0x1d0] sm:$0xff]
    %v2104 = vld [vmem:[%s2067 + $0x1e0] sm:$0xff]
    %v2105 = vld [vmem:[%s2067 + $0x1e8] sm:$0xff]
    %v2106 = vld [vmem:[%s2067 + $0x1f8] sm:$0xff]
    %v2107 = vld [vmem:[%s2067 + $0x200] sm:$0xff]
    %v2108 = vld [vmem:[%s2067 + $0x210] sm:$0xff]
    %v2109 = vld [vmem:[%s2067 + $0x218] sm:$0xff]
    %v2110 = vld [vmem:[%s2067 + $0x228] sm:$0xff]
    %v2111 = vld [vmem:[%s2067 + $0x230] sm:$0xff]
    %v2112 = vld [vmem:[%s2067 + $0x240] sm:$0xff]
    %v2113 = vld [vmem:[%s2067 + $0x248] sm:$0xff]
    %v2114 = vld [vmem:[%s2067 + $0x258] sm:$0xff]
    %v2115 = vld [vmem:[%s2067 + $0x260] sm:$0xff]
    %v2116 = vld [vmem:[%s2067 + $0x270] sm:$0xff]
    %v2117 = vld [vmem:[%s2067 + $0x278] sm:$0xff]
    %v2118 = vld [vmem:[%s2067 + $0x288] sm:$0xff]
    %v2119 = vld [vmem:[%s2067 + $0x290] sm:$0xff]
    %v2120 = vld [vmem:[%s2067 + $0x2a0] sm:$0xff]
    %v2121 = vld [vmem:[%s2067 + $0x2a8] sm:$0xff]
    %v2122 = vld [vmem:[%s2067 + $0x2b8] sm:$0xff]
    %v2123 = vld [vmem:[%s2067 + $0x2c0] sm:$0xff]
    %v2124 = vld [vmem:[%s2067 + $0x2d0] sm:$0xff]
    %v2125 = vld [vmem:[%s2067 + $0x2d8] sm:$0xff]
    %v2126 = vld [vmem:[%s2067 + $0x2e8] sm:$0xff]
    %v2127 = vld [vmem:[%s2067 + $0x2f0] sm:$0xff]
    %v2128 = vld [vmem:[%s2067 + $0x300] sm:$0xff]
    %v2129 = vld [vmem:[%s2067 + $0x308] sm:$0xff]
    %v2130 = vld [vmem:[%s2067 + $0x318] sm:$0xff]
    %v2131 = vld [vmem:[%s2067 + $0x320] sm:$0xff]
    %s2132 = scalar_lea.vmem %s2, 12
    %v2133 = vld [vmem:[%s2132] sm:$0x7]
    %v2135 = vsel %vm195, %v2068, 0
    %v2138 = vsel %vm195, %v2069, 0
    %v2141 = vsel %vm195, %v2070, 0
    %v2144 = vsel %vm195, %v2071, 0
    %v2147 = vsel %vm195, %v2072, 0
    %v2150 = vsel %vm195, %v2073, 0
    %v2153 = vsel %vm195, %v2074, 0
    %v2156 = vsel %vm195, %v2075, 0
    %v2159 = vsel %vm195, %v2076, 0
    %v2162 = vsel %vm195, %v2077, 0
    %v2165 = vsel %vm195, %v2078, 0
    %v2168 = vsel %vm195, %v2079, 0
    %v2171 = vsel %vm195, %v2080, 0
    %v2174 = vsel %vm195, %v2081, 0
    %v2177 = vsel %vm195, %v2082, 0
    %v2180 = vsel %vm195, %v2083, 0
    %v2183 = vsel %vm195, %v2084, 0
    %v2186 = vsel %vm195, %v2085, 0
    %v2189 = vsel %vm195, %v2086, 0
    %v2192 = vsel %vm195, %v2087, 0
    %v2195 = vsel %vm195, %v2088, 0
    %v2198 = vsel %vm195, %v2089, 0
    %v2201 = vsel %vm195, %v2090, 0
    %v2204 = vsel %vm195, %v2091, 0
    %v2207 = vsel %vm195, %v2092, 0
    %v2210 = vsel %vm195, %v2093, 0
    %v2213 = vsel %vm195, %v2094, 0
    %v2216 = vsel %vm195, %v2095, 0
    %v2219 = vsel %vm195, %v2096, 0
    %v2222 = vsel %vm195, %v2097, 0
    %v2225 = vsel %vm195, %v2098, 0
    %v2228 = vsel %vm195, %v2099, 0
    %v2231 = vsel %vm195, %v2100, 0
    %v2234 = vsel %vm195, %v2101, 0
    %v2237 = vsel %vm195, %v2102, 0
    %v2240 = vsel %vm195, %v2103, 0
    %v2243 = vsel %vm195, %v2104, 0
    %v2246 = vsel %vm195, %v2105, 0
    %v2249 = vsel %vm195, %v2106, 0
    %v2252 = vsel %vm195, %v2107, 0
    %v2255 = vsel %vm195, %v2108, 0
    %v2258 = vsel %vm195, %v2109, 0
    %v2261 = vsel %vm195, %v2110, 0
    %v2264 = vsel %vm195, %v2111, 0
    %v2267 = vsel %vm195, %v2112, 0
    %v2270 = vsel %vm195, %v2113, 0
    %v2273 = vsel %vm195, %v2114, 0
    %v2276 = vsel %vm195, %v2115, 0
    %v2279 = vsel %vm195, %v2116, 0
    %v2282 = vsel %vm195, %v2117, 0
    %v2285 = vsel %vm195, %v2118, 0
    %v2288 = vsel %vm195, %v2119, 0
    %v2291 = vsel %vm195, %v2120, 0
    %v2294 = vsel %vm195, %v2121, 0
    %v2297 = vsel %vm195, %v2122, 0
    %v2300 = vsel %vm195, %v2123, 0
    %v2303 = vsel %vm195, %v2124, 0
    %v2306 = vsel %vm195, %v2125, 0
    %v2309 = vsel %vm195, %v2126, 0
    %v2312 = vsel %vm195, %v2127, 0
    %v2315 = vsel %vm195, %v2128, 0
    %v2318 = vsel %vm195, %v2129, 0
    %v2321 = vsel %vm195, %v2130, 0
    %v2324 = vsel %vm195, %v2131, 0
    %v2327 = vsel %vm388, %v2133, 0
    %2329 = vmatprep.subr.mxu0 0.0
    %2330 = vmatpush1.msra.mxu0 0.0
    %2331 = vmatprep.subr.mxu0 0.0
    %2332 = vmatpush1.msra.mxu0 0.0
    %2333 = vmatprep.subr.mxu0 0.0
    %2334 = vmatpush1.msra.mxu0 0.0
    %2335 = vmatprep.subr.mxu0 0.0
    %2336 = vmatpush1.msra.mxu0 0.0
    %2337 = vmatprep.subr.mxu0 0.0
    %2338 = vmatpush1.msra.mxu0 0.0
    %2339 = vmatprep.subr.mxu0 0.0
    %2340 = vmatpush1.msra.mxu0 0.0
    %2341 = vmatprep.subr.mxu0 0.0
    %2342 = vmatpush1.msra.mxu0 0.0
    %2343 = vmatprep.subr.mxu0 0.0
    %2344 = vmatpush1.msra.mxu0 0.0
    %2345 = vmatprep.subr.mxu0 0.0
    %2346 = vmatpush1.msra.mxu0 0.0
    %2347 = vmatprep.subr.mxu0 0.0
    %2348 = vmatpush1.msra.mxu0 0.0
    %2349 = vmatprep.subr.mxu0 0.0
    %2350 = vmatpush1.msra.mxu0 0.0
    %2351 = vmatprep.subr.mxu0 0.0
    %2352 = vmatpush1.msra.mxu0 0.0
    %2353 = vmatprep.subr.mxu0 0.0
    %2354 = vmatpush1.msra.mxu0 0.0
    %2355 = vmatprep.subr.mxu0 0.0
    %2356 = vmatpush1.msra.mxu0 0.0
    %2357 = vmatprep.subr.mxu0 0.0
    %2358 = vmatpush1.msra.mxu0 0.0
    %2359 = vmatprep.subr.mxu0 0.0
    %2360 = vmatpush1.msra.mxu0 %v2327
    %2361 = vmatprep.subr.mxu0 0.0
    %2362 = vmatpush2.msra.mxu0 0.0
    %2363 = vmatprep.subr.mxu0 0.0
    %2364 = vmatpush2.msra.mxu0 0.0
    %2365 = vmatprep.subr.mxu0 0.0
    %2366 = vmatpush2.msra.mxu0 0.0
    %2367 = vmatprep.subr.mxu0 0.0
    %2368 = vmatpush2.msra.mxu0 0.0
    %2369 = vmatprep.subr.mxu0 0.0
    %2370 = vmatpush2.msra.mxu0 0.0
    %2371 = vmatprep.subr.mxu0 0.0
    %2372 = vmatpush2.msra.mxu0 0.0
    %2373 = vmatprep.subr.mxu0 0.0
    %2374 = vmatpush2.msra.mxu0 0.0
    %2375 = vmatprep.subr.mxu0 0.0
    %2376 = vmatpush2.msra.mxu0 0.0
    %2377 = vmatprep.subr.mxu0 0.0
    %2378 = vmatpush2.msra.mxu0 0.0
    %2379 = vmatprep.subr.mxu0 0.0
    %2380 = vmatpush2.msra.mxu0 0.0
    %2381 = vmatprep.subr.mxu0 0.0
    %2382 = vmatpush2.msra.mxu0 0.0
    %2383 = vmatprep.subr.mxu0 0.0
    %2384 = vmatpush2.msra.mxu0 0.0
    %2385 = vmatprep.subr.mxu0 0.0
    %2386 = vmatpush2.msra.mxu0 0.0
    %2387 = vmatprep.subr.mxu0 0.0
    %2388 = vmatpush2.msra.mxu0 0.0
    %2389 = vmatprep.subr.mxu0 0.0
    %2390 = vmatpush2.msra.mxu0 0.0
    %2391 = vmatprep.subr.mxu0 0.0
    %2392 = vmatpush2.msra.mxu0 0.0
    %2393 = vmatprep.mubr.f32.mxu0 0.0
    %2394 = vmatmul.mubr.f32.gmra.mxu0 %v2135
    %v2395 = vpop.f32.mrf.mxu0
    %v2396 = vadd.f32 0.0, %v2395
    %v2397 = vpop.f32.mrf.mxu0
    %2398 = vmatprep.mubr.f32.mxu0 0.0
    %2399 = vmatmul.mubr.f32.gmra.mxu0 %v2138
    %v2400 = vpop.f32.mrf.mxu0
    %v2401 = vadd.f32 0.0, %v2400
    %v2402 = vpop.f32.mrf.mxu0
    %2403 = vmatprep.mubr.f32.mxu0 0.0
    %2404 = vmatmul.mubr.f32.gmra.mxu0 %v2141
    %v2405 = vpop.f32.mrf.mxu0
    %v2406 = vadd.f32 0.0, %v2405
    %v2407 = vpop.f32.mrf.mxu0
    %2408 = vmatprep.mubr.f32.mxu0 0.0
    %2409 = vmatmul.mubr.f32.gmra.mxu0 %v2144
    %v2410 = vpop.f32.mrf.mxu0
    %v2411 = vadd.f32 0.0, %v2410
    %v2412 = vpop.f32.mrf.mxu0
    %2413 = vmatprep.mubr.f32.mxu0 0.0
    %2414 = vmatmul.mubr.f32.gmra.mxu0 %v2147
    %v2415 = vpop.f32.mrf.mxu0
    %v2416 = vadd.f32 0.0, %v2415
    %v2417 = vpop.f32.mrf.mxu0
    %2418 = vmatprep.mubr.f32.mxu0 0.0
    %2419 = vmatmul.mubr.f32.gmra.mxu0 %v2150
    %v2420 = vpop.f32.mrf.mxu0
    %v2421 = vadd.f32 0.0, %v2420
    %v2422 = vpop.f32.mrf.mxu0
    %2423 = vmatprep.mubr.f32.mxu0 0.0
    %2424 = vmatmul.mubr.f32.gmra.mxu0 %v2153
    %v2425 = vpop.f32.mrf.mxu0
    %v2426 = vadd.f32 0.0, %v2425
    %v2427 = vpop.f32.mrf.mxu0
    %2428 = vmatprep.mubr.f32.mxu0 0.0
    %2429 = vmatmul.mubr.f32.gmra.mxu0 %v2156
    %v2430 = vpop.f32.mrf.mxu0
    %v2431 = vadd.f32 0.0, %v2430
    %v2432 = vpop.f32.mrf.mxu0
    %2433 = vmatprep.mubr.f32.mxu0 0.0
    %2434 = vmatmul.mubr.f32.gmra.mxu0 %v2159
    %v2435 = vpop.f32.mrf.mxu0
    %v2436 = vadd.f32 0.0, %v2435
    %v2437 = vpop.f32.mrf.mxu0
    %2438 = vmatprep.mubr.f32.mxu0 0.0
    %2439 = vmatmul.mubr.f32.gmra.mxu0 %v2162
    %v2440 = vpop.f32.mrf.mxu0
    %v2441 = vadd.f32 0.0, %v2440
    %v2442 = vpop.f32.mrf.mxu0
    %2443 = vmatprep.mubr.f32.mxu0 0.0
    %2444 = vmatmul.mubr.f32.gmra.mxu0 %v2165
    %v2445 = vpop.f32.mrf.mxu0
    %v2446 = vadd.f32 0.0, %v2445
    %v2447 = vpop.f32.mrf.mxu0
    %2448 = vmatprep.mubr.f32.mxu0 0.0
    %2449 = vmatmul.mubr.f32.gmra.mxu0 %v2168
    %v2450 = vpop.f32.mrf.mxu0
    %v2451 = vadd.f32 0.0, %v2450
    %v2452 = vpop.f32.mrf.mxu0
    %2453 = vmatprep.mubr.f32.mxu0 0.0
    %2454 = vmatmul.mubr.f32.gmra.mxu0 %v2171
    %v2455 = vpop.f32.mrf.mxu0
    %v2456 = vadd.f32 0.0, %v2455
    %v2457 = vpop.f32.mrf.mxu0
    %2458 = vmatprep.mubr.f32.mxu0 0.0
    %2459 = vmatmul.mubr.f32.gmra.mxu0 %v2174
    %v2460 = vpop.f32.mrf.mxu0
    %v2461 = vadd.f32 0.0, %v2460
    %v2462 = vpop.f32.mrf.mxu0
    %2463 = vmatprep.mubr.f32.mxu0 0.0
    %2464 = vmatmul.mubr.f32.gmra.mxu0 %v2177
    %v2465 = vpop.f32.mrf.mxu0
    %v2466 = vadd.f32 0.0, %v2465
    %v2467 = vpop.f32.mrf.mxu0
    %2468 = vmatprep.mubr.f32.mxu0 0.0
    %2469 = vmatmul.mubr.f32.gmra.mxu0 %v2180
    %v2470 = vpop.f32.mrf.mxu0
    %v2471 = vadd.f32 0.0, %v2470
    %v2472 = vpop.f32.mrf.mxu0
    %2473 = vmatprep.mubr.f32.mxu0 0.0
    %2474 = vmatmul.mubr.f32.gmra.mxu0 %v2183
    %v2475 = vpop.f32.mrf.mxu0
    %v2476 = vadd.f32 0.0, %v2475
    %v2477 = vpop.f32.mrf.mxu0
    %2478 = vmatprep.mubr.f32.mxu0 0.0
    %2479 = vmatmul.mubr.f32.gmra.mxu0 %v2186
    %v2480 = vpop.f32.mrf.mxu0
    %v2481 = vadd.f32 0.0, %v2480
    %v2482 = vpop.f32.mrf.mxu0
    %2483 = vmatprep.mubr.f32.mxu0 0.0
    %2484 = vmatmul.mubr.f32.gmra.mxu0 %v2189
    %v2485 = vpop.f32.mrf.mxu0
    %v2486 = vadd.f32 0.0, %v2485
    %v2487 = vpop.f32.mrf.mxu0
    %2488 = vmatprep.mubr.f32.mxu0 0.0
    %2489 = vmatmul.mubr.f32.gmra.mxu0 %v2192
    %v2490 = vpop.f32.mrf.mxu0
    %v2491 = vadd.f32 0.0, %v2490
    %v2492 = vpop.f32.mrf.mxu0
    %2493 = vmatprep.mubr.f32.mxu0 0.0
    %2494 = vmatmul.mubr.f32.gmra.mxu0 %v2195
    %v2495 = vpop.f32.mrf.mxu0
    %v2496 = vadd.f32 0.0, %v2495
    %v2497 = vpop.f32.mrf.mxu0
    %2498 = vmatprep.mubr.f32.mxu0 0.0
    %2499 = vmatmul.mubr.f32.gmra.mxu0 %v2198
    %v2500 = vpop.f32.mrf.mxu0
    %v2501 = vadd.f32 0.0, %v2500
    %v2502 = vpop.f32.mrf.mxu0
    %2503 = vmatprep.mubr.f32.mxu0 0.0
    %2504 = vmatmul.mubr.f32.gmra.mxu0 %v2201
    %v2505 = vpop.f32.mrf.mxu0
    %v2506 = vadd.f32 0.0, %v2505
    %v2507 = vpop.f32.mrf.mxu0
    %2508 = vmatprep.mubr.f32.mxu0 0.0
    %2509 = vmatmul.mubr.f32.gmra.mxu0 %v2204
    %v2510 = vpop.f32.mrf.mxu0
    %v2511 = vadd.f32 0.0, %v2510
    %v2512 = vpop.f32.mrf.mxu0
    %2513 = vmatprep.mubr.f32.mxu0 0.0
    %2514 = vmatmul.mubr.f32.gmra.mxu0 %v2207
    %v2515 = vpop.f32.mrf.mxu0
    %v2516 = vadd.f32 0.0, %v2515
    %v2517 = vpop.f32.mrf.mxu0
    %2518 = vmatprep.mubr.f32.mxu0 0.0
    %2519 = vmatmul.mubr.f32.gmra.mxu0 %v2210
    %v2520 = vpop.f32.mrf.mxu0
    %v2521 = vadd.f32 0.0, %v2520
    %v2522 = vpop.f32.mrf.mxu0
    %2523 = vmatprep.mubr.f32.mxu0 0.0
    %2524 = vmatmul.mubr.f32.gmra.mxu0 %v2213
    %v2525 = vpop.f32.mrf.mxu0
    %v2526 = vadd.f32 0.0, %v2525
    %v2527 = vpop.f32.mrf.mxu0
    %2528 = vmatprep.mubr.f32.mxu0 0.0
    %2529 = vmatmul.mubr.f32.gmra.mxu0 %v2216
    %v2530 = vpop.f32.mrf.mxu0
    %v2531 = vadd.f32 0.0, %v2530
    %v2532 = vpop.f32.mrf.mxu0
    %2533 = vmatprep.mubr.f32.mxu0 0.0
    %2534 = vmatmul.mubr.f32.gmra.mxu0 %v2219
    %v2535 = vpop.f32.mrf.mxu0
    %v2536 = vadd.f32 0.0, %v2535
    %v2537 = vpop.f32.mrf.mxu0
    %2538 = vmatprep.mubr.f32.mxu0 0.0
    %2539 = vmatmul.mubr.f32.gmra.mxu0 %v2222
    %v2540 = vpop.f32.mrf.mxu0
    %v2541 = vadd.f32 0.0, %v2540
    %v2542 = vpop.f32.mrf.mxu0
    %2543 = vmatprep.mubr.f32.mxu0 0.0
    %2544 = vmatmul.mubr.f32.gmra.mxu0 %v2225
    %v2545 = vpop.f32.mrf.mxu0
    %v2546 = vadd.f32 0.0, %v2545
    %v2547 = vpop.f32.mrf.mxu0
    %2548 = vmatprep.mubr.f32.mxu0 0.0
    %2549 = vmatmul.mubr.f32.gmra.mxu0 %v2228
    %v2550 = vpop.f32.mrf.mxu0
    %v2551 = vadd.f32 0.0, %v2550
    %v2552 = vpop.f32.mrf.mxu0
    %2553 = vmatprep.mubr.f32.mxu0 0.0
    %2554 = vmatmul.mubr.f32.gmra.mxu0 %v2231
    %v2555 = vpop.f32.mrf.mxu0
    %v2556 = vadd.f32 0.0, %v2555
    %v2557 = vpop.f32.mrf.mxu0
    %2558 = vmatprep.mubr.f32.mxu0 0.0
    %2559 = vmatmul.mubr.f32.gmra.mxu0 %v2234
    %v2560 = vpop.f32.mrf.mxu0
    %v2561 = vadd.f32 0.0, %v2560
    %v2562 = vpop.f32.mrf.mxu0
    %2563 = vmatprep.mubr.f32.mxu0 0.0
    %2564 = vmatmul.mubr.f32.gmra.mxu0 %v2237
    %v2565 = vpop.f32.mrf.mxu0
    %v2566 = vadd.f32 0.0, %v2565
    %v2567 = vpop.f32.mrf.mxu0
    %2568 = vmatprep.mubr.f32.mxu0 0.0
    %2569 = vmatmul.mubr.f32.gmra.mxu0 %v2240
    %v2570 = vpop.f32.mrf.mxu0
    %v2571 = vadd.f32 0.0, %v2570
    %v2572 = vpop.f32.mrf.mxu0
    %2573 = vmatprep.mubr.f32.mxu0 0.0
    %2574 = vmatmul.mubr.f32.gmra.mxu0 %v2243
    %v2575 = vpop.f32.mrf.mxu0
    %v2576 = vadd.f32 0.0, %v2575
    %v2577 = vpop.f32.mrf.mxu0
    %2578 = vmatprep.mubr.f32.mxu0 0.0
    %2579 = vmatmul.mubr.f32.gmra.mxu0 %v2246
    %v2580 = vpop.f32.mrf.mxu0
    %v2581 = vadd.f32 0.0, %v2580
    %v2582 = vpop.f32.mrf.mxu0
    %2583 = vmatprep.mubr.f32.mxu0 0.0
    %2584 = vmatmul.mubr.f32.gmra.mxu0 %v2249
    %v2585 = vpop.f32.mrf.mxu0
    %v2586 = vadd.f32 0.0, %v2585
    %v2587 = vpop.f32.mrf.mxu0
    %2588 = vmatprep.mubr.f32.mxu0 0.0
    %2589 = vmatmul.mubr.f32.gmra.mxu0 %v2252
    %v2590 = vpop.f32.mrf.mxu0
    %v2591 = vadd.f32 0.0, %v2590
    %v2592 = vpop.f32.mrf.mxu0
    %2593 = vmatprep.mubr.f32.mxu0 0.0
    %2594 = vmatmul.mubr.f32.gmra.mxu0 %v2255
    %v2595 = vpop.f32.mrf.mxu0
    %v2596 = vadd.f32 0.0, %v2595
    %v2597 = vpop.f32.mrf.mxu0
    %2598 = vmatprep.mubr.f32.mxu0 0.0
    %2599 = vmatmul.mubr.f32.gmra.mxu0 %v2258
    %v2600 = vpop.f32.mrf.mxu0
    %v2601 = vadd.f32 0.0, %v2600
    %v2602 = vpop.f32.mrf.mxu0
    %2603 = vmatprep.mubr.f32.mxu0 0.0
    %2604 = vmatmul.mubr.f32.gmra.mxu0 %v2261
    %v2605 = vpop.f32.mrf.mxu0
    %v2606 = vadd.f32 0.0, %v2605
    %v2607 = vpop.f32.mrf.mxu0
    %2608 = vmatprep.mubr.f32.mxu0 0.0
    %2609 = vmatmul.mubr.f32.gmra.mxu0 %v2264
    %v2610 = vpop.f32.mrf.mxu0
    %v2611 = vadd.f32 0.0, %v2610
    %v2612 = vpop.f32.mrf.mxu0
    %2613 = vmatprep.mubr.f32.mxu0 0.0
    %2614 = vmatmul.mubr.f32.gmra.mxu0 %v2267
    %v2615 = vpop.f32.mrf.mxu0
    %v2616 = vadd.f32 0.0, %v2615
    %v2617 = vpop.f32.mrf.mxu0
    %2618 = vmatprep.mubr.f32.mxu0 0.0
    %2619 = vmatmul.mubr.f32.gmra.mxu0 %v2270
    %v2620 = vpop.f32.mrf.mxu0
    %v2621 = vadd.f32 0.0, %v2620
    %v2622 = vpop.f32.mrf.mxu0
    %2623 = vmatprep.mubr.f32.mxu0 0.0
    %2624 = vmatmul.mubr.f32.gmra.mxu0 %v2273
    %v2625 = vpop.f32.mrf.mxu0
    %v2626 = vadd.f32 0.0, %v2625
    %v2627 = vpop.f32.mrf.mxu0
    %2628 = vmatprep.mubr.f32.mxu0 0.0
    %2629 = vmatmul.mubr.f32.gmra.mxu0 %v2276
    %v2630 = vpop.f32.mrf.mxu0
    %v2631 = vadd.f32 0.0, %v2630
    %v2632 = vpop.f32.mrf.mxu0
    %2633 = vmatprep.mubr.f32.mxu0 0.0
    %2634 = vmatmul.mubr.f32.gmra.mxu0 %v2279
    %v2635 = vpop.f32.mrf.mxu0
    %v2636 = vadd.f32 0.0, %v2635
    %v2637 = vpop.f32.mrf.mxu0
    %2638 = vmatprep.mubr.f32.mxu0 0.0
    %2639 = vmatmul.mubr.f32.gmra.mxu0 %v2282
    %v2640 = vpop.f32.mrf.mxu0
    %v2641 = vadd.f32 0.0, %v2640
    %v2642 = vpop.f32.mrf.mxu0
    %2643 = vmatprep.mubr.f32.mxu0 0.0
    %2644 = vmatmul.mubr.f32.gmra.mxu0 %v2285
    %v2645 = vpop.f32.mrf.mxu0
    %v2646 = vadd.f32 0.0, %v2645
    %v2647 = vpop.f32.mrf.mxu0
    %2648 = vmatprep.mubr.f32.mxu0 0.0
    %2649 = vmatmul.mubr.f32.gmra.mxu0 %v2288
    %v2650 = vpop.f32.mrf.mxu0
    %v2651 = vadd.f32 0.0, %v2650
    %v2652 = vpop.f32.mrf.mxu0
    %2653 = vmatprep.mubr.f32.mxu0 0.0
    %2654 = vmatmul.mubr.f32.gmra.mxu0 %v2291
    %v2655 = vpop.f32.mrf.mxu0
    %v2656 = vadd.f32 0.0, %v2655
    %v2657 = vpop.f32.mrf.mxu0
    %2658 = vmatprep.mubr.f32.mxu0 0.0
    %2659 = vmatmul.mubr.f32.gmra.mxu0 %v2294
    %v2660 = vpop.f32.mrf.mxu0
    %v2661 = vadd.f32 0.0, %v2660
    %v2662 = vpop.f32.mrf.mxu0
    %2663 = vmatprep.mubr.f32.mxu0 0.0
    %2664 = vmatmul.mubr.f32.gmra.mxu0 %v2297
    %v2665 = vpop.f32.mrf.mxu0
    %v2666 = vadd.f32 0.0, %v2665
    %v2667 = vpop.f32.mrf.mxu0
    %2668 = vmatprep.mubr.f32.mxu0 0.0
    %2669 = vmatmul.mubr.f32.gmra.mxu0 %v2300
    %v2670 = vpop.f32.mrf.mxu0
    %v2671 = vadd.f32 0.0, %v2670
    %v2672 = vpop.f32.mrf.mxu0
    %2673 = vmatprep.mubr.f32.mxu0 0.0
    %2674 = vmatmul.mubr.f32.gmra.mxu0 %v2303
    %v2675 = vpop.f32.mrf.mxu0
    %v2676 = vadd.f32 0.0, %v2675
    %v2677 = vpop.f32.mrf.mxu0
    %2678 = vmatprep.mubr.f32.mxu0 0.0
    %2679 = vmatmul.mubr.f32.gmra.mxu0 %v2306
    %v2680 = vpop.f32.mrf.mxu0
    %v2681 = vadd.f32 0.0, %v2680
    %v2682 = vpop.f32.mrf.mxu0
    %2683 = vmatprep.mubr.f32.mxu0 0.0
    %2684 = vmatmul.mubr.f32.gmra.mxu0 %v2309
    %v2685 = vpop.f32.mrf.mxu0
    %v2686 = vadd.f32 0.0, %v2685
    %v2687 = vpop.f32.mrf.mxu0
    %2688 = vmatprep.mubr.f32.mxu0 0.0
    %2689 = vmatmul.mubr.f32.gmra.mxu0 %v2312
    %v2690 = vpop.f32.mrf.mxu0
    %v2691 = vadd.f32 0.0, %v2690
    %v2692 = vpop.f32.mrf.mxu0
    %2693 = vmatprep.mubr.f32.mxu0 0.0
    %2694 = vmatmul.mubr.f32.gmra.mxu0 %v2315
    %v2695 = vpop.f32.mrf.mxu0
    %v2696 = vadd.f32 0.0, %v2695
    %v2697 = vpop.f32.mrf.mxu0
    %2698 = vmatprep.mubr.f32.mxu0 0.0
    %2699 = vmatmul.mubr.f32.gmra.mxu0 %v2318
    %v2700 = vpop.f32.mrf.mxu0
    %v2701 = vadd.f32 0.0, %v2700
    %v2702 = vpop.f32.mrf.mxu0
    %2703 = vmatprep.mubr.f32.mxu0 0.0
    %2704 = vmatmul.mubr.f32.gmra.mxu0 %v2321
    %v2705 = vpop.f32.mrf.mxu0
    %v2706 = vadd.f32 0.0, %v2705
    %v2707 = vpop.f32.mrf.mxu0
    %2708 = vmatprep.mubr.f32.mxu0 0.0
    %2709 = vmatmul.mubr.f32.gmra.mxu0 %v2324
    %v2710 = vpop.f32.mrf.mxu0
    %v2711 = vadd.f32 0.0, %v2710
    %v2712 = vpop.f32.mrf.mxu0
    %2713 = vdwg.mxu0
    %v2714 = vadd.f32 %v2003, %v2396
    %v2715 = vadd.f32 %v2004, %v2401
    %v2716 = vadd.f32 %v2005, %v2406
    %v2717 = vadd.f32 %v2006, %v2411
    %v2718 = vadd.f32 %v2007, %v2416
    %v2719 = vadd.f32 %v2008, %v2421
    %v2720 = vadd.f32 %v2009, %v2426
    %v2721 = vadd.f32 %v2010, %v2431
    %v2722 = vadd.f32 %v2011, %v2436
    %v2723 = vadd.f32 %v2012, %v2441
    %v2724 = vadd.f32 %v2013, %v2446
    %v2725 = vadd.f32 %v2014, %v2451
    %v2726 = vadd.f32 %v2015, %v2456
    %v2727 = vadd.f32 %v2016, %v2461
    %v2728 = vadd.f32 %v2017, %v2466
    %v2729 = vadd.f32 %v2018, %v2471
    %v2730 = vadd.f32 %v2019, %v2476
    %v2731 = vadd.f32 %v2020, %v2481
    %v2732 = vadd.f32 %v2021, %v2486
    %v2733 = vadd.f32 %v2022, %v2491
    %v2734 = vadd.f32 %v2023, %v2496
    %v2735 = vadd.f32 %v2024, %v2501
    %v2736 = vadd.f32 %v2025, %v2506
    %v2737 = vadd.f32 %v2026, %v2511
    %v2738 = vadd.f32 %v2027, %v2516
    %v2739 = vadd.f32 %v2028, %v2521
    %v2740 = vadd.f32 %v2029, %v2526
    %v2741 = vadd.f32 %v2030, %v2531
    %v2742 = vadd.f32 %v2031, %v2536
    %v2743 = vadd.f32 %v2032, %v2541
    %v2744 = vadd.f32 %v2033, %v2546
    %v2745 = vadd.f32 %v2034, %v2551
    %v2746 = vadd.f32 %v2035, %v2556
    %v2747 = vadd.f32 %v2036, %v2561
    %v2748 = vadd.f32 %v2037, %v2566
    %v2749 = vadd.f32 %v2038, %v2571
    %v2750 = vadd.f32 %v2039, %v2576
    %v2751 = vadd.f32 %v2040, %v2581
    %v2752 = vadd.f32 %v2041, %v2586
    %v2753 = vadd.f32 %v2042, %v2591
    %v2754 = vadd.f32 %v2043, %v2596
    %v2755 = vadd.f32 %v2044, %v2601
    %v2756 = vadd.f32 %v2045, %v2606
    %v2757 = vadd.f32 %v2046, %v2611
    %v2758 = vadd.f32 %v2047, %v2616
    %v2759 = vadd.f32 %v2048, %v2621
    %v2760 = vadd.f32 %v2049, %v2626
    %v2761 = vadd.f32 %v2050, %v2631
    %v2762 = vadd.f32 %v2051, %v2636
    %v2763 = vadd.f32 %v2052, %v2641
    %v2764 = vadd.f32 %v2053, %v2646
    %v2765 = vadd.f32 %v2054, %v2651
    %v2766 = vadd.f32 %v2055, %v2656
    %v2767 = vadd.f32 %v2056, %v2661
    %v2768 = vadd.f32 %v2057, %v2666
    %v2769 = vadd.f32 %v2058, %v2671
    %v2770 = vadd.f32 %v2059, %v2676
    %v2771 = vadd.f32 %v2060, %v2681
    %v2772 = vadd.f32 %v2061, %v2686
    %v2773 = vadd.f32 %v2062, %v2691
    %v2774 = vadd.f32 %v2063, %v2696
    %v2775 = vadd.f32 %v2064, %v2701
    %v2776 = vadd.f32 %v2065, %v2706
    %v2777 = vadd.f32 %v2066, %v2711
    %v2778 = vld [vmem:[%s2067 + $0x1] sm:$0xff]
    %v2779 = vld [vmem:[%s2067 + $0x9] sm:$0xff]
    %v2780 = vld [vmem:[%s2067 + $0x19] sm:$0xff]
    %v2781 = vld [vmem:[%s2067 + $0x21] sm:$0xff]
    %v2782 = vld [vmem:[%s2067 + $0x31] sm:$0xff]
    %v2783 = vld [vmem:[%s2067 + $0x39] sm:$0xff]
    %v2784 = vld [vmem:[%s2067 + $0x49] sm:$0xff]
    %v2785 = vld [vmem:[%s2067 + $0x51] sm:$0xff]
    %v2786 = vld [vmem:[%s2067 + $0x61] sm:$0xff]
    %v2787 = vld [vmem:[%s2067 + $0x69] sm:$0xff]
    %v2788 = vld [vmem:[%s2067 + $0x79] sm:$0xff]
    %v2789 = vld [vmem:[%s2067 + $0x81] sm:$0xff]
    %v2790 = vld [vmem:[%s2067 + $0x91] sm:$0xff]
    %v2791 = vld [vmem:[%s2067 + $0x99] sm:$0xff]
    %v2792 = vld [vmem:[%s2067 + $0xa9] sm:$0xff]
    %v2793 = vld [vmem:[%s2067 + $0xb1] sm:$0xff]
    %v2794 = vld [vmem:[%s2067 + $0xc1] sm:$0xff]
    %v2795 = vld [vmem:[%s2067 + $0xc9] sm:$0xff]
    %v2796 = vld [vmem:[%s2067 + $0xd9] sm:$0xff]
    %v2797 = vld [vmem:[%s2067 + $0xe1] sm:$0xff]
    %v2798 = vld [vmem:[%s2067 + $0xf1] sm:$0xff]
    %v2799 = vld [vmem:[%s2067 + $0xf9] sm:$0xff]
    %v2800 = vld [vmem:[%s2067 + $0x109] sm:$0xff]
    %v2801 = vld [vmem:[%s2067 + $0x111] sm:$0xff]
    %v2802 = vld [vmem:[%s2067 + $0x121] sm:$0xff]
    %v2803 = vld [vmem:[%s2067 + $0x129] sm:$0xff]
    %v2804 = vld [vmem:[%s2067 + $0x139] sm:$0xff]
    %v2805 = vld [vmem:[%s2067 + $0x141] sm:$0xff]
    %v2806 = vld [vmem:[%s2067 + $0x151] sm:$0xff]
    %v2807 = vld [vmem:[%s2067 + $0x159] sm:$0xff]
    %v2808 = vld [vmem:[%s2067 + $0x169] sm:$0xff]
    %v2809 = vld [vmem:[%s2067 + $0x171] sm:$0xff]
    %v2810 = vld [vmem:[%s2067 + $0x1b1] sm:$0xff]
    %v2811 = vld [vmem:[%s2067 + $0x1b9] sm:$0xff]
    %v2812 = vld [vmem:[%s2067 + $0x1c9] sm:$0xff]
    %v2813 = vld [vmem:[%s2067 + $0x1d1] sm:$0xff]
    %v2814 = vld [vmem:[%s2067 + $0x1e1] sm:$0xff]
    %v2815 = vld [vmem:[%s2067 + $0x1e9] sm:$0xff]
    %v2816 = vld [vmem:[%s2067 + $0x1f9] sm:$0xff]
    %v2817 = vld [vmem:[%s2067 + $0x201] sm:$0xff]
    %v2818 = vld [vmem:[%s2067 + $0x211] sm:$0xff]
    %v2819 = vld [vmem:[%s2067 + $0x219] sm:$0xff]
    %v2820 = vld [vmem:[%s2067 + $0x229] sm:$0xff]
    %v2821 = vld [vmem:[%s2067 + $0x231] sm:$0xff]
    %v2822 = vld [vmem:[%s2067 + $0x241] sm:$0xff]
    %v2823 = vld [vmem:[%s2067 + $0x249] sm:$0xff]
    %v2824 = vld [vmem:[%s2067 + $0x259] sm:$0xff]
    %v2825 = vld [vmem:[%s2067 + $0x261] sm:$0xff]
    %v2826 = vld [vmem:[%s2067 + $0x271] sm:$0xff]
    %v2827 = vld [vmem:[%s2067 + $0x279] sm:$0xff]
    %v2828 = vld [vmem:[%s2067 + $0x289] sm:$0xff]
    %v2829 = vld [vmem:[%s2067 + $0x291] sm:$0xff]
    %v2830 = vld [vmem:[%s2067 + $0x2a1] sm:$0xff]
    %v2831 = vld [vmem:[%s2067 + $0x2a9] sm:$0xff]
    %v2832 = vld [vmem:[%s2067 + $0x2b9] sm:$0xff]
    %v2833 = vld [vmem:[%s2067 + $0x2c1] sm:$0xff]
    %v2834 = vld [vmem:[%s2067 + $0x2d1] sm:$0xff]
    %v2835 = vld [vmem:[%s2067 + $0x2d9] sm:$0xff]
    %v2836 = vld [vmem:[%s2067 + $0x2e9] sm:$0xff]
    %v2837 = vld [vmem:[%s2067 + $0x2f1] sm:$0xff]
    %v2838 = vld [vmem:[%s2067 + $0x301] sm:$0xff]
    %v2839 = vld [vmem:[%s2067 + $0x309] sm:$0xff]
    %v2840 = vld [vmem:[%s2067 + $0x319] sm:$0xff]
    %v2841 = vld [vmem:[%s2067 + $0x321] sm:$0xff]
    %s2842 = scalar_lea.vmem %s2, 16
    %v2843 = vld [vmem:[%s2842] sm:$0x7]
    %v2845 = vsel %vm195, %v2778, 0
    %v2848 = vsel %vm195, %v2779, 0
    %v2851 = vsel %vm195, %v2780, 0
    %v2854 = vsel %vm195, %v2781, 0
    %v2857 = vsel %vm195, %v2782, 0
    %v2860 = vsel %vm195, %v2783, 0
    %v2863 = vsel %vm195, %v2784, 0
    %v2866 = vsel %vm195, %v2785, 0
    %v2869 = vsel %vm195, %v2786, 0
    %v2872 = vsel %vm195, %v2787, 0
    %v2875 = vsel %vm195, %v2788, 0
    %v2878 = vsel %vm195, %v2789, 0
    %v2881 = vsel %vm195, %v2790, 0
    %v2884 = vsel %vm195, %v2791, 0
    %v2887 = vsel %vm195, %v2792, 0
    %v2890 = vsel %vm195, %v2793, 0
    %v2893 = vsel %vm195, %v2794, 0
    %v2896 = vsel %vm195, %v2795, 0
    %v2899 = vsel %vm195, %v2796, 0
    %v2902 = vsel %vm195, %v2797, 0
    %v2905 = vsel %vm195, %v2798, 0
    %v2908 = vsel %vm195, %v2799, 0
    %v2911 = vsel %vm195, %v2800, 0
    %v2914 = vsel %vm195, %v2801, 0
    %v2917 = vsel %vm195, %v2802, 0
    %v2920 = vsel %vm195, %v2803, 0
    %v2923 = vsel %vm195, %v2804, 0
    %v2926 = vsel %vm195, %v2805, 0
    %v2929 = vsel %vm195, %v2806, 0
    %v2932 = vsel %vm195, %v2807, 0
    %v2935 = vsel %vm195, %v2808, 0
    %v2938 = vsel %vm195, %v2809, 0
    %v2941 = vsel %vm195, %v2810, 0
    %v2944 = vsel %vm195, %v2811, 0
    %v2947 = vsel %vm195, %v2812, 0
    %v2950 = vsel %vm195, %v2813, 0
    %v2953 = vsel %vm195, %v2814, 0
    %v2956 = vsel %vm195, %v2815, 0
    %v2959 = vsel %vm195, %v2816, 0
    %v2962 = vsel %vm195, %v2817, 0
    %v2965 = vsel %vm195, %v2818, 0
    %v2968 = vsel %vm195, %v2819, 0
    %v2971 = vsel %vm195, %v2820, 0
    %v2974 = vsel %vm195, %v2821, 0
    %v2977 = vsel %vm195, %v2822, 0
    %v2980 = vsel %vm195, %v2823, 0
    %v2983 = vsel %vm195, %v2824, 0
    %v2986 = vsel %vm195, %v2825, 0
    %v2989 = vsel %vm195, %v2826, 0
    %v2992 = vsel %vm195, %v2827, 0
    %v2995 = vsel %vm195, %v2828, 0
    %v2998 = vsel %vm195, %v2829, 0
    %v3001 = vsel %vm195, %v2830, 0
    %v3004 = vsel %vm195, %v2831, 0
    %v3007 = vsel %vm195, %v2832, 0
    %v3010 = vsel %vm195, %v2833, 0
    %v3013 = vsel %vm195, %v2834, 0
    %v3016 = vsel %vm195, %v2835, 0
    %v3019 = vsel %vm195, %v2836, 0
    %v3022 = vsel %vm195, %v2837, 0
    %v3025 = vsel %vm195, %v2838, 0
    %v3028 = vsel %vm195, %v2839, 0
    %v3031 = vsel %vm195, %v2840, 0
    %v3034 = vsel %vm195, %v2841, 0
    %v3037 = vsel %vm388, %v2843, 0
    %3039 = vmatprep.subr.mxu0 0.0
    %3040 = vmatpush1.msra.mxu0 0.0
    %3041 = vmatprep.subr.mxu0 0.0
    %3042 = vmatpush1.msra.mxu0 0.0
    %3043 = vmatprep.subr.mxu0 0.0
    %3044 = vmatpush1.msra.mxu0 0.0
    %3045 = vmatprep.subr.mxu0 0.0
    %3046 = vmatpush1.msra.mxu0 0.0
    %3047 = vmatprep.subr.mxu0 0.0
    %3048 = vmatpush1.msra.mxu0 0.0
    %3049 = vmatprep.subr.mxu0 0.0
    %3050 = vmatpush1.msra.mxu0 0.0
    %3051 = vmatprep.subr.mxu0 0.0
    %3052 = vmatpush1.msra.mxu0 0.0
    %3053 = vmatprep.subr.mxu0 0.0
    %3054 = vmatpush1.msra.mxu0 0.0
    %3055 = vmatprep.subr.mxu0 0.0
    %3056 = vmatpush1.msra.mxu0 0.0
    %3057 = vmatprep.subr.mxu0 0.0
    %3058 = vmatpush1.msra.mxu0 0.0
    %3059 = vmatprep.subr.mxu0 0.0
    %3060 = vmatpush1.msra.mxu0 0.0
    %3061 = vmatprep.subr.mxu0 0.0
    %3062 = vmatpush1.msra.mxu0 0.0
    %3063 = vmatprep.subr.mxu0 0.0
    %3064 = vmatpush1.msra.mxu0 0.0
    %3065 = vmatprep.subr.mxu0 0.0
    %3066 = vmatpush1.msra.mxu0 0.0
    %3067 = vmatprep.subr.mxu0 0.0
    %3068 = vmatpush1.msra.mxu0 0.0
    %3069 = vmatprep.subr.mxu0 0.0
    %3070 = vmatpush1.msra.mxu0 %v3037
    %3071 = vmatprep.subr.mxu0 0.0
    %3072 = vmatpush2.msra.mxu0 0.0
    %3073 = vmatprep.subr.mxu0 0.0
    %3074 = vmatpush2.msra.mxu0 0.0
    %3075 = vmatprep.subr.mxu0 0.0
    %3076 = vmatpush2.msra.mxu0 0.0
    %3077 = vmatprep.subr.mxu0 0.0
    %3078 = vmatpush2.msra.mxu0 0.0
    %3079 = vmatprep.subr.mxu0 0.0
    %3080 = vmatpush2.msra.mxu0 0.0
    %3081 = vmatprep.subr.mxu0 0.0
    %3082 = vmatpush2.msra.mxu0 0.0
    %3083 = vmatprep.subr.mxu0 0.0
    %3084 = vmatpush2.msra.mxu0 0.0
    %3085 = vmatprep.subr.mxu0 0.0
    %3086 = vmatpush2.msra.mxu0 0.0
    %3087 = vmatprep.subr.mxu0 0.0
    %3088 = vmatpush2.msra.mxu0 0.0
    %3089 = vmatprep.subr.mxu0 0.0
    %3090 = vmatpush2.msra.mxu0 0.0
    %3091 = vmatprep.subr.mxu0 0.0
    %3092 = vmatpush2.msra.mxu0 0.0
    %3093 = vmatprep.subr.mxu0 0.0
    %3094 = vmatpush2.msra.mxu0 0.0
    %3095 = vmatprep.subr.mxu0 0.0
    %3096 = vmatpush2.msra.mxu0 0.0
    %3097 = vmatprep.subr.mxu0 0.0
    %3098 = vmatpush2.msra.mxu0 0.0
    %3099 = vmatprep.subr.mxu0 0.0
    %3100 = vmatpush2.msra.mxu0 0.0
    %3101 = vmatprep.subr.mxu0 0.0
    %3102 = vmatpush2.msra.mxu0 0.0
    %3103 = vmatprep.mubr.f32.mxu0 0.0
    %3104 = vmatmul.mubr.f32.gmra.mxu0 %v2845
    %v3105 = vpop.f32.mrf.mxu0
    %v3106 = vadd.f32 0.0, %v3105
    %v3107 = vpop.f32.mrf.mxu0
    %3108 = vmatprep.mubr.f32.mxu0 0.0
    %3109 = vmatmul.mubr.f32.gmra.mxu0 %v2848
    %v3110 = vpop.f32.mrf.mxu0
    %v3111 = vadd.f32 0.0, %v3110
    %v3112 = vpop.f32.mrf.mxu0
    %3113 = vmatprep.mubr.f32.mxu0 0.0
    %3114 = vmatmul.mubr.f32.gmra.mxu0 %v2851
    %v3115 = vpop.f32.mrf.mxu0
    %v3116 = vadd.f32 0.0, %v3115
    %v3117 = vpop.f32.mrf.mxu0
    %3118 = vmatprep.mubr.f32.mxu0 0.0
    %3119 = vmatmul.mubr.f32.gmra.mxu0 %v2854
    %v3120 = vpop.f32.mrf.mxu0
    %v3121 = vadd.f32 0.0, %v3120
    %v3122 = vpop.f32.mrf.mxu0
    %3123 = vmatprep.mubr.f32.mxu0 0.0
    %3124 = vmatmul.mubr.f32.gmra.mxu0 %v2857
    %v3125 = vpop.f32.mrf.mxu0
    %v3126 = vadd.f32 0.0, %v3125
    %v3127 = vpop.f32.mrf.mxu0
    %3128 = vmatprep.mubr.f32.mxu0 0.0
    %3129 = vmatmul.mubr.f32.gmra.mxu0 %v2860
    %v3130 = vpop.f32.mrf.mxu0
    %v3131 = vadd.f32 0.0, %v3130
    %v3132 = vpop.f32.mrf.mxu0
    %3133 = vmatprep.mubr.f32.mxu0 0.0
    %3134 = vmatmul.mubr.f32.gmra.mxu0 %v2863
    %v3135 = vpop.f32.mrf.mxu0
    %v3136 = vadd.f32 0.0, %v3135
    %v3137 = vpop.f32.mrf.mxu0
    %3138 = vmatprep.mubr.f32.mxu0 0.0
    %3139 = vmatmul.mubr.f32.gmra.mxu0 %v2866
    %v3140 = vpop.f32.mrf.mxu0
    %v3141 = vadd.f32 0.0, %v3140
    %v3142 = vpop.f32.mrf.mxu0
    %3143 = vmatprep.mubr.f32.mxu0 0.0
    %3144 = vmatmul.mubr.f32.gmra.mxu0 %v2869
    %v3145 = vpop.f32.mrf.mxu0
    %v3146 = vadd.f32 0.0, %v3145
    %v3147 = vpop.f32.mrf.mxu0
    %3148 = vmatprep.mubr.f32.mxu0 0.0
    %3149 = vmatmul.mubr.f32.gmra.mxu0 %v2872
    %v3150 = vpop.f32.mrf.mxu0
    %v3151 = vadd.f32 0.0, %v3150
    %v3152 = vpop.f32.mrf.mxu0
    %3153 = vmatprep.mubr.f32.mxu0 0.0
    %3154 = vmatmul.mubr.f32.gmra.mxu0 %v2875
    %v3155 = vpop.f32.mrf.mxu0
    %v3156 = vadd.f32 0.0, %v3155
    %v3157 = vpop.f32.mrf.mxu0
    %3158 = vmatprep.mubr.f32.mxu0 0.0
    %3159 = vmatmul.mubr.f32.gmra.mxu0 %v2878
    %v3160 = vpop.f32.mrf.mxu0
    %v3161 = vadd.f32 0.0, %v3160
    %v3162 = vpop.f32.mrf.mxu0
    %3163 = vmatprep.mubr.f32.mxu0 0.0
    %3164 = vmatmul.mubr.f32.gmra.mxu0 %v2881
    %v3165 = vpop.f32.mrf.mxu0
    %v3166 = vadd.f32 0.0, %v3165
    %v3167 = vpop.f32.mrf.mxu0
    %3168 = vmatprep.mubr.f32.mxu0 0.0
    %3169 = vmatmul.mubr.f32.gmra.mxu0 %v2884
    %v3170 = vpop.f32.mrf.mxu0
    %v3171 = vadd.f32 0.0, %v3170
    %v3172 = vpop.f32.mrf.mxu0
    %3173 = vmatprep.mubr.f32.mxu0 0.0
    %3174 = vmatmul.mubr.f32.gmra.mxu0 %v2887
    %v3175 = vpop.f32.mrf.mxu0
    %v3176 = vadd.f32 0.0, %v3175
    %v3177 = vpop.f32.mrf.mxu0
    %3178 = vmatprep.mubr.f32.mxu0 0.0
    %3179 = vmatmul.mubr.f32.gmra.mxu0 %v2890
    %v3180 = vpop.f32.mrf.mxu0
    %v3181 = vadd.f32 0.0, %v3180
    %v3182 = vpop.f32.mrf.mxu0
    %3183 = vmatprep.mubr.f32.mxu0 0.0
    %3184 = vmatmul.mubr.f32.gmra.mxu0 %v2893
    %v3185 = vpop.f32.mrf.mxu0
    %v3186 = vadd.f32 0.0, %v3185
    %v3187 = vpop.f32.mrf.mxu0
    %3188 = vmatprep.mubr.f32.mxu0 0.0
    %3189 = vmatmul.mubr.f32.gmra.mxu0 %v2896
    %v3190 = vpop.f32.mrf.mxu0
    %v3191 = vadd.f32 0.0, %v3190
    %v3192 = vpop.f32.mrf.mxu0
    %3193 = vmatprep.mubr.f32.mxu0 0.0
    %3194 = vmatmul.mubr.f32.gmra.mxu0 %v2899
    %v3195 = vpop.f32.mrf.mxu0
    %v3196 = vadd.f32 0.0, %v3195
    %v3197 = vpop.f32.mrf.mxu0
    %3198 = vmatprep.mubr.f32.mxu0 0.0
    %3199 = vmatmul.mubr.f32.gmra.mxu0 %v2902
    %v3200 = vpop.f32.mrf.mxu0
    %v3201 = vadd.f32 0.0, %v3200
    %v3202 = vpop.f32.mrf.mxu0
    %3203 = vmatprep.mubr.f32.mxu0 0.0
    %3204 = vmatmul.mubr.f32.gmra.mxu0 %v2905
    %v3205 = vpop.f32.mrf.mxu0
    %v3206 = vadd.f32 0.0, %v3205
    %v3207 = vpop.f32.mrf.mxu0
    %3208 = vmatprep.mubr.f32.mxu0 0.0
    %3209 = vmatmul.mubr.f32.gmra.mxu0 %v2908
    %v3210 = vpop.f32.mrf.mxu0
    %v3211 = vadd.f32 0.0, %v3210
    %v3212 = vpop.f32.mrf.mxu0
    %3213 = vmatprep.mubr.f32.mxu0 0.0
    %3214 = vmatmul.mubr.f32.gmra.mxu0 %v2911
    %v3215 = vpop.f32.mrf.mxu0
    %v3216 = vadd.f32 0.0, %v3215
    %v3217 = vpop.f32.mrf.mxu0
    %3218 = vmatprep.mubr.f32.mxu0 0.0
    %3219 = vmatmul.mubr.f32.gmra.mxu0 %v2914
    %v3220 = vpop.f32.mrf.mxu0
    %v3221 = vadd.f32 0.0, %v3220
    %v3222 = vpop.f32.mrf.mxu0
    %3223 = vmatprep.mubr.f32.mxu0 0.0
    %3224 = vmatmul.mubr.f32.gmra.mxu0 %v2917
    %v3225 = vpop.f32.mrf.mxu0
    %v3226 = vadd.f32 0.0, %v3225
    %v3227 = vpop.f32.mrf.mxu0
    %3228 = vmatprep.mubr.f32.mxu0 0.0
    %3229 = vmatmul.mubr.f32.gmra.mxu0 %v2920
    %v3230 = vpop.f32.mrf.mxu0
    %v3231 = vadd.f32 0.0, %v3230
    %v3232 = vpop.f32.mrf.mxu0
    %3233 = vmatprep.mubr.f32.mxu0 0.0
    %3234 = vmatmul.mubr.f32.gmra.mxu0 %v2923
    %v3235 = vpop.f32.mrf.mxu0
    %v3236 = vadd.f32 0.0, %v3235
    %v3237 = vpop.f32.mrf.mxu0
    %3238 = vmatprep.mubr.f32.mxu0 0.0
    %3239 = vmatmul.mubr.f32.gmra.mxu0 %v2926
    %v3240 = vpop.f32.mrf.mxu0
    %v3241 = vadd.f32 0.0, %v3240
    %v3242 = vpop.f32.mrf.mxu0
    %3243 = vmatprep.mubr.f32.mxu0 0.0
    %3244 = vmatmul.mubr.f32.gmra.mxu0 %v2929
    %v3245 = vpop.f32.mrf.mxu0
    %v3246 = vadd.f32 0.0, %v3245
    %v3247 = vpop.f32.mrf.mxu0
    %3248 = vmatprep.mubr.f32.mxu0 0.0
    %3249 = vmatmul.mubr.f32.gmra.mxu0 %v2932
    %v3250 = vpop.f32.mrf.mxu0
    %v3251 = vadd.f32 0.0, %v3250
    %v3252 = vpop.f32.mrf.mxu0
    %3253 = vmatprep.mubr.f32.mxu0 0.0
    %3254 = vmatmul.mubr.f32.gmra.mxu0 %v2935
    %v3255 = vpop.f32.mrf.mxu0
    %v3256 = vadd.f32 0.0, %v3255
    %v3257 = vpop.f32.mrf.mxu0
    %3258 = vmatprep.mubr.f32.mxu0 0.0
    %3259 = vmatmul.mubr.f32.gmra.mxu0 %v2938
    %v3260 = vpop.f32.mrf.mxu0
    %v3261 = vadd.f32 0.0, %v3260
    %v3262 = vpop.f32.mrf.mxu0
    %3263 = vmatprep.mubr.f32.mxu0 0.0
    %3264 = vmatmul.mubr.f32.gmra.mxu0 %v2941
    %v3265 = vpop.f32.mrf.mxu0
    %v3266 = vadd.f32 0.0, %v3265
    %v3267 = vpop.f32.mrf.mxu0
    %3268 = vmatprep.mubr.f32.mxu0 0.0
    %3269 = vmatmul.mubr.f32.gmra.mxu0 %v2944
    %v3270 = vpop.f32.mrf.mxu0
    %v3271 = vadd.f32 0.0, %v3270
    %v3272 = vpop.f32.mrf.mxu0
    %3273 = vmatprep.mubr.f32.mxu0 0.0
    %3274 = vmatmul.mubr.f32.gmra.mxu0 %v2947
    %v3275 = vpop.f32.mrf.mxu0
    %v3276 = vadd.f32 0.0, %v3275
    %v3277 = vpop.f32.mrf.mxu0
    %3278 = vmatprep.mubr.f32.mxu0 0.0
    %3279 = vmatmul.mubr.f32.gmra.mxu0 %v2950
    %v3280 = vpop.f32.mrf.mxu0
    %v3281 = vadd.f32 0.0, %v3280
    %v3282 = vpop.f32.mrf.mxu0
    %3283 = vmatprep.mubr.f32.mxu0 0.0
    %3284 = vmatmul.mubr.f32.gmra.mxu0 %v2953
    %v3285 = vpop.f32.mrf.mxu0
    %v3286 = vadd.f32 0.0, %v3285
    %v3287 = vpop.f32.mrf.mxu0
    %3288 = vmatprep.mubr.f32.mxu0 0.0
    %3289 = vmatmul.mubr.f32.gmra.mxu0 %v2956
    %v3290 = vpop.f32.mrf.mxu0
    %v3291 = vadd.f32 0.0, %v3290
    %v3292 = vpop.f32.mrf.mxu0
    %3293 = vmatprep.mubr.f32.mxu0 0.0
    %3294 = vmatmul.mubr.f32.gmra.mxu0 %v2959
    %v3295 = vpop.f32.mrf.mxu0
    %v3296 = vadd.f32 0.0, %v3295
    %v3297 = vpop.f32.mrf.mxu0
    %3298 = vmatprep.mubr.f32.mxu0 0.0
    %3299 = vmatmul.mubr.f32.gmra.mxu0 %v2962
    %v3300 = vpop.f32.mrf.mxu0
    %v3301 = vadd.f32 0.0, %v3300
    %v3302 = vpop.f32.mrf.mxu0
    %3303 = vmatprep.mubr.f32.mxu0 0.0
    %3304 = vmatmul.mubr.f32.gmra.mxu0 %v2965
    %v3305 = vpop.f32.mrf.mxu0
    %v3306 = vadd.f32 0.0, %v3305
    %v3307 = vpop.f32.mrf.mxu0
    %3308 = vmatprep.mubr.f32.mxu0 0.0
    %3309 = vmatmul.mubr.f32.gmra.mxu0 %v2968
    %v3310 = vpop.f32.mrf.mxu0
    %v3311 = vadd.f32 0.0, %v3310
    %v3312 = vpop.f32.mrf.mxu0
    %3313 = vmatprep.mubr.f32.mxu0 0.0
    %3314 = vmatmul.mubr.f32.gmra.mxu0 %v2971
    %v3315 = vpop.f32.mrf.mxu0
    %v3316 = vadd.f32 0.0, %v3315
    %v3317 = vpop.f32.mrf.mxu0
    %3318 = vmatprep.mubr.f32.mxu0 0.0
    %3319 = vmatmul.mubr.f32.gmra.mxu0 %v2974
    %v3320 = vpop.f32.mrf.mxu0
    %v3321 = vadd.f32 0.0, %v3320
    %v3322 = vpop.f32.mrf.mxu0
    %3323 = vmatprep.mubr.f32.mxu0 0.0
    %3324 = vmatmul.mubr.f32.gmra.mxu0 %v2977
    %v3325 = vpop.f32.mrf.mxu0
    %v3326 = vadd.f32 0.0, %v3325
    %v3327 = vpop.f32.mrf.mxu0
    %3328 = vmatprep.mubr.f32.mxu0 0.0
    %3329 = vmatmul.mubr.f32.gmra.mxu0 %v2980
    %v3330 = vpop.f32.mrf.mxu0
    %v3331 = vadd.f32 0.0, %v3330
    %v3332 = vpop.f32.mrf.mxu0
    %3333 = vmatprep.mubr.f32.mxu0 0.0
    %3334 = vmatmul.mubr.f32.gmra.mxu0 %v2983
    %v3335 = vpop.f32.mrf.mxu0
    %v3336 = vadd.f32 0.0, %v3335
    %v3337 = vpop.f32.mrf.mxu0
    %3338 = vmatprep.mubr.f32.mxu0 0.0
    %3339 = vmatmul.mubr.f32.gmra.mxu0 %v2986
    %v3340 = vpop.f32.mrf.mxu0
    %v3341 = vadd.f32 0.0, %v3340
    %v3342 = vpop.f32.mrf.mxu0
    %3343 = vmatprep.mubr.f32.mxu0 0.0
    %3344 = vmatmul.mubr.f32.gmra.mxu0 %v2989
    %v3345 = vpop.f32.mrf.mxu0
    %v3346 = vadd.f32 0.0, %v3345
    %v3347 = vpop.f32.mrf.mxu0
    %3348 = vmatprep.mubr.f32.mxu0 0.0
    %3349 = vmatmul.mubr.f32.gmra.mxu0 %v2992
    %v3350 = vpop.f32.mrf.mxu0
    %v3351 = vadd.f32 0.0, %v3350
    %v3352 = vpop.f32.mrf.mxu0
    %3353 = vmatprep.mubr.f32.mxu0 0.0
    %3354 = vmatmul.mubr.f32.gmra.mxu0 %v2995
    %v3355 = vpop.f32.mrf.mxu0
    %v3356 = vadd.f32 0.0, %v3355
    %v3357 = vpop.f32.mrf.mxu0
    %3358 = vmatprep.mubr.f32.mxu0 0.0
    %3359 = vmatmul.mubr.f32.gmra.mxu0 %v2998
    %v3360 = vpop.f32.mrf.mxu0
    %v3361 = vadd.f32 0.0, %v3360
    %v3362 = vpop.f32.mrf.mxu0
    %3363 = vmatprep.mubr.f32.mxu0 0.0
    %3364 = vmatmul.mubr.f32.gmra.mxu0 %v3001
    %v3365 = vpop.f32.mrf.mxu0
    %v3366 = vadd.f32 0.0, %v3365
    %v3367 = vpop.f32.mrf.mxu0
    %3368 = vmatprep.mubr.f32.mxu0 0.0
    %3369 = vmatmul.mubr.f32.gmra.mxu0 %v3004
    %v3370 = vpop.f32.mrf.mxu0
    %v3371 = vadd.f32 0.0, %v3370
    %v3372 = vpop.f32.mrf.mxu0
    %3373 = vmatprep.mubr.f32.mxu0 0.0
    %3374 = vmatmul.mubr.f32.gmra.mxu0 %v3007
    %v3375 = vpop.f32.mrf.mxu0
    %v3376 = vadd.f32 0.0, %v3375
    %v3377 = vpop.f32.mrf.mxu0
    %3378 = vmatprep.mubr.f32.mxu0 0.0
    %3379 = vmatmul.mubr.f32.gmra.mxu0 %v3010
    %v3380 = vpop.f32.mrf.mxu0
    %v3381 = vadd.f32 0.0, %v3380
    %v3382 = vpop.f32.mrf.mxu0
    %3383 = vmatprep.mubr.f32.mxu0 0.0
    %3384 = vmatmul.mubr.f32.gmra.mxu0 %v3013
    %v3385 = vpop.f32.mrf.mxu0
    %v3386 = vadd.f32 0.0, %v3385
    %v3387 = vpop.f32.mrf.mxu0
    %3388 = vmatprep.mubr.f32.mxu0 0.0
    %3389 = vmatmul.mubr.f32.gmra.mxu0 %v3016
    %v3390 = vpop.f32.mrf.mxu0
    %v3391 = vadd.f32 0.0, %v3390
    %v3392 = vpop.f32.mrf.mxu0
    %3393 = vmatprep.mubr.f32.mxu0 0.0
    %3394 = vmatmul.mubr.f32.gmra.mxu0 %v3019
    %v3395 = vpop.f32.mrf.mxu0
    %v3396 = vadd.f32 0.0, %v3395
    %v3397 = vpop.f32.mrf.mxu0
    %3398 = vmatprep.mubr.f32.mxu0 0.0
    %3399 = vmatmul.mubr.f32.gmra.mxu0 %v3022
    %v3400 = vpop.f32.mrf.mxu0
    %v3401 = vadd.f32 0.0, %v3400
    %v3402 = vpop.f32.mrf.mxu0
    %3403 = vmatprep.mubr.f32.mxu0 0.0
    %3404 = vmatmul.mubr.f32.gmra.mxu0 %v3025
    %v3405 = vpop.f32.mrf.mxu0
    %v3406 = vadd.f32 0.0, %v3405
    %v3407 = vpop.f32.mrf.mxu0
    %3408 = vmatprep.mubr.f32.mxu0 0.0
    %3409 = vmatmul.mubr.f32.gmra.mxu0 %v3028
    %v3410 = vpop.f32.mrf.mxu0
    %v3411 = vadd.f32 0.0, %v3410
    %v3412 = vpop.f32.mrf.mxu0
    %3413 = vmatprep.mubr.f32.mxu0 0.0
    %3414 = vmatmul.mubr.f32.gmra.mxu0 %v3031
    %v3415 = vpop.f32.mrf.mxu0
    %v3416 = vadd.f32 0.0, %v3415
    %v3417 = vpop.f32.mrf.mxu0
    %3418 = vmatprep.mubr.f32.mxu0 0.0
    %3419 = vmatmul.mubr.f32.gmra.mxu0 %v3034
    %v3420 = vpop.f32.mrf.mxu0
    %v3421 = vadd.f32 0.0, %v3420
    %v3422 = vpop.f32.mrf.mxu0
    %3423 = vdwg.mxu0
    %v3424 = vadd.f32 %v2714, %v3106
    %v3425 = vadd.f32 %v2715, %v3111
    %v3426 = vadd.f32 %v2716, %v3116
    %v3427 = vadd.f32 %v2717, %v3121
    %v3428 = vadd.f32 %v2718, %v3126
    %v3429 = vadd.f32 %v2719, %v3131
    %v3430 = vadd.f32 %v2720, %v3136
    %v3431 = vadd.f32 %v2721, %v3141
    %v3432 = vadd.f32 %v2722, %v3146
    %v3433 = vadd.f32 %v2723, %v3151
    %v3434 = vadd.f32 %v2724, %v3156
    %v3435 = vadd.f32 %v2725, %v3161
    %v3436 = vadd.f32 %v2726, %v3166
    %v3437 = vadd.f32 %v2727, %v3171
    %v3438 = vadd.f32 %v2728, %v3176
    %v3439 = vadd.f32 %v2729, %v3181
    %v3440 = vadd.f32 %v2730, %v3186
    %v3441 = vadd.f32 %v2731, %v3191
    %v3442 = vadd.f32 %v2732, %v3196
    %v3443 = vadd.f32 %v2733, %v3201
    %v3444 = vadd.f32 %v2734, %v3206
    %v3445 = vadd.f32 %v2735, %v3211
    %v3446 = vadd.f32 %v2736, %v3216
    %v3447 = vadd.f32 %v2737, %v3221
    %v3448 = vadd.f32 %v2738, %v3226
    %v3449 = vadd.f32 %v2739, %v3231
    %v3450 = vadd.f32 %v2740, %v3236
    %v3451 = vadd.f32 %v2741, %v3241
    %v3452 = vadd.f32 %v2742, %v3246
    %v3453 = vadd.f32 %v2743, %v3251
    %v3454 = vadd.f32 %v2744, %v3256
    %v3455 = vadd.f32 %v2745, %v3261
    %v3456 = vadd.f32 %v2746, %v3266
    %v3457 = vadd.f32 %v2747, %v3271
    %v3458 = vadd.f32 %v2748, %v3276
    %v3459 = vadd.f32 %v2749, %v3281
    %v3460 = vadd.f32 %v2750, %v3286
    %v3461 = vadd.f32 %v2751, %v3291
    %v3462 = vadd.f32 %v2752, %v3296
    %v3463 = vadd.f32 %v2753, %v3301
    %v3464 = vadd.f32 %v2754, %v3306
    %v3465 = vadd.f32 %v2755, %v3311
    %v3466 = vadd.f32 %v2756, %v3316
    %v3467 = vadd.f32 %v2757, %v3321
    %v3468 = vadd.f32 %v2758, %v3326
    %v3469 = vadd.f32 %v2759, %v3331
    %v3470 = vadd.f32 %v2760, %v3336
    %v3471 = vadd.f32 %v2761, %v3341
    %v3472 = vadd.f32 %v2762, %v3346
    %v3473 = vadd.f32 %v2763, %v3351
    %v3474 = vadd.f32 %v2764, %v3356
    %v3475 = vadd.f32 %v2765, %v3361
    %v3476 = vadd.f32 %v2766, %v3366
    %v3477 = vadd.f32 %v2767, %v3371
    %v3478 = vadd.f32 %v2768, %v3376
    %v3479 = vadd.f32 %v2769, %v3381
    %v3480 = vadd.f32 %v2770, %v3386
    %v3481 = vadd.f32 %v2771, %v3391
    %v3482 = vadd.f32 %v2772, %v3396
    %v3483 = vadd.f32 %v2773, %v3401
    %v3484 = vadd.f32 %v2774, %v3406
    %v3485 = vadd.f32 %v2775, %v3411
    %v3486 = vadd.f32 %v2776, %v3416
    %v3487 = vadd.f32 %v2777, %v3421
    %v3488 = vld [vmem:[%s2067 + $0x2] sm:$0xff]
    %v3489 = vld [vmem:[%s2067 + $0xa] sm:$0xff]
    %v3490 = vld [vmem:[%s2067 + $0x1a] sm:$0xff]
    %v3491 = vld [vmem:[%s2067 + $0x22] sm:$0xff]
    %v3492 = vld [vmem:[%s2067 + $0x32] sm:$0xff]
    %v3493 = vld [vmem:[%s2067 + $0x3a] sm:$0xff]
    %v3494 = vld [vmem:[%s2067 + $0x4a] sm:$0xff]
    %v3495 = vld [vmem:[%s2067 + $0x52] sm:$0xff]
    %v3496 = vld [vmem:[%s2067 + $0x62] sm:$0xff]
    %v3497 = vld [vmem:[%s2067 + $0x6a] sm:$0xff]
    %v3498 = vld [vmem:[%s2067 + $0x7a] sm:$0xff]
    %v3499 = vld [vmem:[%s2067 + $0x82] sm:$0xff]
    %v3500 = vld [vmem:[%s2067 + $0x92] sm:$0xff]
    %v3501 = vld [vmem:[%s2067 + $0x9a] sm:$0xff]
    %v3502 = vld [vmem:[%s2067 + $0xaa] sm:$0xff]
    %v3503 = vld [vmem:[%s2067 + $0xb2] sm:$0xff]
    %v3504 = vld [vmem:[%s2067 + $0xc2] sm:$0xff]
    %v3505 = vld [vmem:[%s2067 + $0xca] sm:$0xff]
    %v3506 = vld [vmem:[%s2067 + $0xda] sm:$0xff]
    %v3507 = vld [vmem:[%s2067 + $0xe2] sm:$0xff]
    %v3508 = vld [vmem:[%s2067 + $0xf2] sm:$0xff]
    %v3509 = vld [vmem:[%s2067 + $0xfa] sm:$0xff]
    %v3510 = vld [vmem:[%s2067 + $0x10a] sm:$0xff]
    %v3511 = vld [vmem:[%s2067 + $0x112] sm:$0xff]
    %v3512 = vld [vmem:[%s2067 + $0x122] sm:$0xff]
    %v3513 = vld [vmem:[%s2067 + $0x12a] sm:$0xff]
    %v3514 = vld [vmem:[%s2067 + $0x13a] sm:$0xff]
    %v3515 = vld [vmem:[%s2067 + $0x142] sm:$0xff]
    %v3516 = vld [vmem:[%s2067 + $0x152] sm:$0xff]
    %v3517 = vld [vmem:[%s2067 + $0x15a] sm:$0xff]
    %v3518 = vld [vmem:[%s2067 + $0x16a] sm:$0xff]
    %v3519 = vld [vmem:[%s2067 + $0x172] sm:$0xff]
    %v3520 = vld [vmem:[%s2067 + $0x1b2] sm:$0xff]
    %v3521 = vld [vmem:[%s2067 + $0x1ba] sm:$0xff]
    %v3522 = vld [vmem:[%s2067 + $0x1ca] sm:$0xff]
    %v3523 = vld [vmem:[%s2067 + $0x1d2] sm:$0xff]
    %v3524 = vld [vmem:[%s2067 + $0x1e2] sm:$0xff]
    %v3525 = vld [vmem:[%s2067 + $0x1ea] sm:$0xff]
    %v3526 = vld [vmem:[%s2067 + $0x1fa] sm:$0xff]
    %v3527 = vld [vmem:[%s2067 + $0x202] sm:$0xff]
    %v3528 = vld [vmem:[%s2067 + $0x212] sm:$0xff]
    %v3529 = vld [vmem:[%s2067 + $0x21a] sm:$0xff]
    %v3530 = vld [vmem:[%s2067 + $0x22a] sm:$0xff]
    %v3531 = vld [vmem:[%s2067 + $0x232] sm:$0xff]
    %v3532 = vld [vmem:[%s2067 + $0x242] sm:$0xff]
    %v3533 = vld [vmem:[%s2067 + $0x24a] sm:$0xff]
    %v3534 = vld [vmem:[%s2067 + $0x25a] sm:$0xff]
    %v3535 = vld [vmem:[%s2067 + $0x262] sm:$0xff]
    %v3536 = vld [vmem:[%s2067 + $0x272] sm:$0xff]
    %v3537 = vld [vmem:[%s2067 + $0x27a] sm:$0xff]
    %v3538 = vld [vmem:[%s2067 + $0x28a] sm:$0xff]
    %v3539 = vld [vmem:[%s2067 + $0x292] sm:$0xff]
    %v3540 = vld [vmem:[%s2067 + $0x2a2] sm:$0xff]
    %v3541 = vld [vmem:[%s2067 + $0x2aa] sm:$0xff]
    %v3542 = vld [vmem:[%s2067 + $0x2ba] sm:$0xff]
    %v3543 = vld [vmem:[%s2067 + $0x2c2] sm:$0xff]
    %v3544 = vld [vmem:[%s2067 + $0x2d2] sm:$0xff]
    %v3545 = vld [vmem:[%s2067 + $0x2da] sm:$0xff]
    %v3546 = vld [vmem:[%s2067 + $0x2ea] sm:$0xff]
    %v3547 = vld [vmem:[%s2067 + $0x2f2] sm:$0xff]
    %v3548 = vld [vmem:[%s2067 + $0x302] sm:$0xff]
    %v3549 = vld [vmem:[%s2067 + $0x30a] sm:$0xff]
    %v3550 = vld [vmem:[%s2067 + $0x31a] sm:$0xff]
    %v3551 = vld [vmem:[%s2067 + $0x322] sm:$0xff]
    %s3552 = scalar_lea.vmem %s2, 20
    %v3553 = vld [vmem:[%s3552] sm:$0x7]
    %v3555 = vsel %vm195, %v3488, 0
    %v3558 = vsel %vm195, %v3489, 0
    %v3561 = vsel %vm195, %v3490, 0
    %v3564 = vsel %vm195, %v3491, 0
    %v3567 = vsel %vm195, %v3492, 0
    %v3570 = vsel %vm195, %v3493, 0
    %v3573 = vsel %vm195, %v3494, 0
    %v3576 = vsel %vm195, %v3495, 0
    %v3579 = vsel %vm195, %v3496, 0
    %v3582 = vsel %vm195, %v3497, 0
    %v3585 = vsel %vm195, %v3498, 0
    %v3588 = vsel %vm195, %v3499, 0
    %v3591 = vsel %vm195, %v3500, 0
    %v3594 = vsel %vm195, %v3501, 0
    %v3597 = vsel %vm195, %v3502, 0
    %v3600 = vsel %vm195, %v3503, 0
    %v3603 = vsel %vm195, %v3504, 0
    %v3606 = vsel %vm195, %v3505, 0
    %v3609 = vsel %vm195, %v3506, 0
    %v3612 = vsel %vm195, %v3507, 0
    %v3615 = vsel %vm195, %v3508, 0
    %v3618 = vsel %vm195, %v3509, 0
    %v3621 = vsel %vm195, %v3510, 0
    %v3624 = vsel %vm195, %v3511, 0
    %v3627 = vsel %vm195, %v3512, 0
    %v3630 = vsel %vm195, %v3513, 0
    %v3633 = vsel %vm195, %v3514, 0
    %v3636 = vsel %vm195, %v3515, 0
    %v3639 = vsel %vm195, %v3516, 0
    %v3642 = vsel %vm195, %v3517, 0
    %v3645 = vsel %vm195, %v3518, 0
    %v3648 = vsel %vm195, %v3519, 0
    %v3651 = vsel %vm195, %v3520, 0
    %v3654 = vsel %vm195, %v3521, 0
    %v3657 = vsel %vm195, %v3522, 0
    %v3660 = vsel %vm195, %v3523, 0
    %v3663 = vsel %vm195, %v3524, 0
    %v3666 = vsel %vm195, %v3525, 0
    %v3669 = vsel %vm195, %v3526, 0
    %v3672 = vsel %vm195, %v3527, 0
    %v3675 = vsel %vm195, %v3528, 0
    %v3678 = vsel %vm195, %v3529, 0
    %v3681 = vsel %vm195, %v3530, 0
    %v3684 = vsel %vm195, %v3531, 0
    %v3687 = vsel %vm195, %v3532, 0
    %v3690 = vsel %vm195, %v3533, 0
    %v3693 = vsel %vm195, %v3534, 0
    %v3696 = vsel %vm195, %v3535, 0
    %v3699 = vsel %vm195, %v3536, 0
    %v3702 = vsel %vm195, %v3537, 0
    %v3705 = vsel %vm195, %v3538, 0
    %v3708 = vsel %vm195, %v3539, 0
    %v3711 = vsel %vm195, %v3540, 0
    %v3714 = vsel %vm195, %v3541, 0
    %v3717 = vsel %vm195, %v3542, 0
    %v3720 = vsel %vm195, %v3543, 0
    %v3723 = vsel %vm195, %v3544, 0
    %v3726 = vsel %vm195, %v3545, 0
    %v3729 = vsel %vm195, %v3546, 0
    %v3732 = vsel %vm195, %v3547, 0
    %v3735 = vsel %vm195, %v3548, 0
    %v3738 = vsel %vm195, %v3549, 0
    %v3741 = vsel %vm195, %v3550, 0
    %v3744 = vsel %vm195, %v3551, 0
    %v3747 = vsel %vm388, %v3553, 0
    %3749 = vmatprep.subr.mxu0 0.0
    %3750 = vmatpush1.msra.mxu0 0.0
    %3751 = vmatprep.subr.mxu0 0.0
    %3752 = vmatpush1.msra.mxu0 0.0
    %3753 = vmatprep.subr.mxu0 0.0
    %3754 = vmatpush1.msra.mxu0 0.0
    %3755 = vmatprep.subr.mxu0 0.0
    %3756 = vmatpush1.msra.mxu0 0.0
    %3757 = vmatprep.subr.mxu0 0.0
    %3758 = vmatpush1.msra.mxu0 0.0
    %3759 = vmatprep.subr.mxu0 0.0
    %3760 = vmatpush1.msra.mxu0 0.0
    %3761 = vmatprep.subr.mxu0 0.0
    %3762 = vmatpush1.msra.mxu0 0.0
    %3763 = vmatprep.subr.mxu0 0.0
    %3764 = vmatpush1.msra.mxu0 0.0
    %3765 = vmatprep.subr.mxu0 0.0
    %3766 = vmatpush1.msra.mxu0 0.0
    %3767 = vmatprep.subr.mxu0 0.0
    %3768 = vmatpush1.msra.mxu0 0.0
    %3769 = vmatprep.subr.mxu0 0.0
    %3770 = vmatpush1.msra.mxu0 0.0
    %3771 = vmatprep.subr.mxu0 0.0
    %3772 = vmatpush1.msra.mxu0 0.0
    %3773 = vmatprep.subr.mxu0 0.0
    %3774 = vmatpush1.msra.mxu0 0.0
    %3775 = vmatprep.subr.mxu0 0.0
    %3776 = vmatpush1.msra.mxu0 0.0
    %3777 = vmatprep.subr.mxu0 0.0
    %3778 = vmatpush1.msra.mxu0 0.0
    %3779 = vmatprep.subr.mxu0 0.0
    %3780 = vmatpush1.msra.mxu0 %v3747
    %3781 = vmatprep.subr.mxu0 0.0
    %3782 = vmatpush2.msra.mxu0 0.0
    %3783 = vmatprep.subr.mxu0 0.0
    %3784 = vmatpush2.msra.mxu0 0.0
    %3785 = vmatprep.subr.mxu0 0.0
    %3786 = vmatpush2.msra.mxu0 0.0
    %3787 = vmatprep.subr.mxu0 0.0
    %3788 = vmatpush2.msra.mxu0 0.0
    %3789 = vmatprep.subr.mxu0 0.0
    %3790 = vmatpush2.msra.mxu0 0.0
    %3791 = vmatprep.subr.mxu0 0.0
    %3792 = vmatpush2.msra.mxu0 0.0
    %3793 = vmatprep.subr.mxu0 0.0
    %3794 = vmatpush2.msra.mxu0 0.0
    %3795 = vmatprep.subr.mxu0 0.0
    %3796 = vmatpush2.msra.mxu0 0.0
    %3797 = vmatprep.subr.mxu0 0.0
    %3798 = vmatpush2.msra.mxu0 0.0
    %3799 = vmatprep.subr.mxu0 0.0
    %3800 = vmatpush2.msra.mxu0 0.0
    %3801 = vmatprep.subr.mxu0 0.0
    %3802 = vmatpush2.msra.mxu0 0.0
    %3803 = vmatprep.subr.mxu0 0.0
    %3804 = vmatpush2.msra.mxu0 0.0
    %3805 = vmatprep.subr.mxu0 0.0
    %3806 = vmatpush2.msra.mxu0 0.0
    %3807 = vmatprep.subr.mxu0 0.0
    %3808 = vmatpush2.msra.mxu0 0.0
    %3809 = vmatprep.subr.mxu0 0.0
    %3810 = vmatpush2.msra.mxu0 0.0
    %3811 = vmatprep.subr.mxu0 0.0
    %3812 = vmatpush2.msra.mxu0 0.0
    %3813 = vmatprep.mubr.f32.mxu0 0.0
    %3814 = vmatmul.mubr.f32.gmra.mxu0 %v3555
    %v3815 = vpop.f32.mrf.mxu0
    %v3816 = vadd.f32 0.0, %v3815
    %v3817 = vpop.f32.mrf.mxu0
    %3818 = vmatprep.mubr.f32.mxu0 0.0
    %3819 = vmatmul.mubr.f32.gmra.mxu0 %v3558
    %v3820 = vpop.f32.mrf.mxu0
    %v3821 = vadd.f32 0.0, %v3820
    %v3822 = vpop.f32.mrf.mxu0
    %3823 = vmatprep.mubr.f32.mxu0 0.0
    %3824 = vmatmul.mubr.f32.gmra.mxu0 %v3561
    %v3825 = vpop.f32.mrf.mxu0
    %v3826 = vadd.f32 0.0, %v3825
    %v3827 = vpop.f32.mrf.mxu0
    %3828 = vmatprep.mubr.f32.mxu0 0.0
    %3829 = vmatmul.mubr.f32.gmra.mxu0 %v3564
    %v3830 = vpop.f32.mrf.mxu0
    %v3831 = vadd.f32 0.0, %v3830
    %v3832 = vpop.f32.mrf.mxu0
    %3833 = vmatprep.mubr.f32.mxu0 0.0
    %3834 = vmatmul.mubr.f32.gmra.mxu0 %v3567
    %v3835 = vpop.f32.mrf.mxu0
    %v3836 = vadd.f32 0.0, %v3835
    %v3837 = vpop.f32.mrf.mxu0
    %3838 = vmatprep.mubr.f32.mxu0 0.0
    %3839 = vmatmul.mubr.f32.gmra.mxu0 %v3570
    %v3840 = vpop.f32.mrf.mxu0
    %v3841 = vadd.f32 0.0, %v3840
    %v3842 = vpop.f32.mrf.mxu0
    %3843 = vmatprep.mubr.f32.mxu0 0.0
    %3844 = vmatmul.mubr.f32.gmra.mxu0 %v3573
    %v3845 = vpop.f32.mrf.mxu0
    %v3846 = vadd.f32 0.0, %v3845
    %v3847 = vpop.f32.mrf.mxu0
    %3848 = vmatprep.mubr.f32.mxu0 0.0
    %3849 = vmatmul.mubr.f32.gmra.mxu0 %v3576
    %v3850 = vpop.f32.mrf.mxu0
    %v3851 = vadd.f32 0.0, %v3850
    %v3852 = vpop.f32.mrf.mxu0
    %3853 = vmatprep.mubr.f32.mxu0 0.0
    %3854 = vmatmul.mubr.f32.gmra.mxu0 %v3579
    %v3855 = vpop.f32.mrf.mxu0
    %v3856 = vadd.f32 0.0, %v3855
    %v3857 = vpop.f32.mrf.mxu0
    %3858 = vmatprep.mubr.f32.mxu0 0.0
    %3859 = vmatmul.mubr.f32.gmra.mxu0 %v3582
    %v3860 = vpop.f32.mrf.mxu0
    %v3861 = vadd.f32 0.0, %v3860
    %v3862 = vpop.f32.mrf.mxu0
    %3863 = vmatprep.mubr.f32.mxu0 0.0
    %3864 = vmatmul.mubr.f32.gmra.mxu0 %v3585
    %v3865 = vpop.f32.mrf.mxu0
    %v3866 = vadd.f32 0.0, %v3865
    %v3867 = vpop.f32.mrf.mxu0
    %3868 = vmatprep.mubr.f32.mxu0 0.0
    %3869 = vmatmul.mubr.f32.gmra.mxu0 %v3588
    %v3870 = vpop.f32.mrf.mxu0
    %v3871 = vadd.f32 0.0, %v3870
    %v3872 = vpop.f32.mrf.mxu0
    %3873 = vmatprep.mubr.f32.mxu0 0.0
    %3874 = vmatmul.mubr.f32.gmra.mxu0 %v3591
    %v3875 = vpop.f32.mrf.mxu0
    %v3876 = vadd.f32 0.0, %v3875
    %v3877 = vpop.f32.mrf.mxu0
    %3878 = vmatprep.mubr.f32.mxu0 0.0
    %3879 = vmatmul.mubr.f32.gmra.mxu0 %v3594
    %v3880 = vpop.f32.mrf.mxu0
    %v3881 = vadd.f32 0.0, %v3880
    %v3882 = vpop.f32.mrf.mxu0
    %3883 = vmatprep.mubr.f32.mxu0 0.0
    %3884 = vmatmul.mubr.f32.gmra.mxu0 %v3597
    %v3885 = vpop.f32.mrf.mxu0
    %v3886 = vadd.f32 0.0, %v3885
    %v3887 = vpop.f32.mrf.mxu0
    %3888 = vmatprep.mubr.f32.mxu0 0.0
    %3889 = vmatmul.mubr.f32.gmra.mxu0 %v3600
    %v3890 = vpop.f32.mrf.mxu0
    %v3891 = vadd.f32 0.0, %v3890
    %v3892 = vpop.f32.mrf.mxu0
    %3893 = vmatprep.mubr.f32.mxu0 0.0
    %3894 = vmatmul.mubr.f32.gmra.mxu0 %v3603
    %v3895 = vpop.f32.mrf.mxu0
    %v3896 = vadd.f32 0.0, %v3895
    %v3897 = vpop.f32.mrf.mxu0
    %3898 = vmatprep.mubr.f32.mxu0 0.0
    %3899 = vmatmul.mubr.f32.gmra.mxu0 %v3606
    %v3900 = vpop.f32.mrf.mxu0
    %v3901 = vadd.f32 0.0, %v3900
    %v3902 = vpop.f32.mrf.mxu0
    %3903 = vmatprep.mubr.f32.mxu0 0.0
    %3904 = vmatmul.mubr.f32.gmra.mxu0 %v3609
    %v3905 = vpop.f32.mrf.mxu0
    %v3906 = vadd.f32 0.0, %v3905
    %v3907 = vpop.f32.mrf.mxu0
    %3908 = vmatprep.mubr.f32.mxu0 0.0
    %3909 = vmatmul.mubr.f32.gmra.mxu0 %v3612
    %v3910 = vpop.f32.mrf.mxu0
    %v3911 = vadd.f32 0.0, %v3910
    %v3912 = vpop.f32.mrf.mxu0
    %3913 = vmatprep.mubr.f32.mxu0 0.0
    %3914 = vmatmul.mubr.f32.gmra.mxu0 %v3615
    %v3915 = vpop.f32.mrf.mxu0
    %v3916 = vadd.f32 0.0, %v3915
    %v3917 = vpop.f32.mrf.mxu0
    %3918 = vmatprep.mubr.f32.mxu0 0.0
    %3919 = vmatmul.mubr.f32.gmra.mxu0 %v3618
    %v3920 = vpop.f32.mrf.mxu0
    %v3921 = vadd.f32 0.0, %v3920
    %v3922 = vpop.f32.mrf.mxu0
    %3923 = vmatprep.mubr.f32.mxu0 0.0
    %3924 = vmatmul.mubr.f32.gmra.mxu0 %v3621
    %v3925 = vpop.f32.mrf.mxu0
    %v3926 = vadd.f32 0.0, %v3925
    %v3927 = vpop.f32.mrf.mxu0
    %3928 = vmatprep.mubr.f32.mxu0 0.0
    %3929 = vmatmul.mubr.f32.gmra.mxu0 %v3624
    %v3930 = vpop.f32.mrf.mxu0
    %v3931 = vadd.f32 0.0, %v3930
    %v3932 = vpop.f32.mrf.mxu0
    %3933 = vmatprep.mubr.f32.mxu0 0.0
    %3934 = vmatmul.mubr.f32.gmra.mxu0 %v3627
    %v3935 = vpop.f32.mrf.mxu0
    %v3936 = vadd.f32 0.0, %v3935
    %v3937 = vpop.f32.mrf.mxu0
    %3938 = vmatprep.mubr.f32.mxu0 0.0
    %3939 = vmatmul.mubr.f32.gmra.mxu0 %v3630
    %v3940 = vpop.f32.mrf.mxu0
    %v3941 = vadd.f32 0.0, %v3940
    %v3942 = vpop.f32.mrf.mxu0
    %3943 = vmatprep.mubr.f32.mxu0 0.0
    %3944 = vmatmul.mubr.f32.gmra.mxu0 %v3633
    %v3945 = vpop.f32.mrf.mxu0
    %v3946 = vadd.f32 0.0, %v3945
    %v3947 = vpop.f32.mrf.mxu0
    %3948 = vmatprep.mubr.f32.mxu0 0.0
    %3949 = vmatmul.mubr.f32.gmra.mxu0 %v3636
    %v3950 = vpop.f32.mrf.mxu0
    %v3951 = vadd.f32 0.0, %v3950
    %v3952 = vpop.f32.mrf.mxu0
    %3953 = vmatprep.mubr.f32.mxu0 0.0
    %3954 = vmatmul.mubr.f32.gmra.mxu0 %v3639
    %v3955 = vpop.f32.mrf.mxu0
    %v3956 = vadd.f32 0.0, %v3955
    %v3957 = vpop.f32.mrf.mxu0
    %3958 = vmatprep.mubr.f32.mxu0 0.0
    %3959 = vmatmul.mubr.f32.gmra.mxu0 %v3642
    %v3960 = vpop.f32.mrf.mxu0
    %v3961 = vadd.f32 0.0, %v3960
    %v3962 = vpop.f32.mrf.mxu0
    %3963 = vmatprep.mubr.f32.mxu0 0.0
    %3964 = vmatmul.mubr.f32.gmra.mxu0 %v3645
    %v3965 = vpop.f32.mrf.mxu0
    %v3966 = vadd.f32 0.0, %v3965
    %v3967 = vpop.f32.mrf.mxu0
    %3968 = vmatprep.mubr.f32.mxu0 0.0
    %3969 = vmatmul.mubr.f32.gmra.mxu0 %v3648
    %v3970 = vpop.f32.mrf.mxu0
    %v3971 = vadd.f32 0.0, %v3970
    %v3972 = vpop.f32.mrf.mxu0
    %3973 = vmatprep.mubr.f32.mxu0 0.0
    %3974 = vmatmul.mubr.f32.gmra.mxu0 %v3651
    %v3975 = vpop.f32.mrf.mxu0
    %v3976 = vadd.f32 0.0, %v3975
    %v3977 = vpop.f32.mrf.mxu0
    %3978 = vmatprep.mubr.f32.mxu0 0.0
    %3979 = vmatmul.mubr.f32.gmra.mxu0 %v3654
    %v3980 = vpop.f32.mrf.mxu0
    %v3981 = vadd.f32 0.0, %v3980
    %v3982 = vpop.f32.mrf.mxu0
    %3983 = vmatprep.mubr.f32.mxu0 0.0
    %3984 = vmatmul.mubr.f32.gmra.mxu0 %v3657
    %v3985 = vpop.f32.mrf.mxu0
    %v3986 = vadd.f32 0.0, %v3985
    %v3987 = vpop.f32.mrf.mxu0
    %3988 = vmatprep.mubr.f32.mxu0 0.0
    %3989 = vmatmul.mubr.f32.gmra.mxu0 %v3660
    %v3990 = vpop.f32.mrf.mxu0
    %v3991 = vadd.f32 0.0, %v3990
    %v3992 = vpop.f32.mrf.mxu0
    %3993 = vmatprep.mubr.f32.mxu0 0.0
    %3994 = vmatmul.mubr.f32.gmra.mxu0 %v3663
    %v3995 = vpop.f32.mrf.mxu0
    %v3996 = vadd.f32 0.0, %v3995
    %v3997 = vpop.f32.mrf.mxu0
    %3998 = vmatprep.mubr.f32.mxu0 0.0
    %3999 = vmatmul.mubr.f32.gmra.mxu0 %v3666
    %v4000 = vpop.f32.mrf.mxu0
    %v4001 = vadd.f32 0.0, %v4000
    %v4002 = vpop.f32.mrf.mxu0
    %4003 = vmatprep.mubr.f32.mxu0 0.0
    %4004 = vmatmul.mubr.f32.gmra.mxu0 %v3669
    %v4005 = vpop.f32.mrf.mxu0
    %v4006 = vadd.f32 0.0, %v4005
    %v4007 = vpop.f32.mrf.mxu0
    %4008 = vmatprep.mubr.f32.mxu0 0.0
    %4009 = vmatmul.mubr.f32.gmra.mxu0 %v3672
    %v4010 = vpop.f32.mrf.mxu0
    %v4011 = vadd.f32 0.0, %v4010
    %v4012 = vpop.f32.mrf.mxu0
    %4013 = vmatprep.mubr.f32.mxu0 0.0
    %4014 = vmatmul.mubr.f32.gmra.mxu0 %v3675
    %v4015 = vpop.f32.mrf.mxu0
    %v4016 = vadd.f32 0.0, %v4015
    %v4017 = vpop.f32.mrf.mxu0
    %4018 = vmatprep.mubr.f32.mxu0 0.0
    %4019 = vmatmul.mubr.f32.gmra.mxu0 %v3678
    %v4020 = vpop.f32.mrf.mxu0
    %v4021 = vadd.f32 0.0, %v4020
    %v4022 = vpop.f32.mrf.mxu0
    %4023 = vmatprep.mubr.f32.mxu0 0.0
    %4024 = vmatmul.mubr.f32.gmra.mxu0 %v3681
    %v4025 = vpop.f32.mrf.mxu0
    %v4026 = vadd.f32 0.0, %v4025
    %v4027 = vpop.f32.mrf.mxu0
    %4028 = vmatprep.mubr.f32.mxu0 0.0
    %4029 = vmatmul.mubr.f32.gmra.mxu0 %v3684
    %v4030 = vpop.f32.mrf.mxu0
    %v4031 = vadd.f32 0.0, %v4030
    %v4032 = vpop.f32.mrf.mxu0
    %4033 = vmatprep.mubr.f32.mxu0 0.0
    %4034 = vmatmul.mubr.f32.gmra.mxu0 %v3687
    %v4035 = vpop.f32.mrf.mxu0
    %v4036 = vadd.f32 0.0, %v4035
    %v4037 = vpop.f32.mrf.mxu0
    %4038 = vmatprep.mubr.f32.mxu0 0.0
    %4039 = vmatmul.mubr.f32.gmra.mxu0 %v3690
    %v4040 = vpop.f32.mrf.mxu0
    %v4041 = vadd.f32 0.0, %v4040
    %v4042 = vpop.f32.mrf.mxu0
    %4043 = vmatprep.mubr.f32.mxu0 0.0
    %4044 = vmatmul.mubr.f32.gmra.mxu0 %v3693
    %v4045 = vpop.f32.mrf.mxu0
    %v4046 = vadd.f32 0.0, %v4045
    %v4047 = vpop.f32.mrf.mxu0
    %4048 = vmatprep.mubr.f32.mxu0 0.0
    %4049 = vmatmul.mubr.f32.gmra.mxu0 %v3696
    %v4050 = vpop.f32.mrf.mxu0
    %v4051 = vadd.f32 0.0, %v4050
    %v4052 = vpop.f32.mrf.mxu0
    %4053 = vmatprep.mubr.f32.mxu0 0.0
    %4054 = vmatmul.mubr.f32.gmra.mxu0 %v3699
    %v4055 = vpop.f32.mrf.mxu0
    %v4056 = vadd.f32 0.0, %v4055
    %v4057 = vpop.f32.mrf.mxu0
    %4058 = vmatprep.mubr.f32.mxu0 0.0
    %4059 = vmatmul.mubr.f32.gmra.mxu0 %v3702
    %v4060 = vpop.f32.mrf.mxu0
    %v4061 = vadd.f32 0.0, %v4060
    %v4062 = vpop.f32.mrf.mxu0
    %4063 = vmatprep.mubr.f32.mxu0 0.0
    %4064 = vmatmul.mubr.f32.gmra.mxu0 %v3705
    %v4065 = vpop.f32.mrf.mxu0
    %v4066 = vadd.f32 0.0, %v4065
    %v4067 = vpop.f32.mrf.mxu0
    %4068 = vmatprep.mubr.f32.mxu0 0.0
    %4069 = vmatmul.mubr.f32.gmra.mxu0 %v3708
    %v4070 = vpop.f32.mrf.mxu0
    %v4071 = vadd.f32 0.0, %v4070
    %v4072 = vpop.f32.mrf.mxu0
    %4073 = vmatprep.mubr.f32.mxu0 0.0
    %4074 = vmatmul.mubr.f32.gmra.mxu0 %v3711
    %v4075 = vpop.f32.mrf.mxu0
    %v4076 = vadd.f32 0.0, %v4075
    %v4077 = vpop.f32.mrf.mxu0
    %4078 = vmatprep.mubr.f32.mxu0 0.0
    %4079 = vmatmul.mubr.f32.gmra.mxu0 %v3714
    %v4080 = vpop.f32.mrf.mxu0
    %v4081 = vadd.f32 0.0, %v4080
    %v4082 = vpop.f32.mrf.mxu0
    %4083 = vmatprep.mubr.f32.mxu0 0.0
    %4084 = vmatmul.mubr.f32.gmra.mxu0 %v3717
    %v4085 = vpop.f32.mrf.mxu0
    %v4086 = vadd.f32 0.0, %v4085
    %v4087 = vpop.f32.mrf.mxu0
    %4088 = vmatprep.mubr.f32.mxu0 0.0
    %4089 = vmatmul.mubr.f32.gmra.mxu0 %v3720
    %v4090 = vpop.f32.mrf.mxu0
    %v4091 = vadd.f32 0.0, %v4090
    %v4092 = vpop.f32.mrf.mxu0
    %4093 = vmatprep.mubr.f32.mxu0 0.0
    %4094 = vmatmul.mubr.f32.gmra.mxu0 %v3723
    %v4095 = vpop.f32.mrf.mxu0
    %v4096 = vadd.f32 0.0, %v4095
    %v4097 = vpop.f32.mrf.mxu0
    %4098 = vmatprep.mubr.f32.mxu0 0.0
    %4099 = vmatmul.mubr.f32.gmra.mxu0 %v3726
    %v4100 = vpop.f32.mrf.mxu0
    %v4101 = vadd.f32 0.0, %v4100
    %v4102 = vpop.f32.mrf.mxu0
    %4103 = vmatprep.mubr.f32.mxu0 0.0
    %4104 = vmatmul.mubr.f32.gmra.mxu0 %v3729
    %v4105 = vpop.f32.mrf.mxu0
    %v4106 = vadd.f32 0.0, %v4105
    %v4107 = vpop.f32.mrf.mxu0
    %4108 = vmatprep.mubr.f32.mxu0 0.0
    %4109 = vmatmul.mubr.f32.gmra.mxu0 %v3732
    %v4110 = vpop.f32.mrf.mxu0
    %v4111 = vadd.f32 0.0, %v4110
    %v4112 = vpop.f32.mrf.mxu0
    %4113 = vmatprep.mubr.f32.mxu0 0.0
    %4114 = vmatmul.mubr.f32.gmra.mxu0 %v3735
    %v4115 = vpop.f32.mrf.mxu0
    %v4116 = vadd.f32 0.0, %v4115
    %v4117 = vpop.f32.mrf.mxu0
    %4118 = vmatprep.mubr.f32.mxu0 0.0
    %4119 = vmatmul.mubr.f32.gmra.mxu0 %v3738
    %v4120 = vpop.f32.mrf.mxu0
    %v4121 = vadd.f32 0.0, %v4120
    %v4122 = vpop.f32.mrf.mxu0
    %4123 = vmatprep.mubr.f32.mxu0 0.0
    %4124 = vmatmul.mubr.f32.gmra.mxu0 %v3741
    %v4125 = vpop.f32.mrf.mxu0
    %v4126 = vadd.f32 0.0, %v4125
    %v4127 = vpop.f32.mrf.mxu0
    %4128 = vmatprep.mubr.f32.mxu0 0.0
    %4129 = vmatmul.mubr.f32.gmra.mxu0 %v3744
    %v4130 = vpop.f32.mrf.mxu0
    %v4131 = vadd.f32 0.0, %v4130
    %v4132 = vpop.f32.mrf.mxu0
    %4133 = vdwg.mxu0
    %v4134 = vadd.f32 %v3424, %v3816
    %v4135 = vadd.f32 %v3425, %v3821
    %v4136 = vadd.f32 %v3426, %v3826
    %v4137 = vadd.f32 %v3427, %v3831
    %v4138 = vadd.f32 %v3428, %v3836
    %v4139 = vadd.f32 %v3429, %v3841
    %v4140 = vadd.f32 %v3430, %v3846
    %v4141 = vadd.f32 %v3431, %v3851
    %v4142 = vadd.f32 %v3432, %v3856
    %v4143 = vadd.f32 %v3433, %v3861
    %v4144 = vadd.f32 %v3434, %v3866
    %v4145 = vadd.f32 %v3435, %v3871
    %v4146 = vadd.f32 %v3436, %v3876
    %v4147 = vadd.f32 %v3437, %v3881
    %v4148 = vadd.f32 %v3438, %v3886
    %v4149 = vadd.f32 %v3439, %v3891
    %v4150 = vadd.f32 %v3440, %v3896
    %v4151 = vadd.f32 %v3441, %v3901
    %v4152 = vadd.f32 %v3442, %v3906
    %v4153 = vadd.f32 %v3443, %v3911
    %v4154 = vadd.f32 %v3444, %v3916
    %v4155 = vadd.f32 %v3445, %v3921
    %v4156 = vadd.f32 %v3446, %v3926
    %v4157 = vadd.f32 %v3447, %v3931
    %v4158 = vadd.f32 %v3448, %v3936
    %v4159 = vadd.f32 %v3449, %v3941
    %v4160 = vadd.f32 %v3450, %v3946
    %v4161 = vadd.f32 %v3451, %v3951
    %v4162 = vadd.f32 %v3452, %v3956
    %v4163 = vadd.f32 %v3453, %v3961
    %v4164 = vadd.f32 %v3454, %v3966
    %v4165 = vadd.f32 %v3455, %v3971
    %v4166 = vadd.f32 %v3456, %v3976
    %v4167 = vadd.f32 %v3457, %v3981
    %v4168 = vadd.f32 %v3458, %v3986
    %v4169 = vadd.f32 %v3459, %v3991
    %v4170 = vadd.f32 %v3460, %v3996
    %v4171 = vadd.f32 %v3461, %v4001
    %v4172 = vadd.f32 %v3462, %v4006
    %v4173 = vadd.f32 %v3463, %v4011
    %v4174 = vadd.f32 %v3464, %v4016
    %v4175 = vadd.f32 %v3465, %v4021
    %v4176 = vadd.f32 %v3466, %v4026
    %v4177 = vadd.f32 %v3467, %v4031
    %v4178 = vadd.f32 %v3468, %v4036
    %v4179 = vadd.f32 %v3469, %v4041
    %v4180 = vadd.f32 %v3470, %v4046
    %v4181 = vadd.f32 %v3471, %v4051
    %v4182 = vadd.f32 %v3472, %v4056
    %v4183 = vadd.f32 %v3473, %v4061
    %v4184 = vadd.f32 %v3474, %v4066
    %v4185 = vadd.f32 %v3475, %v4071
    %v4186 = vadd.f32 %v3476, %v4076
    %v4187 = vadd.f32 %v3477, %v4081
    %v4188 = vadd.f32 %v3478, %v4086
    %v4189 = vadd.f32 %v3479, %v4091
    %v4190 = vadd.f32 %v3480, %v4096
    %v4191 = vadd.f32 %v3481, %v4101
    %v4192 = vadd.f32 %v3482, %v4106
    %v4193 = vadd.f32 %v3483, %v4111
    %v4194 = vadd.f32 %v3484, %v4116
    %v4195 = vadd.f32 %v3485, %v4121
    %v4196 = vadd.f32 %v3486, %v4126
    %v4197 = vadd.f32 %v3487, %v4131
    %s4198 = scalar_lea.vmem %s0, 48
    %v4199 = vld [vmem:[%s4198] sm:$0xff]
    %v4200 = vld [vmem:[%s4198 + $0x8] sm:$0xff]
    %v4201 = vld [vmem:[%s4198 + $0x18] sm:$0xff]
    %v4202 = vld [vmem:[%s4198 + $0x20] sm:$0xff]
    %v4203 = vld [vmem:[%s4198 + $0x30] sm:$0xff]
    %v4204 = vld [vmem:[%s4198 + $0x38] sm:$0xff]
    %v4205 = vld [vmem:[%s4198 + $0x48] sm:$0xff]
    %v4206 = vld [vmem:[%s4198 + $0x50] sm:$0xff]
    %v4207 = vld [vmem:[%s4198 + $0x60] sm:$0xff]
    %v4208 = vld [vmem:[%s4198 + $0x68] sm:$0xff]
    %v4209 = vld [vmem:[%s4198 + $0x78] sm:$0xff]
    %v4210 = vld [vmem:[%s4198 + $0x80] sm:$0xff]
    %v4211 = vld [vmem:[%s4198 + $0x90] sm:$0xff]
    %v4212 = vld [vmem:[%s4198 + $0x98] sm:$0xff]
    %v4213 = vld [vmem:[%s4198 + $0xa8] sm:$0xff]
    %v4214 = vld [vmem:[%s4198 + $0xb0] sm:$0xff]
    %v4215 = vld [vmem:[%s4198 + $0xc0] sm:$0xff]
    %v4216 = vld [vmem:[%s4198 + $0xc8] sm:$0xff]
    %v4217 = vld [vmem:[%s4198 + $0xd8] sm:$0xff]
    %v4218 = vld [vmem:[%s4198 + $0xe0] sm:$0xff]
    %v4219 = vld [vmem:[%s4198 + $0xf0] sm:$0xff]
    %v4220 = vld [vmem:[%s4198 + $0xf8] sm:$0xff]
    %v4221 = vld [vmem:[%s4198 + $0x108] sm:$0xff]
    %v4222 = vld [vmem:[%s4198 + $0x110] sm:$0xff]
    %v4223 = vld [vmem:[%s4198 + $0x120] sm:$0xff]
    %v4224 = vld [vmem:[%s4198 + $0x128] sm:$0xff]
    %v4225 = vld [vmem:[%s4198 + $0x138] sm:$0xff]
    %v4226 = vld [vmem:[%s4198 + $0x140] sm:$0xff]
    %v4227 = vld [vmem:[%s4198 + $0x150] sm:$0xff]
    %v4228 = vld [vmem:[%s4198 + $0x158] sm:$0xff]
    %v4229 = vld [vmem:[%s4198 + $0x168] sm:$0xff]
    %v4230 = vld [vmem:[%s4198 + $0x170] sm:$0xff]
    %v4231 = vld [vmem:[%s4198 + $0x1b0] sm:$0xff]
    %v4232 = vld [vmem:[%s4198 + $0x1b8] sm:$0xff]
    %v4233 = vld [vmem:[%s4198 + $0x1c8] sm:$0xff]
    %v4234 = vld [vmem:[%s4198 + $0x1d0] sm:$0xff]
    %v4235 = vld [vmem:[%s4198 + $0x1e0] sm:$0xff]
    %v4236 = vld [vmem:[%s4198 + $0x1e8] sm:$0xff]
    %v4237 = vld [vmem:[%s4198 + $0x1f8] sm:$0xff]
    %v4238 = vld [vmem:[%s4198 + $0x200] sm:$0xff]
    %v4239 = vld [vmem:[%s4198 + $0x210] sm:$0xff]
    %v4240 = vld [vmem:[%s4198 + $0x218] sm:$0xff]
    %v4241 = vld [vmem:[%s4198 + $0x228] sm:$0xff]
    %v4242 = vld [vmem:[%s4198 + $0x230] sm:$0xff]
    %v4243 = vld [vmem:[%s4198 + $0x240] sm:$0xff]
    %v4244 = vld [vmem:[%s4198 + $0x248] sm:$0xff]
    %v4245 = vld [vmem:[%s4198 + $0x258] sm:$0xff]
    %v4246 = vld [vmem:[%s4198 + $0x260] sm:$0xff]
    %v4247 = vld [vmem:[%s4198 + $0x270] sm:$0xff]
    %v4248 = vld [vmem:[%s4198 + $0x278] sm:$0xff]
    %v4249 = vld [vmem:[%s4198 + $0x288] sm:$0xff]
    %v4250 = vld [vmem:[%s4198 + $0x290] sm:$0xff]
    %v4251 = vld [vmem:[%s4198 + $0x2a0] sm:$0xff]
    %v4252 = vld [vmem:[%s4198 + $0x2a8] sm:$0xff]
    %v4253 = vld [vmem:[%s4198 + $0x2b8] sm:$0xff]
    %v4254 = vld [vmem:[%s4198 + $0x2c0] sm:$0xff]
    %v4255 = vld [vmem:[%s4198 + $0x2d0] sm:$0xff]
    %v4256 = vld [vmem:[%s4198 + $0x2d8] sm:$0xff]
    %v4257 = vld [vmem:[%s4198 + $0x2e8] sm:$0xff]
    %v4258 = vld [vmem:[%s4198 + $0x2f0] sm:$0xff]
    %v4259 = vld [vmem:[%s4198 + $0x300] sm:$0xff]
    %v4260 = vld [vmem:[%s4198 + $0x308] sm:$0xff]
    %v4261 = vld [vmem:[%s4198 + $0x318] sm:$0xff]
    %v4262 = vld [vmem:[%s4198 + $0x320] sm:$0xff]
    %s4263 = scalar_lea.vmem %s2, 24
    %v4264 = vld [vmem:[%s4263] sm:$0x7]
    %v4266 = vsel %vm195, %v4199, 0
    %v4269 = vsel %vm195, %v4200, 0
    %v4272 = vsel %vm195, %v4201, 0
    %v4275 = vsel %vm195, %v4202, 0
    %v4278 = vsel %vm195, %v4203, 0
    %v4281 = vsel %vm195, %v4204, 0
    %v4284 = vsel %vm195, %v4205, 0
    %v4287 = vsel %vm195, %v4206, 0
    %v4290 = vsel %vm195, %v4207, 0
    %v4293 = vsel %vm195, %v4208, 0
    %v4296 = vsel %vm195, %v4209, 0
    %v4299 = vsel %vm195, %v4210, 0
    %v4302 = vsel %vm195, %v4211, 0
    %v4305 = vsel %vm195, %v4212, 0
    %v4308 = vsel %vm195, %v4213, 0
    %v4311 = vsel %vm195, %v4214, 0
    %v4314 = vsel %vm195, %v4215, 0
    %v4317 = vsel %vm195, %v4216, 0
    %v4320 = vsel %vm195, %v4217, 0
    %v4323 = vsel %vm195, %v4218, 0
    %v4326 = vsel %vm195, %v4219, 0
    %v4329 = vsel %vm195, %v4220, 0
    %v4332 = vsel %vm195, %v4221, 0
    %v4335 = vsel %vm195, %v4222, 0
    %v4338 = vsel %vm195, %v4223, 0
    %v4341 = vsel %vm195, %v4224, 0
    %v4344 = vsel %vm195, %v4225, 0
    %v4347 = vsel %vm195, %v4226, 0
    %v4350 = vsel %vm195, %v4227, 0
    %v4353 = vsel %vm195, %v4228, 0
    %v4356 = vsel %vm195, %v4229, 0
    %v4359 = vsel %vm195, %v4230, 0
    %v4362 = vsel %vm195, %v4231, 0
    %v4365 = vsel %vm195, %v4232, 0
    %v4368 = vsel %vm195, %v4233, 0
    %v4371 = vsel %vm195, %v4234, 0
    %v4374 = vsel %vm195, %v4235, 0
    %v4377 = vsel %vm195, %v4236, 0
    %v4380 = vsel %vm195, %v4237, 0
    %v4383 = vsel %vm195, %v4238, 0
    %v4386 = vsel %vm195, %v4239, 0
    %v4389 = vsel %vm195, %v4240, 0
    %v4392 = vsel %vm195, %v4241, 0
    %v4395 = vsel %vm195, %v4242, 0
    %v4398 = vsel %vm195, %v4243, 0
    %v4401 = vsel %vm195, %v4244, 0
    %v4404 = vsel %vm195, %v4245, 0
    %v4407 = vsel %vm195, %v4246, 0
    %v4410 = vsel %vm195, %v4247, 0
    %v4413 = vsel %vm195, %v4248, 0
    %v4416 = vsel %vm195, %v4249, 0
    %v4419 = vsel %vm195, %v4250, 0
    %v4422 = vsel %vm195, %v4251, 0
    %v4425 = vsel %vm195, %v4252, 0
    %v4428 = vsel %vm195, %v4253, 0
    %v4431 = vsel %vm195, %v4254, 0
    %v4434 = vsel %vm195, %v4255, 0
    %v4437 = vsel %vm195, %v4256, 0
    %v4440 = vsel %vm195, %v4257, 0
    %v4443 = vsel %vm195, %v4258, 0
    %v4446 = vsel %vm195, %v4259, 0
    %v4449 = vsel %vm195, %v4260, 0
    %v4452 = vsel %vm195, %v4261, 0
    %v4455 = vsel %vm195, %v4262, 0
    %v4458 = vsel %vm388, %v4264, 0
    %4460 = vmatprep.subr.mxu0 0.0
    %4461 = vmatpush1.msra.mxu0 0.0
    %4462 = vmatprep.subr.mxu0 0.0
    %4463 = vmatpush1.msra.mxu0 0.0
    %4464 = vmatprep.subr.mxu0 0.0
    %4465 = vmatpush1.msra.mxu0 0.0
    %4466 = vmatprep.subr.mxu0 0.0
    %4467 = vmatpush1.msra.mxu0 0.0
    %4468 = vmatprep.subr.mxu0 0.0
    %4469 = vmatpush1.msra.mxu0 0.0
    %4470 = vmatprep.subr.mxu0 0.0
    %4471 = vmatpush1.msra.mxu0 0.0
    %4472 = vmatprep.subr.mxu0 0.0
    %4473 = vmatpush1.msra.mxu0 0.0
    %4474 = vmatprep.subr.mxu0 0.0
    %4475 = vmatpush1.msra.mxu0 0.0
    %4476 = vmatprep.subr.mxu0 0.0
    %4477 = vmatpush1.msra.mxu0 0.0
    %4478 = vmatprep.subr.mxu0 0.0
    %4479 = vmatpush1.msra.mxu0 0.0
    %4480 = vmatprep.subr.mxu0 0.0
    %4481 = vmatpush1.msra.mxu0 0.0
    %4482 = vmatprep.subr.mxu0 0.0
    %4483 = vmatpush1.msra.mxu0 0.0
    %4484 = vmatprep.subr.mxu0 0.0
    %4485 = vmatpush1.msra.mxu0 0.0
    %4486 = vmatprep.subr.mxu0 0.0
    %4487 = vmatpush1.msra.mxu0 0.0
    %4488 = vmatprep.subr.mxu0 0.0
    %4489 = vmatpush1.msra.mxu0 0.0
    %4490 = vmatprep.subr.mxu0 0.0
    %4491 = vmatpush1.msra.mxu0 %v4458
    %4492 = vmatprep.subr.mxu0 0.0
    %4493 = vmatpush2.msra.mxu0 0.0
    %4494 = vmatprep.subr.mxu0 0.0
    %4495 = vmatpush2.msra.mxu0 0.0
    %4496 = vmatprep.subr.mxu0 0.0
    %4497 = vmatpush2.msra.mxu0 0.0
    %4498 = vmatprep.subr.mxu0 0.0
    %4499 = vmatpush2.msra.mxu0 0.0
    %4500 = vmatprep.subr.mxu0 0.0
    %4501 = vmatpush2.msra.mxu0 0.0
    %4502 = vmatprep.subr.mxu0 0.0
    %4503 = vmatpush2.msra.mxu0 0.0
    %4504 = vmatprep.subr.mxu0 0.0
    %4505 = vmatpush2.msra.mxu0 0.0
    %4506 = vmatprep.subr.mxu0 0.0
    %4507 = vmatpush2.msra.mxu0 0.0
    %4508 = vmatprep.subr.mxu0 0.0
    %4509 = vmatpush2.msra.mxu0 0.0
    %4510 = vmatprep.subr.mxu0 0.0
    %4511 = vmatpush2.msra.mxu0 0.0
    %4512 = vmatprep.subr.mxu0 0.0
    %4513 = vmatpush2.msra.mxu0 0.0
    %4514 = vmatprep.subr.mxu0 0.0
    %4515 = vmatpush2.msra.mxu0 0.0
    %4516 = vmatprep.subr.mxu0 0.0
    %4517 = vmatpush2.msra.mxu0 0.0
    %4518 = vmatprep.subr.mxu0 0.0
    %4519 = vmatpush2.msra.mxu0 0.0
    %4520 = vmatprep.subr.mxu0 0.0
    %4521 = vmatpush2.msra.mxu0 0.0
    %4522 = vmatprep.subr.mxu0 0.0
    %4523 = vmatpush2.msra.mxu0 0.0
    %4524 = vmatprep.mubr.f32.mxu0 0.0
    %4525 = vmatmul.mubr.f32.gmra.mxu0 %v4266
    %v4526 = vpop.f32.mrf.mxu0
    %v4527 = vadd.f32 0.0, %v4526
    %v4528 = vpop.f32.mrf.mxu0
    %4529 = vmatprep.mubr.f32.mxu0 0.0
    %4530 = vmatmul.mubr.f32.gmra.mxu0 %v4269
    %v4531 = vpop.f32.mrf.mxu0
    %v4532 = vadd.f32 0.0, %v4531
    %v4533 = vpop.f32.mrf.mxu0
    %4534 = vmatprep.mubr.f32.mxu0 0.0
    %4535 = vmatmul.mubr.f32.gmra.mxu0 %v4272
    %v4536 = vpop.f32.mrf.mxu0
    %v4537 = vadd.f32 0.0, %v4536
    %v4538 = vpop.f32.mrf.mxu0
    %4539 = vmatprep.mubr.f32.mxu0 0.0
    %4540 = vmatmul.mubr.f32.gmra.mxu0 %v4275
    %v4541 = vpop.f32.mrf.mxu0
    %v4542 = vadd.f32 0.0, %v4541
    %v4543 = vpop.f32.mrf.mxu0
    %4544 = vmatprep.mubr.f32.mxu0 0.0
    %4545 = vmatmul.mubr.f32.gmra.mxu0 %v4278
    %v4546 = vpop.f32.mrf.mxu0
    %v4547 = vadd.f32 0.0, %v4546
    %v4548 = vpop.f32.mrf.mxu0
    %4549 = vmatprep.mubr.f32.mxu0 0.0
    %4550 = vmatmul.mubr.f32.gmra.mxu0 %v4281
    %v4551 = vpop.f32.mrf.mxu0
    %v4552 = vadd.f32 0.0, %v4551
    %v4553 = vpop.f32.mrf.mxu0
    %4554 = vmatprep.mubr.f32.mxu0 0.0
    %4555 = vmatmul.mubr.f32.gmra.mxu0 %v4284
    %v4556 = vpop.f32.mrf.mxu0
    %v4557 = vadd.f32 0.0, %v4556
    %v4558 = vpop.f32.mrf.mxu0
    %4559 = vmatprep.mubr.f32.mxu0 0.0
    %4560 = vmatmul.mubr.f32.gmra.mxu0 %v4287
    %v4561 = vpop.f32.mrf.mxu0
    %v4562 = vadd.f32 0.0, %v4561
    %v4563 = vpop.f32.mrf.mxu0
    %4564 = vmatprep.mubr.f32.mxu0 0.0
    %4565 = vmatmul.mubr.f32.gmra.mxu0 %v4290
    %v4566 = vpop.f32.mrf.mxu0
    %v4567 = vadd.f32 0.0, %v4566
    %v4568 = vpop.f32.mrf.mxu0
    %4569 = vmatprep.mubr.f32.mxu0 0.0
    %4570 = vmatmul.mubr.f32.gmra.mxu0 %v4293
    %v4571 = vpop.f32.mrf.mxu0
    %v4572 = vadd.f32 0.0, %v4571
    %v4573 = vpop.f32.mrf.mxu0
    %4574 = vmatprep.mubr.f32.mxu0 0.0
    %4575 = vmatmul.mubr.f32.gmra.mxu0 %v4296
    %v4576 = vpop.f32.mrf.mxu0
    %v4577 = vadd.f32 0.0, %v4576
    %v4578 = vpop.f32.mrf.mxu0
    %4579 = vmatprep.mubr.f32.mxu0 0.0
    %4580 = vmatmul.mubr.f32.gmra.mxu0 %v4299
    %v4581 = vpop.f32.mrf.mxu0
    %v4582 = vadd.f32 0.0, %v4581
    %v4583 = vpop.f32.mrf.mxu0
    %4584 = vmatprep.mubr.f32.mxu0 0.0
    %4585 = vmatmul.mubr.f32.gmra.mxu0 %v4302
    %v4586 = vpop.f32.mrf.mxu0
    %v4587 = vadd.f32 0.0, %v4586
    %v4588 = vpop.f32.mrf.mxu0
    %4589 = vmatprep.mubr.f32.mxu0 0.0
    %4590 = vmatmul.mubr.f32.gmra.mxu0 %v4305
    %v4591 = vpop.f32.mrf.mxu0
    %v4592 = vadd.f32 0.0, %v4591
    %v4593 = vpop.f32.mrf.mxu0
    %4594 = vmatprep.mubr.f32.mxu0 0.0
    %4595 = vmatmul.mubr.f32.gmra.mxu0 %v4308
    %v4596 = vpop.f32.mrf.mxu0
    %v4597 = vadd.f32 0.0, %v4596
    %v4598 = vpop.f32.mrf.mxu0
    %4599 = vmatprep.mubr.f32.mxu0 0.0
    %4600 = vmatmul.mubr.f32.gmra.mxu0 %v4311
    %v4601 = vpop.f32.mrf.mxu0
    %v4602 = vadd.f32 0.0, %v4601
    %v4603 = vpop.f32.mrf.mxu0
    %4604 = vmatprep.mubr.f32.mxu0 0.0
    %4605 = vmatmul.mubr.f32.gmra.mxu0 %v4314
    %v4606 = vpop.f32.mrf.mxu0
    %v4607 = vadd.f32 0.0, %v4606
    %v4608 = vpop.f32.mrf.mxu0
    %4609 = vmatprep.mubr.f32.mxu0 0.0
    %4610 = vmatmul.mubr.f32.gmra.mxu0 %v4317
    %v4611 = vpop.f32.mrf.mxu0
    %v4612 = vadd.f32 0.0, %v4611
    %v4613 = vpop.f32.mrf.mxu0
    %4614 = vmatprep.mubr.f32.mxu0 0.0
    %4615 = vmatmul.mubr.f32.gmra.mxu0 %v4320
    %v4616 = vpop.f32.mrf.mxu0
    %v4617 = vadd.f32 0.0, %v4616
    %v4618 = vpop.f32.mrf.mxu0
    %4619 = vmatprep.mubr.f32.mxu0 0.0
    %4620 = vmatmul.mubr.f32.gmra.mxu0 %v4323
    %v4621 = vpop.f32.mrf.mxu0
    %v4622 = vadd.f32 0.0, %v4621
    %v4623 = vpop.f32.mrf.mxu0
    %4624 = vmatprep.mubr.f32.mxu0 0.0
    %4625 = vmatmul.mubr.f32.gmra.mxu0 %v4326
    %v4626 = vpop.f32.mrf.mxu0
    %v4627 = vadd.f32 0.0, %v4626
    %v4628 = vpop.f32.mrf.mxu0
    %4629 = vmatprep.mubr.f32.mxu0 0.0
    %4630 = vmatmul.mubr.f32.gmra.mxu0 %v4329
    %v4631 = vpop.f32.mrf.mxu0
    %v4632 = vadd.f32 0.0, %v4631
    %v4633 = vpop.f32.mrf.mxu0
    %4634 = vmatprep.mubr.f32.mxu0 0.0
    %4635 = vmatmul.mubr.f32.gmra.mxu0 %v4332
    %v4636 = vpop.f32.mrf.mxu0
    %v4637 = vadd.f32 0.0, %v4636
    %v4638 = vpop.f32.mrf.mxu0
    %4639 = vmatprep.mubr.f32.mxu0 0.0
    %4640 = vmatmul.mubr.f32.gmra.mxu0 %v4335
    %v4641 = vpop.f32.mrf.mxu0
    %v4642 = vadd.f32 0.0, %v4641
    %v4643 = vpop.f32.mrf.mxu0
    %4644 = vmatprep.mubr.f32.mxu0 0.0
    %4645 = vmatmul.mubr.f32.gmra.mxu0 %v4338
    %v4646 = vpop.f32.mrf.mxu0
    %v4647 = vadd.f32 0.0, %v4646
    %v4648 = vpop.f32.mrf.mxu0
    %4649 = vmatprep.mubr.f32.mxu0 0.0
    %4650 = vmatmul.mubr.f32.gmra.mxu0 %v4341
    %v4651 = vpop.f32.mrf.mxu0
    %v4652 = vadd.f32 0.0, %v4651
    %v4653 = vpop.f32.mrf.mxu0
    %4654 = vmatprep.mubr.f32.mxu0 0.0
    %4655 = vmatmul.mubr.f32.gmra.mxu0 %v4344
    %v4656 = vpop.f32.mrf.mxu0
    %v4657 = vadd.f32 0.0, %v4656
    %v4658 = vpop.f32.mrf.mxu0
    %4659 = vmatprep.mubr.f32.mxu0 0.0
    %4660 = vmatmul.mubr.f32.gmra.mxu0 %v4347
    %v4661 = vpop.f32.mrf.mxu0
    %v4662 = vadd.f32 0.0, %v4661
    %v4663 = vpop.f32.mrf.mxu0
    %4664 = vmatprep.mubr.f32.mxu0 0.0
    %4665 = vmatmul.mubr.f32.gmra.mxu0 %v4350
    %v4666 = vpop.f32.mrf.mxu0
    %v4667 = vadd.f32 0.0, %v4666
    %v4668 = vpop.f32.mrf.mxu0
    %4669 = vmatprep.mubr.f32.mxu0 0.0
    %4670 = vmatmul.mubr.f32.gmra.mxu0 %v4353
    %v4671 = vpop.f32.mrf.mxu0
    %v4672 = vadd.f32 0.0, %v4671
    %v4673 = vpop.f32.mrf.mxu0
    %4674 = vmatprep.mubr.f32.mxu0 0.0
    %4675 = vmatmul.mubr.f32.gmra.mxu0 %v4356
    %v4676 = vpop.f32.mrf.mxu0
    %v4677 = vadd.f32 0.0, %v4676
    %v4678 = vpop.f32.mrf.mxu0
    %4679 = vmatprep.mubr.f32.mxu0 0.0
    %4680 = vmatmul.mubr.f32.gmra.mxu0 %v4359
    %v4681 = vpop.f32.mrf.mxu0
    %v4682 = vadd.f32 0.0, %v4681
    %v4683 = vpop.f32.mrf.mxu0
    %4684 = vmatprep.mubr.f32.mxu0 0.0
    %4685 = vmatmul.mubr.f32.gmra.mxu0 %v4362
    %v4686 = vpop.f32.mrf.mxu0
    %v4687 = vadd.f32 0.0, %v4686
    %v4688 = vpop.f32.mrf.mxu0
    %4689 = vmatprep.mubr.f32.mxu0 0.0
    %4690 = vmatmul.mubr.f32.gmra.mxu0 %v4365
    %v4691 = vpop.f32.mrf.mxu0
    %v4692 = vadd.f32 0.0, %v4691
    %v4693 = vpop.f32.mrf.mxu0
    %4694 = vmatprep.mubr.f32.mxu0 0.0
    %4695 = vmatmul.mubr.f32.gmra.mxu0 %v4368
    %v4696 = vpop.f32.mrf.mxu0
    %v4697 = vadd.f32 0.0, %v4696
    %v4698 = vpop.f32.mrf.mxu0
    %4699 = vmatprep.mubr.f32.mxu0 0.0
    %4700 = vmatmul.mubr.f32.gmra.mxu0 %v4371
    %v4701 = vpop.f32.mrf.mxu0
    %v4702 = vadd.f32 0.0, %v4701
    %v4703 = vpop.f32.mrf.mxu0
    %4704 = vmatprep.mubr.f32.mxu0 0.0
    %4705 = vmatmul.mubr.f32.gmra.mxu0 %v4374
    %v4706 = vpop.f32.mrf.mxu0
    %v4707 = vadd.f32 0.0, %v4706
    %v4708 = vpop.f32.mrf.mxu0
    %4709 = vmatprep.mubr.f32.mxu0 0.0
    %4710 = vmatmul.mubr.f32.gmra.mxu0 %v4377
    %v4711 = vpop.f32.mrf.mxu0
    %v4712 = vadd.f32 0.0, %v4711
    %v4713 = vpop.f32.mrf.mxu0
    %4714 = vmatprep.mubr.f32.mxu0 0.0
    %4715 = vmatmul.mubr.f32.gmra.mxu0 %v4380
    %v4716 = vpop.f32.mrf.mxu0
    %v4717 = vadd.f32 0.0, %v4716
    %v4718 = vpop.f32.mrf.mxu0
    %4719 = vmatprep.mubr.f32.mxu0 0.0
    %4720 = vmatmul.mubr.f32.gmra.mxu0 %v4383
    %v4721 = vpop.f32.mrf.mxu0
    %v4722 = vadd.f32 0.0, %v4721
    %v4723 = vpop.f32.mrf.mxu0
    %4724 = vmatprep.mubr.f32.mxu0 0.0
    %4725 = vmatmul.mubr.f32.gmra.mxu0 %v4386
    %v4726 = vpop.f32.mrf.mxu0
    %v4727 = vadd.f32 0.0, %v4726
    %v4728 = vpop.f32.mrf.mxu0
    %4729 = vmatprep.mubr.f32.mxu0 0.0
    %4730 = vmatmul.mubr.f32.gmra.mxu0 %v4389
    %v4731 = vpop.f32.mrf.mxu0
    %v4732 = vadd.f32 0.0, %v4731
    %v4733 = vpop.f32.mrf.mxu0
    %4734 = vmatprep.mubr.f32.mxu0 0.0
    %4735 = vmatmul.mubr.f32.gmra.mxu0 %v4392
    %v4736 = vpop.f32.mrf.mxu0
    %v4737 = vadd.f32 0.0, %v4736
    %v4738 = vpop.f32.mrf.mxu0
    %4739 = vmatprep.mubr.f32.mxu0 0.0
    %4740 = vmatmul.mubr.f32.gmra.mxu0 %v4395
    %v4741 = vpop.f32.mrf.mxu0
    %v4742 = vadd.f32 0.0, %v4741
    %v4743 = vpop.f32.mrf.mxu0
    %4744 = vmatprep.mubr.f32.mxu0 0.0
    %4745 = vmatmul.mubr.f32.gmra.mxu0 %v4398
    %v4746 = vpop.f32.mrf.mxu0
    %v4747 = vadd.f32 0.0, %v4746
    %v4748 = vpop.f32.mrf.mxu0
    %4749 = vmatprep.mubr.f32.mxu0 0.0
    %4750 = vmatmul.mubr.f32.gmra.mxu0 %v4401
    %v4751 = vpop.f32.mrf.mxu0
    %v4752 = vadd.f32 0.0, %v4751
    %v4753 = vpop.f32.mrf.mxu0
    %4754 = vmatprep.mubr.f32.mxu0 0.0
    %4755 = vmatmul.mubr.f32.gmra.mxu0 %v4404
    %v4756 = vpop.f32.mrf.mxu0
    %v4757 = vadd.f32 0.0, %v4756
    %v4758 = vpop.f32.mrf.mxu0
    %4759 = vmatprep.mubr.f32.mxu0 0.0
    %4760 = vmatmul.mubr.f32.gmra.mxu0 %v4407
    %v4761 = vpop.f32.mrf.mxu0
    %v4762 = vadd.f32 0.0, %v4761
    %v4763 = vpop.f32.mrf.mxu0
    %4764 = vmatprep.mubr.f32.mxu0 0.0
    %4765 = vmatmul.mubr.f32.gmra.mxu0 %v4410
    %v4766 = vpop.f32.mrf.mxu0
    %v4767 = vadd.f32 0.0, %v4766
    %v4768 = vpop.f32.mrf.mxu0
    %4769 = vmatprep.mubr.f32.mxu0 0.0
    %4770 = vmatmul.mubr.f32.gmra.mxu0 %v4413
    %v4771 = vpop.f32.mrf.mxu0
    %v4772 = vadd.f32 0.0, %v4771
    %v4773 = vpop.f32.mrf.mxu0
    %4774 = vmatprep.mubr.f32.mxu0 0.0
    %4775 = vmatmul.mubr.f32.gmra.mxu0 %v4416
    %v4776 = vpop.f32.mrf.mxu0
    %v4777 = vadd.f32 0.0, %v4776
    %v4778 = vpop.f32.mrf.mxu0
    %4779 = vmatprep.mubr.f32.mxu0 0.0
    %4780 = vmatmul.mubr.f32.gmra.mxu0 %v4419
    %v4781 = vpop.f32.mrf.mxu0
    %v4782 = vadd.f32 0.0, %v4781
    %v4783 = vpop.f32.mrf.mxu0
    %4784 = vmatprep.mubr.f32.mxu0 0.0
    %4785 = vmatmul.mubr.f32.gmra.mxu0 %v4422
    %v4786 = vpop.f32.mrf.mxu0
    %v4787 = vadd.f32 0.0, %v4786
    %v4788 = vpop.f32.mrf.mxu0
    %4789 = vmatprep.mubr.f32.mxu0 0.0
    %4790 = vmatmul.mubr.f32.gmra.mxu0 %v4425
    %v4791 = vpop.f32.mrf.mxu0
    %v4792 = vadd.f32 0.0, %v4791
    %v4793 = vpop.f32.mrf.mxu0
    %4794 = vmatprep.mubr.f32.mxu0 0.0
    %4795 = vmatmul.mubr.f32.gmra.mxu0 %v4428
    %v4796 = vpop.f32.mrf.mxu0
    %v4797 = vadd.f32 0.0, %v4796
    %v4798 = vpop.f32.mrf.mxu0
    %4799 = vmatprep.mubr.f32.mxu0 0.0
    %4800 = vmatmul.mubr.f32.gmra.mxu0 %v4431
    %v4801 = vpop.f32.mrf.mxu0
    %v4802 = vadd.f32 0.0, %v4801
    %v4803 = vpop.f32.mrf.mxu0
    %4804 = vmatprep.mubr.f32.mxu0 0.0
    %4805 = vmatmul.mubr.f32.gmra.mxu0 %v4434
    %v4806 = vpop.f32.mrf.mxu0
    %v4807 = vadd.f32 0.0, %v4806
    %v4808 = vpop.f32.mrf.mxu0
    %4809 = vmatprep.mubr.f32.mxu0 0.0
    %4810 = vmatmul.mubr.f32.gmra.mxu0 %v4437
    %v4811 = vpop.f32.mrf.mxu0
    %v4812 = vadd.f32 0.0, %v4811
    %v4813 = vpop.f32.mrf.mxu0
    %4814 = vmatprep.mubr.f32.mxu0 0.0
    %4815 = vmatmul.mubr.f32.gmra.mxu0 %v4440
    %v4816 = vpop.f32.mrf.mxu0
    %v4817 = vadd.f32 0.0, %v4816
    %v4818 = vpop.f32.mrf.mxu0
    %4819 = vmatprep.mubr.f32.mxu0 0.0
    %4820 = vmatmul.mubr.f32.gmra.mxu0 %v4443
    %v4821 = vpop.f32.mrf.mxu0
    %v4822 = vadd.f32 0.0, %v4821
    %v4823 = vpop.f32.mrf.mxu0
    %4824 = vmatprep.mubr.f32.mxu0 0.0
    %4825 = vmatmul.mubr.f32.gmra.mxu0 %v4446
    %v4826 = vpop.f32.mrf.mxu0
    %v4827 = vadd.f32 0.0, %v4826
    %v4828 = vpop.f32.mrf.mxu0
    %4829 = vmatprep.mubr.f32.mxu0 0.0
    %4830 = vmatmul.mubr.f32.gmra.mxu0 %v4449
    %v4831 = vpop.f32.mrf.mxu0
    %v4832 = vadd.f32 0.0, %v4831
    %v4833 = vpop.f32.mrf.mxu0
    %4834 = vmatprep.mubr.f32.mxu0 0.0
    %4835 = vmatmul.mubr.f32.gmra.mxu0 %v4452
    %v4836 = vpop.f32.mrf.mxu0
    %v4837 = vadd.f32 0.0, %v4836
    %v4838 = vpop.f32.mrf.mxu0
    %4839 = vmatprep.mubr.f32.mxu0 0.0
    %4840 = vmatmul.mubr.f32.gmra.mxu0 %v4455
    %v4841 = vpop.f32.mrf.mxu0
    %v4842 = vadd.f32 0.0, %v4841
    %v4843 = vpop.f32.mrf.mxu0
    %4844 = vdwg.mxu0
    %v4845 = vadd.f32 %v4134, %v4527
    %v4846 = vadd.f32 %v4135, %v4532
    %v4847 = vadd.f32 %v4136, %v4537
    %v4848 = vadd.f32 %v4137, %v4542
    %v4849 = vadd.f32 %v4138, %v4547
    %v4850 = vadd.f32 %v4139, %v4552
    %v4851 = vadd.f32 %v4140, %v4557
    %v4852 = vadd.f32 %v4141, %v4562
    %v4853 = vadd.f32 %v4142, %v4567
    %v4854 = vadd.f32 %v4143, %v4572
    %v4855 = vadd.f32 %v4144, %v4577
    %v4856 = vadd.f32 %v4145, %v4582
    %v4857 = vadd.f32 %v4146, %v4587
    %v4858 = vadd.f32 %v4147, %v4592
    %v4859 = vadd.f32 %v4148, %v4597
    %v4860 = vadd.f32 %v4149, %v4602
    %v4861 = vadd.f32 %v4150, %v4607
    %v4862 = vadd.f32 %v4151, %v4612
    %v4863 = vadd.f32 %v4152, %v4617
    %v4864 = vadd.f32 %v4153, %v4622
    %v4865 = vadd.f32 %v4154, %v4627
    %v4866 = vadd.f32 %v4155, %v4632
    %v4867 = vadd.f32 %v4156, %v4637
    %v4868 = vadd.f32 %v4157, %v4642
    %v4869 = vadd.f32 %v4158, %v4647
    %v4870 = vadd.f32 %v4159, %v4652
    %v4871 = vadd.f32 %v4160, %v4657
    %v4872 = vadd.f32 %v4161, %v4662
    %v4873 = vadd.f32 %v4162, %v4667
    %v4874 = vadd.f32 %v4163, %v4672
    %v4875 = vadd.f32 %v4164, %v4677
    %v4876 = vadd.f32 %v4165, %v4682
    %v4877 = vadd.f32 %v4166, %v4687
    %v4878 = vadd.f32 %v4167, %v4692
    %v4879 = vadd.f32 %v4168, %v4697
    %v4880 = vadd.f32 %v4169, %v4702
    %v4881 = vadd.f32 %v4170, %v4707
    %v4882 = vadd.f32 %v4171, %v4712
    %v4883 = vadd.f32 %v4172, %v4717
    %v4884 = vadd.f32 %v4173, %v4722
    %v4885 = vadd.f32 %v4174, %v4727
    %v4886 = vadd.f32 %v4175, %v4732
    %v4887 = vadd.f32 %v4176, %v4737
    %v4888 = vadd.f32 %v4177, %v4742
    %v4889 = vadd.f32 %v4178, %v4747
    %v4890 = vadd.f32 %v4179, %v4752
    %v4891 = vadd.f32 %v4180, %v4757
    %v4892 = vadd.f32 %v4181, %v4762
    %v4893 = vadd.f32 %v4182, %v4767
    %v4894 = vadd.f32 %v4183, %v4772
    %v4895 = vadd.f32 %v4184, %v4777
    %v4896 = vadd.f32 %v4185, %v4782
    %v4897 = vadd.f32 %v4186, %v4787
    %v4898 = vadd.f32 %v4187, %v4792
    %v4899 = vadd.f32 %v4188, %v4797
    %v4900 = vadd.f32 %v4189, %v4802
    %v4901 = vadd.f32 %v4190, %v4807
    %v4902 = vadd.f32 %v4191, %v4812
    %v4903 = vadd.f32 %v4192, %v4817
    %v4904 = vadd.f32 %v4193, %v4822
    %v4905 = vadd.f32 %v4194, %v4827
    %v4906 = vadd.f32 %v4195, %v4832
    %v4907 = vadd.f32 %v4196, %v4837
    %v4908 = vadd.f32 %v4197, %v4842
    %v4909 = vld [vmem:[%s4198 + $0x1] sm:$0xff]
    %v4910 = vld [vmem:[%s4198 + $0x9] sm:$0xff]
    %v4911 = vld [vmem:[%s4198 + $0x19] sm:$0xff]
    %v4912 = vld [vmem:[%s4198 + $0x21] sm:$0xff]
    %v4913 = vld [vmem:[%s4198 + $0x31] sm:$0xff]
    %v4914 = vld [vmem:[%s4198 + $0x39] sm:$0xff]
    %v4915 = vld [vmem:[%s4198 + $0x49] sm:$0xff]
    %v4916 = vld [vmem:[%s4198 + $0x51] sm:$0xff]
    %v4917 = vld [vmem:[%s4198 + $0x61] sm:$0xff]
    %v4918 = vld [vmem:[%s4198 + $0x69] sm:$0xff]
    %v4919 = vld [vmem:[%s4198 + $0x79] sm:$0xff]
    %v4920 = vld [vmem:[%s4198 + $0x81] sm:$0xff]
    %v4921 = vld [vmem:[%s4198 + $0x91] sm:$0xff]
    %v4922 = vld [vmem:[%s4198 + $0x99] sm:$0xff]
    %v4923 = vld [vmem:[%s4198 + $0xa9] sm:$0xff]
    %v4924 = vld [vmem:[%s4198 + $0xb1] sm:$0xff]
    %v4925 = vld [vmem:[%s4198 + $0xc1] sm:$0xff]
    %v4926 = vld [vmem:[%s4198 + $0xc9] sm:$0xff]
    %v4927 = vld [vmem:[%s4198 + $0xd9] sm:$0xff]
    %v4928 = vld [vmem:[%s4198 + $0xe1] sm:$0xff]
    %v4929 = vld [vmem:[%s4198 + $0xf1] sm:$0xff]
    %v4930 = vld [vmem:[%s4198 + $0xf9] sm:$0xff]
    %v4931 = vld [vmem:[%s4198 + $0x109] sm:$0xff]
    %v4932 = vld [vmem:[%s4198 + $0x111] sm:$0xff]
    %v4933 = vld [vmem:[%s4198 + $0x121] sm:$0xff]
    %v4934 = vld [vmem:[%s4198 + $0x129] sm:$0xff]
    %v4935 = vld [vmem:[%s4198 + $0x139] sm:$0xff]
    %v4936 = vld [vmem:[%s4198 + $0x141] sm:$0xff]
    %v4937 = vld [vmem:[%s4198 + $0x151] sm:$0xff]
    %v4938 = vld [vmem:[%s4198 + $0x159] sm:$0xff]
    %v4939 = vld [vmem:[%s4198 + $0x169] sm:$0xff]
    %v4940 = vld [vmem:[%s4198 + $0x171] sm:$0xff]
    %v4941 = vld [vmem:[%s4198 + $0x1b1] sm:$0xff]
    %v4942 = vld [vmem:[%s4198 + $0x1b9] sm:$0xff]
    %v4943 = vld [vmem:[%s4198 + $0x1c9] sm:$0xff]
    %v4944 = vld [vmem:[%s4198 + $0x1d1] sm:$0xff]
    %v4945 = vld [vmem:[%s4198 + $0x1e1] sm:$0xff]
    %v4946 = vld [vmem:[%s4198 + $0x1e9] sm:$0xff]
    %v4947 = vld [vmem:[%s4198 + $0x1f9] sm:$0xff]
    %v4948 = vld [vmem:[%s4198 + $0x201] sm:$0xff]
    %v4949 = vld [vmem:[%s4198 + $0x211] sm:$0xff]
    %v4950 = vld [vmem:[%s4198 + $0x219] sm:$0xff]
    %v4951 = vld [vmem:[%s4198 + $0x229] sm:$0xff]
    %v4952 = vld [vmem:[%s4198 + $0x231] sm:$0xff]
    %v4953 = vld [vmem:[%s4198 + $0x241] sm:$0xff]
    %v4954 = vld [vmem:[%s4198 + $0x249] sm:$0xff]
    %v4955 = vld [vmem:[%s4198 + $0x259] sm:$0xff]
    %v4956 = vld [vmem:[%s4198 + $0x261] sm:$0xff]
    %v4957 = vld [vmem:[%s4198 + $0x271] sm:$0xff]
    %v4958 = vld [vmem:[%s4198 + $0x279] sm:$0xff]
    %v4959 = vld [vmem:[%s4198 + $0x289] sm:$0xff]
    %v4960 = vld [vmem:[%s4198 + $0x291] sm:$0xff]
    %v4961 = vld [vmem:[%s4198 + $0x2a1] sm:$0xff]
    %v4962 = vld [vmem:[%s4198 + $0x2a9] sm:$0xff]
    %v4963 = vld [vmem:[%s4198 + $0x2b9] sm:$0xff]
    %v4964 = vld [vmem:[%s4198 + $0x2c1] sm:$0xff]
    %v4965 = vld [vmem:[%s4198 + $0x2d1] sm:$0xff]
    %v4966 = vld [vmem:[%s4198 + $0x2d9] sm:$0xff]
    %v4967 = vld [vmem:[%s4198 + $0x2e9] sm:$0xff]
    %v4968 = vld [vmem:[%s4198 + $0x2f1] sm:$0xff]
    %v4969 = vld [vmem:[%s4198 + $0x301] sm:$0xff]
    %v4970 = vld [vmem:[%s4198 + $0x309] sm:$0xff]
    %v4971 = vld [vmem:[%s4198 + $0x319] sm:$0xff]
    %v4972 = vld [vmem:[%s4198 + $0x321] sm:$0xff]
    %s4973 = scalar_lea.vmem %s2, 28
    %v4974 = vld [vmem:[%s4973] sm:$0x7]
    %v4976 = vsel %vm195, %v4909, 0
    %v4979 = vsel %vm195, %v4910, 0
    %v4982 = vsel %vm195, %v4911, 0
    %v4985 = vsel %vm195, %v4912, 0
    %v4988 = vsel %vm195, %v4913, 0
    %v4991 = vsel %vm195, %v4914, 0
    %v4994 = vsel %vm195, %v4915, 0
    %v4997 = vsel %vm195, %v4916, 0
    %v5000 = vsel %vm195, %v4917, 0
    %v5003 = vsel %vm195, %v4918, 0
    %v5006 = vsel %vm195, %v4919, 0
    %v5009 = vsel %vm195, %v4920, 0
    %v5012 = vsel %vm195, %v4921, 0
    %v5015 = vsel %vm195, %v4922, 0
    %v5018 = vsel %vm195, %v4923, 0
    %v5021 = vsel %vm195, %v4924, 0
    %v5024 = vsel %vm195, %v4925, 0
    %v5027 = vsel %vm195, %v4926, 0
    %v5030 = vsel %vm195, %v4927, 0
    %v5033 = vsel %vm195, %v4928, 0
    %v5036 = vsel %vm195, %v4929, 0
    %v5039 = vsel %vm195, %v4930, 0
    %v5042 = vsel %vm195, %v4931, 0
    %v5045 = vsel %vm195, %v4932, 0
    %v5048 = vsel %vm195, %v4933, 0
    %v5051 = vsel %vm195, %v4934, 0
    %v5054 = vsel %vm195, %v4935, 0
    %v5057 = vsel %vm195, %v4936, 0
    %v5060 = vsel %vm195, %v4937, 0
    %v5063 = vsel %vm195, %v4938, 0
    %v5066 = vsel %vm195, %v4939, 0
    %v5069 = vsel %vm195, %v4940, 0
    %v5072 = vsel %vm195, %v4941, 0
    %v5075 = vsel %vm195, %v4942, 0
    %v5078 = vsel %vm195, %v4943, 0
    %v5081 = vsel %vm195, %v4944, 0
    %v5084 = vsel %vm195, %v4945, 0
    %v5087 = vsel %vm195, %v4946, 0
    %v5090 = vsel %vm195, %v4947, 0
    %v5093 = vsel %vm195, %v4948, 0
    %v5096 = vsel %vm195, %v4949, 0
    %v5099 = vsel %vm195, %v4950, 0
    %v5102 = vsel %vm195, %v4951, 0
    %v5105 = vsel %vm195, %v4952, 0
    %v5108 = vsel %vm195, %v4953, 0
    %v5111 = vsel %vm195, %v4954, 0
    %v5114 = vsel %vm195, %v4955, 0
    %v5117 = vsel %vm195, %v4956, 0
    %v5120 = vsel %vm195, %v4957, 0
    %v5123 = vsel %vm195, %v4958, 0
    %v5126 = vsel %vm195, %v4959, 0
    %v5129 = vsel %vm195, %v4960, 0
    %v5132 = vsel %vm195, %v4961, 0
    %v5135 = vsel %vm195, %v4962, 0
    %v5138 = vsel %vm195, %v4963, 0
    %v5141 = vsel %vm195, %v4964, 0
    %v5144 = vsel %vm195, %v4965, 0
    %v5147 = vsel %vm195, %v4966, 0
    %v5150 = vsel %vm195, %v4967, 0
    %v5153 = vsel %vm195, %v4968, 0
    %v5156 = vsel %vm195, %v4969, 0
    %v5159 = vsel %vm195, %v4970, 0
    %v5162 = vsel %vm195, %v4971, 0
    %v5165 = vsel %vm195, %v4972, 0
    %v5168 = vsel %vm388, %v4974, 0
    %5170 = vmatprep.subr.mxu0 0.0
    %5171 = vmatpush1.msra.mxu0 0.0
    %5172 = vmatprep.subr.mxu0 0.0
    %5173 = vmatpush1.msra.mxu0 0.0
    %5174 = vmatprep.subr.mxu0 0.0
    %5175 = vmatpush1.msra.mxu0 0.0
    %5176 = vmatprep.subr.mxu0 0.0
    %5177 = vmatpush1.msra.mxu0 0.0
    %5178 = vmatprep.subr.mxu0 0.0
    %5179 = vmatpush1.msra.mxu0 0.0
    %5180 = vmatprep.subr.mxu0 0.0
    %5181 = vmatpush1.msra.mxu0 0.0
    %5182 = vmatprep.subr.mxu0 0.0
    %5183 = vmatpush1.msra.mxu0 0.0
    %5184 = vmatprep.subr.mxu0 0.0
    %5185 = vmatpush1.msra.mxu0 0.0
    %5186 = vmatprep.subr.mxu0 0.0
    %5187 = vmatpush1.msra.mxu0 0.0
    %5188 = vmatprep.subr.mxu0 0.0
    %5189 = vmatpush1.msra.mxu0 0.0
    %5190 = vmatprep.subr.mxu0 0.0
    %5191 = vmatpush1.msra.mxu0 0.0
    %5192 = vmatprep.subr.mxu0 0.0
    %5193 = vmatpush1.msra.mxu0 0.0
    %5194 = vmatprep.subr.mxu0 0.0
    %5195 = vmatpush1.msra.mxu0 0.0
    %5196 = vmatprep.subr.mxu0 0.0
    %5197 = vmatpush1.msra.mxu0 0.0
    %5198 = vmatprep.subr.mxu0 0.0
    %5199 = vmatpush1.msra.mxu0 0.0
    %5200 = vmatprep.subr.mxu0 0.0
    %5201 = vmatpush1.msra.mxu0 %v5168
    %5202 = vmatprep.subr.mxu0 0.0
    %5203 = vmatpush2.msra.mxu0 0.0
    %5204 = vmatprep.subr.mxu0 0.0
    %5205 = vmatpush2.msra.mxu0 0.0
    %5206 = vmatprep.subr.mxu0 0.0
    %5207 = vmatpush2.msra.mxu0 0.0
    %5208 = vmatprep.subr.mxu0 0.0
    %5209 = vmatpush2.msra.mxu0 0.0
    %5210 = vmatprep.subr.mxu0 0.0
    %5211 = vmatpush2.msra.mxu0 0.0
    %5212 = vmatprep.subr.mxu0 0.0
    %5213 = vmatpush2.msra.mxu0 0.0
    %5214 = vmatprep.subr.mxu0 0.0
    %5215 = vmatpush2.msra.mxu0 0.0
    %5216 = vmatprep.subr.mxu0 0.0
    %5217 = vmatpush2.msra.mxu0 0.0
    %5218 = vmatprep.subr.mxu0 0.0
    %5219 = vmatpush2.msra.mxu0 0.0
    %5220 = vmatprep.subr.mxu0 0.0
    %5221 = vmatpush2.msra.mxu0 0.0
    %5222 = vmatprep.subr.mxu0 0.0
    %5223 = vmatpush2.msra.mxu0 0.0
    %5224 = vmatprep.subr.mxu0 0.0
    %5225 = vmatpush2.msra.mxu0 0.0
    %5226 = vmatprep.subr.mxu0 0.0
    %5227 = vmatpush2.msra.mxu0 0.0
    %5228 = vmatprep.subr.mxu0 0.0
    %5229 = vmatpush2.msra.mxu0 0.0
    %5230 = vmatprep.subr.mxu0 0.0
    %5231 = vmatpush2.msra.mxu0 0.0
    %5232 = vmatprep.subr.mxu0 0.0
    %5233 = vmatpush2.msra.mxu0 0.0
    %5234 = vmatprep.mubr.f32.mxu0 0.0
    %5235 = vmatmul.mubr.f32.gmra.mxu0 %v4976
    %v5236 = vpop.f32.mrf.mxu0
    %v5237 = vadd.f32 0.0, %v5236
    %v5238 = vpop.f32.mrf.mxu0
    %5239 = vmatprep.mubr.f32.mxu0 0.0
    %5240 = vmatmul.mubr.f32.gmra.mxu0 %v4979
    %v5241 = vpop.f32.mrf.mxu0
    %v5242 = vadd.f32 0.0, %v5241
    %v5243 = vpop.f32.mrf.mxu0
    %5244 = vmatprep.mubr.f32.mxu0 0.0
    %5245 = vmatmul.mubr.f32.gmra.mxu0 %v4982
    %v5246 = vpop.f32.mrf.mxu0
    %v5247 = vadd.f32 0.0, %v5246
    %v5248 = vpop.f32.mrf.mxu0
    %5249 = vmatprep.mubr.f32.mxu0 0.0
    %5250 = vmatmul.mubr.f32.gmra.mxu0 %v4985
    %v5251 = vpop.f32.mrf.mxu0
    %v5252 = vadd.f32 0.0, %v5251
    %v5253 = vpop.f32.mrf.mxu0
    %5254 = vmatprep.mubr.f32.mxu0 0.0
    %5255 = vmatmul.mubr.f32.gmra.mxu0 %v4988
    %v5256 = vpop.f32.mrf.mxu0
    %v5257 = vadd.f32 0.0, %v5256
    %v5258 = vpop.f32.mrf.mxu0
    %5259 = vmatprep.mubr.f32.mxu0 0.0
    %5260 = vmatmul.mubr.f32.gmra.mxu0 %v4991
    %v5261 = vpop.f32.mrf.mxu0
    %v5262 = vadd.f32 0.0, %v5261
    %v5263 = vpop.f32.mrf.mxu0
    %5264 = vmatprep.mubr.f32.mxu0 0.0
    %5265 = vmatmul.mubr.f32.gmra.mxu0 %v4994
    %v5266 = vpop.f32.mrf.mxu0
    %v5267 = vadd.f32 0.0, %v5266
    %v5268 = vpop.f32.mrf.mxu0
    %5269 = vmatprep.mubr.f32.mxu0 0.0
    %5270 = vmatmul.mubr.f32.gmra.mxu0 %v4997
    %v5271 = vpop.f32.mrf.mxu0
    %v5272 = vadd.f32 0.0, %v5271
    %v5273 = vpop.f32.mrf.mxu0
    %5274 = vmatprep.mubr.f32.mxu0 0.0
    %5275 = vmatmul.mubr.f32.gmra.mxu0 %v5000
    %v5276 = vpop.f32.mrf.mxu0
    %v5277 = vadd.f32 0.0, %v5276
    %v5278 = vpop.f32.mrf.mxu0
    %5279 = vmatprep.mubr.f32.mxu0 0.0
    %5280 = vmatmul.mubr.f32.gmra.mxu0 %v5003
    %v5281 = vpop.f32.mrf.mxu0
    %v5282 = vadd.f32 0.0, %v5281
    %v5283 = vpop.f32.mrf.mxu0
    %5284 = vmatprep.mubr.f32.mxu0 0.0
    %5285 = vmatmul.mubr.f32.gmra.mxu0 %v5006
    %v5286 = vpop.f32.mrf.mxu0
    %v5287 = vadd.f32 0.0, %v5286
    %v5288 = vpop.f32.mrf.mxu0
    %5289 = vmatprep.mubr.f32.mxu0 0.0
    %5290 = vmatmul.mubr.f32.gmra.mxu0 %v5009
    %v5291 = vpop.f32.mrf.mxu0
    %v5292 = vadd.f32 0.0, %v5291
    %v5293 = vpop.f32.mrf.mxu0
    %5294 = vmatprep.mubr.f32.mxu0 0.0
    %5295 = vmatmul.mubr.f32.gmra.mxu0 %v5012
    %v5296 = vpop.f32.mrf.mxu0
    %v5297 = vadd.f32 0.0, %v5296
    %v5298 = vpop.f32.mrf.mxu0
    %5299 = vmatprep.mubr.f32.mxu0 0.0
    %5300 = vmatmul.mubr.f32.gmra.mxu0 %v5015
    %v5301 = vpop.f32.mrf.mxu0
    %v5302 = vadd.f32 0.0, %v5301
    %v5303 = vpop.f32.mrf.mxu0
    %5304 = vmatprep.mubr.f32.mxu0 0.0
    %5305 = vmatmul.mubr.f32.gmra.mxu0 %v5018
    %v5306 = vpop.f32.mrf.mxu0
    %v5307 = vadd.f32 0.0, %v5306
    %v5308 = vpop.f32.mrf.mxu0
    %5309 = vmatprep.mubr.f32.mxu0 0.0
    %5310 = vmatmul.mubr.f32.gmra.mxu0 %v5021
    %v5311 = vpop.f32.mrf.mxu0
    %v5312 = vadd.f32 0.0, %v5311
    %v5313 = vpop.f32.mrf.mxu0
    %5314 = vmatprep.mubr.f32.mxu0 0.0
    %5315 = vmatmul.mubr.f32.gmra.mxu0 %v5024
    %v5316 = vpop.f32.mrf.mxu0
    %v5317 = vadd.f32 0.0, %v5316
    %v5318 = vpop.f32.mrf.mxu0
    %5319 = vmatprep.mubr.f32.mxu0 0.0
    %5320 = vmatmul.mubr.f32.gmra.mxu0 %v5027
    %v5321 = vpop.f32.mrf.mxu0
    %v5322 = vadd.f32 0.0, %v5321
    %v5323 = vpop.f32.mrf.mxu0
    %5324 = vmatprep.mubr.f32.mxu0 0.0
    %5325 = vmatmul.mubr.f32.gmra.mxu0 %v5030
    %v5326 = vpop.f32.mrf.mxu0
    %v5327 = vadd.f32 0.0, %v5326
    %v5328 = vpop.f32.mrf.mxu0
    %5329 = vmatprep.mubr.f32.mxu0 0.0
    %5330 = vmatmul.mubr.f32.gmra.mxu0 %v5033
    %v5331 = vpop.f32.mrf.mxu0
    %v5332 = vadd.f32 0.0, %v5331
    %v5333 = vpop.f32.mrf.mxu0
    %5334 = vmatprep.mubr.f32.mxu0 0.0
    %5335 = vmatmul.mubr.f32.gmra.mxu0 %v5036
    %v5336 = vpop.f32.mrf.mxu0
    %v5337 = vadd.f32 0.0, %v5336
    %v5338 = vpop.f32.mrf.mxu0
    %5339 = vmatprep.mubr.f32.mxu0 0.0
    %5340 = vmatmul.mubr.f32.gmra.mxu0 %v5039
    %v5341 = vpop.f32.mrf.mxu0
    %v5342 = vadd.f32 0.0, %v5341
    %v5343 = vpop.f32.mrf.mxu0
    %5344 = vmatprep.mubr.f32.mxu0 0.0
    %5345 = vmatmul.mubr.f32.gmra.mxu0 %v5042
    %v5346 = vpop.f32.mrf.mxu0
    %v5347 = vadd.f32 0.0, %v5346
    %v5348 = vpop.f32.mrf.mxu0
    %5349 = vmatprep.mubr.f32.mxu0 0.0
    %5350 = vmatmul.mubr.f32.gmra.mxu0 %v5045
    %v5351 = vpop.f32.mrf.mxu0
    %v5352 = vadd.f32 0.0, %v5351
    %v5353 = vpop.f32.mrf.mxu0
    %5354 = vmatprep.mubr.f32.mxu0 0.0
    %5355 = vmatmul.mubr.f32.gmra.mxu0 %v5048
    %v5356 = vpop.f32.mrf.mxu0
    %v5357 = vadd.f32 0.0, %v5356
    %v5358 = vpop.f32.mrf.mxu0
    %5359 = vmatprep.mubr.f32.mxu0 0.0
    %5360 = vmatmul.mubr.f32.gmra.mxu0 %v5051
    %v5361 = vpop.f32.mrf.mxu0
    %v5362 = vadd.f32 0.0, %v5361
    %v5363 = vpop.f32.mrf.mxu0
    %5364 = vmatprep.mubr.f32.mxu0 0.0
    %5365 = vmatmul.mubr.f32.gmra.mxu0 %v5054
    %v5366 = vpop.f32.mrf.mxu0
    %v5367 = vadd.f32 0.0, %v5366
    %v5368 = vpop.f32.mrf.mxu0
    %5369 = vmatprep.mubr.f32.mxu0 0.0
    %5370 = vmatmul.mubr.f32.gmra.mxu0 %v5057
    %v5371 = vpop.f32.mrf.mxu0
    %v5372 = vadd.f32 0.0, %v5371
    %v5373 = vpop.f32.mrf.mxu0
    %5374 = vmatprep.mubr.f32.mxu0 0.0
    %5375 = vmatmul.mubr.f32.gmra.mxu0 %v5060
    %v5376 = vpop.f32.mrf.mxu0
    %v5377 = vadd.f32 0.0, %v5376
    %v5378 = vpop.f32.mrf.mxu0
    %5379 = vmatprep.mubr.f32.mxu0 0.0
    %5380 = vmatmul.mubr.f32.gmra.mxu0 %v5063
    %v5381 = vpop.f32.mrf.mxu0
    %v5382 = vadd.f32 0.0, %v5381
    %v5383 = vpop.f32.mrf.mxu0
    %5384 = vmatprep.mubr.f32.mxu0 0.0
    %5385 = vmatmul.mubr.f32.gmra.mxu0 %v5066
    %v5386 = vpop.f32.mrf.mxu0
    %v5387 = vadd.f32 0.0, %v5386
    %v5388 = vpop.f32.mrf.mxu0
    %5389 = vmatprep.mubr.f32.mxu0 0.0
    %5390 = vmatmul.mubr.f32.gmra.mxu0 %v5069
    %v5391 = vpop.f32.mrf.mxu0
    %v5392 = vadd.f32 0.0, %v5391
    %v5393 = vpop.f32.mrf.mxu0
    %5394 = vmatprep.mubr.f32.mxu0 0.0
    %5395 = vmatmul.mubr.f32.gmra.mxu0 %v5072
    %v5396 = vpop.f32.mrf.mxu0
    %v5397 = vadd.f32 0.0, %v5396
    %v5398 = vpop.f32.mrf.mxu0
    %5399 = vmatprep.mubr.f32.mxu0 0.0
    %5400 = vmatmul.mubr.f32.gmra.mxu0 %v5075
    %v5401 = vpop.f32.mrf.mxu0
    %v5402 = vadd.f32 0.0, %v5401
    %v5403 = vpop.f32.mrf.mxu0
    %5404 = vmatprep.mubr.f32.mxu0 0.0
    %5405 = vmatmul.mubr.f32.gmra.mxu0 %v5078
    %v5406 = vpop.f32.mrf.mxu0
    %v5407 = vadd.f32 0.0, %v5406
    %v5408 = vpop.f32.mrf.mxu0
    %5409 = vmatprep.mubr.f32.mxu0 0.0
    %5410 = vmatmul.mubr.f32.gmra.mxu0 %v5081
    %v5411 = vpop.f32.mrf.mxu0
    %v5412 = vadd.f32 0.0, %v5411
    %v5413 = vpop.f32.mrf.mxu0
    %5414 = vmatprep.mubr.f32.mxu0 0.0
    %5415 = vmatmul.mubr.f32.gmra.mxu0 %v5084
    %v5416 = vpop.f32.mrf.mxu0
    %v5417 = vadd.f32 0.0, %v5416
    %v5418 = vpop.f32.mrf.mxu0
    %5419 = vmatprep.mubr.f32.mxu0 0.0
    %5420 = vmatmul.mubr.f32.gmra.mxu0 %v5087
    %v5421 = vpop.f32.mrf.mxu0
    %v5422 = vadd.f32 0.0, %v5421
    %v5423 = vpop.f32.mrf.mxu0
    %5424 = vmatprep.mubr.f32.mxu0 0.0
    %5425 = vmatmul.mubr.f32.gmra.mxu0 %v5090
    %v5426 = vpop.f32.mrf.mxu0
    %v5427 = vadd.f32 0.0, %v5426
    %v5428 = vpop.f32.mrf.mxu0
    %5429 = vmatprep.mubr.f32.mxu0 0.0
    %5430 = vmatmul.mubr.f32.gmra.mxu0 %v5093
    %v5431 = vpop.f32.mrf.mxu0
    %v5432 = vadd.f32 0.0, %v5431
    %v5433 = vpop.f32.mrf.mxu0
    %5434 = vmatprep.mubr.f32.mxu0 0.0
    %5435 = vmatmul.mubr.f32.gmra.mxu0 %v5096
    %v5436 = vpop.f32.mrf.mxu0
    %v5437 = vadd.f32 0.0, %v5436
    %v5438 = vpop.f32.mrf.mxu0
    %5439 = vmatprep.mubr.f32.mxu0 0.0
    %5440 = vmatmul.mubr.f32.gmra.mxu0 %v5099
    %v5441 = vpop.f32.mrf.mxu0
    %v5442 = vadd.f32 0.0, %v5441
    %v5443 = vpop.f32.mrf.mxu0
    %5444 = vmatprep.mubr.f32.mxu0 0.0
    %5445 = vmatmul.mubr.f32.gmra.mxu0 %v5102
    %v5446 = vpop.f32.mrf.mxu0
    %v5447 = vadd.f32 0.0, %v5446
    %v5448 = vpop.f32.mrf.mxu0
    %5449 = vmatprep.mubr.f32.mxu0 0.0
    %5450 = vmatmul.mubr.f32.gmra.mxu0 %v5105
    %v5451 = vpop.f32.mrf.mxu0
    %v5452 = vadd.f32 0.0, %v5451
    %v5453 = vpop.f32.mrf.mxu0
    %5454 = vmatprep.mubr.f32.mxu0 0.0
    %5455 = vmatmul.mubr.f32.gmra.mxu0 %v5108
    %v5456 = vpop.f32.mrf.mxu0
    %v5457 = vadd.f32 0.0, %v5456
    %v5458 = vpop.f32.mrf.mxu0
    %5459 = vmatprep.mubr.f32.mxu0 0.0
    %5460 = vmatmul.mubr.f32.gmra.mxu0 %v5111
    %v5461 = vpop.f32.mrf.mxu0
    %v5462 = vadd.f32 0.0, %v5461
    %v5463 = vpop.f32.mrf.mxu0
    %5464 = vmatprep.mubr.f32.mxu0 0.0
    %5465 = vmatmul.mubr.f32.gmra.mxu0 %v5114
    %v5466 = vpop.f32.mrf.mxu0
    %v5467 = vadd.f32 0.0, %v5466
    %v5468 = vpop.f32.mrf.mxu0
    %5469 = vmatprep.mubr.f32.mxu0 0.0
    %5470 = vmatmul.mubr.f32.gmra.mxu0 %v5117
    %v5471 = vpop.f32.mrf.mxu0
    %v5472 = vadd.f32 0.0, %v5471
    %v5473 = vpop.f32.mrf.mxu0
    %5474 = vmatprep.mubr.f32.mxu0 0.0
    %5475 = vmatmul.mubr.f32.gmra.mxu0 %v5120
    %v5476 = vpop.f32.mrf.mxu0
    %v5477 = vadd.f32 0.0, %v5476
    %v5478 = vpop.f32.mrf.mxu0
    %5479 = vmatprep.mubr.f32.mxu0 0.0
    %5480 = vmatmul.mubr.f32.gmra.mxu0 %v5123
    %v5481 = vpop.f32.mrf.mxu0
    %v5482 = vadd.f32 0.0, %v5481
    %v5483 = vpop.f32.mrf.mxu0
    %5484 = vmatprep.mubr.f32.mxu0 0.0
    %5485 = vmatmul.mubr.f32.gmra.mxu0 %v5126
    %v5486 = vpop.f32.mrf.mxu0
    %v5487 = vadd.f32 0.0, %v5486
    %v5488 = vpop.f32.mrf.mxu0
    %5489 = vmatprep.mubr.f32.mxu0 0.0
    %5490 = vmatmul.mubr.f32.gmra.mxu0 %v5129
    %v5491 = vpop.f32.mrf.mxu0
    %v5492 = vadd.f32 0.0, %v5491
    %v5493 = vpop.f32.mrf.mxu0
    %5494 = vmatprep.mubr.f32.mxu0 0.0
    %5495 = vmatmul.mubr.f32.gmra.mxu0 %v5132
    %v5496 = vpop.f32.mrf.mxu0
    %v5497 = vadd.f32 0.0, %v5496
    %v5498 = vpop.f32.mrf.mxu0
    %5499 = vmatprep.mubr.f32.mxu0 0.0
    %5500 = vmatmul.mubr.f32.gmra.mxu0 %v5135
    %v5501 = vpop.f32.mrf.mxu0
    %v5502 = vadd.f32 0.0, %v5501
    %v5503 = vpop.f32.mrf.mxu0
    %5504 = vmatprep.mubr.f32.mxu0 0.0
    %5505 = vmatmul.mubr.f32.gmra.mxu0 %v5138
    %v5506 = vpop.f32.mrf.mxu0
    %v5507 = vadd.f32 0.0, %v5506
    %v5508 = vpop.f32.mrf.mxu0
    %5509 = vmatprep.mubr.f32.mxu0 0.0
    %5510 = vmatmul.mubr.f32.gmra.mxu0 %v5141
    %v5511 = vpop.f32.mrf.mxu0
    %v5512 = vadd.f32 0.0, %v5511
    %v5513 = vpop.f32.mrf.mxu0
    %5514 = vmatprep.mubr.f32.mxu0 0.0
    %5515 = vmatmul.mubr.f32.gmra.mxu0 %v5144
    %v5516 = vpop.f32.mrf.mxu0
    %v5517 = vadd.f32 0.0, %v5516
    %v5518 = vpop.f32.mrf.mxu0
    %5519 = vmatprep.mubr.f32.mxu0 0.0
    %5520 = vmatmul.mubr.f32.gmra.mxu0 %v5147
    %v5521 = vpop.f32.mrf.mxu0
    %v5522 = vadd.f32 0.0, %v5521
    %v5523 = vpop.f32.mrf.mxu0
    %5524 = vmatprep.mubr.f32.mxu0 0.0
    %5525 = vmatmul.mubr.f32.gmra.mxu0 %v5150
    %v5526 = vpop.f32.mrf.mxu0
    %v5527 = vadd.f32 0.0, %v5526
    %v5528 = vpop.f32.mrf.mxu0
    %5529 = vmatprep.mubr.f32.mxu0 0.0
    %5530 = vmatmul.mubr.f32.gmra.mxu0 %v5153
    %v5531 = vpop.f32.mrf.mxu0
    %v5532 = vadd.f32 0.0, %v5531
    %v5533 = vpop.f32.mrf.mxu0
    %5534 = vmatprep.mubr.f32.mxu0 0.0
    %5535 = vmatmul.mubr.f32.gmra.mxu0 %v5156
    %v5536 = vpop.f32.mrf.mxu0
    %v5537 = vadd.f32 0.0, %v5536
    %v5538 = vpop.f32.mrf.mxu0
    %5539 = vmatprep.mubr.f32.mxu0 0.0
    %5540 = vmatmul.mubr.f32.gmra.mxu0 %v5159
    %v5541 = vpop.f32.mrf.mxu0
    %v5542 = vadd.f32 0.0, %v5541
    %v5543 = vpop.f32.mrf.mxu0
    %5544 = vmatprep.mubr.f32.mxu0 0.0
    %5545 = vmatmul.mubr.f32.gmra.mxu0 %v5162
    %v5546 = vpop.f32.mrf.mxu0
    %v5547 = vadd.f32 0.0, %v5546
    %v5548 = vpop.f32.mrf.mxu0
    %5549 = vmatprep.mubr.f32.mxu0 0.0
    %5550 = vmatmul.mubr.f32.gmra.mxu0 %v5165
    %v5551 = vpop.f32.mrf.mxu0
    %v5552 = vadd.f32 0.0, %v5551
    %v5553 = vpop.f32.mrf.mxu0
    %5554 = vdwg.mxu0
    %v5555 = vadd.f32 %v4845, %v5237
    %v5556 = vadd.f32 %v4846, %v5242
    %v5557 = vadd.f32 %v4847, %v5247
    %v5558 = vadd.f32 %v4848, %v5252
    %v5559 = vadd.f32 %v4849, %v5257
    %v5560 = vadd.f32 %v4850, %v5262
    %v5561 = vadd.f32 %v4851, %v5267
    %v5562 = vadd.f32 %v4852, %v5272
    %v5563 = vadd.f32 %v4853, %v5277
    %v5564 = vadd.f32 %v4854, %v5282
    %v5565 = vadd.f32 %v4855, %v5287
    %v5566 = vadd.f32 %v4856, %v5292
    %v5567 = vadd.f32 %v4857, %v5297
    %v5568 = vadd.f32 %v4858, %v5302
    %v5569 = vadd.f32 %v4859, %v5307
    %v5570 = vadd.f32 %v4860, %v5312
    %v5571 = vadd.f32 %v4861, %v5317
    %v5572 = vadd.f32 %v4862, %v5322
    %v5573 = vadd.f32 %v4863, %v5327
    %v5574 = vadd.f32 %v4864, %v5332
    %v5575 = vadd.f32 %v4865, %v5337
    %v5576 = vadd.f32 %v4866, %v5342
    %v5577 = vadd.f32 %v4867, %v5347
    %v5578 = vadd.f32 %v4868, %v5352
    %v5579 = vadd.f32 %v4869, %v5357
    %v5580 = vadd.f32 %v4870, %v5362
    %v5581 = vadd.f32 %v4871, %v5367
    %v5582 = vadd.f32 %v4872, %v5372
    %v5583 = vadd.f32 %v4873, %v5377
    %v5584 = vadd.f32 %v4874, %v5382
    %v5585 = vadd.f32 %v4875, %v5387
    %v5586 = vadd.f32 %v4876, %v5392
    %v5587 = vadd.f32 %v4877, %v5397
    %v5588 = vadd.f32 %v4878, %v5402
    %v5589 = vadd.f32 %v4879, %v5407
    %v5590 = vadd.f32 %v4880, %v5412
    %v5591 = vadd.f32 %v4881, %v5417
    %v5592 = vadd.f32 %v4882, %v5422
    %v5593 = vadd.f32 %v4883, %v5427
    %v5594 = vadd.f32 %v4884, %v5432
    %v5595 = vadd.f32 %v4885, %v5437
    %v5596 = vadd.f32 %v4886, %v5442
    %v5597 = vadd.f32 %v4887, %v5447
    %v5598 = vadd.f32 %v4888, %v5452
    %v5599 = vadd.f32 %v4889, %v5457
    %v5600 = vadd.f32 %v4890, %v5462
    %v5601 = vadd.f32 %v4891, %v5467
    %v5602 = vadd.f32 %v4892, %v5472
    %v5603 = vadd.f32 %v4893, %v5477
    %v5604 = vadd.f32 %v4894, %v5482
    %v5605 = vadd.f32 %v4895, %v5487
    %v5606 = vadd.f32 %v4896, %v5492
    %v5607 = vadd.f32 %v4897, %v5497
    %v5608 = vadd.f32 %v4898, %v5502
    %v5609 = vadd.f32 %v4899, %v5507
    %v5610 = vadd.f32 %v4900, %v5512
    %v5611 = vadd.f32 %v4901, %v5517
    %v5612 = vadd.f32 %v4902, %v5522
    %v5613 = vadd.f32 %v4903, %v5527
    %v5614 = vadd.f32 %v4904, %v5532
    %v5615 = vadd.f32 %v4905, %v5537
    %v5616 = vadd.f32 %v4906, %v5542
    %v5617 = vadd.f32 %v4907, %v5547
    %v5618 = vadd.f32 %v4908, %v5552
    %v5619 = vld [vmem:[%s4198 + $0x2] sm:$0xff]
    %v5620 = vld [vmem:[%s4198 + $0xa] sm:$0xff]
    %v5621 = vld [vmem:[%s4198 + $0x1a] sm:$0xff]
    %v5622 = vld [vmem:[%s4198 + $0x22] sm:$0xff]
    %v5623 = vld [vmem:[%s4198 + $0x32] sm:$0xff]
    %v5624 = vld [vmem:[%s4198 + $0x3a] sm:$0xff]
    %v5625 = vld [vmem:[%s4198 + $0x4a] sm:$0xff]
    %v5626 = vld [vmem:[%s4198 + $0x52] sm:$0xff]
    %v5627 = vld [vmem:[%s4198 + $0x62] sm:$0xff]
    %v5628 = vld [vmem:[%s4198 + $0x6a] sm:$0xff]
    %v5629 = vld [vmem:[%s4198 + $0x7a] sm:$0xff]
    %v5630 = vld [vmem:[%s4198 + $0x82] sm:$0xff]
    %v5631 = vld [vmem:[%s4198 + $0x92] sm:$0xff]
    %v5632 = vld [vmem:[%s4198 + $0x9a] sm:$0xff]
    %v5633 = vld [vmem:[%s4198 + $0xaa] sm:$0xff]
    %v5634 = vld [vmem:[%s4198 + $0xb2] sm:$0xff]
    %v5635 = vld [vmem:[%s4198 + $0xc2] sm:$0xff]
    %v5636 = vld [vmem:[%s4198 + $0xca] sm:$0xff]
    %v5637 = vld [vmem:[%s4198 + $0xda] sm:$0xff]
    %v5638 = vld [vmem:[%s4198 + $0xe2] sm:$0xff]
    %v5639 = vld [vmem:[%s4198 + $0xf2] sm:$0xff]
    %v5640 = vld [vmem:[%s4198 + $0xfa] sm:$0xff]
    %v5641 = vld [vmem:[%s4198 + $0x10a] sm:$0xff]
    %v5642 = vld [vmem:[%s4198 + $0x112] sm:$0xff]
    %v5643 = vld [vmem:[%s4198 + $0x122] sm:$0xff]
    %v5644 = vld [vmem:[%s4198 + $0x12a] sm:$0xff]
    %v5645 = vld [vmem:[%s4198 + $0x13a] sm:$0xff]
    %v5646 = vld [vmem:[%s4198 + $0x142] sm:$0xff]
    %v5647 = vld [vmem:[%s4198 + $0x152] sm:$0xff]
    %v5648 = vld [vmem:[%s4198 + $0x15a] sm:$0xff]
    %v5649 = vld [vmem:[%s4198 + $0x16a] sm:$0xff]
    %v5650 = vld [vmem:[%s4198 + $0x172] sm:$0xff]
    %v5651 = vld [vmem:[%s4198 + $0x1b2] sm:$0xff]
    %v5652 = vld [vmem:[%s4198 + $0x1ba] sm:$0xff]
    %v5653 = vld [vmem:[%s4198 + $0x1ca] sm:$0xff]
    %v5654 = vld [vmem:[%s4198 + $0x1d2] sm:$0xff]
    %v5655 = vld [vmem:[%s4198 + $0x1e2] sm:$0xff]
    %v5656 = vld [vmem:[%s4198 + $0x1ea] sm:$0xff]
    %v5657 = vld [vmem:[%s4198 + $0x1fa] sm:$0xff]
    %v5658 = vld [vmem:[%s4198 + $0x202] sm:$0xff]
    %v5659 = vld [vmem:[%s4198 + $0x212] sm:$0xff]
    %v5660 = vld [vmem:[%s4198 + $0x21a] sm:$0xff]
    %v5661 = vld [vmem:[%s4198 + $0x22a] sm:$0xff]
    %v5662 = vld [vmem:[%s4198 + $0x232] sm:$0xff]
    %v5663 = vld [vmem:[%s4198 + $0x242] sm:$0xff]
    %v5664 = vld [vmem:[%s4198 + $0x24a] sm:$0xff]
    %v5665 = vld [vmem:[%s4198 + $0x25a] sm:$0xff]
    %v5666 = vld [vmem:[%s4198 + $0x262] sm:$0xff]
    %v5667 = vld [vmem:[%s4198 + $0x272] sm:$0xff]
    %v5668 = vld [vmem:[%s4198 + $0x27a] sm:$0xff]
    %v5669 = vld [vmem:[%s4198 + $0x28a] sm:$0xff]
    %v5670 = vld [vmem:[%s4198 + $0x292] sm:$0xff]
    %v5671 = vld [vmem:[%s4198 + $0x2a2] sm:$0xff]
    %v5672 = vld [vmem:[%s4198 + $0x2aa] sm:$0xff]
    %v5673 = vld [vmem:[%s4198 + $0x2ba] sm:$0xff]
    %v5674 = vld [vmem:[%s4198 + $0x2c2] sm:$0xff]
    %v5675 = vld [vmem:[%s4198 + $0x2d2] sm:$0xff]
    %v5676 = vld [vmem:[%s4198 + $0x2da] sm:$0xff]
    %v5677 = vld [vmem:[%s4198 + $0x2ea] sm:$0xff]
    %v5678 = vld [vmem:[%s4198 + $0x2f2] sm:$0xff]
    %v5679 = vld [vmem:[%s4198 + $0x302] sm:$0xff]
    %v5680 = vld [vmem:[%s4198 + $0x30a] sm:$0xff]
    %v5681 = vld [vmem:[%s4198 + $0x31a] sm:$0xff]
    %v5682 = vld [vmem:[%s4198 + $0x322] sm:$0xff]
    %s5683 = scalar_lea.vmem %s2, 32
    %v5684 = vld [vmem:[%s5683] sm:$0x7]
    %v5686 = vsel %vm195, %v5619, 0
    %v5689 = vsel %vm195, %v5620, 0
    %v5692 = vsel %vm195, %v5621, 0
    %v5695 = vsel %vm195, %v5622, 0
    %v5698 = vsel %vm195, %v5623, 0
    %v5701 = vsel %vm195, %v5624, 0
    %v5704 = vsel %vm195, %v5625, 0
    %v5707 = vsel %vm195, %v5626, 0
    %v5710 = vsel %vm195, %v5627, 0
    %v5713 = vsel %vm195, %v5628, 0
    %v5716 = vsel %vm195, %v5629, 0
    %v5719 = vsel %vm195, %v5630, 0
    %v5722 = vsel %vm195, %v5631, 0
    %v5725 = vsel %vm195, %v5632, 0
    %v5728 = vsel %vm195, %v5633, 0
    %v5731 = vsel %vm195, %v5634, 0
    %v5734 = vsel %vm195, %v5635, 0
    %v5737 = vsel %vm195, %v5636, 0
    %v5740 = vsel %vm195, %v5637, 0
    %v5743 = vsel %vm195, %v5638, 0
    %v5746 = vsel %vm195, %v5639, 0
    %v5749 = vsel %vm195, %v5640, 0
    %v5752 = vsel %vm195, %v5641, 0
    %v5755 = vsel %vm195, %v5642, 0
    %v5758 = vsel %vm195, %v5643, 0
    %v5761 = vsel %vm195, %v5644, 0
    %v5764 = vsel %vm195, %v5645, 0
    %v5767 = vsel %vm195, %v5646, 0
    %v5770 = vsel %vm195, %v5647, 0
    %v5773 = vsel %vm195, %v5648, 0
    %v5776 = vsel %vm195, %v5649, 0
    %v5779 = vsel %vm195, %v5650, 0
    %v5782 = vsel %vm195, %v5651, 0
    %v5785 = vsel %vm195, %v5652, 0
    %v5788 = vsel %vm195, %v5653, 0
    %v5791 = vsel %vm195, %v5654, 0
    %v5794 = vsel %vm195, %v5655, 0
    %v5797 = vsel %vm195, %v5656, 0
    %v5800 = vsel %vm195, %v5657, 0
    %v5803 = vsel %vm195, %v5658, 0
    %v5806 = vsel %vm195, %v5659, 0
    %v5809 = vsel %vm195, %v5660, 0
    %v5812 = vsel %vm195, %v5661, 0
    %v5815 = vsel %vm195, %v5662, 0
    %v5818 = vsel %vm195, %v5663, 0
    %v5821 = vsel %vm195, %v5664, 0
    %v5824 = vsel %vm195, %v5665, 0
    %v5827 = vsel %vm195, %v5666, 0
    %v5830 = vsel %vm195, %v5667, 0
    %v5833 = vsel %vm195, %v5668, 0
    %v5836 = vsel %vm195, %v5669, 0
    %v5839 = vsel %vm195, %v5670, 0
    %v5842 = vsel %vm195, %v5671, 0
    %v5845 = vsel %vm195, %v5672, 0
    %v5848 = vsel %vm195, %v5673, 0
    %v5851 = vsel %vm195, %v5674, 0
    %v5854 = vsel %vm195, %v5675, 0
    %v5857 = vsel %vm195, %v5676, 0
    %v5860 = vsel %vm195, %v5677, 0
    %v5863 = vsel %vm195, %v5678, 0
    %v5866 = vsel %vm195, %v5679, 0
    %v5869 = vsel %vm195, %v5680, 0
    %v5872 = vsel %vm195, %v5681, 0
    %v5875 = vsel %vm195, %v5682, 0
    %v5878 = vsel %vm388, %v5684, 0
    %5880 = vmatprep.subr.mxu0 0.0
    %5881 = vmatpush1.msra.mxu0 0.0
    %5882 = vmatprep.subr.mxu0 0.0
    %5883 = vmatpush1.msra.mxu0 0.0
    %5884 = vmatprep.subr.mxu0 0.0
    %5885 = vmatpush1.msra.mxu0 0.0
    %5886 = vmatprep.subr.mxu0 0.0
    %5887 = vmatpush1.msra.mxu0 0.0
    %5888 = vmatprep.subr.mxu0 0.0
    %5889 = vmatpush1.msra.mxu0 0.0
    %5890 = vmatprep.subr.mxu0 0.0
    %5891 = vmatpush1.msra.mxu0 0.0
    %5892 = vmatprep.subr.mxu0 0.0
    %5893 = vmatpush1.msra.mxu0 0.0
    %5894 = vmatprep.subr.mxu0 0.0
    %5895 = vmatpush1.msra.mxu0 0.0
    %5896 = vmatprep.subr.mxu0 0.0
    %5897 = vmatpush1.msra.mxu0 0.0
    %5898 = vmatprep.subr.mxu0 0.0
    %5899 = vmatpush1.msra.mxu0 0.0
    %5900 = vmatprep.subr.mxu0 0.0
    %5901 = vmatpush1.msra.mxu0 0.0
    %5902 = vmatprep.subr.mxu0 0.0
    %5903 = vmatpush1.msra.mxu0 0.0
    %5904 = vmatprep.subr.mxu0 0.0
    %5905 = vmatpush1.msra.mxu0 0.0
    %5906 = vmatprep.subr.mxu0 0.0
    %5907 = vmatpush1.msra.mxu0 0.0
    %5908 = vmatprep.subr.mxu0 0.0
    %5909 = vmatpush1.msra.mxu0 0.0
    %5910 = vmatprep.subr.mxu0 0.0
    %5911 = vmatpush1.msra.mxu0 %v5878
    %5912 = vmatprep.subr.mxu0 0.0
    %5913 = vmatpush2.msra.mxu0 0.0
    %5914 = vmatprep.subr.mxu0 0.0
    %5915 = vmatpush2.msra.mxu0 0.0
    %5916 = vmatprep.subr.mxu0 0.0
    %5917 = vmatpush2.msra.mxu0 0.0
    %5918 = vmatprep.subr.mxu0 0.0
    %5919 = vmatpush2.msra.mxu0 0.0
    %5920 = vmatprep.subr.mxu0 0.0
    %5921 = vmatpush2.msra.mxu0 0.0
    %5922 = vmatprep.subr.mxu0 0.0
    %5923 = vmatpush2.msra.mxu0 0.0
    %5924 = vmatprep.subr.mxu0 0.0
    %5925 = vmatpush2.msra.mxu0 0.0
    %5926 = vmatprep.subr.mxu0 0.0
    %5927 = vmatpush2.msra.mxu0 0.0
    %5928 = vmatprep.subr.mxu0 0.0
    %5929 = vmatpush2.msra.mxu0 0.0
    %5930 = vmatprep.subr.mxu0 0.0
    %5931 = vmatpush2.msra.mxu0 0.0
    %5932 = vmatprep.subr.mxu0 0.0
    %5933 = vmatpush2.msra.mxu0 0.0
    %5934 = vmatprep.subr.mxu0 0.0
    %5935 = vmatpush2.msra.mxu0 0.0
    %5936 = vmatprep.subr.mxu0 0.0
    %5937 = vmatpush2.msra.mxu0 0.0
    %5938 = vmatprep.subr.mxu0 0.0
    %5939 = vmatpush2.msra.mxu0 0.0
    %5940 = vmatprep.subr.mxu0 0.0
    %5941 = vmatpush2.msra.mxu0 0.0
    %5942 = vmatprep.subr.mxu0 0.0
    %5943 = vmatpush2.msra.mxu0 0.0
    %5944 = vmatprep.mubr.f32.mxu0 0.0
    %5945 = vmatmul.mubr.f32.gmra.mxu0 %v5686
    %v5946 = vpop.f32.mrf.mxu0
    %v5947 = vadd.f32 0.0, %v5946
    %v5948 = vpop.f32.mrf.mxu0
    %5949 = vmatprep.mubr.f32.mxu0 0.0
    %5950 = vmatmul.mubr.f32.gmra.mxu0 %v5689
    %v5951 = vpop.f32.mrf.mxu0
    %v5952 = vadd.f32 0.0, %v5951
    %v5953 = vpop.f32.mrf.mxu0
    %5954 = vmatprep.mubr.f32.mxu0 0.0
    %5955 = vmatmul.mubr.f32.gmra.mxu0 %v5692
    %v5956 = vpop.f32.mrf.mxu0
    %v5957 = vadd.f32 0.0, %v5956
    %v5958 = vpop.f32.mrf.mxu0
    %5959 = vmatprep.mubr.f32.mxu0 0.0
    %5960 = vmatmul.mubr.f32.gmra.mxu0 %v5695
    %v5961 = vpop.f32.mrf.mxu0
    %v5962 = vadd.f32 0.0, %v5961
    %v5963 = vpop.f32.mrf.mxu0
    %5964 = vmatprep.mubr.f32.mxu0 0.0
    %5965 = vmatmul.mubr.f32.gmra.mxu0 %v5698
    %v5966 = vpop.f32.mrf.mxu0
    %v5967 = vadd.f32 0.0, %v5966
    %v5968 = vpop.f32.mrf.mxu0
    %5969 = vmatprep.mubr.f32.mxu0 0.0
    %5970 = vmatmul.mubr.f32.gmra.mxu0 %v5701
    %v5971 = vpop.f32.mrf.mxu0
    %v5972 = vadd.f32 0.0, %v5971
    %v5973 = vpop.f32.mrf.mxu0
    %5974 = vmatprep.mubr.f32.mxu0 0.0
    %5975 = vmatmul.mubr.f32.gmra.mxu0 %v5704
    %v5976 = vpop.f32.mrf.mxu0
    %v5977 = vadd.f32 0.0, %v5976
    %v5978 = vpop.f32.mrf.mxu0
    %5979 = vmatprep.mubr.f32.mxu0 0.0
    %5980 = vmatmul.mubr.f32.gmra.mxu0 %v5707
    %v5981 = vpop.f32.mrf.mxu0
    %v5982 = vadd.f32 0.0, %v5981
    %v5983 = vpop.f32.mrf.mxu0
    %5984 = vmatprep.mubr.f32.mxu0 0.0
    %5985 = vmatmul.mubr.f32.gmra.mxu0 %v5710
    %v5986 = vpop.f32.mrf.mxu0
    %v5987 = vadd.f32 0.0, %v5986
    %v5988 = vpop.f32.mrf.mxu0
    %5989 = vmatprep.mubr.f32.mxu0 0.0
    %5990 = vmatmul.mubr.f32.gmra.mxu0 %v5713
    %v5991 = vpop.f32.mrf.mxu0
    %v5992 = vadd.f32 0.0, %v5991
    %v5993 = vpop.f32.mrf.mxu0
    %5994 = vmatprep.mubr.f32.mxu0 0.0
    %5995 = vmatmul.mubr.f32.gmra.mxu0 %v5716
    %v5996 = vpop.f32.mrf.mxu0
    %v5997 = vadd.f32 0.0, %v5996
    %v5998 = vpop.f32.mrf.mxu0
    %5999 = vmatprep.mubr.f32.mxu0 0.0
    %6000 = vmatmul.mubr.f32.gmra.mxu0 %v5719
    %v6001 = vpop.f32.mrf.mxu0
    %v6002 = vadd.f32 0.0, %v6001
    %v6003 = vpop.f32.mrf.mxu0
    %6004 = vmatprep.mubr.f32.mxu0 0.0
    %6005 = vmatmul.mubr.f32.gmra.mxu0 %v5722
    %v6006 = vpop.f32.mrf.mxu0
    %v6007 = vadd.f32 0.0, %v6006
    %v6008 = vpop.f32.mrf.mxu0
    %6009 = vmatprep.mubr.f32.mxu0 0.0
    %6010 = vmatmul.mubr.f32.gmra.mxu0 %v5725
    %v6011 = vpop.f32.mrf.mxu0
    %v6012 = vadd.f32 0.0, %v6011
    %v6013 = vpop.f32.mrf.mxu0
    %6014 = vmatprep.mubr.f32.mxu0 0.0
    %6015 = vmatmul.mubr.f32.gmra.mxu0 %v5728
    %v6016 = vpop.f32.mrf.mxu0
    %v6017 = vadd.f32 0.0, %v6016
    %v6018 = vpop.f32.mrf.mxu0
    %6019 = vmatprep.mubr.f32.mxu0 0.0
    %6020 = vmatmul.mubr.f32.gmra.mxu0 %v5731
    %v6021 = vpop.f32.mrf.mxu0
    %v6022 = vadd.f32 0.0, %v6021
    %v6023 = vpop.f32.mrf.mxu0
    %6024 = vmatprep.mubr.f32.mxu0 0.0
    %6025 = vmatmul.mubr.f32.gmra.mxu0 %v5734
    %v6026 = vpop.f32.mrf.mxu0
    %v6027 = vadd.f32 0.0, %v6026
    %v6028 = vpop.f32.mrf.mxu0
    %6029 = vmatprep.mubr.f32.mxu0 0.0
    %6030 = vmatmul.mubr.f32.gmra.mxu0 %v5737
    %v6031 = vpop.f32.mrf.mxu0
    %v6032 = vadd.f32 0.0, %v6031
    %v6033 = vpop.f32.mrf.mxu0
    %6034 = vmatprep.mubr.f32.mxu0 0.0
    %6035 = vmatmul.mubr.f32.gmra.mxu0 %v5740
    %v6036 = vpop.f32.mrf.mxu0
    %v6037 = vadd.f32 0.0, %v6036
    %v6038 = vpop.f32.mrf.mxu0
    %6039 = vmatprep.mubr.f32.mxu0 0.0
    %6040 = vmatmul.mubr.f32.gmra.mxu0 %v5743
    %v6041 = vpop.f32.mrf.mxu0
    %v6042 = vadd.f32 0.0, %v6041
    %v6043 = vpop.f32.mrf.mxu0
    %6044 = vmatprep.mubr.f32.mxu0 0.0
    %6045 = vmatmul.mubr.f32.gmra.mxu0 %v5746
    %v6046 = vpop.f32.mrf.mxu0
    %v6047 = vadd.f32 0.0, %v6046
    %v6048 = vpop.f32.mrf.mxu0
    %6049 = vmatprep.mubr.f32.mxu0 0.0
    %6050 = vmatmul.mubr.f32.gmra.mxu0 %v5749
    %v6051 = vpop.f32.mrf.mxu0
    %v6052 = vadd.f32 0.0, %v6051
    %v6053 = vpop.f32.mrf.mxu0
    %6054 = vmatprep.mubr.f32.mxu0 0.0
    %6055 = vmatmul.mubr.f32.gmra.mxu0 %v5752
    %v6056 = vpop.f32.mrf.mxu0
    %v6057 = vadd.f32 0.0, %v6056
    %v6058 = vpop.f32.mrf.mxu0
    %6059 = vmatprep.mubr.f32.mxu0 0.0
    %6060 = vmatmul.mubr.f32.gmra.mxu0 %v5755
    %v6061 = vpop.f32.mrf.mxu0
    %v6062 = vadd.f32 0.0, %v6061
    %v6063 = vpop.f32.mrf.mxu0
    %6064 = vmatprep.mubr.f32.mxu0 0.0
    %6065 = vmatmul.mubr.f32.gmra.mxu0 %v5758
    %v6066 = vpop.f32.mrf.mxu0
    %v6067 = vadd.f32 0.0, %v6066
    %v6068 = vpop.f32.mrf.mxu0
    %6069 = vmatprep.mubr.f32.mxu0 0.0
    %6070 = vmatmul.mubr.f32.gmra.mxu0 %v5761
    %v6071 = vpop.f32.mrf.mxu0
    %v6072 = vadd.f32 0.0, %v6071
    %v6073 = vpop.f32.mrf.mxu0
    %6074 = vmatprep.mubr.f32.mxu0 0.0
    %6075 = vmatmul.mubr.f32.gmra.mxu0 %v5764
    %v6076 = vpop.f32.mrf.mxu0
    %v6077 = vadd.f32 0.0, %v6076
    %v6078 = vpop.f32.mrf.mxu0
    %6079 = vmatprep.mubr.f32.mxu0 0.0
    %6080 = vmatmul.mubr.f32.gmra.mxu0 %v5767
    %v6081 = vpop.f32.mrf.mxu0
    %v6082 = vadd.f32 0.0, %v6081
    %v6083 = vpop.f32.mrf.mxu0
    %6084 = vmatprep.mubr.f32.mxu0 0.0
    %6085 = vmatmul.mubr.f32.gmra.mxu0 %v5770
    %v6086 = vpop.f32.mrf.mxu0
    %v6087 = vadd.f32 0.0, %v6086
    %v6088 = vpop.f32.mrf.mxu0
    %6089 = vmatprep.mubr.f32.mxu0 0.0
    %6090 = vmatmul.mubr.f32.gmra.mxu0 %v5773
    %v6091 = vpop.f32.mrf.mxu0
    %v6092 = vadd.f32 0.0, %v6091
    %v6093 = vpop.f32.mrf.mxu0
    %6094 = vmatprep.mubr.f32.mxu0 0.0
    %6095 = vmatmul.mubr.f32.gmra.mxu0 %v5776
    %v6096 = vpop.f32.mrf.mxu0
    %v6097 = vadd.f32 0.0, %v6096
    %v6098 = vpop.f32.mrf.mxu0
    %6099 = vmatprep.mubr.f32.mxu0 0.0
    %6100 = vmatmul.mubr.f32.gmra.mxu0 %v5779
    %v6101 = vpop.f32.mrf.mxu0
    %v6102 = vadd.f32 0.0, %v6101
    %v6103 = vpop.f32.mrf.mxu0
    %6104 = vmatprep.mubr.f32.mxu0 0.0
    %6105 = vmatmul.mubr.f32.gmra.mxu0 %v5782
    %v6106 = vpop.f32.mrf.mxu0
    %v6107 = vadd.f32 0.0, %v6106
    %v6108 = vpop.f32.mrf.mxu0
    %6109 = vmatprep.mubr.f32.mxu0 0.0
    %6110 = vmatmul.mubr.f32.gmra.mxu0 %v5785
    %v6111 = vpop.f32.mrf.mxu0
    %v6112 = vadd.f32 0.0, %v6111
    %v6113 = vpop.f32.mrf.mxu0
    %6114 = vmatprep.mubr.f32.mxu0 0.0
    %6115 = vmatmul.mubr.f32.gmra.mxu0 %v5788
    %v6116 = vpop.f32.mrf.mxu0
    %v6117 = vadd.f32 0.0, %v6116
    %v6118 = vpop.f32.mrf.mxu0
    %6119 = vmatprep.mubr.f32.mxu0 0.0
    %6120 = vmatmul.mubr.f32.gmra.mxu0 %v5791
    %v6121 = vpop.f32.mrf.mxu0
    %v6122 = vadd.f32 0.0, %v6121
    %v6123 = vpop.f32.mrf.mxu0
    %6124 = vmatprep.mubr.f32.mxu0 0.0
    %6125 = vmatmul.mubr.f32.gmra.mxu0 %v5794
    %v6126 = vpop.f32.mrf.mxu0
    %v6127 = vadd.f32 0.0, %v6126
    %v6128 = vpop.f32.mrf.mxu0
    %6129 = vmatprep.mubr.f32.mxu0 0.0
    %6130 = vmatmul.mubr.f32.gmra.mxu0 %v5797
    %v6131 = vpop.f32.mrf.mxu0
    %v6132 = vadd.f32 0.0, %v6131
    %v6133 = vpop.f32.mrf.mxu0
    %6134 = vmatprep.mubr.f32.mxu0 0.0
    %6135 = vmatmul.mubr.f32.gmra.mxu0 %v5800
    %v6136 = vpop.f32.mrf.mxu0
    %v6137 = vadd.f32 0.0, %v6136
    %v6138 = vpop.f32.mrf.mxu0
    %6139 = vmatprep.mubr.f32.mxu0 0.0
    %6140 = vmatmul.mubr.f32.gmra.mxu0 %v5803
    %v6141 = vpop.f32.mrf.mxu0
    %v6142 = vadd.f32 0.0, %v6141
    %v6143 = vpop.f32.mrf.mxu0
    %6144 = vmatprep.mubr.f32.mxu0 0.0
    %6145 = vmatmul.mubr.f32.gmra.mxu0 %v5806
    %v6146 = vpop.f32.mrf.mxu0
    %v6147 = vadd.f32 0.0, %v6146
    %v6148 = vpop.f32.mrf.mxu0
    %6149 = vmatprep.mubr.f32.mxu0 0.0
    %6150 = vmatmul.mubr.f32.gmra.mxu0 %v5809
    %v6151 = vpop.f32.mrf.mxu0
    %v6152 = vadd.f32 0.0, %v6151
    %v6153 = vpop.f32.mrf.mxu0
    %6154 = vmatprep.mubr.f32.mxu0 0.0
    %6155 = vmatmul.mubr.f32.gmra.mxu0 %v5812
    %v6156 = vpop.f32.mrf.mxu0
    %v6157 = vadd.f32 0.0, %v6156
    %v6158 = vpop.f32.mrf.mxu0
    %6159 = vmatprep.mubr.f32.mxu0 0.0
    %6160 = vmatmul.mubr.f32.gmra.mxu0 %v5815
    %v6161 = vpop.f32.mrf.mxu0
    %v6162 = vadd.f32 0.0, %v6161
    %v6163 = vpop.f32.mrf.mxu0
    %6164 = vmatprep.mubr.f32.mxu0 0.0
    %6165 = vmatmul.mubr.f32.gmra.mxu0 %v5818
    %v6166 = vpop.f32.mrf.mxu0
    %v6167 = vadd.f32 0.0, %v6166
    %v6168 = vpop.f32.mrf.mxu0
    %6169 = vmatprep.mubr.f32.mxu0 0.0
    %6170 = vmatmul.mubr.f32.gmra.mxu0 %v5821
    %v6171 = vpop.f32.mrf.mxu0
    %v6172 = vadd.f32 0.0, %v6171
    %v6173 = vpop.f32.mrf.mxu0
    %6174 = vmatprep.mubr.f32.mxu0 0.0
    %6175 = vmatmul.mubr.f32.gmra.mxu0 %v5824
    %v6176 = vpop.f32.mrf.mxu0
    %v6177 = vadd.f32 0.0, %v6176
    %v6178 = vpop.f32.mrf.mxu0
    %6179 = vmatprep.mubr.f32.mxu0 0.0
    %6180 = vmatmul.mubr.f32.gmra.mxu0 %v5827
    %v6181 = vpop.f32.mrf.mxu0
    %v6182 = vadd.f32 0.0, %v6181
    %v6183 = vpop.f32.mrf.mxu0
    %6184 = vmatprep.mubr.f32.mxu0 0.0
    %6185 = vmatmul.mubr.f32.gmra.mxu0 %v5830
    %v6186 = vpop.f32.mrf.mxu0
    %v6187 = vadd.f32 0.0, %v6186
    %v6188 = vpop.f32.mrf.mxu0
    %6189 = vmatprep.mubr.f32.mxu0 0.0
    %6190 = vmatmul.mubr.f32.gmra.mxu0 %v5833
    %v6191 = vpop.f32.mrf.mxu0
    %v6192 = vadd.f32 0.0, %v6191
    %v6193 = vpop.f32.mrf.mxu0
    %6194 = vmatprep.mubr.f32.mxu0 0.0
    %6195 = vmatmul.mubr.f32.gmra.mxu0 %v5836
    %v6196 = vpop.f32.mrf.mxu0
    %v6197 = vadd.f32 0.0, %v6196
    %v6198 = vpop.f32.mrf.mxu0
    %6199 = vmatprep.mubr.f32.mxu0 0.0
    %6200 = vmatmul.mubr.f32.gmra.mxu0 %v5839
    %v6201 = vpop.f32.mrf.mxu0
    %v6202 = vadd.f32 0.0, %v6201
    %v6203 = vpop.f32.mrf.mxu0
    %6204 = vmatprep.mubr.f32.mxu0 0.0
    %6205 = vmatmul.mubr.f32.gmra.mxu0 %v5842
    %v6206 = vpop.f32.mrf.mxu0
    %v6207 = vadd.f32 0.0, %v6206
    %v6208 = vpop.f32.mrf.mxu0
    %6209 = vmatprep.mubr.f32.mxu0 0.0
    %6210 = vmatmul.mubr.f32.gmra.mxu0 %v5845
    %v6211 = vpop.f32.mrf.mxu0
    %v6212 = vadd.f32 0.0, %v6211
    %v6213 = vpop.f32.mrf.mxu0
    %6214 = vmatprep.mubr.f32.mxu0 0.0
    %6215 = vmatmul.mubr.f32.gmra.mxu0 %v5848
    %v6216 = vpop.f32.mrf.mxu0
    %v6217 = vadd.f32 0.0, %v6216
    %v6218 = vpop.f32.mrf.mxu0
    %6219 = vmatprep.mubr.f32.mxu0 0.0
    %6220 = vmatmul.mubr.f32.gmra.mxu0 %v5851
    %v6221 = vpop.f32.mrf.mxu0
    %v6222 = vadd.f32 0.0, %v6221
    %v6223 = vpop.f32.mrf.mxu0
    %6224 = vmatprep.mubr.f32.mxu0 0.0
    %6225 = vmatmul.mubr.f32.gmra.mxu0 %v5854
    %v6226 = vpop.f32.mrf.mxu0
    %v6227 = vadd.f32 0.0, %v6226
    %v6228 = vpop.f32.mrf.mxu0
    %6229 = vmatprep.mubr.f32.mxu0 0.0
    %6230 = vmatmul.mubr.f32.gmra.mxu0 %v5857
    %v6231 = vpop.f32.mrf.mxu0
    %v6232 = vadd.f32 0.0, %v6231
    %v6233 = vpop.f32.mrf.mxu0
    %6234 = vmatprep.mubr.f32.mxu0 0.0
    %6235 = vmatmul.mubr.f32.gmra.mxu0 %v5860
    %v6236 = vpop.f32.mrf.mxu0
    %v6237 = vadd.f32 0.0, %v6236
    %v6238 = vpop.f32.mrf.mxu0
    %6239 = vmatprep.mubr.f32.mxu0 0.0
    %6240 = vmatmul.mubr.f32.gmra.mxu0 %v5863
    %v6241 = vpop.f32.mrf.mxu0
    %v6242 = vadd.f32 0.0, %v6241
    %v6243 = vpop.f32.mrf.mxu0
    %6244 = vmatprep.mubr.f32.mxu0 0.0
    %6245 = vmatmul.mubr.f32.gmra.mxu0 %v5866
    %v6246 = vpop.f32.mrf.mxu0
    %v6247 = vadd.f32 0.0, %v6246
    %v6248 = vpop.f32.mrf.mxu0
    %6249 = vmatprep.mubr.f32.mxu0 0.0
    %6250 = vmatmul.mubr.f32.gmra.mxu0 %v5869
    %v6251 = vpop.f32.mrf.mxu0
    %v6252 = vadd.f32 0.0, %v6251
    %v6253 = vpop.f32.mrf.mxu0
    %6254 = vmatprep.mubr.f32.mxu0 0.0
    %6255 = vmatmul.mubr.f32.gmra.mxu0 %v5872
    %v6256 = vpop.f32.mrf.mxu0
    %v6257 = vadd.f32 0.0, %v6256
    %v6258 = vpop.f32.mrf.mxu0
    %6259 = vmatprep.mubr.f32.mxu0 0.0
    %6260 = vmatmul.mubr.f32.gmra.mxu0 %v5875
    %v6261 = vpop.f32.mrf.mxu0
    %v6262 = vadd.f32 0.0, %v6261
    %v6263 = vpop.f32.mrf.mxu0
    %6264 = vdwg.mxu0
    %v6265 = vadd.f32 %v5555, %v5947
    %v6266 = vadd.f32 %v5556, %v5952
    %v6267 = vadd.f32 %v5557, %v5957
    %v6268 = vadd.f32 %v5558, %v5962
    %v6269 = vadd.f32 %v5559, %v5967
    %v6270 = vadd.f32 %v5560, %v5972
    %v6271 = vadd.f32 %v5561, %v5977
    %v6272 = vadd.f32 %v5562, %v5982
    %v6273 = vadd.f32 %v5563, %v5987
    %v6274 = vadd.f32 %v5564, %v5992
    %v6275 = vadd.f32 %v5565, %v5997
    %v6276 = vadd.f32 %v5566, %v6002
    %v6277 = vadd.f32 %v5567, %v6007
    %v6278 = vadd.f32 %v5568, %v6012
    %v6279 = vadd.f32 %v5569, %v6017
    %v6280 = vadd.f32 %v5570, %v6022
    %v6281 = vadd.f32 %v5571, %v6027
    %v6282 = vadd.f32 %v5572, %v6032
    %v6283 = vadd.f32 %v5573, %v6037
    %v6284 = vadd.f32 %v5574, %v6042
    %v6285 = vadd.f32 %v5575, %v6047
    %v6286 = vadd.f32 %v5576, %v6052
    %v6287 = vadd.f32 %v5577, %v6057
    %v6288 = vadd.f32 %v5578, %v6062
    %v6289 = vadd.f32 %v5579, %v6067
    %v6290 = vadd.f32 %v5580, %v6072
    %v6291 = vadd.f32 %v5581, %v6077
    %v6292 = vadd.f32 %v5582, %v6082
    %v6293 = vadd.f32 %v5583, %v6087
    %v6294 = vadd.f32 %v5584, %v6092
    %v6295 = vadd.f32 %v5585, %v6097
    %v6296 = vadd.f32 %v5586, %v6102
    %v6297 = vadd.f32 %v5587, %v6107
    %v6298 = vadd.f32 %v5588, %v6112
    %v6299 = vadd.f32 %v5589, %v6117
    %v6300 = vadd.f32 %v5590, %v6122
    %v6301 = vadd.f32 %v5591, %v6127
    %v6302 = vadd.f32 %v5592, %v6132
    %v6303 = vadd.f32 %v5593, %v6137
    %v6304 = vadd.f32 %v5594, %v6142
    %v6305 = vadd.f32 %v5595, %v6147
    %v6306 = vadd.f32 %v5596, %v6152
    %v6307 = vadd.f32 %v5597, %v6157
    %v6308 = vadd.f32 %v5598, %v6162
    %v6309 = vadd.f32 %v5599, %v6167
    %v6310 = vadd.f32 %v5600, %v6172
    %v6311 = vadd.f32 %v5601, %v6177
    %v6312 = vadd.f32 %v5602, %v6182
    %v6313 = vadd.f32 %v5603, %v6187
    %v6314 = vadd.f32 %v5604, %v6192
    %v6315 = vadd.f32 %v5605, %v6197
    %v6316 = vadd.f32 %v5606, %v6202
    %v6317 = vadd.f32 %v5607, %v6207
    %v6318 = vadd.f32 %v5608, %v6212
    %v6319 = vadd.f32 %v5609, %v6217
    %v6320 = vadd.f32 %v5610, %v6222
    %v6321 = vadd.f32 %v5611, %v6227
    %v6322 = vadd.f32 %v5612, %v6232
    %v6323 = vadd.f32 %v5613, %v6237
    %v6324 = vadd.f32 %v5614, %v6242
    %v6325 = vadd.f32 %v5615, %v6247
    %v6326 = vadd.f32 %v5616, %v6252
    %v6327 = vadd.f32 %v5617, %v6257
    %v6328 = vadd.f32 %v5618, %v6262
    %v6329 = vld [vmem:[%s3] sm:$0x1]
    %v6331 = vlaneseq
    %v6332 = vshrl.u32 %v6331, 7
    %v6333 = vsub.s32 0, %v6332
    %v6334 = vrot.slane %v6329, %v6333
    %v6336 = vadd.f32 %v6265, %v6334
    %v6337 = vadd.f32 %v6266, %v6334
    %v6338 = vadd.f32 %v6267, %v6334
    %v6339 = vadd.f32 %v6268, %v6334
    %v6340 = vadd.f32 %v6269, %v6334
    %v6341 = vadd.f32 %v6270, %v6334
    %v6342 = vadd.f32 %v6271, %v6334
    %v6343 = vadd.f32 %v6272, %v6334
    %v6344 = vadd.f32 %v6273, %v6334
    %v6345 = vadd.f32 %v6274, %v6334
    %v6346 = vadd.f32 %v6275, %v6334
    %v6347 = vadd.f32 %v6276, %v6334
    %v6348 = vadd.f32 %v6277, %v6334
    %v6349 = vadd.f32 %v6278, %v6334
    %v6350 = vadd.f32 %v6279, %v6334
    %v6351 = vadd.f32 %v6280, %v6334
    %v6352 = vadd.f32 %v6281, %v6334
    %v6353 = vadd.f32 %v6282, %v6334
    %v6354 = vadd.f32 %v6283, %v6334
    %v6355 = vadd.f32 %v6284, %v6334
    %v6356 = vadd.f32 %v6285, %v6334
    %v6357 = vadd.f32 %v6286, %v6334
    %v6358 = vadd.f32 %v6287, %v6334
    %v6359 = vadd.f32 %v6288, %v6334
    %v6360 = vadd.f32 %v6289, %v6334
    %v6361 = vadd.f32 %v6290, %v6334
    %v6362 = vadd.f32 %v6291, %v6334
    %v6363 = vadd.f32 %v6292, %v6334
    %v6364 = vadd.f32 %v6293, %v6334
    %v6365 = vadd.f32 %v6294, %v6334
    %v6366 = vadd.f32 %v6295, %v6334
    %v6367 = vadd.f32 %v6296, %v6334
    %v6368 = vadd.f32 %v6297, %v6334
    %v6369 = vadd.f32 %v6298, %v6334
    %v6370 = vadd.f32 %v6299, %v6334
    %v6371 = vadd.f32 %v6300, %v6334
    %v6372 = vadd.f32 %v6301, %v6334
    %v6373 = vadd.f32 %v6302, %v6334
    %v6374 = vadd.f32 %v6303, %v6334
    %v6375 = vadd.f32 %v6304, %v6334
    %v6376 = vadd.f32 %v6305, %v6334
    %v6377 = vadd.f32 %v6306, %v6334
    %v6378 = vadd.f32 %v6307, %v6334
    %v6379 = vadd.f32 %v6308, %v6334
    %v6380 = vadd.f32 %v6309, %v6334
    %v6381 = vadd.f32 %v6310, %v6334
    %v6382 = vadd.f32 %v6311, %v6334
    %v6383 = vadd.f32 %v6312, %v6334
    %v6384 = vadd.f32 %v6313, %v6334
    %v6385 = vadd.f32 %v6314, %v6334
    %v6386 = vadd.f32 %v6315, %v6334
    %v6387 = vadd.f32 %v6316, %v6334
    %v6388 = vadd.f32 %v6317, %v6334
    %v6389 = vadd.f32 %v6318, %v6334
    %v6390 = vadd.f32 %v6319, %v6334
    %v6391 = vadd.f32 %v6320, %v6334
    %v6392 = vadd.f32 %v6321, %v6334
    %v6393 = vadd.f32 %v6322, %v6334
    %v6394 = vadd.f32 %v6323, %v6334
    %v6395 = vadd.f32 %v6324, %v6334
    %v6396 = vadd.f32 %v6325, %v6334
    %v6397 = vadd.f32 %v6326, %v6334
    %v6398 = vadd.f32 %v6327, %v6334
    %v6399 = vadd.f32 %v6328, %v6334
    %v6400 = vmax.f32 %v6336, 0.0
    %v6401 = vmax.f32 %v6337, 0.0
    %v6402 = vmax.f32 %v6338, 0.0
    %v6403 = vmax.f32 %v6339, 0.0
    %v6404 = vmax.f32 %v6340, 0.0
    %v6405 = vmax.f32 %v6341, 0.0
    %v6406 = vmax.f32 %v6342, 0.0
    %v6407 = vmax.f32 %v6343, 0.0
    %v6408 = vmax.f32 %v6344, 0.0
    %v6409 = vmax.f32 %v6345, 0.0
    %v6410 = vmax.f32 %v6346, 0.0
    %v6411 = vmax.f32 %v6347, 0.0
    %v6412 = vmax.f32 %v6348, 0.0
    %v6413 = vmax.f32 %v6349, 0.0
    %v6414 = vmax.f32 %v6350, 0.0
    %v6415 = vmax.f32 %v6351, 0.0
    %v6416 = vmax.f32 %v6352, 0.0
    %v6417 = vmax.f32 %v6353, 0.0
    %v6418 = vmax.f32 %v6354, 0.0
    %v6419 = vmax.f32 %v6355, 0.0
    %v6420 = vmax.f32 %v6356, 0.0
    %v6421 = vmax.f32 %v6357, 0.0
    %v6422 = vmax.f32 %v6358, 0.0
    %v6423 = vmax.f32 %v6359, 0.0
    %v6424 = vmax.f32 %v6360, 0.0
    %v6425 = vmax.f32 %v6361, 0.0
    %v6426 = vmax.f32 %v6362, 0.0
    %v6427 = vmax.f32 %v6363, 0.0
    %v6428 = vmax.f32 %v6364, 0.0
    %v6429 = vmax.f32 %v6365, 0.0
    %v6430 = vmax.f32 %v6366, 0.0
    %v6431 = vmax.f32 %v6367, 0.0
    %v6432 = vmax.f32 %v6368, 0.0
    %v6433 = vmax.f32 %v6369, 0.0
    %v6434 = vmax.f32 %v6370, 0.0
    %v6435 = vmax.f32 %v6371, 0.0
    %v6436 = vmax.f32 %v6372, 0.0
    %v6437 = vmax.f32 %v6373, 0.0
    %v6438 = vmax.f32 %v6374, 0.0
    %v6439 = vmax.f32 %v6375, 0.0
    %v6440 = vmax.f32 %v6376, 0.0
    %v6441 = vmax.f32 %v6377, 0.0
    %v6442 = vmax.f32 %v6378, 0.0
    %v6443 = vmax.f32 %v6379, 0.0
    %v6444 = vmax.f32 %v6380, 0.0
    %v6445 = vmax.f32 %v6381, 0.0
    %v6446 = vmax.f32 %v6382, 0.0
    %v6447 = vmax.f32 %v6383, 0.0
    %v6448 = vmax.f32 %v6384, 0.0
    %v6449 = vmax.f32 %v6385, 0.0
    %v6450 = vmax.f32 %v6386, 0.0
    %v6451 = vmax.f32 %v6387, 0.0
    %v6452 = vmax.f32 %v6388, 0.0
    %v6453 = vmax.f32 %v6389, 0.0
    %v6454 = vmax.f32 %v6390, 0.0
    %v6455 = vmax.f32 %v6391, 0.0
    %v6456 = vmax.f32 %v6392, 0.0
    %v6457 = vmax.f32 %v6393, 0.0
    %v6458 = vmax.f32 %v6394, 0.0
    %v6459 = vmax.f32 %v6395, 0.0
    %v6460 = vmax.f32 %v6396, 0.0
    %v6461 = vmax.f32 %v6397, 0.0
    %v6462 = vmax.f32 %v6398, 0.0
    %v6463 = vmax.f32 %v6399, 0.0
    %vm6464 = vcmask 261120
    %v6465 = vsel %vm6464, %v6400, 0.0
    %v6466 = vsel %vm6464, %v6401, 0.0
    %v6467 = vadd.f32 %v6465, %v6466
    %v6468 = vsel %vm6464, %v6402, 0.0
    %v6469 = vadd.f32 %v6467, %v6468
    %v6470 = vsel %vm6464, %v6403, 0.0
    %v6471 = vadd.f32 %v6469, %v6470
    %v6472 = vsel %vm6464, %v6404, 0.0
    %v6473 = vadd.f32 %v6471, %v6472
    %v6474 = vsel %vm6464, %v6405, 0.0
    %v6475 = vadd.f32 %v6473, %v6474
    %v6476 = vsel %vm6464, %v6406, 0.0
    %v6477 = vadd.f32 %v6475, %v6476
    %v6478 = vsel %vm6464, %v6407, 0.0
    %v6479 = vadd.f32 %v6477, %v6478
    %v6480 = vsel %vm6464, %v6408, 0.0
    %v6481 = vadd.f32 %v6479, %v6480
    %v6482 = vsel %vm6464, %v6409, 0.0
    %v6483 = vadd.f32 %v6481, %v6482
    %v6484 = vsel %vm6464, %v6410, 0.0
    %v6485 = vadd.f32 %v6483, %v6484
    %v6486 = vsel %vm6464, %v6411, 0.0
    %v6487 = vadd.f32 %v6485, %v6486
    %v6488 = vsel %vm6464, %v6412, 0.0
    %v6489 = vadd.f32 %v6487, %v6488
    %v6490 = vsel %vm6464, %v6413, 0.0
    %v6491 = vadd.f32 %v6489, %v6490
    %v6492 = vsel %vm6464, %v6414, 0.0
    %v6493 = vadd.f32 %v6491, %v6492
    %v6494 = vsel %vm6464, %v6415, 0.0
    %v6495 = vadd.f32 %v6493, %v6494
    %v6496 = vsel %vm6464, %v6416, 0.0
    %v6497 = vadd.f32 %v6495, %v6496
    %v6498 = vsel %vm6464, %v6417, 0.0
    %v6499 = vadd.f32 %v6497, %v6498
    %v6500 = vsel %vm6464, %v6418, 0.0
    %v6501 = vadd.f32 %v6499, %v6500
    %v6502 = vsel %vm6464, %v6419, 0.0
    %v6503 = vadd.f32 %v6501, %v6502
    %v6504 = vsel %vm6464, %v6420, 0.0
    %v6505 = vadd.f32 %v6503, %v6504
    %v6506 = vsel %vm6464, %v6421, 0.0
    %v6507 = vadd.f32 %v6505, %v6506
    %v6508 = vsel %vm6464, %v6422, 0.0
    %v6509 = vadd.f32 %v6507, %v6508
    %v6510 = vsel %vm6464, %v6423, 0.0
    %v6511 = vadd.f32 %v6509, %v6510
    %v6512 = vsel %vm6464, %v6424, 0.0
    %v6513 = vadd.f32 %v6511, %v6512
    %v6514 = vsel %vm6464, %v6425, 0.0
    %v6515 = vadd.f32 %v6513, %v6514
    %v6516 = vsel %vm6464, %v6426, 0.0
    %v6517 = vadd.f32 %v6515, %v6516
    %v6518 = vsel %vm6464, %v6427, 0.0
    %v6519 = vadd.f32 %v6517, %v6518
    %v6520 = vsel %vm6464, %v6428, 0.0
    %v6521 = vadd.f32 %v6519, %v6520
    %v6522 = vsel %vm6464, %v6429, 0.0
    %v6523 = vadd.f32 %v6521, %v6522
    %v6524 = vsel %vm6464, %v6430, 0.0
    %v6525 = vadd.f32 %v6523, %v6524
    %v6526 = vsel %vm6464, %v6431, 0.0
    %v6527 = vadd.f32 %v6525, %v6526
    %v6528 = vrot.slane %v6527, 4
    %v6529 = vadd.f32 %v6527, %v6528
    %v6530 = vrot.slane %v6529, 2
    %v6531 = vadd.f32 %v6529, %v6530
    %v6532 = vrot.slane %v6531, 1
    %v6533 = vadd.f32 %v6531, %v6532
    %v6534 = vsel %vm6464, %v6432, 0.0
    %v6535 = vsel %vm6464, %v6433, 0.0
    %v6536 = vadd.f32 %v6534, %v6535
    %v6537 = vsel %vm6464, %v6434, 0.0
    %v6538 = vadd.f32 %v6536, %v6537
    %v6539 = vsel %vm6464, %v6435, 0.0
    %v6540 = vadd.f32 %v6538, %v6539
    %v6541 = vsel %vm6464, %v6436, 0.0
    %v6542 = vadd.f32 %v6540, %v6541
    %v6543 = vsel %vm6464, %v6437, 0.0
    %v6544 = vadd.f32 %v6542, %v6543
    %v6545 = vsel %vm6464, %v6438, 0.0
    %v6546 = vadd.f32 %v6544, %v6545
    %v6547 = vsel %vm6464, %v6439, 0.0
    %v6548 = vadd.f32 %v6546, %v6547
    %v6549 = vsel %vm6464, %v6440, 0.0
    %v6550 = vadd.f32 %v6548, %v6549
    %v6551 = vsel %vm6464, %v6441, 0.0
    %v6552 = vadd.f32 %v6550, %v6551
    %v6553 = vsel %vm6464, %v6442, 0.0
    %v6554 = vadd.f32 %v6552, %v6553
    %v6555 = vsel %vm6464, %v6443, 0.0
    %v6556 = vadd.f32 %v6554, %v6555
    %v6557 = vsel %vm6464, %v6444, 0.0
    %v6558 = vadd.f32 %v6556, %v6557
    %v6559 = vsel %vm6464, %v6445, 0.0
    %v6560 = vadd.f32 %v6558, %v6559
    %v6561 = vsel %vm6464, %v6446, 0.0
    %v6562 = vadd.f32 %v6560, %v6561
    %v6563 = vsel %vm6464, %v6447, 0.0
    %v6564 = vadd.f32 %v6562, %v6563
    %v6565 = vsel %vm6464, %v6448, 0.0
    %v6566 = vadd.f32 %v6564, %v6565
    %v6567 = vsel %vm6464, %v6449, 0.0
    %v6568 = vadd.f32 %v6566, %v6567
    %v6569 = vsel %vm6464, %v6450, 0.0
    %v6570 = vadd.f32 %v6568, %v6569
    %v6571 = vsel %vm6464, %v6451, 0.0
    %v6572 = vadd.f32 %v6570, %v6571
    %v6573 = vsel %vm6464, %v6452, 0.0
    %v6574 = vadd.f32 %v6572, %v6573
    %v6575 = vsel %vm6464, %v6453, 0.0
    %v6576 = vadd.f32 %v6574, %v6575
    %v6577 = vsel %vm6464, %v6454, 0.0
    %v6578 = vadd.f32 %v6576, %v6577
    %v6579 = vsel %vm6464, %v6455, 0.0
    %v6580 = vadd.f32 %v6578, %v6579
    %v6581 = vsel %vm6464, %v6456, 0.0
    %v6582 = vadd.f32 %v6580, %v6581
    %v6583 = vsel %vm6464, %v6457, 0.0
    %v6584 = vadd.f32 %v6582, %v6583
    %v6585 = vsel %vm6464, %v6458, 0.0
    %v6586 = vadd.f32 %v6584, %v6585
    %v6587 = vsel %vm6464, %v6459, 0.0
    %v6588 = vadd.f32 %v6586, %v6587
    %v6589 = vsel %vm6464, %v6460, 0.0
    %v6590 = vadd.f32 %v6588, %v6589
    %v6591 = vsel %vm6464, %v6461, 0.0
    %v6592 = vadd.f32 %v6590, %v6591
    %v6593 = vsel %vm6464, %v6462, 0.0
    %v6594 = vadd.f32 %v6592, %v6593
    %v6595 = vsel %vm6464, %v6463, 0.0
    %v6596 = vadd.f32 %v6594, %v6595
    %v6597 = vrot.slane %v6596, 4
    %v6598 = vadd.f32 %v6596, %v6597
    %v6599 = vrot.slane %v6598, 2
    %v6600 = vadd.f32 %v6598, %v6599
    %v6601 = vrot.slane %v6600, 1
    %v6602 = vadd.f32 %v6600, %v6601
    %v6603 = vmul.f32 %v6533, 0.00390625
    %v6604 = vmul.f32 %v6602, 0.00390625
    %v6605 = vpack.c.bf16 %v6603, %v6603
    %v6606 = vpack.c.bf16 %v6604, %v6604
    %v6607 = vld [vmem:[%s4] sm:$0xff]
    %v6608 = vld [vmem:[%s4 + $0x8] sm:$0xff]
    %v6609 = vld [vmem:[%s4 + $0x10] sm:$0xff]
    %v6610 = vld [vmem:[%s4 + $0x18] sm:$0xff]
    %v6611 = vld [vmem:[%s4 + $0x20] sm:$0xff]
    %v6612 = vld [vmem:[%s4 + $0x28] sm:$0xff]
    %v6613 = vld [vmem:[%s4 + $0x30] sm:$0xff]
    %v6614 = vld [vmem:[%s4 + $0x38] sm:$0xff]
    %v6615 = vld [vmem:[%s4 + $0x40] sm:$0xff]
    %v6616 = vld [vmem:[%s4 + $0x48] sm:$0xff]
    %v6617 = vld [vmem:[%s4 + $0x50] sm:$0xff]
    %v6618 = vld [vmem:[%s4 + $0x58] sm:$0xff]
    %v6619 = vld [vmem:[%s4 + $0x60] sm:$0xff]
    %v6620 = vld [vmem:[%s4 + $0x68] sm:$0xff]
    %v6621 = vld [vmem:[%s4 + $0x70] sm:$0xff]
    %v6622 = vld [vmem:[%s4 + $0x78] sm:$0xff]
    %v6623 = vld [vmem:[%s4 + $0x80] sm:$0xff]
    %v6624 = vld [vmem:[%s4 + $0x88] sm:$0xff]
    %v6625 = vld [vmem:[%s4 + $0x90] sm:$0xff]
    %v6626 = vld [vmem:[%s4 + $0x98] sm:$0xff]
    %v6627 = vld [vmem:[%s5] sm:$0xff]
    %v6628 = vld [vmem:[%s5 + $0x8] sm:$0x3]
    %v6631 = vlaneseq
    %v6632 = vshrl.u32 %v6631, 7
    %v6633 = vsub.s32 0, %v6632
    %v6634 = vrot.slane %v6627, %v6633
    %v6635 = vlaneseq
    %v6636 = vshrl.u32 %v6635, 7
    %v6637 = vsub.s32 1, %v6636
    %v6638 = vrot.slane %v6627, %v6637
    %v6639 = vlaneseq
    %v6640 = vshrl.u32 %v6639, 7
    %v6641 = vsub.s32 2, %v6640
    %v6642 = vrot.slane %v6627, %v6641
    %v6643 = vlaneseq
    %v6644 = vshrl.u32 %v6643, 7
    %v6645 = vsub.s32 3, %v6644
    %v6646 = vrot.slane %v6627, %v6645
    %v6647 = vlaneseq
    %v6648 = vshrl.u32 %v6647, 7
    %v6649 = vsub.s32 4, %v6648
    %v6650 = vrot.slane %v6627, %v6649
    %v6651 = vlaneseq
    %v6652 = vshrl.u32 %v6651, 7
    %v6653 = vsub.s32 5, %v6652
    %v6654 = vrot.slane %v6627, %v6653
    %v6655 = vlaneseq
    %v6656 = vshrl.u32 %v6655, 7
    %v6657 = vsub.s32 6, %v6656
    %v6658 = vrot.slane %v6627, %v6657
    %v6659 = vlaneseq
    %v6660 = vshrl.u32 %v6659, 7
    %v6661 = vsub.s32 7, %v6660
    %v6662 = vrot.slane %v6627, %v6661
    %v6663 = vlaneseq
    %v6664 = vshrl.u32 %v6663, 7
    %v6665 = vsub.s32 0, %v6664
    %v6666 = vrot.slane %v6628, %v6665
    %v6667 = vlaneseq
    %v6668 = vshrl.u32 %v6667, 7
    %v6669 = vsub.s32 1, %v6668
    %v6670 = vrot.slane %v6628, %v6669
    %v6683 = vunpack.c.l.b16 %v6605
    %v6684 = vunpack.c.l.b16 %v6606
    %vm6685 = vcmask 1041409
    %v6686 = vsel %vm6685, %v6684, %v6683
    %v6687 = vpack.c.b16 %v6686, %v6686
    %v6708 = vunpack.c.l.b16 %v6607
    %v6709 = vunpack.c.h.b16 %v6607
    %v6710 = vunpack.c.l.b16 %v6608
    %v6711 = vunpack.c.h.b16 %v6608
    %v6712 = vunpack.c.l.b16 %v6609
    %v6713 = vunpack.c.h.b16 %v6609
    %v6714 = vunpack.c.l.b16 %v6610
    %v6715 = vunpack.c.h.b16 %v6610
    %v6716 = vunpack.c.l.b16 %v6611
    %v6717 = vunpack.c.h.b16 %v6611
    %v6718 = vunpack.c.l.b16 %v6612
    %v6719 = vunpack.c.h.b16 %v6612
    %v6720 = vunpack.c.l.b16 %v6613
    %v6721 = vunpack.c.h.b16 %v6613
    %v6722 = vunpack.c.l.b16 %v6614
    %v6723 = vunpack.c.h.b16 %v6614
    %v6724 = vunpack.c.l.b16 %v6615
    %v6725 = vunpack.c.h.b16 %v6615
    %v6726 = vunpack.c.l.b16 %v6616
    %v6727 = vunpack.c.h.b16 %v6616
    %v6728 = vunpack.c.l.b16 %v6617
    %v6729 = vunpack.c.h.b16 %v6617
    %v6730 = vunpack.c.l.b16 %v6618
    %v6731 = vunpack.c.h.b16 %v6618
    %v6732 = vunpack.c.l.b16 %v6619
    %v6733 = vunpack.c.h.b16 %v6619
    %v6734 = vunpack.c.l.b16 %v6620
    %v6735 = vunpack.c.h.b16 %v6620
    %v6736 = vunpack.c.l.b16 %v6621
    %v6737 = vunpack.c.h.b16 %v6621
    %v6738 = vunpack.c.l.b16 %v6622
    %v6739 = vunpack.c.h.b16 %v6622
    %v6740 = vunpack.c.l.b16 %v6623
    %v6741 = vunpack.c.h.b16 %v6623
    %v6742 = vunpack.c.l.b16 %v6624
    %v6743 = vunpack.c.h.b16 %v6624
    %v6744 = vunpack.c.l.b16 %v6625
    %v6745 = vunpack.c.h.b16 %v6625
    %v6746 = vunpack.c.l.b16 %v6626
    %v6747 = vunpack.c.h.b16 %v6626
    %v6748 = vpack.c.b16 %v6718, %v6708
    %v6749 = vpack.c.b16 %v6719, %v6709
    %v6750 = vpack.c.b16 %v6720, %v6710
    %v6751 = vpack.c.b16 %v6721, %v6711
    %v6752 = vpack.c.b16 %v6722, %v6712
    %v6753 = vpack.c.b16 %v6723, %v6713
    %v6754 = vpack.c.b16 %v6724, %v6714
    %v6755 = vpack.c.b16 %v6725, %v6715
    %v6756 = vpack.c.b16 %v6726, %v6716
    %v6757 = vpack.c.b16 %v6727, %v6717
    %v6758 = vpack.c.b16 %v6738, %v6728
    %v6759 = vpack.c.b16 %v6739, %v6729
    %v6760 = vpack.c.b16 %v6740, %v6730
    %v6761 = vpack.c.b16 %v6741, %v6731
    %v6762 = vpack.c.b16 %v6742, %v6732
    %v6763 = vpack.c.b16 %v6743, %v6733
    %v6764 = vpack.c.b16 %v6744, %v6734
    %v6765 = vpack.c.b16 %v6745, %v6735
    %v6766 = vpack.c.b16 %v6746, %v6736
    %v6767 = vpack.c.b16 %v6747, %v6737
    %v6789 = vsel %vm6464, %v6687, 0
    %6791 = vmatprep.subr.bf16.mxu0 0
    %6792 = vmatpush1.bf16.msra.mxu0 0
    %6793 = vmatprep.subr.bf16.mxu0 0
    %6794 = vmatpush1.bf16.msra.mxu0 0
    %6795 = vmatprep.subr.bf16.mxu0 0
    %6796 = vmatpush1.bf16.msra.mxu0 0
    %6797 = vmatprep.subr.bf16.mxu0 0
    %6798 = vmatpush1.bf16.msra.mxu0 0
    %6799 = vmatprep.subr.bf16.mxu0 0
    %6800 = vmatpush1.bf16.msra.mxu0 0
    %6801 = vmatprep.subr.bf16.mxu0 0
    %6802 = vmatpush1.bf16.msra.mxu0 0
    %6803 = vmatprep.subr.bf16.mxu0 %v6759
    %6804 = vmatpush1.bf16.msra.mxu0 %v6758
    %6805 = vmatprep.subr.bf16.mxu0 %v6749
    %6806 = vmatpush1.bf16.msra.mxu0 %v6748
    %6807 = vmatprep.subr.bf16.mxu0 0
    %6808 = vmatpush2.bf16.msra.mxu0 0
    %6809 = vmatprep.subr.bf16.mxu0 0
    %6810 = vmatpush2.bf16.msra.mxu0 0
    %6811 = vmatprep.subr.bf16.mxu0 0
    %6812 = vmatpush2.bf16.msra.mxu0 0
    %6813 = vmatprep.subr.bf16.mxu0 0
    %6814 = vmatpush2.bf16.msra.mxu0 0
    %6815 = vmatprep.subr.bf16.mxu0 0
    %6816 = vmatpush2.bf16.msra.mxu0 0
    %6817 = vmatprep.subr.bf16.mxu0 0
    %6818 = vmatpush2.bf16.msra.mxu0 0
    %6819 = vmatprep.subr.bf16.mxu0 0
    %6820 = vmatpush2.bf16.msra.mxu0 0
    %6821 = vmatprep.subr.bf16.mxu0 0
    %6822 = vmatpush2.bf16.msra.mxu0 0
    %6823 = vmatprep.mubr.bf16.mxu0 0
    %6824 = vmatmul.mubr.bf16.gmra.mxu0 %v6789
    %v6825 = vpop.f32.mrf.mxu0
    %v6826 = vadd.f32 %v6634, %v6825
    %v6827 = vpop.f32.mrf.mxu0
    %v6828 = vadd.f32 %v6638, %v6827
    %v6829 = vpop.f32.mrf.mxu0
    %v6830 = vpop.f32.mrf.mxu0
    %6831 = vdwg.mxu0
    %6832 = vmatprep.subr.bf16.mxu0 0
    %6833 = vmatpush1.bf16.msra.mxu0 0
    %6834 = vmatprep.subr.bf16.mxu0 0
    %6835 = vmatpush1.bf16.msra.mxu0 0
    %6836 = vmatprep.subr.bf16.mxu0 0
    %6837 = vmatpush1.bf16.msra.mxu0 0
    %6838 = vmatprep.subr.bf16.mxu0 0
    %6839 = vmatpush1.bf16.msra.mxu0 0
    %6840 = vmatprep.subr.bf16.mxu0 0
    %6841 = vmatpush1.bf16.msra.mxu0 0
    %6842 = vmatprep.subr.bf16.mxu0 0
    %6843 = vmatpush1.bf16.msra.mxu0 0
    %6844 = vmatprep.subr.bf16.mxu0 %v6761
    %6845 = vmatpush1.bf16.msra.mxu0 %v6760
    %6846 = vmatprep.subr.bf16.mxu0 %v6751
    %6847 = vmatpush1.bf16.msra.mxu0 %v6750
    %6848 = vmatprep.subr.bf16.mxu0 0
    %6849 = vmatpush2.bf16.msra.mxu0 0
    %6850 = vmatprep.subr.bf16.mxu0 0
    %6851 = vmatpush2.bf16.msra.mxu0 0
    %6852 = vmatprep.subr.bf16.mxu0 0
    %6853 = vmatpush2.bf16.msra.mxu0 0
    %6854 = vmatprep.subr.bf16.mxu0 0
    %6855 = vmatpush2.bf16.msra.mxu0 0
    %6856 = vmatprep.subr.bf16.mxu0 0
    %6857 = vmatpush2.bf16.msra.mxu0 0
    %6858 = vmatprep.subr.bf16.mxu0 0
    %6859 = vmatpush2.bf16.msra.mxu0 0
    %6860 = vmatprep.subr.bf16.mxu0 0
    %6861 = vmatpush2.bf16.msra.mxu0 0
    %6862 = vmatprep.subr.bf16.mxu0 0
    %6863 = vmatpush2.bf16.msra.mxu0 0
    %6864 = vmatprep.mubr.bf16.mxu0 0
    %6865 = vmatmul.mubr.bf16.gmra.mxu0 %v6789
    %v6866 = vpop.f32.mrf.mxu0
    %v6867 = vadd.f32 %v6642, %v6866
    %v6868 = vpop.f32.mrf.mxu0
    %v6869 = vadd.f32 %v6646, %v6868
    %v6870 = vpop.f32.mrf.mxu0
    %v6871 = vpop.f32.mrf.mxu0
    %6872 = vdwg.mxu0
    %6873 = vmatprep.subr.bf16.mxu0 0
    %6874 = vmatpush1.bf16.msra.mxu0 0
    %6875 = vmatprep.subr.bf16.mxu0 0
    %6876 = vmatpush1.bf16.msra.mxu0 0
    %6877 = vmatprep.subr.bf16.mxu0 0
    %6878 = vmatpush1.bf16.msra.mxu0 0
    %6879 = vmatprep.subr.bf16.mxu0 0
    %6880 = vmatpush1.bf16.msra.mxu0 0
    %6881 = vmatprep.subr.bf16.mxu0 0
    %6882 = vmatpush1.bf16.msra.mxu0 0
    %6883 = vmatprep.subr.bf16.mxu0 0
    %6884 = vmatpush1.bf16.msra.mxu0 0
    %6885 = vmatprep.subr.bf16.mxu0 %v6763
    %6886 = vmatpush1.bf16.msra.mxu0 %v6762
    %6887 = vmatprep.subr.bf16.mxu0 %v6753
    %6888 = vmatpush1.bf16.msra.mxu0 %v6752
    %6889 = vmatprep.subr.bf16.mxu0 0
    %6890 = vmatpush2.bf16.msra.mxu0 0
    %6891 = vmatprep.subr.bf16.mxu0 0
    %6892 = vmatpush2.bf16.msra.mxu0 0
    %6893 = vmatprep.subr.bf16.mxu0 0
    %6894 = vmatpush2.bf16.msra.mxu0 0
    %6895 = vmatprep.subr.bf16.mxu0 0
    %6896 = vmatpush2.bf16.msra.mxu0 0
    %6897 = vmatprep.subr.bf16.mxu0 0
    %6898 = vmatpush2.bf16.msra.mxu0 0
    %6899 = vmatprep.subr.bf16.mxu0 0
    %6900 = vmatpush2.bf16.msra.mxu0 0
    %6901 = vmatprep.subr.bf16.mxu0 0
    %6902 = vmatpush2.bf16.msra.mxu0 0
    %6903 = vmatprep.subr.bf16.mxu0 0
    %6904 = vmatpush2.bf16.msra.mxu0 0
    %6905 = vmatprep.mubr.bf16.mxu0 0
    %6906 = vmatmul.mubr.bf16.gmra.mxu0 %v6789
    %v6907 = vpop.f32.mrf.mxu0
    %v6908 = vadd.f32 %v6650, %v6907
    %v6909 = vpop.f32.mrf.mxu0
    %v6910 = vadd.f32 %v6654, %v6909
    %v6911 = vpop.f32.mrf.mxu0
    %v6912 = vpop.f32.mrf.mxu0
    %6913 = vdwg.mxu0
    %6914 = vmatprep.subr.bf16.mxu0 0
    %6915 = vmatpush1.bf16.msra.mxu0 0
    %6916 = vmatprep.subr.bf16.mxu0 0
    %6917 = vmatpush1.bf16.msra.mxu0 0
    %6918 = vmatprep.subr.bf16.mxu0 0
    %6919 = vmatpush1.bf16.msra.mxu0 0
    %6920 = vmatprep.subr.bf16.mxu0 0
    %6921 = vmatpush1.bf16.msra.mxu0 0
    %6922 = vmatprep.subr.bf16.mxu0 0
    %6923 = vmatpush1.bf16.msra.mxu0 0
    %6924 = vmatprep.subr.bf16.mxu0 0
    %6925 = vmatpush1.bf16.msra.mxu0 0
    %6926 = vmatprep.subr.bf16.mxu0 %v6765
    %6927 = vmatpush1.bf16.msra.mxu0 %v6764
    %6928 = vmatprep.subr.bf16.mxu0 %v6755
    %6929 = vmatpush1.bf16.msra.mxu0 %v6754
    %6930 = vmatprep.subr.bf16.mxu0 0
    %6931 = vmatpush2.bf16.msra.mxu0 0
    %6932 = vmatprep.subr.bf16.mxu0 0
    %6933 = vmatpush2.bf16.msra.mxu0 0
    %6934 = vmatprep.subr.bf16.mxu0 0
    %6935 = vmatpush2.bf16.msra.mxu0 0
    %6936 = vmatprep.subr.bf16.mxu0 0
    %6937 = vmatpush2.bf16.msra.mxu0 0
    %6938 = vmatprep.subr.bf16.mxu0 0
    %6939 = vmatpush2.bf16.msra.mxu0 0
    %6940 = vmatprep.subr.bf16.mxu0 0
    %6941 = vmatpush2.bf16.msra.mxu0 0
    %6942 = vmatprep.subr.bf16.mxu0 0
    %6943 = vmatpush2.bf16.msra.mxu0 0
    %6944 = vmatprep.subr.bf16.mxu0 0
    %6945 = vmatpush2.bf16.msra.mxu0 0
    %6946 = vmatprep.mubr.bf16.mxu0 0
    %6947 = vmatmul.mubr.bf16.gmra.mxu0 %v6789
    %v6948 = vpop.f32.mrf.mxu0
    %v6949 = vadd.f32 %v6658, %v6948
    %v6950 = vpop.f32.mrf.mxu0
    %v6951 = vadd.f32 %v6662, %v6950
    %v6952 = vpop.f32.mrf.mxu0
    %v6953 = vpop.f32.mrf.mxu0
    %6954 = vdwg.mxu0
    %6955 = vmatprep.subr.bf16.mxu0 0
    %6956 = vmatpush1.bf16.msra.mxu0 0
    %6957 = vmatprep.subr.bf16.mxu0 0
    %6958 = vmatpush1.bf16.msra.mxu0 0
    %6959 = vmatprep.subr.bf16.mxu0 0
    %6960 = vmatpush1.bf16.msra.mxu0 0
    %6961 = vmatprep.subr.bf16.mxu0 0
    %6962 = vmatpush1.bf16.msra.mxu0 0
    %6963 = vmatprep.subr.bf16.mxu0 0
    %6964 = vmatpush1.bf16.msra.mxu0 0
    %6965 = vmatprep.subr.bf16.mxu0 0
    %6966 = vmatpush1.bf16.msra.mxu0 0
    %6967 = vmatprep.subr.bf16.mxu0 %v6767
    %6968 = vmatpush1.bf16.msra.mxu0 %v6766
    %6969 = vmatprep.subr.bf16.mxu0 %v6757
    %6970 = vmatpush1.bf16.msra.mxu0 %v6756
    %6971 = vmatprep.subr.bf16.mxu0 0
    %6972 = vmatpush2.bf16.msra.mxu0 0
    %6973 = vmatprep.subr.bf16.mxu0 0
    %6974 = vmatpush2.bf16.msra.mxu0 0
    %6975 = vmatprep.subr.bf16.mxu0 0
    %6976 = vmatpush2.bf16.msra.mxu0 0
    %6977 = vmatprep.subr.bf16.mxu0 0
    %6978 = vmatpush2.bf16.msra.mxu0 0
    %6979 = vmatprep.subr.bf16.mxu0 0
    %6980 = vmatpush2.bf16.msra.mxu0 0
    %6981 = vmatprep.subr.bf16.mxu0 0
    %6982 = vmatpush2.bf16.msra.mxu0 0
    %6983 = vmatprep.subr.bf16.mxu0 0
    %6984 = vmatpush2.bf16.msra.mxu0 0
    %6985 = vmatprep.subr.bf16.mxu0 0
    %6986 = vmatpush2.bf16.msra.mxu0 0
    %6987 = vmatprep.mubr.bf16.mxu0 0
    %6988 = vmatmul.mubr.bf16.gmra.mxu0 %v6789
    %v6989 = vpop.f32.mrf.mxu0
    %v6990 = vadd.f32 %v6666, %v6989
    %v6991 = vpop.f32.mrf.mxu0
    %v6992 = vadd.f32 %v6670, %v6991
    %v6993 = vpop.f32.mrf.mxu0
    %v6994 = vpop.f32.mrf.mxu0
    %6995 = vdwg.mxu0
    %v6996 = vld [vmem:[%s1] sm:$0x3]
    %v6997 = vld [vmem:[%s6] sm:$0x1f]
    %v6998 = vld [vmem:[%s7] sm:$0x1]
    %v7000 = vlaneseq
    %v7001 = vshrl.u32 %v7000, 7
    %v7002 = vsub.s32 0, %v7001
    %v7003 = vrot.slane %v6998, %v7002
    %vm7005 = vcmask 39936
    %v7007 = vsel %vm7005, %v6996, 0
    %vm7009 = vcmask 1044480
    %v7011 = vsel %vm7009, %v6997, 0
    %7013 = vmatprep.subr.mxu0 0.0
    %7014 = vmatpush1.msra.mxu0 0.0
    %7015 = vmatprep.subr.mxu0 0.0
    %7016 = vmatpush1.msra.mxu0 0.0
    %7017 = vmatprep.subr.mxu0 0.0
    %7018 = vmatpush1.msra.mxu0 0.0
    %7019 = vmatprep.subr.mxu0 0.0
    %7020 = vmatpush1.msra.mxu0 0.0
    %7021 = vmatprep.subr.mxu0 0.0
    %7022 = vmatpush1.msra.mxu0 0.0
    %7023 = vmatprep.subr.mxu0 0.0
    %7024 = vmatpush1.msra.mxu0 0.0
    %7025 = vmatprep.subr.mxu0 0.0
    %7026 = vmatpush1.msra.mxu0 0.0
    %7027 = vmatprep.subr.mxu0 0.0
    %7028 = vmatpush1.msra.mxu0 0.0
    %7029 = vmatprep.subr.mxu0 0.0
    %7030 = vmatpush1.msra.mxu0 0.0
    %7031 = vmatprep.subr.mxu0 0.0
    %7032 = vmatpush1.msra.mxu0 0.0
    %7033 = vmatprep.subr.mxu0 0.0
    %7034 = vmatpush1.msra.mxu0 0.0
    %7035 = vmatprep.subr.mxu0 0.0
    %7036 = vmatpush1.msra.mxu0 0.0
    %7037 = vmatprep.subr.mxu0 0.0
    %7038 = vmatpush1.msra.mxu0 0.0
    %7039 = vmatprep.subr.mxu0 0.0
    %7040 = vmatpush1.msra.mxu0 0.0
    %7041 = vmatprep.subr.mxu0 0.0
    %7042 = vmatpush1.msra.mxu0 0.0
    %7043 = vmatprep.subr.mxu0 0.0
    %7044 = vmatpush1.msra.mxu0 %v7011
    %7045 = vmatprep.subr.mxu0 0.0
    %7046 = vmatpush2.msra.mxu0 0.0
    %7047 = vmatprep.subr.mxu0 0.0
    %7048 = vmatpush2.msra.mxu0 0.0
    %7049 = vmatprep.subr.mxu0 0.0
    %7050 = vmatpush2.msra.mxu0 0.0
    %7051 = vmatprep.subr.mxu0 0.0
    %7052 = vmatpush2.msra.mxu0 0.0
    %7053 = vmatprep.subr.mxu0 0.0
    %7054 = vmatpush2.msra.mxu0 0.0
    %7055 = vmatprep.subr.mxu0 0.0
    %7056 = vmatpush2.msra.mxu0 0.0
    %7057 = vmatprep.subr.mxu0 0.0
    %7058 = vmatpush2.msra.mxu0 0.0
    %7059 = vmatprep.subr.mxu0 0.0
    %7060 = vmatpush2.msra.mxu0 0.0
    %7061 = vmatprep.subr.mxu0 0.0
    %7062 = vmatpush2.msra.mxu0 0.0
    %7063 = vmatprep.subr.mxu0 0.0
    %7064 = vmatpush2.msra.mxu0 0.0
    %7065 = vmatprep.subr.mxu0 0.0
    %7066 = vmatpush2.msra.mxu0 0.0
    %7067 = vmatprep.subr.mxu0 0.0
    %7068 = vmatpush2.msra.mxu0 0.0
    %7069 = vmatprep.subr.mxu0 0.0
    %7070 = vmatpush2.msra.mxu0 0.0
    %7071 = vmatprep.subr.mxu0 0.0
    %7072 = vmatpush2.msra.mxu0 0.0
    %7073 = vmatprep.subr.mxu0 0.0
    %7074 = vmatpush2.msra.mxu0 0.0
    %7075 = vmatprep.subr.mxu0 0.0
    %7076 = vmatpush2.msra.mxu0 0.0
    %7077 = vmatprep.mubr.f32.mxu0 0.0
    %7078 = vmatmul.mubr.f32.gmra.mxu0 %v7007
    %v7079 = vpop.f32.mrf.mxu0
    %v7080 = vadd.f32 %v7003, %v7079
    %v7081 = vpop.f32.mrf.mxu0
    %7082 = vdwg.mxu0
    %v7083 = vmax.f32 %v7080, 0.0
    %v7084 = vld [vmem:[%s8] sm:$0xff]
    %v7085 = vld [vmem:[%s8 + $0x8] sm:$0xff]
    %v7086 = vld [vmem:[%s8 + $0x10] sm:$0xff]
    %v7087 = vld [vmem:[%s8 + $0x18] sm:$0xff]
    %v7088 = vld [vmem:[%s9] sm:$0x1]
    %v7090 = vlaneseq
    %v7091 = vshrl.u32 %v7090, 7
    %v7092 = vsub.s32 0, %v7091
    %v7093 = vrot.slane %v7088, %v7092
    %v7096 = vsel %vm6464, %v7083, 0
    %7098 = vmatprep.subr.mxu0 0.0
    %7099 = vmatpush1.msra.mxu0 0.0
    %7100 = vmatprep.subr.mxu0 0.0
    %7101 = vmatpush1.msra.mxu0 0.0
    %7102 = vmatprep.subr.mxu0 0.0
    %7103 = vmatpush1.msra.mxu0 0.0
    %7104 = vmatprep.subr.mxu0 0.0
    %7105 = vmatpush1.msra.mxu0 0.0
    %7106 = vmatprep.subr.mxu0 0.0
    %7107 = vmatpush1.msra.mxu0 0.0
    %7108 = vmatprep.subr.mxu0 0.0
    %7109 = vmatpush1.msra.mxu0 0.0
    %7110 = vmatprep.subr.mxu0 0.0
    %7111 = vmatpush1.msra.mxu0 0.0
    %7112 = vmatprep.subr.mxu0 0.0
    %7113 = vmatpush1.msra.mxu0 0.0
    %7114 = vmatprep.subr.mxu0 0.0
    %7115 = vmatpush1.msra.mxu0 0.0
    %7116 = vmatprep.subr.mxu0 0.0
    %7117 = vmatpush1.msra.mxu0 0.0
    %7118 = vmatprep.subr.mxu0 0.0
    %7119 = vmatpush1.msra.mxu0 0.0
    %7120 = vmatprep.subr.mxu0 0.0
    %7121 = vmatpush1.msra.mxu0 0.0
    %7122 = vmatprep.subr.mxu0 0.0
    %7123 = vmatpush1.msra.mxu0 %v7087
    %7124 = vmatprep.subr.mxu0 0.0
    %7125 = vmatpush1.msra.mxu0 %v7086
    %7126 = vmatprep.subr.mxu0 0.0
    %7127 = vmatpush1.msra.mxu0 %v7085
    %7128 = vmatprep.subr.mxu0 0.0
    %7129 = vmatpush1.msra.mxu0 %v7084
    %7130 = vmatprep.subr.mxu0 0.0
    %7131 = vmatpush2.msra.mxu0 0.0
    %7132 = vmatprep.subr.mxu0 0.0
    %7133 = vmatpush2.msra.mxu0 0.0
    %7134 = vmatprep.subr.mxu0 0.0
    %7135 = vmatpush2.msra.mxu0 0.0
    %7136 = vmatprep.subr.mxu0 0.0
    %7137 = vmatpush2.msra.mxu0 0.0
    %7138 = vmatprep.subr.mxu0 0.0
    %7139 = vmatpush2.msra.mxu0 0.0
    %7140 = vmatprep.subr.mxu0 0.0
    %7141 = vmatpush2.msra.mxu0 0.0
    %7142 = vmatprep.subr.mxu0 0.0
    %7143 = vmatpush2.msra.mxu0 0.0
    %7144 = vmatprep.subr.mxu0 0.0
    %7145 = vmatpush2.msra.mxu0 0.0
    %7146 = vmatprep.subr.mxu0 0.0
    %7147 = vmatpush2.msra.mxu0 0.0
    %7148 = vmatprep.subr.mxu0 0.0
    %7149 = vmatpush2.msra.mxu0 0.0
    %7150 = vmatprep.subr.mxu0 0.0
    %7151 = vmatpush2.msra.mxu0 0.0
    %7152 = vmatprep.subr.mxu0 0.0
    %7153 = vmatpush2.msra.mxu0 0.0
    %7154 = vmatprep.subr.mxu0 0.0
    %7155 = vmatpush2.msra.mxu0 0.0
    %7156 = vmatprep.subr.mxu0 0.0
    %7157 = vmatpush2.msra.mxu0 0.0
    %7158 = vmatprep.subr.mxu0 0.0
    %7159 = vmatpush2.msra.mxu0 0.0
    %7160 = vmatprep.subr.mxu0 0.0
    %7161 = vmatpush2.msra.mxu0 0.0
    %7162 = vmatprep.mubr.f32.mxu0 0.0
    %7163 = vmatmul.mubr.f32.gmra.mxu0 %v7096
    %v7164 = vpop.f32.mrf.mxu0
    %v7165 = vadd.f32 %v7093, %v7164
    %v7166 = vpop.f32.mrf.mxu0
    %7167 = vdwg.mxu0
    %v7168 = vmax.f32 %v7165, 0.0
    %v7169 = vld [vmem:[%s10] sm:$0xff]
    %v7170 = vld [vmem:[%s10 + $0x8] sm:$0xff]
    %v7171 = vld [vmem:[%s10 + $0x10] sm:$0xff]
    %v7172 = vld [vmem:[%s10 + $0x18] sm:$0xff]
    %v7173 = vld [vmem:[%s10 + $0x20] sm:$0xff]
    %v7174 = vld [vmem:[%s10 + $0x28] sm:$0xff]
    %v7175 = vld [vmem:[%s10 + $0x30] sm:$0xff]
    %v7176 = vld [vmem:[%s10 + $0x38] sm:$0xff]
    %v7177 = vld [vmem:[%s11] sm:$0x1]
    %v7179 = vlaneseq
    %v7180 = vshrl.u32 %v7179, 7
    %v7181 = vsub.s32 0, %v7180
    %v7182 = vrot.slane %v7177, %v7181
    %vm7184 = vcmask 523264
    %v7186 = vsel %vm7184, %v7168, 0
    %7188 = vmatprep.subr.mxu0 0.0
    %7189 = vmatpush1.msra.mxu0 0.0
    %7190 = vmatprep.subr.mxu0 0.0
    %7191 = vmatpush1.msra.mxu0 0.0
    %7192 = vmatprep.subr.mxu0 0.0
    %7193 = vmatpush1.msra.mxu0 0.0
    %7194 = vmatprep.subr.mxu0 0.0
    %7195 = vmatpush1.msra.mxu0 0.0
    %7196 = vmatprep.subr.mxu0 0.0
    %7197 = vmatpush1.msra.mxu0 0.0
    %7198 = vmatprep.subr.mxu0 0.0
    %7199 = vmatpush1.msra.mxu0 0.0
    %7200 = vmatprep.subr.mxu0 0.0
    %7201 = vmatpush1.msra.mxu0 0.0
    %7202 = vmatprep.subr.mxu0 0.0
    %7203 = vmatpush1.msra.mxu0 0.0
    %7204 = vmatprep.subr.mxu0 0.0
    %7205 = vmatpush1.msra.mxu0 %v7176
    %7206 = vmatprep.subr.mxu0 0.0
    %7207 = vmatpush1.msra.mxu0 %v7175
    %7208 = vmatprep.subr.mxu0 0.0
    %7209 = vmatpush1.msra.mxu0 %v7174
    %7210 = vmatprep.subr.mxu0 0.0
    %7211 = vmatpush1.msra.mxu0 %v7173
    %7212 = vmatprep.subr.mxu0 0.0
    %7213 = vmatpush1.msra.mxu0 %v7172
    %7214 = vmatprep.subr.mxu0 0.0
    %7215 = vmatpush1.msra.mxu0 %v7171
    %7216 = vmatprep.subr.mxu0 0.0
    %7217 = vmatpush1.msra.mxu0 %v7170
    %7218 = vmatprep.subr.mxu0 0.0
    %7219 = vmatpush1.msra.mxu0 %v7169
    %7220 = vmatprep.subr.mxu0 0.0
    %7221 = vmatpush2.msra.mxu0 0.0
    %7222 = vmatprep.subr.mxu0 0.0
    %7223 = vmatpush2.msra.mxu0 0.0
    %7224 = vmatprep.subr.mxu0 0.0
    %7225 = vmatpush2.msra.mxu0 0.0
    %7226 = vmatprep.subr.mxu0 0.0
    %7227 = vmatpush2.msra.mxu0 0.0
    %7228 = vmatprep.subr.mxu0 0.0
    %7229 = vmatpush2.msra.mxu0 0.0
    %7230 = vmatprep.subr.mxu0 0.0
    %7231 = vmatpush2.msra.mxu0 0.0
    %7232 = vmatprep.subr.mxu0 0.0
    %7233 = vmatpush2.msra.mxu0 0.0
    %7234 = vmatprep.subr.mxu0 0.0
    %7235 = vmatpush2.msra.mxu0 0.0
    %7236 = vmatprep.subr.mxu0 0.0
    %7237 = vmatpush2.msra.mxu0 0.0
    %7238 = vmatprep.subr.mxu0 0.0
    %7239 = vmatpush2.msra.mxu0 0.0
    %7240 = vmatprep.subr.mxu0 0.0
    %7241 = vmatpush2.msra.mxu0 0.0
    %7242 = vmatprep.subr.mxu0 0.0
    %7243 = vmatpush2.msra.mxu0 0.0
    %7244 = vmatprep.subr.mxu0 0.0
    %7245 = vmatpush2.msra.mxu0 0.0
    %7246 = vmatprep.subr.mxu0 0.0
    %7247 = vmatpush2.msra.mxu0 0.0
    %7248 = vmatprep.subr.mxu0 0.0
    %7249 = vmatpush2.msra.mxu0 0.0
    %7250 = vmatprep.subr.mxu0 0.0
    %7251 = vmatpush2.msra.mxu0 0.0
    %7252 = vmatprep.mubr.f32.mxu0 0.0
    %7253 = vmatmul.mubr.f32.gmra.mxu0 %v7186
    %v7254 = vpop.f32.mrf.mxu0
    %v7255 = vadd.f32 %v7182, %v7254
    %v7256 = vpop.f32.mrf.mxu0
    %7257 = vdwg.mxu0
    %v7258 = vpack.c.bf16 %v6826, %v6826
    %v7259 = vpack.c.bf16 %v6828, %v6828
    %v7260 = vpack.c.bf16 %v6867, %v6867
    %v7261 = vpack.c.bf16 %v6869, %v6869
    %v7262 = vpack.c.bf16 %v6908, %v6908
    %v7263 = vpack.c.bf16 %v6910, %v6910
    %v7264 = vpack.c.bf16 %v6949, %v6949
    %v7265 = vpack.c.bf16 %v6951, %v6951
    %v7266 = vpack.c.bf16 %v6990, %v6990
    %v7267 = vpack.c.bf16 %v6992, %v6992
    %v7268 = vld [vmem:[%s12] sm:$0xff]
    %v7269 = vld [vmem:[%s12 + $0x8] sm:$0xff]
    %v7270 = vld [vmem:[%s12 + $0x10] sm:$0xff]
    %v7271 = vld [vmem:[%s12 + $0x18] sm:$0xff]
    %v7272 = vld [vmem:[%s12 + $0x20] sm:$0xff]
    %v7273 = vld [vmem:[%s12 + $0x28] sm:$0xff]
    %v7274 = vld [vmem:[%s12 + $0x30] sm:$0xff]
    %v7275 = vld [vmem:[%s12 + $0x38] sm:$0xff]
    %v7276 = vld [vmem:[%s12 + $0x40] sm:$0xff]
    %v7277 = vld [vmem:[%s12 + $0x48] sm:$0xff]
    %v7278 = vld [vmem:[%s12 + $0x50] sm:$0xff]
    %v7279 = vld [vmem:[%s12 + $0x58] sm:$0xff]
    %v7280 = vld [vmem:[%s12 + $0x60] sm:$0xff]
    %v7281 = vld [vmem:[%s12 + $0x68] sm:$0xff]
    %v7282 = vld [vmem:[%s12 + $0x70] sm:$0xff]
    %v7283 = vld [vmem:[%s12 + $0x78] sm:$0xff]
    %v7284 = vld [vmem:[%s12 + $0x80] sm:$0xff]
    %v7285 = vld [vmem:[%s12 + $0x88] sm:$0xff]
    %v7286 = vld [vmem:[%s12 + $0x90] sm:$0xff]
    %v7287 = vld [vmem:[%s12 + $0x98] sm:$0xff]
    %v7288 = vld [vmem:[%s12 + $0xa0] sm:$0xff]
    %v7289 = vld [vmem:[%s12 + $0xa8] sm:$0xff]
    %v7290 = vld [vmem:[%s12 + $0xb0] sm:$0xff]
    %v7291 = vld [vmem:[%s12 + $0xb8] sm:$0xff]
    %v7292 = vld [vmem:[%s12 + $0xc0] sm:$0xff]
    %v7293 = vld [vmem:[%s12 + $0xc8] sm:$0xff]
    %v7294 = vld [vmem:[%s12 + $0xd0] sm:$0xff]
    %v7295 = vld [vmem:[%s12 + $0xd8] sm:$0xff]
    %v7296 = vld [vmem:[%s12 + $0xe0] sm:$0xff]
    %v7297 = vld [vmem:[%s12 + $0xe8] sm:$0xff]
    %v7298 = vld [vmem:[%s12 + $0xf0] sm:$0xff]
    %v7299 = vld [vmem:[%s12 + $0xf8] sm:$0xff]
    %v7300 = vld [vmem:[%s12 + $0x100] sm:$0xff]
    %v7301 = vld [vmem:[%s12 + $0x108] sm:$0xff]
    %v7302 = vld [vmem:[%s12 + $0x110] sm:$0xff]
    %v7303 = vld [vmem:[%s12 + $0x118] sm:$0xff]
    %v7304 = vld [vmem:[%s12 + $0x120] sm:$0xff]
    %v7305 = vld [vmem:[%s12 + $0x128] sm:$0xff]
    %v7306 = vld [vmem:[%s12 + $0x130] sm:$0xff]
    %v7307 = vld [vmem:[%s12 + $0x138] sm:$0xff]
    %v7308 = vld [vmem:[%s12 + $0x140] sm:$0xff]
    %v7309 = vld [vmem:[%s12 + $0x148] sm:$0xff]
    %v7310 = vld [vmem:[%s12 + $0x150] sm:$0xff]
    %v7311 = vld [vmem:[%s12 + $0x158] sm:$0xff]
    %v7312 = vld [vmem:[%s12 + $0x160] sm:$0xff]
    %v7313 = vld [vmem:[%s12 + $0x168] sm:$0xff]
    %v7314 = vld [vmem:[%s12 + $0x170] sm:$0xff]
    %v7315 = vld [vmem:[%s12 + $0x178] sm:$0xff]
    %v7316 = vld [vmem:[%s12 + $0x180] sm:$0xff]
    %v7317 = vld [vmem:[%s12 + $0x188] sm:$0xff]
    %v7318 = vld [vmem:[%s12 + $0x190] sm:$0xff]
    %v7319 = vld [vmem:[%s12 + $0x198] sm:$0xff]
    %v7320 = vld [vmem:[%s12 + $0x1a0] sm:$0xff]
    %v7321 = vld [vmem:[%s12 + $0x1a8] sm:$0xff]
    %v7322 = vld [vmem:[%s12 + $0x1b0] sm:$0xff]
    %v7323 = vld [vmem:[%s12 + $0x1b8] sm:$0xff]
    %v7324 = vld [vmem:[%s12 + $0x1c0] sm:$0xff]
    %v7325 = vld [vmem:[%s12 + $0x1c8] sm:$0xff]
    %v7326 = vld [vmem:[%s12 + $0x1d0] sm:$0xff]
    %v7327 = vld [vmem:[%s12 + $0x1d8] sm:$0xff]
    %v7328 = vld [vmem:[%s12 + $0x1e0] sm:$0xff]
    %v7329 = vld [vmem:[%s12 + $0x1e8] sm:$0xff]
    %v7330 = vld [vmem:[%s12 + $0x1f0] sm:$0xff]
    %v7331 = vld [vmem:[%s12 + $0x1f8] sm:$0xff]
    %v7332 = vld [vmem:[%s12 + $0x200] sm:$0xff]
    %v7333 = vld [vmem:[%s12 + $0x208] sm:$0xff]
    %v7334 = vld [vmem:[%s12 + $0x210] sm:$0xff]
    %v7335 = vld [vmem:[%s12 + $0x218] sm:$0xff]
    %v7336 = vld [vmem:[%s12 + $0x220] sm:$0xff]
    %v7337 = vld [vmem:[%s12 + $0x228] sm:$0xff]
    %v7338 = vld [vmem:[%s12 + $0x230] sm:$0xff]
    %v7339 = vld [vmem:[%s12 + $0x238] sm:$0xff]
    %v7340 = vld [vmem:[%s12 + $0x240] sm:$0xff]
    %v7341 = vld [vmem:[%s12 + $0x248] sm:$0xff]
    %v7342 = vld [vmem:[%s12 + $0x250] sm:$0xff]
    %v7343 = vld [vmem:[%s12 + $0x258] sm:$0xff]
    %v7344 = vld [vmem:[%s12 + $0x260] sm:$0xff]
    %v7345 = vld [vmem:[%s12 + $0x268] sm:$0xff]
    %v7346 = vld [vmem:[%s12 + $0x270] sm:$0xff]
    %v7347 = vld [vmem:[%s12 + $0x278] sm:$0xff]
    %v7348 = vld [vmem:[%s12 + $0x280] sm:$0xff]
    %v7349 = vld [vmem:[%s12 + $0x288] sm:$0xff]
    %v7350 = vld [vmem:[%s12 + $0x290] sm:$0xff]
    %v7351 = vld [vmem:[%s12 + $0x298] sm:$0xff]
    %v7352 = vld [vmem:[%s12 + $0x2a0] sm:$0xff]
    %v7353 = vld [vmem:[%s12 + $0x2a8] sm:$0xff]
    %v7354 = vld [vmem:[%s12 + $0x2b0] sm:$0xff]
    %v7355 = vld [vmem:[%s12 + $0x2b8] sm:$0xff]
    %v7356 = vld [vmem:[%s12 + $0x2c0] sm:$0xff]
    %v7357 = vld [vmem:[%s12 + $0x2c8] sm:$0xff]
    %v7358 = vld [vmem:[%s12 + $0x2d0] sm:$0xff]
    %v7359 = vld [vmem:[%s12 + $0x2d8] sm:$0xff]
    %v7360 = vld [vmem:[%s12 + $0x2e0] sm:$0xff]
    %v7361 = vld [vmem:[%s12 + $0x2e8] sm:$0xff]
    %v7362 = vld [vmem:[%s12 + $0x2f0] sm:$0xff]
    %v7363 = vld [vmem:[%s12 + $0x2f8] sm:$0xff]
    %v7364 = vld [vmem:[%s12 + $0x300] sm:$0xff]
    %v7365 = vld [vmem:[%s12 + $0x308] sm:$0xff]
    %v7366 = vld [vmem:[%s12 + $0x310] sm:$0xff]
    %v7367 = vld [vmem:[%s12 + $0x318] sm:$0xff]
    %v7368 = vld [vmem:[%s12 + $0x320] sm:$0xff]
    %v7369 = vld [vmem:[%s12 + $0x328] sm:$0xff]
    %v7370 = vld [vmem:[%s12 + $0x330] sm:$0xff]
    %v7371 = vld [vmem:[%s12 + $0x338] sm:$0xff]
    %v7372 = vld [vmem:[%s12 + $0x340] sm:$0xff]
    %v7373 = vld [vmem:[%s12 + $0x348] sm:$0xff]
    %v7374 = vld [vmem:[%s12 + $0x350] sm:$0xff]
    %v7375 = vld [vmem:[%s12 + $0x358] sm:$0xff]
    %v7376 = vld [vmem:[%s12 + $0x360] sm:$0xff]
    %v7377 = vld [vmem:[%s12 + $0x368] sm:$0xff]
    %v7378 = vld [vmem:[%s12 + $0x370] sm:$0xff]
    %v7379 = vld [vmem:[%s12 + $0x378] sm:$0xff]
    %v7380 = vld [vmem:[%s12 + $0x380] sm:$0xff]
    %v7381 = vld [vmem:[%s12 + $0x388] sm:$0xff]
    %v7382 = vld [vmem:[%s12 + $0x390] sm:$0xff]
    %v7383 = vld [vmem:[%s12 + $0x398] sm:$0xff]
    %v7384 = vld [vmem:[%s12 + $0x3a0] sm:$0xff]
    %v7385 = vld [vmem:[%s12 + $0x3a8] sm:$0xff]
    %v7386 = vld [vmem:[%s12 + $0x3b0] sm:$0xff]
    %v7387 = vld [vmem:[%s12 + $0x3b8] sm:$0xff]
    %v7388 = vld [vmem:[%s12 + $0x3c0] sm:$0xff]
    %v7389 = vld [vmem:[%s12 + $0x3c8] sm:$0xff]
    %v7390 = vld [vmem:[%s12 + $0x3d0] sm:$0xff]
    %v7391 = vld [vmem:[%s12 + $0x3d8] sm:$0xff]
    %v7392 = vld [vmem:[%s12 + $0x3e0] sm:$0xff]
    %v7393 = vld [vmem:[%s12 + $0x3e8] sm:$0xff]
    %v7394 = vld [vmem:[%s12 + $0x3f0] sm:$0xff]
    %v7395 = vld [vmem:[%s12 + $0x3f8] sm:$0xff]
    %v7396 = vld [vmem:[%s12 + $0x400] sm:$0xff]
    %v7397 = vld [vmem:[%s12 + $0x408] sm:$0xff]
    %v7398 = vld [vmem:[%s12 + $0x410] sm:$0xff]
    %v7399 = vld [vmem:[%s12 + $0x418] sm:$0xff]
    %v7400 = vld [vmem:[%s12 + $0x420] sm:$0xff]
    %v7401 = vld [vmem:[%s12 + $0x428] sm:$0xff]
    %v7402 = vld [vmem:[%s12 + $0x430] sm:$0xff]
    %v7403 = vld [vmem:[%s12 + $0x438] sm:$0xff]
    %v7404 = vld [vmem:[%s12 + $0x440] sm:$0xff]
    %v7405 = vld [vmem:[%s12 + $0x448] sm:$0xff]
    %v7406 = vld [vmem:[%s12 + $0x450] sm:$0xff]
    %v7407 = vld [vmem:[%s12 + $0x458] sm:$0xff]
    %v7408 = vld [vmem:[%s12 + $0x460] sm:$0xff]
    %v7409 = vld [vmem:[%s12 + $0x468] sm:$0xff]
    %v7410 = vld [vmem:[%s12 + $0x470] sm:$0xff]
    %v7411 = vld [vmem:[%s12 + $0x478] sm:$0xff]
    %v7412 = vld [vmem:[%s12 + $0x480] sm:$0xff]
    %v7413 = vld [vmem:[%s12 + $0x488] sm:$0xff]
    %v7414 = vld [vmem:[%s12 + $0x490] sm:$0xff]
    %v7415 = vld [vmem:[%s12 + $0x498] sm:$0xff]
    %v7416 = vld [vmem:[%s12 + $0x4a0] sm:$0xff]
    %v7417 = vld [vmem:[%s12 + $0x4a8] sm:$0xff]
    %v7418 = vld [vmem:[%s12 + $0x4b0] sm:$0xff]
    %v7419 = vld [vmem:[%s12 + $0x4b8] sm:$0xff]
    %v7420 = vld [vmem:[%s12 + $0x4c0] sm:$0xff]
    %v7421 = vld [vmem:[%s12 + $0x4c8] sm:$0xff]
    %v7422 = vld [vmem:[%s12 + $0x4d0] sm:$0xff]
    %v7423 = vld [vmem:[%s12 + $0x4d8] sm:$0xff]
    %v7424 = vld [vmem:[%s12 + $0x4e0] sm:$0xff]
    %v7425 = vld [vmem:[%s12 + $0x4e8] sm:$0xff]
    %v7426 = vld [vmem:[%s12 + $0x4f0] sm:$0xff]
    %v7427 = vld [vmem:[%s12 + $0x4f8] sm:$0xff]
    %v7428 = vpack.c.bf16 %v7255, %v7255
    %v7429 = vld [vmem:[%s13] sm:$0xff]
    %v7430 = vld [vmem:[%s13 + $0x8] sm:$0xff]
    %v7431 = vld [vmem:[%s13 + $0x10] sm:$0xff]
    %v7432 = vld [vmem:[%s13 + $0x18] sm:$0xff]
    %v7437 = vunpack.c.l.b16 %v7429
    %v7438 = vunpack.c.h.b16 %v7429
    %v7439 = vunpack.c.l.b16 %v7430
    %v7440 = vunpack.c.h.b16 %v7430
    %v7441 = vunpack.c.l.b16 %v7431
    %v7442 = vunpack.c.h.b16 %v7431
    %v7443 = vunpack.c.l.b16 %v7432
    %v7444 = vunpack.c.h.b16 %v7432
    %v7445 = vpack.c.b16 %v7439, %v7437
    %v7446 = vpack.c.b16 %v7440, %v7438
    %v7447 = vpack.c.b16 %v7443, %v7441
    %v7448 = vpack.c.b16 %v7444, %v7442
    %v7454 = vsel %vm6464, %v7428, 0
    %7456 = vmatprep.subr.bf16.mxu0 0
    %7457 = vmatpush1.bf16.msra.mxu0 0
    %7458 = vmatprep.subr.bf16.mxu0 0
    %7459 = vmatpush1.bf16.msra.mxu0 0
    %7460 = vmatprep.subr.bf16.mxu0 0
    %7461 = vmatpush1.bf16.msra.mxu0 0
    %7462 = vmatprep.subr.bf16.mxu0 0
    %7463 = vmatpush1.bf16.msra.mxu0 0
    %7464 = vmatprep.subr.bf16.mxu0 0
    %7465 = vmatpush1.bf16.msra.mxu0 0
    %7466 = vmatprep.subr.bf16.mxu0 0
    %7467 = vmatpush1.bf16.msra.mxu0 0
    %7468 = vmatprep.subr.bf16.mxu0 %v7448
    %7469 = vmatpush1.bf16.msra.mxu0 %v7447
    %7470 = vmatprep.subr.bf16.mxu0 %v7446
    %7471 = vmatpush1.bf16.msra.mxu0 %v7445
    %7472 = vmatprep.subr.bf16.mxu0 0
    %7473 = vmatpush2.bf16.msra.mxu0 0
    %7474 = vmatprep.subr.bf16.mxu0 0
    %7475 = vmatpush2.bf16.msra.mxu0 0
    %7476 = vmatprep.subr.bf16.mxu0 0
    %7477 = vmatpush2.bf16.msra.mxu0 0
    %7478 = vmatprep.subr.bf16.mxu0 0
    %7479 = vmatpush2.bf16.msra.mxu0 0
    %7480 = vmatprep.subr.bf16.mxu0 0
    %7481 = vmatpush2.bf16.msra.mxu0 0
    %7482 = vmatprep.subr.bf16.mxu0 0
    %7483 = vmatpush2.bf16.msra.mxu0 0
    %7484 = vmatprep.subr.bf16.mxu0 0
    %7485 = vmatpush2.bf16.msra.mxu0 0
    %7486 = vmatprep.subr.bf16.mxu0 0
    %7487 = vmatpush2.bf16.msra.mxu0 0
    %7488 = vmatprep.mubr.bf16.mxu0 0
    %7489 = vmatmul.mubr.bf16.gmra.mxu0 %v7454
    %v7490 = vpop.f32.mrf.mxu0
    %v7491 = vadd.f32 0.0, %v7490
    %v7492 = vpop.f32.mrf.mxu0
    %v7493 = vadd.f32 0.0, %v7492
    %v7494 = vpop.f32.mrf.mxu0
    %v7495 = vpop.f32.mrf.mxu0
    %7496 = vdwg.mxu0
    %v7657 = vunpack.c.l.b16 %v7268
    %v7658 = vunpack.c.h.b16 %v7268
    %v7659 = vunpack.c.l.b16 %v7269
    %v7660 = vunpack.c.h.b16 %v7269
    %v7661 = vunpack.c.l.b16 %v7270
    %v7662 = vunpack.c.h.b16 %v7270
    %v7663 = vunpack.c.l.b16 %v7271
    %v7664 = vunpack.c.h.b16 %v7271
    %v7665 = vunpack.c.l.b16 %v7272
    %v7666 = vunpack.c.h.b16 %v7272
    %v7667 = vunpack.c.l.b16 %v7273
    %v7668 = vunpack.c.h.b16 %v7273
    %v7669 = vunpack.c.l.b16 %v7274
    %v7670 = vunpack.c.h.b16 %v7274
    %v7671 = vunpack.c.l.b16 %v7275
    %v7672 = vunpack.c.h.b16 %v7275
    %v7673 = vunpack.c.l.b16 %v7276
    %v7674 = vunpack.c.h.b16 %v7276
    %v7675 = vunpack.c.l.b16 %v7277
    %v7676 = vunpack.c.h.b16 %v7277
    %v7677 = vunpack.c.l.b16 %v7278
    %v7678 = vunpack.c.h.b16 %v7278
    %v7679 = vunpack.c.l.b16 %v7279
    %v7680 = vunpack.c.h.b16 %v7279
    %v7681 = vunpack.c.l.b16 %v7280
    %v7682 = vunpack.c.h.b16 %v7280
    %v7683 = vunpack.c.l.b16 %v7281
    %v7684 = vunpack.c.h.b16 %v7281
    %v7685 = vunpack.c.l.b16 %v7282
    %v7686 = vunpack.c.h.b16 %v7282
    %v7687 = vunpack.c.l.b16 %v7283
    %v7688 = vunpack.c.h.b16 %v7283
    %v7689 = vunpack.c.l.b16 %v7284
    %v7690 = vunpack.c.h.b16 %v7284
    %v7691 = vunpack.c.l.b16 %v7285
    %v7692 = vunpack.c.h.b16 %v7285
    %v7693 = vunpack.c.l.b16 %v7286
    %v7694 = vunpack.c.h.b16 %v7286
    %v7695 = vunpack.c.l.b16 %v7287
    %v7696 = vunpack.c.h.b16 %v7287
    %v7697 = vunpack.c.l.b16 %v7288
    %v7698 = vunpack.c.h.b16 %v7288
    %v7699 = vunpack.c.l.b16 %v7289
    %v7700 = vunpack.c.h.b16 %v7289
    %v7701 = vunpack.c.l.b16 %v7290
    %v7702 = vunpack.c.h.b16 %v7290
    %v7703 = vunpack.c.l.b16 %v7291
    %v7704 = vunpack.c.h.b16 %v7291
    %v7705 = vunpack.c.l.b16 %v7292
    %v7706 = vunpack.c.h.b16 %v7292
    %v7707 = vunpack.c.l.b16 %v7293
    %v7708 = vunpack.c.h.b16 %v7293
    %v7709 = vunpack.c.l.b16 %v7294
    %v7710 = vunpack.c.h.b16 %v7294
    %v7711 = vunpack.c.l.b16 %v7295
    %v7712 = vunpack.c.h.b16 %v7295
    %v7713 = vunpack.c.l.b16 %v7296
    %v7714 = vunpack.c.h.b16 %v7296
    %v7715 = vunpack.c.l.b16 %v7297
    %v7716 = vunpack.c.h.b16 %v7297
    %v7717 = vunpack.c.l.b16 %v7298
    %v7718 = vunpack.c.h.b16 %v7298
    %v7719 = vunpack.c.l.b16 %v7299
    %v7720 = vunpack.c.h.b16 %v7299
    %v7721 = vunpack.c.l.b16 %v7300
    %v7722 = vunpack.c.h.b16 %v7300
    %v7723 = vunpack.c.l.b16 %v7301
    %v7724 = vunpack.c.h.b16 %v7301
    %v7725 = vunpack.c.l.b16 %v7302
    %v7726 = vunpack.c.h.b16 %v7302
    %v7727 = vunpack.c.l.b16 %v7303
    %v7728 = vunpack.c.h.b16 %v7303
    %v7729 = vunpack.c.l.b16 %v7304
    %v7730 = vunpack.c.h.b16 %v7304
    %v7731 = vunpack.c.l.b16 %v7305
    %v7732 = vunpack.c.h.b16 %v7305
    %v7733 = vunpack.c.l.b16 %v7306
    %v7734 = vunpack.c.h.b16 %v7306
    %v7735 = vunpack.c.l.b16 %v7307
    %v7736 = vunpack.c.h.b16 %v7307
    %v7737 = vunpack.c.l.b16 %v7308
    %v7738 = vunpack.c.h.b16 %v7308
    %v7739 = vunpack.c.l.b16 %v7309
    %v7740 = vunpack.c.h.b16 %v7309
    %v7741 = vunpack.c.l.b16 %v7310
    %v7742 = vunpack.c.h.b16 %v7310
    %v7743 = vunpack.c.l.b16 %v7311
    %v7744 = vunpack.c.h.b16 %v7311
    %v7745 = vunpack.c.l.b16 %v7312
    %v7746 = vunpack.c.h.b16 %v7312
    %v7747 = vunpack.c.l.b16 %v7313
    %v7748 = vunpack.c.h.b16 %v7313
    %v7749 = vunpack.c.l.b16 %v7314
    %v7750 = vunpack.c.h.b16 %v7314
    %v7751 = vunpack.c.l.b16 %v7315
    %v7752 = vunpack.c.h.b16 %v7315
    %v7753 = vunpack.c.l.b16 %v7316
    %v7754 = vunpack.c.h.b16 %v7316
    %v7755 = vunpack.c.l.b16 %v7317
    %v7756 = vunpack.c.h.b16 %v7317
    %v7757 = vunpack.c.l.b16 %v7318
    %v7758 = vunpack.c.h.b16 %v7318
    %v7759 = vunpack.c.l.b16 %v7319
    %v7760 = vunpack.c.h.b16 %v7319
    %v7761 = vunpack.c.l.b16 %v7320
    %v7762 = vunpack.c.h.b16 %v7320
    %v7763 = vunpack.c.l.b16 %v7321
    %v7764 = vunpack.c.h.b16 %v7321
    %v7765 = vunpack.c.l.b16 %v7322
    %v7766 = vunpack.c.h.b16 %v7322
    %v7767 = vunpack.c.l.b16 %v7323
    %v7768 = vunpack.c.h.b16 %v7323
    %v7769 = vunpack.c.l.b16 %v7324
    %v7770 = vunpack.c.h.b16 %v7324
    %v7771 = vunpack.c.l.b16 %v7325
    %v7772 = vunpack.c.h.b16 %v7325
    %v7773 = vunpack.c.l.b16 %v7326
    %v7774 = vunpack.c.h.b16 %v7326
    %v7775 = vunpack.c.l.b16 %v7327
    %v7776 = vunpack.c.h.b16 %v7327
    %v7777 = vunpack.c.l.b16 %v7328
    %v7778 = vunpack.c.h.b16 %v7328
    %v7779 = vunpack.c.l.b16 %v7329
    %v7780 = vunpack.c.h.b16 %v7329
    %v7781 = vunpack.c.l.b16 %v7330
    %v7782 = vunpack.c.h.b16 %v7330
    %v7783 = vunpack.c.l.b16 %v7331
    %v7784 = vunpack.c.h.b16 %v7331
    %v7785 = vunpack.c.l.b16 %v7332
    %v7786 = vunpack.c.h.b16 %v7332
    %v7787 = vunpack.c.l.b16 %v7333
    %v7788 = vunpack.c.h.b16 %v7333
    %v7789 = vunpack.c.l.b16 %v7334
    %v7790 = vunpack.c.h.b16 %v7334
    %v7791 = vunpack.c.l.b16 %v7335
    %v7792 = vunpack.c.h.b16 %v7335
    %v7793 = vunpack.c.l.b16 %v7336
    %v7794 = vunpack.c.h.b16 %v7336
    %v7795 = vunpack.c.l.b16 %v7337
    %v7796 = vunpack.c.h.b16 %v7337
    %v7797 = vunpack.c.l.b16 %v7338
    %v7798 = vunpack.c.h.b16 %v7338
    %v7799 = vunpack.c.l.b16 %v7339
    %v7800 = vunpack.c.h.b16 %v7339
    %v7801 = vunpack.c.l.b16 %v7340
    %v7802 = vunpack.c.h.b16 %v7340
    %v7803 = vunpack.c.l.b16 %v7341
    %v7804 = vunpack.c.h.b16 %v7341
    %v7805 = vunpack.c.l.b16 %v7342
    %v7806 = vunpack.c.h.b16 %v7342
    %v7807 = vunpack.c.l.b16 %v7343
    %v7808 = vunpack.c.h.b16 %v7343
    %v7809 = vunpack.c.l.b16 %v7344
    %v7810 = vunpack.c.h.b16 %v7344
    %v7811 = vunpack.c.l.b16 %v7345
    %v7812 = vunpack.c.h.b16 %v7345
    %v7813 = vunpack.c.l.b16 %v7346
    %v7814 = vunpack.c.h.b16 %v7346
    %v7815 = vunpack.c.l.b16 %v7347
    %v7816 = vunpack.c.h.b16 %v7347
    %v7817 = vunpack.c.l.b16 %v7348
    %v7818 = vunpack.c.h.b16 %v7348
    %v7819 = vunpack.c.l.b16 %v7349
    %v7820 = vunpack.c.h.b16 %v7349
    %v7821 = vunpack.c.l.b16 %v7350
    %v7822 = vunpack.c.h.b16 %v7350
    %v7823 = vunpack.c.l.b16 %v7351
    %v7824 = vunpack.c.h.b16 %v7351
    %v7825 = vunpack.c.l.b16 %v7352
    %v7826 = vunpack.c.h.b16 %v7352
    %v7827 = vunpack.c.l.b16 %v7353
    %v7828 = vunpack.c.h.b16 %v7353
    %v7829 = vunpack.c.l.b16 %v7354
    %v7830 = vunpack.c.h.b16 %v7354
    %v7831 = vunpack.c.l.b16 %v7355
    %v7832 = vunpack.c.h.b16 %v7355
    %v7833 = vunpack.c.l.b16 %v7356
    %v7834 = vunpack.c.h.b16 %v7356
    %v7835 = vunpack.c.l.b16 %v7357
    %v7836 = vunpack.c.h.b16 %v7357
    %v7837 = vunpack.c.l.b16 %v7358
    %v7838 = vunpack.c.h.b16 %v7358
    %v7839 = vunpack.c.l.b16 %v7359
    %v7840 = vunpack.c.h.b16 %v7359
    %v7841 = vunpack.c.l.b16 %v7360
    %v7842 = vunpack.c.h.b16 %v7360
    %v7843 = vunpack.c.l.b16 %v7361
    %v7844 = vunpack.c.h.b16 %v7361
    %v7845 = vunpack.c.l.b16 %v7362
    %v7846 = vunpack.c.h.b16 %v7362
    %v7847 = vunpack.c.l.b16 %v7363
    %v7848 = vunpack.c.h.b16 %v7363
    %v7849 = vunpack.c.l.b16 %v7364
    %v7850 = vunpack.c.h.b16 %v7364
    %v7851 = vunpack.c.l.b16 %v7365
    %v7852 = vunpack.c.h.b16 %v7365
    %v7853 = vunpack.c.l.b16 %v7366
    %v7854 = vunpack.c.h.b16 %v7366
    %v7855 = vunpack.c.l.b16 %v7367
    %v7856 = vunpack.c.h.b16 %v7367
    %v7857 = vunpack.c.l.b16 %v7368
    %v7858 = vunpack.c.h.b16 %v7368
    %v7859 = vunpack.c.l.b16 %v7369
    %v7860 = vunpack.c.h.b16 %v7369
    %v7861 = vunpack.c.l.b16 %v7370
    %v7862 = vunpack.c.h.b16 %v7370
    %v7863 = vunpack.c.l.b16 %v7371
    %v7864 = vunpack.c.h.b16 %v7371
    %v7865 = vunpack.c.l.b16 %v7372
    %v7866 = vunpack.c.h.b16 %v7372
    %v7867 = vunpack.c.l.b16 %v7373
    %v7868 = vunpack.c.h.b16 %v7373
    %v7869 = vunpack.c.l.b16 %v7374
    %v7870 = vunpack.c.h.b16 %v7374
    %v7871 = vunpack.c.l.b16 %v7375
    %v7872 = vunpack.c.h.b16 %v7375
    %v7873 = vunpack.c.l.b16 %v7376
    %v7874 = vunpack.c.h.b16 %v7376
    %v7875 = vunpack.c.l.b16 %v7377
    %v7876 = vunpack.c.h.b16 %v7377
    %v7877 = vunpack.c.l.b16 %v7378
    %v7878 = vunpack.c.h.b16 %v7378
    %v7879 = vunpack.c.l.b16 %v7379
    %v7880 = vunpack.c.h.b16 %v7379
    %v7881 = vunpack.c.l.b16 %v7380
    %v7882 = vunpack.c.h.b16 %v7380
    %v7883 = vunpack.c.l.b16 %v7381
    %v7884 = vunpack.c.h.b16 %v7381
    %v7885 = vunpack.c.l.b16 %v7382
    %v7886 = vunpack.c.h.b16 %v7382
    %v7887 = vunpack.c.l.b16 %v7383
    %v7888 = vunpack.c.h.b16 %v7383
    %v7889 = vunpack.c.l.b16 %v7384
    %v7890 = vunpack.c.h.b16 %v7384
    %v7891 = vunpack.c.l.b16 %v7385
    %v7892 = vunpack.c.h.b16 %v7385
    %v7893 = vunpack.c.l.b16 %v7386
    %v7894 = vunpack.c.h.b16 %v7386
    %v7895 = vunpack.c.l.b16 %v7387
    %v7896 = vunpack.c.h.b16 %v7387
    %v7897 = vunpack.c.l.b16 %v7388
    %v7898 = vunpack.c.h.b16 %v7388
    %v7899 = vunpack.c.l.b16 %v7389
    %v7900 = vunpack.c.h.b16 %v7389
    %v7901 = vunpack.c.l.b16 %v7390
    %v7902 = vunpack.c.h.b16 %v7390
    %v7903 = vunpack.c.l.b16 %v7391
    %v7904 = vunpack.c.h.b16 %v7391
    %v7905 = vunpack.c.l.b16 %v7392
    %v7906 = vunpack.c.h.b16 %v7392
    %v7907 = vunpack.c.l.b16 %v7393
    %v7908 = vunpack.c.h.b16 %v7393
    %v7909 = vunpack.c.l.b16 %v7394
    %v7910 = vunpack.c.h.b16 %v7394
    %v7911 = vunpack.c.l.b16 %v7395
    %v7912 = vunpack.c.h.b16 %v7395
    %v7913 = vunpack.c.l.b16 %v7396
    %v7914 = vunpack.c.h.b16 %v7396
    %v7915 = vunpack.c.l.b16 %v7397
    %v7916 = vunpack.c.h.b16 %v7397
    %v7917 = vunpack.c.l.b16 %v7398
    %v7918 = vunpack.c.h.b16 %v7398
    %v7919 = vunpack.c.l.b16 %v7399
    %v7920 = vunpack.c.h.b16 %v7399
    %v7921 = vunpack.c.l.b16 %v7400
    %v7922 = vunpack.c.h.b16 %v7400
    %v7923 = vunpack.c.l.b16 %v7401
    %v7924 = vunpack.c.h.b16 %v7401
    %v7925 = vunpack.c.l.b16 %v7402
    %v7926 = vunpack.c.h.b16 %v7402
    %v7927 = vunpack.c.l.b16 %v7403
    %v7928 = vunpack.c.h.b16 %v7403
    %v7929 = vunpack.c.l.b16 %v7404
    %v7930 = vunpack.c.h.b16 %v7404
    %v7931 = vunpack.c.l.b16 %v7405
    %v7932 = vunpack.c.h.b16 %v7405
    %v7933 = vunpack.c.l.b16 %v7406
    %v7934 = vunpack.c.h.b16 %v7406
    %v7935 = vunpack.c.l.b16 %v7407
    %v7936 = vunpack.c.h.b16 %v7407
    %v7937 = vunpack.c.l.b16 %v7408
    %v7938 = vunpack.c.h.b16 %v7408
    %v7939 = vunpack.c.l.b16 %v7409
    %v7940 = vunpack.c.h.b16 %v7409
    %v7941 = vunpack.c.l.b16 %v7410
    %v7942 = vunpack.c.h.b16 %v7410
    %v7943 = vunpack.c.l.b16 %v7411
    %v7944 = vunpack.c.h.b16 %v7411
    %v7945 = vunpack.c.l.b16 %v7412
    %v7946 = vunpack.c.h.b16 %v7412
    %v7947 = vunpack.c.l.b16 %v7413
    %v7948 = vunpack.c.h.b16 %v7413
    %v7949 = vunpack.c.l.b16 %v7414
    %v7950 = vunpack.c.h.b16 %v7414
    %v7951 = vunpack.c.l.b16 %v7415
    %v7952 = vunpack.c.h.b16 %v7415
    %v7953 = vunpack.c.l.b16 %v7416
    %v7954 = vunpack.c.h.b16 %v7416
    %v7955 = vunpack.c.l.b16 %v7417
    %v7956 = vunpack.c.h.b16 %v7417
    %v7957 = vunpack.c.l.b16 %v7418
    %v7958 = vunpack.c.h.b16 %v7418
    %v7959 = vunpack.c.l.b16 %v7419
    %v7960 = vunpack.c.h.b16 %v7419
    %v7961 = vunpack.c.l.b16 %v7420
    %v7962 = vunpack.c.h.b16 %v7420
    %v7963 = vunpack.c.l.b16 %v7421
    %v7964 = vunpack.c.h.b16 %v7421
    %v7965 = vunpack.c.l.b16 %v7422
    %v7966 = vunpack.c.h.b16 %v7422
    %v7967 = vunpack.c.l.b16 %v7423
    %v7968 = vunpack.c.h.b16 %v7423
    %v7969 = vunpack.c.l.b16 %v7424
    %v7970 = vunpack.c.h.b16 %v7424
    %v7971 = vunpack.c.l.b16 %v7425
    %v7972 = vunpack.c.h.b16 %v7425
    %v7973 = vunpack.c.l.b16 %v7426
    %v7974 = vunpack.c.h.b16 %v7426
    %v7975 = vunpack.c.l.b16 %v7427
    %v7976 = vunpack.c.h.b16 %v7427
    %v7977 = vpack.c.b16 %v7659, %v7657
    %v7978 = vpack.c.b16 %v7660, %v7658
    %v7979 = vpack.c.b16 %v7663, %v7661
    %v7980 = vpack.c.b16 %v7664, %v7662
    %v7981 = vpack.c.b16 %v7667, %v7665
    %v7982 = vpack.c.b16 %v7668, %v7666
    %v7983 = vpack.c.b16 %v7671, %v7669
    %v7984 = vpack.c.b16 %v7672, %v7670
    %v7985 = vpack.c.b16 %v7675, %v7673
    %v7986 = vpack.c.b16 %v7676, %v7674
    %v7987 = vpack.c.b16 %v7679, %v7677
    %v7988 = vpack.c.b16 %v7680, %v7678
    %v7989 = vpack.c.b16 %v7683, %v7681
    %v7990 = vpack.c.b16 %v7684, %v7682
    %v7991 = vpack.c.b16 %v7687, %v7685
    %v7992 = vpack.c.b16 %v7688, %v7686
    %v7993 = vpack.c.b16 %v7691, %v7689
    %v7994 = vpack.c.b16 %v7692, %v7690
    %v7995 = vpack.c.b16 %v7695, %v7693
    %v7996 = vpack.c.b16 %v7696, %v7694
    %v7997 = vpack.c.b16 %v7699, %v7697
    %v7998 = vpack.c.b16 %v7700, %v7698
    %v7999 = vpack.c.b16 %v7703, %v7701
    %v8000 = vpack.c.b16 %v7704, %v7702
    %v8001 = vpack.c.b16 %v7707, %v7705
    %v8002 = vpack.c.b16 %v7708, %v7706
    %v8003 = vpack.c.b16 %v7711, %v7709
    %v8004 = vpack.c.b16 %v7712, %v7710
    %v8005 = vpack.c.b16 %v7715, %v7713
    %v8006 = vpack.c.b16 %v7716, %v7714
    %v8007 = vpack.c.b16 %v7719, %v7717
    %v8008 = vpack.c.b16 %v7720, %v7718
    %v8009 = vpack.c.b16 %v7723, %v7721
    %v8010 = vpack.c.b16 %v7724, %v7722
    %v8011 = vpack.c.b16 %v7727, %v7725
    %v8012 = vpack.c.b16 %v7728, %v7726
    %v8013 = vpack.c.b16 %v7731, %v7729
    %v8014 = vpack.c.b16 %v7732, %v7730
    %v8015 = vpack.c.b16 %v7735, %v7733
    %v8016 = vpack.c.b16 %v7736, %v7734
    %v8017 = vpack.c.b16 %v7739, %v7737
    %v8018 = vpack.c.b16 %v7740, %v7738
    %v8019 = vpack.c.b16 %v7743, %v7741
    %v8020 = vpack.c.b16 %v7744, %v7742
    %v8021 = vpack.c.b16 %v7747, %v7745
    %v8022 = vpack.c.b16 %v7748, %v7746
    %v8023 = vpack.c.b16 %v7751, %v7749
    %v8024 = vpack.c.b16 %v7752, %v7750
    %v8025 = vpack.c.b16 %v7755, %v7753
    %v8026 = vpack.c.b16 %v7756, %v7754
    %v8027 = vpack.c.b16 %v7759, %v7757
    %v8028 = vpack.c.b16 %v7760, %v7758
    %v8029 = vpack.c.b16 %v7763, %v7761
    %v8030 = vpack.c.b16 %v7764, %v7762
    %v8031 = vpack.c.b16 %v7767, %v7765
    %v8032 = vpack.c.b16 %v7768, %v7766
    %v8033 = vpack.c.b16 %v7771, %v7769
    %v8034 = vpack.c.b16 %v7772, %v7770
    %v8035 = vpack.c.b16 %v7775, %v7773
    %v8036 = vpack.c.b16 %v7776, %v7774
    %v8037 = vpack.c.b16 %v7779, %v7777
    %v8038 = vpack.c.b16 %v7780, %v7778
    %v8039 = vpack.c.b16 %v7783, %v7781
    %v8040 = vpack.c.b16 %v7784, %v7782
    %v8041 = vpack.c.b16 %v7787, %v7785
    %v8042 = vpack.c.b16 %v7788, %v7786
    %v8043 = vpack.c.b16 %v7791, %v7789
    %v8044 = vpack.c.b16 %v7792, %v7790
    %v8045 = vpack.c.b16 %v7795, %v7793
    %v8046 = vpack.c.b16 %v7796, %v7794
    %v8047 = vpack.c.b16 %v7799, %v7797
    %v8048 = vpack.c.b16 %v7800, %v7798
    %v8049 = vpack.c.b16 %v7803, %v7801
    %v8050 = vpack.c.b16 %v7804, %v7802
    %v8051 = vpack.c.b16 %v7807, %v7805
    %v8052 = vpack.c.b16 %v7808, %v7806
    %v8053 = vpack.c.b16 %v7811, %v7809
    %v8054 = vpack.c.b16 %v7812, %v7810
    %v8055 = vpack.c.b16 %v7815, %v7813
    %v8056 = vpack.c.b16 %v7816, %v7814
    %v8057 = vpack.c.b16 %v7819, %v7817
    %v8058 = vpack.c.b16 %v7820, %v7818
    %v8059 = vpack.c.b16 %v7823, %v7821
    %v8060 = vpack.c.b16 %v7824, %v7822
    %v8061 = vpack.c.b16 %v7827, %v7825
    %v8062 = vpack.c.b16 %v7828, %v7826
    %v8063 = vpack.c.b16 %v7831, %v7829
    %v8064 = vpack.c.b16 %v7832, %v7830
    %v8065 = vpack.c.b16 %v7835, %v7833
    %v8066 = vpack.c.b16 %v7836, %v7834
    %v8067 = vpack.c.b16 %v7839, %v7837
    %v8068 = vpack.c.b16 %v7840, %v7838
    %v8069 = vpack.c.b16 %v7843, %v7841
    %v8070 = vpack.c.b16 %v7844, %v7842
    %v8071 = vpack.c.b16 %v7847, %v7845
    %v8072 = vpack.c.b16 %v7848, %v7846
    %v8073 = vpack.c.b16 %v7851, %v7849
    %v8074 = vpack.c.b16 %v7852, %v7850
    %v8075 = vpack.c.b16 %v7855, %v7853
    %v8076 = vpack.c.b16 %v7856, %v7854
    %v8077 = vpack.c.b16 %v7859, %v7857
    %v8078 = vpack.c.b16 %v7860, %v7858
    %v8079 = vpack.c.b16 %v7863, %v7861
    %v8080 = vpack.c.b16 %v7864, %v7862
    %v8081 = vpack.c.b16 %v7867, %v7865
    %v8082 = vpack.c.b16 %v7868, %v7866
    %v8083 = vpack.c.b16 %v7871, %v7869
    %v8084 = vpack.c.b16 %v7872, %v7870
    %v8085 = vpack.c.b16 %v7875, %v7873
    %v8086 = vpack.c.b16 %v7876, %v7874
    %v8087 = vpack.c.b16 %v7879, %v7877
    %v8088 = vpack.c.b16 %v7880, %v7878
    %v8089 = vpack.c.b16 %v7883, %v7881
    %v8090 = vpack.c.b16 %v7884, %v7882
    %v8091 = vpack.c.b16 %v7887, %v7885
    %v8092 = vpack.c.b16 %v7888, %v7886
    %v8093 = vpack.c.b16 %v7891, %v7889
    %v8094 = vpack.c.b16 %v7892, %v7890
    %v8095 = vpack.c.b16 %v7895, %v7893
    %v8096 = vpack.c.b16 %v7896, %v7894
    %v8097 = vpack.c.b16 %v7899, %v7897
    %v8098 = vpack.c.b16 %v7900, %v7898
    %v8099 = vpack.c.b16 %v7903, %v7901
    %v8100 = vpack.c.b16 %v7904, %v7902
    %v8101 = vpack.c.b16 %v7907, %v7905
    %v8102 = vpack.c.b16 %v7908, %v7906
    %v8103 = vpack.c.b16 %v7911, %v7909
    %v8104 = vpack.c.b16 %v7912, %v7910
    %v8105 = vpack.c.b16 %v7915, %v7913
    %v8106 = vpack.c.b16 %v7916, %v7914
    %v8107 = vpack.c.b16 %v7919, %v7917
    %v8108 = vpack.c.b16 %v7920, %v7918
    %v8109 = vpack.c.b16 %v7923, %v7921
    %v8110 = vpack.c.b16 %v7924, %v7922
    %v8111 = vpack.c.b16 %v7927, %v7925
    %v8112 = vpack.c.b16 %v7928, %v7926
    %v8113 = vpack.c.b16 %v7931, %v7929
    %v8114 = vpack.c.b16 %v7932, %v7930
    %v8115 = vpack.c.b16 %v7935, %v7933
    %v8116 = vpack.c.b16 %v7936, %v7934
    %v8117 = vpack.c.b16 %v7939, %v7937
    %v8118 = vpack.c.b16 %v7940, %v7938
    %v8119 = vpack.c.b16 %v7943, %v7941
    %v8120 = vpack.c.b16 %v7944, %v7942
    %v8121 = vpack.c.b16 %v7947, %v7945
    %v8122 = vpack.c.b16 %v7948, %v7946
    %v8123 = vpack.c.b16 %v7951, %v7949
    %v8124 = vpack.c.b16 %v7952, %v7950
    %v8125 = vpack.c.b16 %v7955, %v7953
    %v8126 = vpack.c.b16 %v7956, %v7954
    %v8127 = vpack.c.b16 %v7959, %v7957
    %v8128 = vpack.c.b16 %v7960, %v7958
    %v8129 = vpack.c.b16 %v7963, %v7961
    %v8130 = vpack.c.b16 %v7964, %v7962
    %v8131 = vpack.c.b16 %v7967, %v7965
    %v8132 = vpack.c.b16 %v7968, %v7966
    %v8133 = vpack.c.b16 %v7971, %v7969
    %v8134 = vpack.c.b16 %v7972, %v7970
    %v8135 = vpack.c.b16 %v7975, %v7973
    %v8136 = vpack.c.b16 %v7976, %v7974
    %8297 = vmatprep.subr.bf16.mxu0 %v7992
    %8298 = vmatpush1.bf16.msra.mxu0 %v7991
    %8299 = vmatprep.subr.bf16.mxu0 %v7990
    %8300 = vmatpush1.bf16.msra.mxu0 %v7989
    %8301 = vmatprep.subr.bf16.mxu0 %v7988
    %8302 = vmatpush1.bf16.msra.mxu0 %v7987
    %8303 = vmatprep.subr.bf16.mxu0 %v7986
    %8304 = vmatpush1.bf16.msra.mxu0 %v7985
    %8305 = vmatprep.subr.bf16.mxu0 %v7984
    %8306 = vmatpush1.bf16.msra.mxu0 %v7983
    %8307 = vmatprep.subr.bf16.mxu0 %v7982
    %8308 = vmatpush1.bf16.msra.mxu0 %v7981
    %8309 = vmatprep.subr.bf16.mxu0 %v7980
    %8310 = vmatpush1.bf16.msra.mxu0 %v7979
    %8311 = vmatprep.subr.bf16.mxu0 %v7978
    %8312 = vmatpush1.bf16.msra.mxu0 %v7977
    %8313 = vmatprep.subr.bf16.mxu0 %v8008
    %8314 = vmatpush2.bf16.msra.mxu0 %v8007
    %8315 = vmatprep.subr.bf16.mxu0 %v8006
    %8316 = vmatpush2.bf16.msra.mxu0 %v8005
    %8317 = vmatprep.subr.bf16.mxu0 %v8004
    %8318 = vmatpush2.bf16.msra.mxu0 %v8003
    %8319 = vmatprep.subr.bf16.mxu0 %v8002
    %8320 = vmatpush2.bf16.msra.mxu0 %v8001
    %8321 = vmatprep.subr.bf16.mxu0 %v8000
    %8322 = vmatpush2.bf16.msra.mxu0 %v7999
    %8323 = vmatprep.subr.bf16.mxu0 %v7998
    %8324 = vmatpush2.bf16.msra.mxu0 %v7997
    %8325 = vmatprep.subr.bf16.mxu0 %v7996
    %8326 = vmatpush2.bf16.msra.mxu0 %v7995
    %8327 = vmatprep.subr.bf16.mxu0 %v7994
    %8328 = vmatpush2.bf16.msra.mxu0 %v7993
    %8329 = vmatprep.mubr.bf16.mxu0 %v7259
    %8330 = vmatmul.mubr.bf16.gmra.mxu0 %v7258
    %v8331 = vpop.f32.mrf.mxu0
    %v8332 = vadd.f32 %v7491, %v8331
    %v8333 = vpop.f32.mrf.mxu0
    %v8334 = vadd.f32 %v7493, %v8333
    %v8335 = vpop.f32.mrf.mxu0
    %v8336 = vpop.f32.mrf.mxu0
    %8337 = vdwg.mxu0
    %8338 = vmatprep.subr.bf16.mxu0 %v8024
    %8339 = vmatpush1.bf16.msra.mxu0 %v8023
    %8340 = vmatprep.subr.bf16.mxu0 %v8022
    %8341 = vmatpush1.bf16.msra.mxu0 %v8021
    %8342 = vmatprep.subr.bf16.mxu0 %v8020
    %8343 = vmatpush1.bf16.msra.mxu0 %v8019
    %8344 = vmatprep.subr.bf16.mxu0 %v8018
    %8345 = vmatpush1.bf16.msra.mxu0 %v8017
    %8346 = vmatprep.subr.bf16.mxu0 %v8016
    %8347 = vmatpush1.bf16.msra.mxu0 %v8015
    %8348 = vmatprep.subr.bf16.mxu0 %v8014
    %8349 = vmatpush1.bf16.msra.mxu0 %v8013
    %8350 = vmatprep.subr.bf16.mxu0 %v8012
    %8351 = vmatpush1.bf16.msra.mxu0 %v8011
    %8352 = vmatprep.subr.bf16.mxu0 %v8010
    %8353 = vmatpush1.bf16.msra.mxu0 %v8009
    %8354 = vmatprep.subr.bf16.mxu0 %v8040
    %8355 = vmatpush2.bf16.msra.mxu0 %v8039
    %8356 = vmatprep.subr.bf16.mxu0 %v8038
    %8357 = vmatpush2.bf16.msra.mxu0 %v8037
    %8358 = vmatprep.subr.bf16.mxu0 %v8036
    %8359 = vmatpush2.bf16.msra.mxu0 %v8035
    %8360 = vmatprep.subr.bf16.mxu0 %v8034
    %8361 = vmatpush2.bf16.msra.mxu0 %v8033
    %8362 = vmatprep.subr.bf16.mxu0 %v8032
    %8363 = vmatpush2.bf16.msra.mxu0 %v8031
    %8364 = vmatprep.subr.bf16.mxu0 %v8030
    %8365 = vmatpush2.bf16.msra.mxu0 %v8029
    %8366 = vmatprep.subr.bf16.mxu0 %v8028
    %8367 = vmatpush2.bf16.msra.mxu0 %v8027
    %8368 = vmatprep.subr.bf16.mxu0 %v8026
    %8369 = vmatpush2.bf16.msra.mxu0 %v8025
    %8370 = vmatprep.mubr.bf16.mxu0 %v7261
    %8371 = vmatmul.mubr.bf16.gmra.mxu0 %v7260
    %v8372 = vpop.f32.mrf.mxu0
    %v8373 = vadd.f32 %v8332, %v8372
    %v8374 = vpop.f32.mrf.mxu0
    %v8375 = vadd.f32 %v8334, %v8374
    %v8376 = vpop.f32.mrf.mxu0
    %v8377 = vpop.f32.mrf.mxu0
    %8378 = vdwg.mxu0
    %8379 = vmatprep.subr.bf16.mxu0 %v8056
    %8380 = vmatpush1.bf16.msra.mxu0 %v8055
    %8381 = vmatprep.subr.bf16.mxu0 %v8054
    %8382 = vmatpush1.bf16.msra.mxu0 %v8053
    %8383 = vmatprep.subr.bf16.mxu0 %v8052
    %8384 = vmatpush1.bf16.msra.mxu0 %v8051
    %8385 = vmatprep.subr.bf16.mxu0 %v8050
    %8386 = vmatpush1.bf16.msra.mxu0 %v8049
    %8387 = vmatprep.subr.bf16.mxu0 %v8048
    %8388 = vmatpush1.bf16.msra.mxu0 %v8047
    %8389 = vmatprep.subr.bf16.mxu0 %v8046
    %8390 = vmatpush1.bf16.msra.mxu0 %v8045
    %8391 = vmatprep.subr.bf16.mxu0 %v8044
    %8392 = vmatpush1.bf16.msra.mxu0 %v8043
    %8393 = vmatprep.subr.bf16.mxu0 %v8042
    %8394 = vmatpush1.bf16.msra.mxu0 %v8041
    %8395 = vmatprep.subr.bf16.mxu0 %v8072
    %8396 = vmatpush2.bf16.msra.mxu0 %v8071
    %8397 = vmatprep.subr.bf16.mxu0 %v8070
    %8398 = vmatpush2.bf16.msra.mxu0 %v8069
    %8399 = vmatprep.subr.bf16.mxu0 %v8068
    %8400 = vmatpush2.bf16.msra.mxu0 %v8067
    %8401 = vmatprep.subr.bf16.mxu0 %v8066
    %8402 = vmatpush2.bf16.msra.mxu0 %v8065
    %8403 = vmatprep.subr.bf16.mxu0 %v8064
    %8404 = vmatpush2.bf16.msra.mxu0 %v8063
    %8405 = vmatprep.subr.bf16.mxu0 %v8062
    %8406 = vmatpush2.bf16.msra.mxu0 %v8061
    %8407 = vmatprep.subr.bf16.mxu0 %v8060
    %8408 = vmatpush2.bf16.msra.mxu0 %v8059
    %8409 = vmatprep.subr.bf16.mxu0 %v8058
    %8410 = vmatpush2.bf16.msra.mxu0 %v8057
    %8411 = vmatprep.mubr.bf16.mxu0 %v7263
    %8412 = vmatmul.mubr.bf16.gmra.mxu0 %v7262
    %v8413 = vpop.f32.mrf.mxu0
    %v8414 = vadd.f32 %v8373, %v8413
    %v8415 = vpop.f32.mrf.mxu0
    %v8416 = vadd.f32 %v8375, %v8415
    %v8417 = vpop.f32.mrf.mxu0
    %v8418 = vpop.f32.mrf.mxu0
    %8419 = vdwg.mxu0
    %8420 = vmatprep.subr.bf16.mxu0 %v8088
    %8421 = vmatpush1.bf16.msra.mxu0 %v8087
    %8422 = vmatprep.subr.bf16.mxu0 %v8086
    %8423 = vmatpush1.bf16.msra.mxu0 %v8085
    %8424 = vmatprep.subr.bf16.mxu0 %v8084
    %8425 = vmatpush1.bf16.msra.mxu0 %v8083
    %8426 = vmatprep.subr.bf16.mxu0 %v8082
    %8427 = vmatpush1.bf16.msra.mxu0 %v8081
    %8428 = vmatprep.subr.bf16.mxu0 %v8080
    %8429 = vmatpush1.bf16.msra.mxu0 %v8079
    %8430 = vmatprep.subr.bf16.mxu0 %v8078
    %8431 = vmatpush1.bf16.msra.mxu0 %v8077
    %8432 = vmatprep.subr.bf16.mxu0 %v8076
    %8433 = vmatpush1.bf16.msra.mxu0 %v8075
    %8434 = vmatprep.subr.bf16.mxu0 %v8074
    %8435 = vmatpush1.bf16.msra.mxu0 %v8073
    %8436 = vmatprep.subr.bf16.mxu0 %v8104
    %8437 = vmatpush2.bf16.msra.mxu0 %v8103
    %8438 = vmatprep.subr.bf16.mxu0 %v8102
    %8439 = vmatpush2.bf16.msra.mxu0 %v8101
    %8440 = vmatprep.subr.bf16.mxu0 %v8100
    %8441 = vmatpush2.bf16.msra.mxu0 %v8099
    %8442 = vmatprep.subr.bf16.mxu0 %v8098
    %8443 = vmatpush2.bf16.msra.mxu0 %v8097
    %8444 = vmatprep.subr.bf16.mxu0 %v8096
    %8445 = vmatpush2.bf16.msra.mxu0 %v8095
    %8446 = vmatprep.subr.bf16.mxu0 %v8094
    %8447 = vmatpush2.bf16.msra.mxu0 %v8093
    %8448 = vmatprep.subr.bf16.mxu0 %v8092
    %8449 = vmatpush2.bf16.msra.mxu0 %v8091
    %8450 = vmatprep.subr.bf16.mxu0 %v8090
    %8451 = vmatpush2.bf16.msra.mxu0 %v8089
    %8452 = vmatprep.mubr.bf16.mxu0 %v7265
    %8453 = vmatmul.mubr.bf16.gmra.mxu0 %v7264
    %v8454 = vpop.f32.mrf.mxu0
    %v8455 = vadd.f32 %v8414, %v8454
    %v8456 = vpop.f32.mrf.mxu0
    %v8457 = vadd.f32 %v8416, %v8456
    %v8458 = vpop.f32.mrf.mxu0
    %v8459 = vpop.f32.mrf.mxu0
    %8460 = vdwg.mxu0
    %8461 = vmatprep.subr.bf16.mxu0 %v8120
    %8462 = vmatpush1.bf16.msra.mxu0 %v8119
    %8463 = vmatprep.subr.bf16.mxu0 %v8118
    %8464 = vmatpush1.bf16.msra.mxu0 %v8117
    %8465 = vmatprep.subr.bf16.mxu0 %v8116
    %8466 = vmatpush1.bf16.msra.mxu0 %v8115
    %8467 = vmatprep.subr.bf16.mxu0 %v8114
    %8468 = vmatpush1.bf16.msra.mxu0 %v8113
    %8469 = vmatprep.subr.bf16.mxu0 %v8112
    %8470 = vmatpush1.bf16.msra.mxu0 %v8111
    %8471 = vmatprep.subr.bf16.mxu0 %v8110
    %8472 = vmatpush1.bf16.msra.mxu0 %v8109
    %8473 = vmatprep.subr.bf16.mxu0 %v8108
    %8474 = vmatpush1.bf16.msra.mxu0 %v8107
    %8475 = vmatprep.subr.bf16.mxu0 %v8106
    %8476 = vmatpush1.bf16.msra.mxu0 %v8105
    %8477 = vmatprep.subr.bf16.mxu0 %v8136
    %8478 = vmatpush2.bf16.msra.mxu0 %v8135
    %8479 = vmatprep.subr.bf16.mxu0 %v8134
    %8480 = vmatpush2.bf16.msra.mxu0 %v8133
    %8481 = vmatprep.subr.bf16.mxu0 %v8132
    %8482 = vmatpush2.bf16.msra.mxu0 %v8131
    %8483 = vmatprep.subr.bf16.mxu0 %v8130
    %8484 = vmatpush2.bf16.msra.mxu0 %v8129
    %8485 = vmatprep.subr.bf16.mxu0 %v8128
    %8486 = vmatpush2.bf16.msra.mxu0 %v8127
    %8487 = vmatprep.subr.bf16.mxu0 %v8126
    %8488 = vmatpush2.bf16.msra.mxu0 %v8125
    %8489 = vmatprep.subr.bf16.mxu0 %v8124
    %8490 = vmatpush2.bf16.msra.mxu0 %v8123
    %8491 = vmatprep.subr.bf16.mxu0 %v8122
    %8492 = vmatpush2.bf16.msra.mxu0 %v8121
    %8493 = vmatprep.mubr.bf16.mxu0 %v7267
    %8494 = vmatmul.mubr.bf16.gmra.mxu0 %v7266
    %v8495 = vpop.f32.mrf.mxu0
    %v8496 = vadd.f32 %v8455, %v8495
    %v8497 = vpop.f32.mrf.mxu0
    %v8498 = vadd.f32 %v8457, %v8497
    %v8499 = vpop.f32.mrf.mxu0
    %v8500 = vpop.f32.mrf.mxu0
    %8501 = vdwg.mxu0
    %v8502 = vld [vmem:[%s14] sm:$0x3]
    %v8504 = vlaneseq
    %v8505 = vshrl.u32 %v8504, 7
    %v8506 = vsub.s32 0, %v8505
    %v8507 = vrot.slane %v8502, %v8506
    %v8508 = vlaneseq
    %v8509 = vshrl.u32 %v8508, 7
    %v8510 = vsub.s32 1, %v8509
    %v8511 = vrot.slane %v8502, %v8510
    %v8514 = vadd.f32 %v8496, %v8507
    %v8515 = vadd.f32 %v8498, %v8511
    %v8516 = vmax.f32 %v8514, 0.0
    %v8517 = vmax.f32 %v8515, 0.0
    %v8518 = vpack.c.bf16 %v8516, %v8516
    %v8519 = vpack.c.bf16 %v8517, %v8517
    %v8520 = vld [vmem:[%s15] sm:$0xf]
    %v8521 = vld [vmem:[%s15 + $0x4] sm:$0xf]
    %v8522 = vld [vmem:[%s15 + $0x8] sm:$0xf]
    %v8523 = vld [vmem:[%s15 + $0xc] sm:$0xf]
    %v8524 = vld [vmem:[%s15 + $0x10] sm:$0xf]
    %v8525 = vld [vmem:[%s15 + $0x14] sm:$0xf]
    %v8526 = vld [vmem:[%s15 + $0x18] sm:$0xf]
    %v8527 = vld [vmem:[%s15 + $0x1c] sm:$0xf]
    %v8528 = vld [vmem:[%s15 + $0x20] sm:$0xf]
    %v8529 = vld [vmem:[%s15 + $0x24] sm:$0xf]
    %v8530 = vld [vmem:[%s15 + $0x28] sm:$0xf]
    %v8531 = vld [vmem:[%s15 + $0x2c] sm:$0xf]
    %v8532 = vld [vmem:[%s15 + $0x30] sm:$0xf]
    %v8533 = vld [vmem:[%s15 + $0x34] sm:$0xf]
    %v8534 = vld [vmem:[%s15 + $0x38] sm:$0xf]
    %v8535 = vld [vmem:[%s15 + $0x3c] sm:$0xf]
    %v8536 = vld [vmem:[%s15 + $0x40] sm:$0xf]
    %v8537 = vld [vmem:[%s15 + $0x44] sm:$0xf]
    %v8538 = vld [vmem:[%s15 + $0x48] sm:$0xf]
    %v8539 = vld [vmem:[%s15 + $0x4c] sm:$0xf]
    %v8540 = vld [vmem:[%s15 + $0x50] sm:$0xf]
    %v8541 = vld [vmem:[%s15 + $0x54] sm:$0xf]
    %v8542 = vld [vmem:[%s15 + $0x58] sm:$0xf]
    %v8543 = vld [vmem:[%s15 + $0x5c] sm:$0xf]
    %v8544 = vld [vmem:[%s15 + $0x60] sm:$0xf]
    %v8545 = vld [vmem:[%s15 + $0x64] sm:$0xf]
    %v8546 = vld [vmem:[%s15 + $0x68] sm:$0xf]
    %v8547 = vld [vmem:[%s15 + $0x6c] sm:$0xf]
    %v8548 = vld [vmem:[%s15 + $0x70] sm:$0xf]
    %v8549 = vld [vmem:[%s15 + $0x74] sm:$0xf]
    %v8550 = vld [vmem:[%s15 + $0x78] sm:$0xf]
    %v8551 = vld [vmem:[%s15 + $0x7c] sm:$0xf]
    %v8552 = vld [vmem:[%s16] sm:$0x1]
    %v8554 = vlaneseq
    %v8555 = vshrl.u32 %v8554, 7
    %v8556 = vsub.s32 0, %v8555
    %v8557 = vrot.slane %v8552, %v8556
    %v8591 = vunpack.c.l.b16 %v8520
    %v8592 = vunpack.c.l.b16 %v8521
    %v8593 = vunpack.c.l.b16 %v8522
    %v8594 = vunpack.c.l.b16 %v8523
    %v8595 = vunpack.c.l.b16 %v8524
    %v8596 = vunpack.c.l.b16 %v8525
    %v8597 = vunpack.c.l.b16 %v8526
    %v8598 = vunpack.c.l.b16 %v8527
    %v8599 = vunpack.c.l.b16 %v8528
    %v8600 = vunpack.c.l.b16 %v8529
    %v8601 = vunpack.c.l.b16 %v8530
    %v8602 = vunpack.c.l.b16 %v8531
    %v8603 = vunpack.c.l.b16 %v8532
    %v8604 = vunpack.c.l.b16 %v8533
    %v8605 = vunpack.c.l.b16 %v8534
    %v8606 = vunpack.c.l.b16 %v8535
    %v8607 = vunpack.c.l.b16 %v8536
    %v8608 = vunpack.c.l.b16 %v8537
    %v8609 = vunpack.c.l.b16 %v8538
    %v8610 = vunpack.c.l.b16 %v8539
    %v8611 = vunpack.c.l.b16 %v8540
    %v8612 = vunpack.c.l.b16 %v8541
    %v8613 = vunpack.c.l.b16 %v8542
    %v8614 = vunpack.c.l.b16 %v8543
    %v8615 = vunpack.c.l.b16 %v8544
    %v8616 = vunpack.c.l.b16 %v8545
    %v8617 = vunpack.c.l.b16 %v8546
    %v8618 = vunpack.c.l.b16 %v8547
    %v8619 = vunpack.c.l.b16 %v8548
    %v8620 = vunpack.c.l.b16 %v8549
    %v8621 = vunpack.c.l.b16 %v8550
    %v8622 = vunpack.c.l.b16 %v8551
    %v8623 = vpack.c.b16 %v8592, %v8591
    %v8624 = vpack.c.b16 %v8594, %v8593
    %v8625 = vpack.c.b16 %v8596, %v8595
    %v8626 = vpack.c.b16 %v8598, %v8597
    %v8627 = vpack.c.b16 %v8600, %v8599
    %v8628 = vpack.c.b16 %v8602, %v8601
    %v8629 = vpack.c.b16 %v8604, %v8603
    %v8630 = vpack.c.b16 %v8606, %v8605
    %v8631 = vpack.c.b16 %v8608, %v8607
    %v8632 = vpack.c.b16 %v8610, %v8609
    %v8633 = vpack.c.b16 %v8612, %v8611
    %v8634 = vpack.c.b16 %v8614, %v8613
    %v8635 = vpack.c.b16 %v8616, %v8615
    %v8636 = vpack.c.b16 %v8618, %v8617
    %v8637 = vpack.c.b16 %v8620, %v8619
    %v8638 = vpack.c.b16 %v8622, %v8621
    %8655 = vmatprep.subr.bf16.mxu0 0
    %8656 = vmatpush1.bf16.msra.mxu0 %v8630
    %8657 = vmatprep.subr.bf16.mxu0 0
    %8658 = vmatpush1.bf16.msra.mxu0 %v8629
    %8659 = vmatprep.subr.bf16.mxu0 0
    %8660 = vmatpush1.bf16.msra.mxu0 %v8628
    %8661 = vmatprep.subr.bf16.mxu0 0
    %8662 = vmatpush1.bf16.msra.mxu0 %v8627
    %8663 = vmatprep.subr.bf16.mxu0 0
    %8664 = vmatpush1.bf16.msra.mxu0 %v8626
    %8665 = vmatprep.subr.bf16.mxu0 0
    %8666 = vmatpush1.bf16.msra.mxu0 %v8625
    %8667 = vmatprep.subr.bf16.mxu0 0
    %8668 = vmatpush1.bf16.msra.mxu0 %v8624
    %8669 = vmatprep.subr.bf16.mxu0 0
    %8670 = vmatpush1.bf16.msra.mxu0 %v8623
    %8671 = vmatprep.subr.bf16.mxu0 0
    %8672 = vmatpush2.bf16.msra.mxu0 %v8638
    %8673 = vmatprep.subr.bf16.mxu0 0
    %8674 = vmatpush2.bf16.msra.mxu0 %v8637
    %8675 = vmatprep.subr.bf16.mxu0 0
    %8676 = vmatpush2.bf16.msra.mxu0 %v8636
    %8677 = vmatprep.subr.bf16.mxu0 0
    %8678 = vmatpush2.bf16.msra.mxu0 %v8635
    %8679 = vmatprep.subr.bf16.mxu0 0
    %8680 = vmatpush2.bf16.msra.mxu0 %v8634
    %8681 = vmatprep.subr.bf16.mxu0 0
    %8682 = vmatpush2.bf16.msra.mxu0 %v8633
    %8683 = vmatprep.subr.bf16.mxu0 0
    %8684 = vmatpush2.bf16.msra.mxu0 %v8632
    %8685 = vmatprep.subr.bf16.mxu0 0
    %8686 = vmatpush2.bf16.msra.mxu0 %v8631
    %8687 = vmatprep.mubr.bf16.mxu0 %v8519
    %8688 = vmatmul.mubr.bf16.gmra.mxu0 %v8518
    %v8689 = vpop.f32.mrf.mxu0
    %v8690 = vadd.f32 %v8557, %v8689
    %v8691 = vpop.f32.mrf.mxu0
    %v8692 = vpop.f32.mrf.mxu0
    %v8693 = vpop.f32.mrf.mxu0
    %8694 = vdwg.mxu0
    %v8695 = vmax.f32 %v8690, 0.0
    %v8696 = vld [vmem:[%s17] sm:$0xff]
    %v8697 = vld [vmem:[%s17 + $0x8] sm:$0xff]
    %v8698 = vld [vmem:[%s17 + $0x10] sm:$0xff]
    %v8699 = vld [vmem:[%s17 + $0x18] sm:$0xff]
    %v8700 = vld [vmem:[%s17 + $0x20] sm:$0xff]
    %v8701 = vld [vmem:[%s17 + $0x28] sm:$0xff]
    %v8702 = vld [vmem:[%s17 + $0x30] sm:$0xff]
    %v8703 = vld [vmem:[%s17 + $0x38] sm:$0xff]
    %v8704 = vld [vmem:[%s17 + $0x40] sm:$0xff]
    %v8705 = vld [vmem:[%s17 + $0x48] sm:$0xff]
    %v8706 = vld [vmem:[%s17 + $0x50] sm:$0xff]
    %v8707 = vld [vmem:[%s17 + $0x58] sm:$0xff]
    %v8708 = vld [vmem:[%s17 + $0x60] sm:$0xff]
    %v8709 = vld [vmem:[%s17 + $0x68] sm:$0xff]
    %v8710 = vld [vmem:[%s17 + $0x70] sm:$0xff]
    %v8711 = vld [vmem:[%s17 + $0x78] sm:$0xff]
    %v8712 = vld [vmem:[%s18] sm:$0x1]
    %v8714 = vlaneseq
    %v8715 = vshrl.u32 %v8714, 7
    %v8716 = vsub.s32 0, %v8715
    %v8717 = vrot.slane %v8712, %v8716
    %8719 = vmatprep.subr.mxu0 0.0
    %8720 = vmatpush1.msra.mxu0 %v8711
    %8721 = vmatprep.subr.mxu0 0.0
    %8722 = vmatpush1.msra.mxu0 %v8710
    %8723 = vmatprep.subr.mxu0 0.0
    %8724 = vmatpush1.msra.mxu0 %v8709
    %8725 = vmatprep.subr.mxu0 0.0
    %8726 = vmatpush1.msra.mxu0 %v8708
    %8727 = vmatprep.subr.mxu0 0.0
    %8728 = vmatpush1.msra.mxu0 %v8707
    %8729 = vmatprep.subr.mxu0 0.0
    %8730 = vmatpush1.msra.mxu0 %v8706
    %8731 = vmatprep.subr.mxu0 0.0
    %8732 = vmatpush1.msra.mxu0 %v8705
    %8733 = vmatprep.subr.mxu0 0.0
    %8734 = vmatpush1.msra.mxu0 %v8704
    %8735 = vmatprep.subr.mxu0 0.0
    %8736 = vmatpush1.msra.mxu0 %v8703
    %8737 = vmatprep.subr.mxu0 0.0
    %8738 = vmatpush1.msra.mxu0 %v8702
    %8739 = vmatprep.subr.mxu0 0.0
    %8740 = vmatpush1.msra.mxu0 %v8701
    %8741 = vmatprep.subr.mxu0 0.0
    %8742 = vmatpush1.msra.mxu0 %v8700
    %8743 = vmatprep.subr.mxu0 0.0
    %8744 = vmatpush1.msra.mxu0 %v8699
    %8745 = vmatprep.subr.mxu0 0.0
    %8746 = vmatpush1.msra.mxu0 %v8698
    %8747 = vmatprep.subr.mxu0 0.0
    %8748 = vmatpush1.msra.mxu0 %v8697
    %8749 = vmatprep.subr.mxu0 0.0
    %8750 = vmatpush1.msra.mxu0 %v8696
    %8751 = vmatprep.subr.mxu0 0.0
    %8752 = vmatpush2.msra.mxu0 0.0
    %8753 = vmatprep.subr.mxu0 0.0
    %8754 = vmatpush2.msra.mxu0 0.0
    %8755 = vmatprep.subr.mxu0 0.0
    %8756 = vmatpush2.msra.mxu0 0.0
    %8757 = vmatprep.subr.mxu0 0.0
    %8758 = vmatpush2.msra.mxu0 0.0
    %8759 = vmatprep.subr.mxu0 0.0
    %8760 = vmatpush2.msra.mxu0 0.0
    %8761 = vmatprep.subr.mxu0 0.0
    %8762 = vmatpush2.msra.mxu0 0.0
    %8763 = vmatprep.subr.mxu0 0.0
    %8764 = vmatpush2.msra.mxu0 0.0
    %8765 = vmatprep.subr.mxu0 0.0
    %8766 = vmatpush2.msra.mxu0 0.0
    %8767 = vmatprep.subr.mxu0 0.0
    %8768 = vmatpush2.msra.mxu0 0.0
    %8769 = vmatprep.subr.mxu0 0.0
    %8770 = vmatpush2.msra.mxu0 0.0
    %8771 = vmatprep.subr.mxu0 0.0
    %8772 = vmatpush2.msra.mxu0 0.0
    %8773 = vmatprep.subr.mxu0 0.0
    %8774 = vmatpush2.msra.mxu0 0.0
    %8775 = vmatprep.subr.mxu0 0.0
    %8776 = vmatpush2.msra.mxu0 0.0
    %8777 = vmatprep.subr.mxu0 0.0
    %8778 = vmatpush2.msra.mxu0 0.0
    %8779 = vmatprep.subr.mxu0 0.0
    %8780 = vmatpush2.msra.mxu0 0.0
    %8781 = vmatprep.subr.mxu0 0.0
    %8782 = vmatpush2.msra.mxu0 0.0
    %8783 = vmatprep.mubr.f32.mxu0 0.0
    %8784 = vmatmul.mubr.f32.gmra.mxu0 %v8695
    %v8785 = vpop.f32.mrf.mxu0
    %v8786 = vadd.f32 %v8717, %v8785
    %v8787 = vpop.f32.mrf.mxu0
    %8788 = vdwg.mxu0
    %vm8789 = vcmask 17408
    %8790 = vst.msk [vmem:[#allocation2] sm:$0x3] %vm8789, %v8786
    // Predicated region
    $region78: #{enhanced_crop_classifier.1} parent=1 // pred_check
      _
    $region79: #{enhanced_crop_classifier.1} parent=1 // pred_check_branch
      %8792 = sbr.rel (0) target = $region81
    $region80: #{enhanced_crop_classifier.1} parent=1 // pred_region
      %s8794 = ssub.s32 32, 32
      %8795 = vsyncadd [#allocation3], %s8794
      %s8797 = sshll.u32 [#allocation2], 4
      %s8798 = int_to_ptr.vmem [resolvable:$true] %s8797
      %8800 = dma.vmem_to_hbm [thread:$0]  %s8798, 32, %s19, [#allocation3]
    $region81: #{enhanced_crop_classifier.1} parent=1 // pred_fallthru
      _
    // Predicated region
    $region82: #{enhanced_crop_classifier.1} parent=1 // pred_check
      _
    $region83: #{enhanced_crop_classifier.1} parent=1 // pred_check_branch
      %8802 = sbr.rel (0) target = $region85
    $region84: #{enhanced_crop_classifier.1} parent=1 // pred_region
      %8803 = dma.done [#allocation3], 32
    $region85: #{enhanced_crop_classifier.1} parent=1 // pred_fallthru
      _
    %8804 = vsyncpa [#allocation3], 1

</llo_original>
